<compile_context>
chip_gen: v7x
topology: tpu7x:2x2x1
jax: 0.10.0
libtpu: 0.0.40
codegen_flags: <defaults>
</compile_context>

<pallas_src>
import jax
import jax.numpy as jnp
from jax.experimental import pallas as pl
from jax.experimental.pallas import tpu as pltpu


def _round_up(n, m):
    return ((n + m - 1) // m) * m


def generator_kernel(x_ref,
                     w1_ref, b1_ref,
                     w2_ref, b2_ref,
                     w3_ref, b3_ref,
                     w4_ref, b4_ref,
                     out_ref):
    """One batch tile of the fused 4-layer MLP.

    Matmul inputs are bf16; accumulation is f32 on the MXU; the bias add,
    leaky_relu(0.2) and tanh run in f32 on the VPU/EUP.
    """
    def lrelu(h):
        return jnp.where(h > 0, h, 0.2 * h)

    h = lrelu(jnp.dot(x_ref[...], w1_ref[...],
                      preferred_element_type=jnp.float32) + b1_ref[...])
    h = lrelu(jnp.dot(h.astype(jnp.bfloat16), w2_ref[...],
                      preferred_element_type=jnp.float32) + b2_ref[...])
    h = lrelu(jnp.dot(h.astype(jnp.bfloat16), w3_ref[...],
                      preferred_element_type=jnp.float32) + b3_ref[...])
    h = jnp.dot(h.astype(jnp.bfloat16), w4_ref[...],
                preferred_element_type=jnp.float32) + b4_ref[...]
    out_ref[...] = jnp.tanh(h)


def generator_forward(x, params, *, block_b=128):
    """x: (B, g_input_dim) float32. params: dict of f32 weights (in,out) / biases (1,out)."""
    B, d_in = x.shape
    d_out = params["w4"].shape[1]

    # Lane-dense output: pad feature dim to a multiple of 128 (784 -> 896) so
    # the output stores are unmasked; slice the padding off afterwards.
    d_out_pad = _round_up(d_out, 128)
    w4 = params["w4"]
    b4 = params["b4"]
    if d_out_pad != d_out:
        w4 = jnp.pad(w4, ((0, 0), (0, d_out_pad - d_out)))
        b4 = jnp.pad(b4, ((0, 0), (0, d_out_pad - d_out)))

    # Pad the batch to a multiple of the batch tile.
    B_pad = _round_up(B, block_b)
    x_p = x if B_pad == B else jnp.pad(x, ((0, B_pad - B), (0, 0)))

    # bf16 matmul operands; biases stay f32 (added to the f32 accumulator).
    x_bf = x_p.astype(jnp.bfloat16)
    w1 = params["w1"].astype(jnp.bfloat16)
    w2 = params["w2"].astype(jnp.bfloat16)
    w3 = params["w3"].astype(jnp.bfloat16)
    w4 = w4.astype(jnp.bfloat16)
    b1 = params["b1"].astype(jnp.float32)
    b2 = params["b2"].astype(jnp.float32)
    b3 = params["b3"].astype(jnp.float32)
    b4 = b4.astype(jnp.float32)

    grid = (B_pad // block_b,)

    def batched(i):      # x / out: walk the batch dimension
        return (i, 0)

    def const(i):        # weights / biases: same block every step -> stay resident
        return (0, 0)

    def resident(arr):
        return pl.BlockSpec(arr.shape, const)

    out = pl.pallas_call(
        generator_kernel,
        out_shape=jax.ShapeDtypeStruct((B_pad, d_out_pad), jnp.float32),
        grid=grid,
        in_specs=[
            pl.BlockSpec((block_b, d_in), batched),
            resident(w1), resident(b1),
            resident(w2), resident(b2),
            resident(w3), resident(b3),
            resident(w4), resident(b4),
        ],
        out_specs=pl.BlockSpec((block_b, d_out_pad), batched),
        compiler_params=pltpu.CompilerParams(
            dimension_semantics=("parallel",),   # shard batch tiles across v7x's 2 TCs
            vmem_limit_bytes=32 << 20,           # actual footprint is only a few MiB
        ),
    )(x_bf, w1, b1, w2, b2, w3, b3, w4, b4)

    return out[:B, :d_out]


def init_params(key, g_input_dim, g_output_dim):
    """Deterministic synthetic parameters matching the module's layer shapes.

    Weights stored as (in, out); biases as (1, out). Kept in f32; the wrapper
    casts matmul operands to bf16."""
    dims = [(g_input_dim, 256), (256, 512), (512, 1024), (1024, g_output_dim)]
    params = {}
    keys = jax.random.split(key, 2 * len(dims))
    for i, (din, dout) in enumerate(dims):
        wk, bk = keys[2 * i], keys[2 * i + 1]
        scale = 1.0 / jnp.sqrt(jnp.float32(din))  # mimic PyTorch Linear init scale
        params[f"w{i+1}"] = (jax.random.uniform(wk, (din, dout), jnp.float32,
                                                minval=-1.0, maxval=1.0) * scale)
        params[f"b{i+1}"] = (jax.random.uniform(bk, (1, dout), jnp.float32,
                                                minval=-1.0, maxval=1.0) * scale)
    return params


def reference_forward(x, params):
    """Pure-JAX reference that mirrors the kernel's bf16-matmul / f32-accum path."""
    def lrelu(h):
        return jnp.where(h > 0, h, 0.2 * h)

    def dot(a, w):
        return jnp.dot(a.astype(jnp.bfloat16), w.astype(jnp.bfloat16),
                       preferred_element_type=jnp.float32)

    h = lrelu(dot(x, params["w1"]) + params["b1"])
    h = lrelu(dot(h, params["w2"]) + params["b2"])
    h = lrelu(dot(h, params["w3"]) + params["b3"])
    return jnp.tanh(dot(h, params["w4"]) + params["b4"])


if __name__ == "__main__":
    B = 256               # batch tiled at 128 rows/grid step -> 2 grid steps
    G_INPUT_DIM = 64      # latent z dim (alignment-friendly)
    G_OUTPUT_DIM = 784    # 28*28 MNIST output (padded to 896 inside the wrapper)

    key = jax.random.PRNGKey(0)
    k_x, k_p = jax.random.split(key)

    x = jax.random.normal(k_x, (B, G_INPUT_DIM), dtype=jnp.float32)
    params = init_params(k_p, G_INPUT_DIM, G_OUTPUT_DIM)

    out = generator_forward(x, params)
    out = jax.block_until_ready(out)

    ref = reference_forward(x, params)
    assert out.shape == (B, G_OUTPUT_DIM), out.shape
    assert jnp.allclose(out, ref, atol=2e-2, rtol=0.0), (
        "mismatch vs reference: max abs err = "
        f"{float(jnp.max(jnp.abs(out - ref)))}")

    print("KERNEL_OK")
</pallas_src>

<mosaic_0001>
module attributes {stable_mosaic.version = 11 : i64} {
  func.func @generator_kernel(%arg0: i32, %arg1: memref<128x64xbf16, #tpu.memory_space<vmem>>, %arg2: memref<64x256xbf16, #tpu.memory_space<vmem>>, %arg3: memref<1x256xf32, #tpu.memory_space<vmem>>, %arg4: memref<256x512xbf16, #tpu.memory_space<vmem>>, %arg5: memref<1x512xf32, #tpu.memory_space<vmem>>, %arg6: memref<512x1024xbf16, #tpu.memory_space<vmem>>, %arg7: memref<1x1024xf32, #tpu.memory_space<vmem>>, %arg8: memref<1024x896xbf16, #tpu.memory_space<vmem>>, %arg9: memref<1x896xf32, #tpu.memory_space<vmem>>, %arg10: memref<128x896xf32, #tpu.memory_space<vmem>>) attributes {dimension_semantics = [#tpu.dimension_semantics<parallel>], iteration_bounds = array<i64: 2>, scalar_prefetch = 0 : i64, scratch_operands = 0 : i64, tpu.core_type = #tpu.core_type<tc>, window_params = [{transform_indices = @transform_0, window_bounds = array<i64: 128, 64>}, {pipeline_mode = #tpu.pipeline_mode<synchronous>, transform_indices = @transform_1, window_bounds = array<i64: 64, 256>}, {pipeline_mode = #tpu.pipeline_mode<synchronous>, transform_indices = @transform_2, window_bounds = array<i64: 1, 256>}, {pipeline_mode = #tpu.pipeline_mode<synchronous>, transform_indices = @transform_3, window_bounds = array<i64: 256, 512>}, {pipeline_mode = #tpu.pipeline_mode<synchronous>, transform_indices = @transform_4, window_bounds = array<i64: 1, 512>}, {pipeline_mode = #tpu.pipeline_mode<synchronous>, transform_indices = @transform_5, window_bounds = array<i64: 512, 1024>}, {pipeline_mode = #tpu.pipeline_mode<synchronous>, transform_indices = @transform_6, window_bounds = array<i64: 1, 1024>}, {pipeline_mode = #tpu.pipeline_mode<synchronous>, transform_indices = @transform_7, window_bounds = array<i64: 1024, 896>}, {pipeline_mode = #tpu.pipeline_mode<synchronous>, transform_indices = @transform_8, window_bounds = array<i64: 1, 896>}, {transform_indices = @transform_9, window_bounds = array<i64: 128, 896>}]} {
    %c0 = arith.constant 0 : index
    %c0_0 = arith.constant 0 : index
    %0 = vector.load %arg1[%c0, %c0_0] : memref<128x64xbf16, #tpu.memory_space<vmem>>, vector<128x64xbf16>
    %c0_1 = arith.constant 0 : index
    %c0_2 = arith.constant 0 : index
    %1 = vector.load %arg2[%c0_1, %c0_2] : memref<64x256xbf16, #tpu.memory_space<vmem>>, vector<64x256xbf16>
    %cst = arith.constant dense<0.000000e+00> : vector<128x256xf32>
    %2 = tpu.matmul %0, %1, %cst {dimension_numbers = #tpu.dot_dimension_numbers<[1], [0], [0], [1], [0, 0, 1, 1], [], []>} : vector<128x64xbf16>, vector<64x256xbf16>, vector<128x256xf32> -> vector<128x256xf32>
    %c0_3 = arith.constant 0 : index
    %c0_4 = arith.constant 0 : index
    %3 = vector.load %arg3[%c0_3, %c0_4] : memref<1x256xf32, #tpu.memory_space<vmem>>, vector<1x256xf32>
    %4 = vector.broadcast %3 : vector<1x256xf32> to vector<128x256xf32>
    %5 = arith.addf %2, %4 : vector<128x256xf32>
    %cst_5 = arith.constant 0.000000e+00 : f32
    %6 = vector.broadcast %cst_5 : f32 to vector<128x256xf32>
    %7 = arith.cmpf ogt, %5, %6 : vector<128x256xf32>
    %cst_6 = arith.constant 2.000000e-01 : f32
    %8 = vector.broadcast %cst_6 : f32 to vector<128x256xf32>
    %9 = arith.mulf %8, %5 : vector<128x256xf32>
    %10 = arith.select %7, %5, %9 : vector<128x256xi1>, vector<128x256xf32>
    %11 = arith.truncf %10 : vector<128x256xf32> to vector<128x256xbf16>
    %c0_7 = arith.constant 0 : index
    %c0_8 = arith.constant 0 : index
    %12 = vector.load %arg4[%c0_7, %c0_8] : memref<256x512xbf16, #tpu.memory_space<vmem>>, vector<256x512xbf16>
    %cst_9 = arith.constant dense<0.000000e+00> : vector<128x512xf32>
    %13 = tpu.matmul %11, %12, %cst_9 {dimension_numbers = #tpu.dot_dimension_numbers<[1], [0], [0], [1], [0, 0, 1, 1], [], []>} : vector<128x256xbf16>, vector<256x512xbf16>, vector<128x512xf32> -> vector<128x512xf32>
    %c0_10 = arith.constant 0 : index
    %c0_11 = arith.constant 0 : index
    %14 = vector.load %arg5[%c0_10, %c0_11] : memref<1x512xf32, #tpu.memory_space<vmem>>, vector<1x512xf32>
    %15 = vector.broadcast %14 : vector<1x512xf32> to vector<128x512xf32>
    %16 = arith.addf %13, %15 : vector<128x512xf32>
    %cst_12 = arith.constant 0.000000e+00 : f32
    %17 = vector.broadcast %cst_12 : f32 to vector<128x512xf32>
    %18 = arith.cmpf ogt, %16, %17 : vector<128x512xf32>
    %cst_13 = arith.constant 2.000000e-01 : f32
    %19 = vector.broadcast %cst_13 : f32 to vector<128x512xf32>
    %20 = arith.mulf %19, %16 : vector<128x512xf32>
    %21 = arith.select %18, %16, %20 : vector<128x512xi1>, vector<128x512xf32>
    %22 = arith.truncf %21 : vector<128x512xf32> to vector<128x512xbf16>
    %c0_14 = arith.constant 0 : index
    %c0_15 = arith.constant 0 : index
    %23 = vector.load %arg6[%c0_14, %c0_15] : memref<512x1024xbf16, #tpu.memory_space<vmem>>, vector<512x1024xbf16>
    %cst_16 = arith.constant dense<0.000000e+00> : vector<128x1024xf32>
    %24 = tpu.matmul %22, %23, %cst_16 {dimension_numbers = #tpu.dot_dimension_numbers<[1], [0], [0], [1], [0, 0, 1, 1], [], []>} : vector<128x512xbf16>, vector<512x1024xbf16>, vector<128x1024xf32> -> vector<128x1024xf32>
    %c0_17 = arith.constant 0 : index
    %c0_18 = arith.constant 0 : index
    %25 = vector.load %arg7[%c0_17, %c0_18] : memref<1x1024xf32, #tpu.memory_space<vmem>>, vector<1x1024xf32>
    %26 = vector.broadcast %25 : vector<1x1024xf32> to vector<128x1024xf32>
    %27 = arith.addf %24, %26 : vector<128x1024xf32>
    %cst_19 = arith.constant 0.000000e+00 : f32
    %28 = vector.broadcast %cst_19 : f32 to vector<128x1024xf32>
    %29 = arith.cmpf ogt, %27, %28 : vector<128x1024xf32>
    %cst_20 = arith.constant 2.000000e-01 : f32
    %30 = vector.broadcast %cst_20 : f32 to vector<128x1024xf32>
    %31 = arith.mulf %30, %27 : vector<128x1024xf32>
    %32 = arith.select %29, %27, %31 : vector<128x1024xi1>, vector<128x1024xf32>
    %33 = arith.truncf %32 : vector<128x1024xf32> to vector<128x1024xbf16>
    %c0_21 = arith.constant 0 : index
    %c0_22 = arith.constant 0 : index
    %34 = vector.load %arg8[%c0_21, %c0_22] : memref<1024x896xbf16, #tpu.memory_space<vmem>>, vector<1024x896xbf16>
    %cst_23 = arith.constant dense<0.000000e+00> : vector<128x896xf32>
    %35 = tpu.matmul %33, %34, %cst_23 {dimension_numbers = #tpu.dot_dimension_numbers<[1], [0], [0], [1], [0, 0, 1, 1], [], []>} : vector<128x1024xbf16>, vector<1024x896xbf16>, vector<128x896xf32> -> vector<128x896xf32>
    %c0_24 = arith.constant 0 : index
    %c0_25 = arith.constant 0 : index
    %36 = vector.load %arg9[%c0_24, %c0_25] : memref<1x896xf32, #tpu.memory_space<vmem>>, vector<1x896xf32>
    %37 = vector.broadcast %36 : vector<1x896xf32> to vector<128x896xf32>
    %38 = arith.addf %35, %37 : vector<128x896xf32>
    %39 = math.tanh %38 : vector<128x896xf32>
    %c0_26 = arith.constant 0 : index
    %c0_27 = arith.constant 0 : index
    %40 = vector.load %arg10[%c0_26, %c0_27] : memref<128x896xf32, #tpu.memory_space<vmem>>, vector<128x896xf32>
    tpu.vector_store %arg10[%c0_26, %c0_27], %39 {strides = array<i32>} : memref<128x896xf32, #tpu.memory_space<vmem>>, vector<128x896xf32>,
    return
  }
  func.func @transform_0(%arg0: i32) -> (i32, i32) {
    %c0_i32 = arith.constant 0 : i32
    %c0_i32_0 = arith.constant 0 : i32
    return %arg0, %c0_i32 : i32, i32
  }
  func.func @transform_1(%arg0: i32) -> (i32, i32) {
    %c0_i32 = arith.constant 0 : i32
    %c0_i32_0 = arith.constant 0 : i32
    %c0_i32_1 = arith.constant 0 : i32
    return %c0_i32, %c0_i32_0 : i32, i32
  }
  func.func @transform_2(%arg0: i32) -> (i32, i32) {
    %c0_i32 = arith.constant 0 : i32
    %c0_i32_0 = arith.constant 0 : i32
    %c0_i32_1 = arith.constant 0 : i32
    return %c0_i32, %c0_i32_0 : i32, i32
  }
  func.func @transform_3(%arg0: i32) -> (i32, i32) {
    %c0_i32 = arith.constant 0 : i32
    %c0_i32_0 = arith.constant 0 : i32
    %c0_i32_1 = arith.constant 0 : i32
    return %c0_i32, %c0_i32_0 : i32, i32
  }
  func.func @transform_4(%arg0: i32) -> (i32, i32) {
    %c0_i32 = arith.constant 0 : i32
    %c0_i32_0 = arith.constant 0 : i32
    %c0_i32_1 = arith.constant 0 : i32
    return %c0_i32, %c0_i32_0 : i32, i32
  }
  func.func @transform_5(%arg0: i32) -> (i32, i32) {
    %c0_i32 = arith.constant 0 : i32
    %c0_i32_0 = arith.constant 0 : i32
    %c0_i32_1 = arith.constant 0 : i32
    return %c0_i32, %c0_i32_0 : i32, i32
  }
  func.func @transform_6(%arg0: i32) -> (i32, i32) {
    %c0_i32 = arith.constant 0 : i32
    %c0_i32_0 = arith.constant 0 : i32
    %c0_i32_1 = arith.constant 0 : i32
    return %c0_i32, %c0_i32_0 : i32, i32
  }
  func.func @transform_7(%arg0: i32) -> (i32, i32) {
    %c0_i32 = arith.constant 0 : i32
    %c0_i32_0 = arith.constant 0 : i32
    %c0_i32_1 = arith.constant 0 : i32
    return %c0_i32, %c0_i32_0 : i32, i32
  }
  func.func @transform_8(%arg0: i32) -> (i32, i32) {
    %c0_i32 = arith.constant 0 : i32
    %c0_i32_0 = arith.constant 0 : i32
    %c0_i32_1 = arith.constant 0 : i32
    return %c0_i32, %c0_i32_0 : i32, i32
  }
  func.func @transform_9(%arg0: i32) -> (i32, i32) {
    %c0_i32 = arith.constant 0 : i32
    %c0_i32_0 = arith.constant 0 : i32
    return %arg0, %c0_i32 : i32, i32
  }
}

</mosaic_0001>

<llo_original>
// kernel: tpu_custom_call.1
$region0: #{tpu_custom_call.1}
  #allocation0 [shape = 'u32[]', space=smem, size = 0x4, offset = 0x4, fixed_abs, tag = 'smem constant byte address 0x4 - core index']
  #allocation1 [shape = 'u32[144,128]{1,0:T(1,128)}', space=vmem, size = 0x12000, scoped, tag = 'internal scratch']
  %s0 = inlined_call_operand.vmem [shape: bf16[256,64], index: 0, kind: input, shape index: {}]
  %s1 = inlined_call_operand.hbm [shape: bf16[64,256], index: 1, kind: input, shape index: {}]
  %s2 = inlined_call_operand.hbm [shape: f32[1,256], index: 2, kind: input, shape index: {}]
  %s3 = inlined_call_operand.hbm [shape: bf16[256,512], index: 3, kind: input, shape index: {}]
  %s4 = inlined_call_operand.hbm [shape: f32[1,512], index: 4, kind: input, shape index: {}]
  %s5 = inlined_call_operand.hbm [shape: bf16[512,1024], index: 5, kind: input, shape index: {}]
  %s6 = inlined_call_operand.hbm [shape: f32[1,1024], index: 6, kind: input, shape index: {}]
  %s7 = inlined_call_operand.hbm [shape: bf16[1024,896], index: 7, kind: input, shape index: {}]
  %s8 = inlined_call_operand.hbm [shape: f32[1,896], index: 8, kind: input, shape index: {}]
  %s9 = inlined_call_operand.hbm [shape: f32[256,896], index: 9, kind: output, shape index: {}]
  %s10 = sld [smem:[#allocation0]]
  $region101: #{tpu_custom_call.1} parent=0
    _
  %s12 = ssub.s32 1, %s10
  %s13 = scalar_select 0, %s12, %s10
  $region1: #{tpu_custom_call.1} parent=0
    #allocation2 [shape = 'u8[32768]{0}', space=vmem, size = 0x8000, scoped, tag = 'input window, operand 1, single buffered']
    #allocation3 [shape = 's32[2]{0}', space=sflag, size = 0x8, scoped, tag = 'scoped memory for tpu_custom_call.1']
    #allocation4 [shape = 's32[2]{0}', space=sflag, size = 0x8, scoped, tag = 'scoped memory for tpu_custom_call.1']
    #allocation5 [shape = 'u8[1024]{0}', space=vmem, size = 0x400, scoped, tag = 'input window, operand 2, single buffered']
    #allocation6 [shape = 's32[1]{0}', space=sflag, size = 0x4, scoped, tag = 'scoped memory for tpu_custom_call.1']
    #allocation7 [shape = 'u8[262144]{0}', space=vmem, size = 0x40000, scoped, tag = 'input window, operand 3, single buffered']
    #allocation8 [shape = 'u8[2048]{0}', space=vmem, size = 0x800, scoped, tag = 'input window, operand 4, single buffered']
    #allocation9 [shape = 's32[1]{0}', space=sflag, size = 0x4, scoped, tag = 'scoped memory for tpu_custom_call.1']
    #allocation10 [shape = 'u8[1048576]{0}', space=vmem, size = 0x100000, scoped, tag = 'input window, operand 5, single buffered']
    #allocation11 [shape = 'u8[4096]{0}', space=vmem, size = 0x1000, scoped, tag = 'input window, operand 6, single buffered']
    #allocation12 [shape = 's32[1]{0}', space=sflag, size = 0x4, scoped, tag = 'scoped memory for tpu_custom_call.1']
    #allocation13 [shape = 'u8[1835008]{0}', space=vmem, size = 0x1c0000, scoped, tag = 'input window, operand 7, single buffered']
    #allocation14 [shape = 'u8[3584]{0}', space=vmem, size = 0x1000, scoped, tag = 'input window, operand 8, single buffered']
    #allocation15 [shape = 's32[1]{0}', space=sflag, size = 0x4, scoped, tag = 'scoped memory for tpu_custom_call.1']
    #allocation16 [shape = 'u8[917504]{0}', space=vmem, size = 0xe0000, scoped, tag = 'output window, operand 0']
    %14 = vsyncpa [#allocation3], 0
    %15 = vsyncpa [#allocation6], 0
    %16 = vsyncpa [#allocation9], 0
    %17 = vsyncpa [#allocation12], 0
    %18 = vsyncpa [#allocation15], 0
    %19 = vsyncpa [#allocation4], 0
    %s20 = scalar_lea.sflag [#allocation4], 1
    %21 = vsyncpa %s20, 0
    loop: start=0, step=1, limit=4
    $region2: #{tpu_custom_call.1} parent=1 // loop_pre_header
      _
    $region3: #{tpu_custom_call.1} parent=1 // loop_header
      %s23 = sphi 0, %s27
      %p24 = scmp.ge.s32.totalorder %s23, 4
      %s33 = sphi 0, %s35
      %s36 = sphi 0, %s33
      %s37 = sphi 0, %s36
      %s53 = sphi 0, %s37
      %s57 = sphi 0, %s57
      %s59 = sphi 0, %s57
      %s60 = sphi 0, %s59
      %s74 = sphi 0, %s60
      %s78 = sphi 0, %s78
      %s80 = sphi 0, %s78
      %s81 = sphi 0, %s80
      %s95 = sphi 0, %s81
      %s99 = sphi 0, %s99
      %s101 = sphi 0, %s99
      %s102 = sphi 0, %s101
      %s116 = sphi 0, %s102
      %s120 = sphi 0, %s120
      %s122 = sphi 0, %s120
      %s123 = sphi 0, %s122
      %s137 = sphi 0, %s123
      %s141 = sphi 0, %s141
      %s143 = sphi 0, %s141
      %s144 = sphi 0, %s143
      %s158 = sphi 0, %s144
      %s162 = sphi 0, %s162
      %s164 = sphi 0, %s162
      %s165 = sphi 0, %s164
      %s179 = sphi 0, %s165
      %s183 = sphi 0, %s183
      %s185 = sphi 0, %s183
      %s186 = sphi 0, %s185
      %s200 = sphi 0, %s186
      %s204 = sphi 0, %s204
      %s206 = sphi 0, %s204
      %s207 = sphi 0, %s206
      %s221 = sphi 0, %s207
      %s227 = sphi 0, %s229
      %s230 = sphi 0, %s227
      %s231 = sphi 0, %s230
      %s247 = sphi 0, %s231
    $region4: #{tpu_custom_call.1} parent=1 // loop_header_branch
      %26 = sbr.rel (%p24) target = $region8
    $region5: #{tpu_custom_call.1} parent=1 // loop_body
      %s28 = ssub.s32 %s23, 1
      %s29 = ssub.s32 %s23, 2
      %s30 = sadd.s32 %s23, 1
      %s31 = ssub.s32 %s23, %s30
      %p32 = scmp.eq.s32.totalorder %s31, 0
      %s34 = sadd.s32 %s33, 1
      %s35 = scalar_select %p32, %s33, %s34
      %p38 = pneg %p32
      %p39 = scmp.eq.s32.totalorder %s23, 1
      %p40 = por %p38, %p39
      %p41 = scmp.ne.s32.totalorder %s33, %s36
      %p42 = scmp.eq.s32.totalorder %s23, 0
      %p43 = por %p41, %p42
      %p44 = scmp.ne.s32.totalorder %s33, %s36
      %p45 = scmp.eq.s32.totalorder %s28, 1
      %p46 = por %p44, %p45
      %p47 = scmp.ne.s32.totalorder %s36, %s37
      %p48 = scmp.eq.s32.totalorder %s28, 0
      %p49 = por %p47, %p48
      %p50 = scmp.ne.s32.totalorder %s36, %s37
      %p51 = scmp.eq.s32.totalorder %s29, 1
      %p52 = por %p50, %p51
      %p54 = scmp.ne.s32.totalorder %s37, %s53
      %p55 = scmp.eq.s32.totalorder %s29, 0
      %p56 = por %p54, %p55
      %s58 = sadd.s32 %s57, 1
      %p61 = scmp.eq.s32.totalorder %s23, 1
      %p62 = scmp.ne.s32.totalorder %s57, %s59
      %p63 = scmp.eq.s32.totalorder %s23, 0
      %p64 = por %p62, %p63
      %p65 = scmp.ne.s32.totalorder %s57, %s59
      %p66 = scmp.eq.s32.totalorder %s28, 1
      %p67 = por %p65, %p66
      %p68 = scmp.ne.s32.totalorder %s59, %s60
      %p69 = scmp.eq.s32.totalorder %s28, 0
      %p70 = por %p68, %p69
      %p71 = scmp.ne.s32.totalorder %s59, %s60
      %p72 = scmp.eq.s32.totalorder %s29, 1
      %p73 = por %p71, %p72
      %p75 = scmp.ne.s32.totalorder %s60, %s74
      %p76 = scmp.eq.s32.totalorder %s29, 0
      %p77 = por %p75, %p76
      %s79 = sadd.s32 %s78, 1
      %p82 = scmp.eq.s32.totalorder %s23, 1
      %p83 = scmp.ne.s32.totalorder %s78, %s80
      %p84 = scmp.eq.s32.totalorder %s23, 0
      %p85 = por %p83, %p84
      %p86 = scmp.ne.s32.totalorder %s78, %s80
      %p87 = scmp.eq.s32.totalorder %s28, 1
      %p88 = por %p86, %p87
      %p89 = scmp.ne.s32.totalorder %s80, %s81
      %p90 = scmp.eq.s32.totalorder %s28, 0
      %p91 = por %p89, %p90
      %p92 = scmp.ne.s32.totalorder %s80, %s81
      %p93 = scmp.eq.s32.totalorder %s29, 1
      %p94 = por %p92, %p93
      %p96 = scmp.ne.s32.totalorder %s81, %s95
      %p97 = scmp.eq.s32.totalorder %s29, 0
      %p98 = por %p96, %p97
      %s100 = sadd.s32 %s99, 1
      %p103 = scmp.eq.s32.totalorder %s23, 1
      %p104 = scmp.ne.s32.totalorder %s99, %s101
      %p105 = scmp.eq.s32.totalorder %s23, 0
      %p106 = por %p104, %p105
      %p107 = scmp.ne.s32.totalorder %s99, %s101
      %p108 = scmp.eq.s32.totalorder %s28, 1
      %p109 = por %p107, %p108
      %p110 = scmp.ne.s32.totalorder %s101, %s102
      %p111 = scmp.eq.s32.totalorder %s28, 0
      %p112 = por %p110, %p111
      %p113 = scmp.ne.s32.totalorder %s101, %s102
      %p114 = scmp.eq.s32.totalorder %s29, 1
      %p115 = por %p113, %p114
      %p117 = scmp.ne.s32.totalorder %s102, %s116
      %p118 = scmp.eq.s32.totalorder %s29, 0
      %p119 = por %p117, %p118
      %s121 = sadd.s32 %s120, 1
      %p124 = scmp.eq.s32.totalorder %s23, 1
      %p125 = scmp.ne.s32.totalorder %s120, %s122
      %p126 = scmp.eq.s32.totalorder %s23, 0
      %p127 = por %p125, %p126
      %p128 = scmp.ne.s32.totalorder %s120, %s122
      %p129 = scmp.eq.s32.totalorder %s28, 1
      %p130 = por %p128, %p129
      %p131 = scmp.ne.s32.totalorder %s122, %s123
      %p132 = scmp.eq.s32.totalorder %s28, 0
      %p133 = por %p131, %p132
      %p134 = scmp.ne.s32.totalorder %s122, %s123
      %p135 = scmp.eq.s32.totalorder %s29, 1
      %p136 = por %p134, %p135
      %p138 = scmp.ne.s32.totalorder %s123, %s137
      %p139 = scmp.eq.s32.totalorder %s29, 0
      %p140 = por %p138, %p139
      %s142 = sadd.s32 %s141, 1
      %p145 = scmp.eq.s32.totalorder %s23, 1
      %p146 = scmp.ne.s32.totalorder %s141, %s143
      %p147 = scmp.eq.s32.totalorder %s23, 0
      %p148 = por %p146, %p147
      %p149 = scmp.ne.s32.totalorder %s141, %s143
      %p150 = scmp.eq.s32.totalorder %s28, 1
      %p151 = por %p149, %p150
      %p152 = scmp.ne.s32.totalorder %s143, %s144
      %p153 = scmp.eq.s32.totalorder %s28, 0
      %p154 = por %p152, %p153
      %p155 = scmp.ne.s32.totalorder %s143, %s144
      %p156 = scmp.eq.s32.totalorder %s29, 1
      %p157 = por %p155, %p156
      %p159 = scmp.ne.s32.totalorder %s144, %s158
      %p160 = scmp.eq.s32.totalorder %s29, 0
      %p161 = por %p159, %p160
      %s163 = sadd.s32 %s162, 1
      %p166 = scmp.eq.s32.totalorder %s23, 1
      %p167 = scmp.ne.s32.totalorder %s162, %s164
      %p168 = scmp.eq.s32.totalorder %s23, 0
      %p169 = por %p167, %p168
      %p170 = scmp.ne.s32.totalorder %s162, %s164
      %p171 = scmp.eq.s32.totalorder %s28, 1
      %p172 = por %p170, %p171
      %p173 = scmp.ne.s32.totalorder %s164, %s165
      %p174 = scmp.eq.s32.totalorder %s28, 0
      %p175 = por %p173, %p174
      %p176 = scmp.ne.s32.totalorder %s164, %s165
      %p177 = scmp.eq.s32.totalorder %s29, 1
      %p178 = por %p176, %p177
      %p180 = scmp.ne.s32.totalorder %s165, %s179
      %p181 = scmp.eq.s32.totalorder %s29, 0
      %p182 = por %p180, %p181
      %s184 = sadd.s32 %s183, 1
      %p187 = scmp.eq.s32.totalorder %s23, 1
      %p188 = scmp.ne.s32.totalorder %s183, %s185
      %p189 = scmp.eq.s32.totalorder %s23, 0
      %p190 = por %p188, %p189
      %p191 = scmp.ne.s32.totalorder %s183, %s185
      %p192 = scmp.eq.s32.totalorder %s28, 1
      %p193 = por %p191, %p192
      %p194 = scmp.ne.s32.totalorder %s185, %s186
      %p195 = scmp.eq.s32.totalorder %s28, 0
      %p196 = por %p194, %p195
      %p197 = scmp.ne.s32.totalorder %s185, %s186
      %p198 = scmp.eq.s32.totalorder %s29, 1
      %p199 = por %p197, %p198
      %p201 = scmp.ne.s32.totalorder %s186, %s200
      %p202 = scmp.eq.s32.totalorder %s29, 0
      %p203 = por %p201, %p202
      %s205 = sadd.s32 %s204, 1
      %p208 = scmp.eq.s32.totalorder %s23, 1
      %p209 = scmp.ne.s32.totalorder %s204, %s206
      %p210 = scmp.eq.s32.totalorder %s23, 0
      %p211 = por %p209, %p210
      %p212 = scmp.ne.s32.totalorder %s204, %s206
      %p213 = scmp.eq.s32.totalorder %s28, 1
      %p214 = por %p212, %p213
      %p215 = scmp.ne.s32.totalorder %s206, %s207
      %p216 = scmp.eq.s32.totalorder %s28, 0
      %p217 = por %p215, %p216
      %p218 = scmp.ne.s32.totalorder %s206, %s207
      %p219 = scmp.eq.s32.totalorder %s29, 1
      %p220 = por %p218, %p219
      %p222 = scmp.ne.s32.totalorder %s207, %s221
      %p223 = scmp.eq.s32.totalorder %s29, 0
      %p224 = por %p222, %p223
      %s225 = ssub.s32 %s23, %s30
      %p226 = scmp.eq.s32.totalorder %s225, 0
      %s228 = sadd.s32 %s227, 1
      %s229 = scalar_select %p226, %s227, %s228
      %p232 = pneg %p226
      %p233 = scmp.eq.s32.totalorder %s23, 1
      %p234 = por %p232, %p233
      %p235 = scmp.ne.s32.totalorder %s227, %s230
      %p236 = scmp.eq.s32.totalorder %s23, 0
      %p237 = por %p235, %p236
      %p238 = scmp.ne.s32.totalorder %s227, %s230
      %p239 = scmp.eq.s32.totalorder %s28, 1
      %p240 = por %p238, %p239
      %p241 = scmp.ne.s32.totalorder %s230, %s231
      %p242 = scmp.eq.s32.totalorder %s28, 0
      %p243 = por %p241, %p242
      %p244 = scmp.ne.s32.totalorder %s230, %s231
      %p245 = scmp.eq.s32.totalorder %s29, 1
      %p246 = por %p244, %p245
      %p248 = scmp.ne.s32.totalorder %s231, %s247
      %p249 = scmp.eq.s32.totalorder %s29, 0
      %p250 = por %p248, %p249
      %p251 = scmp.le.s32.totalorder 1, %s23
      %p252 = scmp.lt.s32.totalorder %s23, 3
      %p253 = pnand %p251, %p252
      %p254 = pneg %p253
      // Predicated region
      $region9: #{tpu_custom_call.1} parent=5 // pred_check
        _
      $region10: #{tpu_custom_call.1} parent=5 // pred_check_branch
        %256 = sbr.rel (%p253) target = $region12
      $region11: #{tpu_custom_call.1} parent=5 // pred_region
        %s257 = ssub.s32 %s23, 1
        // Predicated region
        $region13: #{tpu_custom_call.1} parent=11 // pred_check
          %p258 = pneg %p70
        $region14: #{tpu_custom_call.1} parent=11 // pred_check_branch
          %260 = sbr.rel (%p258) target = $region16
        $region15: #{tpu_custom_call.1} parent=11 // pred_region
          %s262 = ssub.s32 1024, 1024
          %263 = vsyncadd [#allocation3], %s262
          %s264 = sshll.u32 [#allocation2], 4
          %s265 = int_to_ptr.vmem [resolvable:$true] %s264
          %270 = dma.hbm_to_vmem [thread:$0]  %s1, 1024, %s265, [#allocation3], 128, 128, 8
        $region16: #{tpu_custom_call.1} parent=11 // pred_fallthru
          _
        // Predicated region
        $region17: #{tpu_custom_call.1} parent=11 // pred_check
          %p271 = pneg %p91
        $region18: #{tpu_custom_call.1} parent=11 // pred_check_branch
          %273 = sbr.rel (%p271) target = $region20
        $region19: #{tpu_custom_call.1} parent=11 // pred_region
          %s275 = ssub.s32 32, 32
          %276 = vsyncadd [#allocation6], %s275
          %s278 = sshll.u32 [#allocation5], 4
          %s279 = int_to_ptr.vmem [resolvable:$true] %s278
          %281 = dma.hbm_to_vmem [thread:$0]  %s2, 32, %s279, [#allocation6]
        $region20: #{tpu_custom_call.1} parent=11 // pred_fallthru
          _
        // Predicated region
        $region21: #{tpu_custom_call.1} parent=11 // pred_check
          %p282 = pneg %p112
        $region22: #{tpu_custom_call.1} parent=11 // pred_check_branch
          %284 = sbr.rel (%p282) target = $region24
        $region23: #{tpu_custom_call.1} parent=11 // pred_region
          %s286 = ssub.s32 8192, 8192
          %287 = vsyncadd [#allocation6], %s286
          %s288 = sshll.u32 [#allocation7], 4
          %s289 = int_to_ptr.vmem [resolvable:$true] %s288
          %294 = dma.hbm_to_vmem [thread:$0]  %s3, 8192, %s289, [#allocation6], 256, 256, 16
        $region24: #{tpu_custom_call.1} parent=11 // pred_fallthru
          _
        // Predicated region
        $region25: #{tpu_custom_call.1} parent=11 // pred_check
          %p295 = pneg %p133
        $region26: #{tpu_custom_call.1} parent=11 // pred_check_branch
          %297 = sbr.rel (%p295) target = $region28
        $region27: #{tpu_custom_call.1} parent=11 // pred_region
          %s299 = ssub.s32 64, 64
          %300 = vsyncadd [#allocation9], %s299
          %s302 = sshll.u32 [#allocation8], 4
          %s303 = int_to_ptr.vmem [resolvable:$true] %s302
          %305 = dma.hbm_to_vmem [thread:$0]  %s4, 64, %s303, [#allocation9]
        $region28: #{tpu_custom_call.1} parent=11 // pred_fallthru
          _
        // Predicated region
        $region29: #{tpu_custom_call.1} parent=11 // pred_check
          %p306 = pneg %p154
        $region30: #{tpu_custom_call.1} parent=11 // pred_check_branch
          %308 = sbr.rel (%p306) target = $region32
        $region31: #{tpu_custom_call.1} parent=11 // pred_region
          %s310 = ssub.s32 32768, 32768
          %311 = vsyncadd [#allocation9], %s310
          %s312 = sshll.u32 [#allocation10], 4
          %s313 = int_to_ptr.vmem [resolvable:$true] %s312
          %318 = dma.hbm_to_vmem [thread:$0]  %s5, 32768, %s313, [#allocation9], 512, 512, 32
        $region32: #{tpu_custom_call.1} parent=11 // pred_fallthru
          _
        // Predicated region
        $region33: #{tpu_custom_call.1} parent=11 // pred_check
          %p319 = pneg %p175
        $region34: #{tpu_custom_call.1} parent=11 // pred_check_branch
          %321 = sbr.rel (%p319) target = $region36
        $region35: #{tpu_custom_call.1} parent=11 // pred_region
          %s323 = ssub.s32 128, 128
          %324 = vsyncadd [#allocation12], %s323
          %s326 = sshll.u32 [#allocation11], 4
          %s327 = int_to_ptr.vmem [resolvable:$true] %s326
          %329 = dma.hbm_to_vmem [thread:$0]  %s6, 128, %s327, [#allocation12]
        $region36: #{tpu_custom_call.1} parent=11 // pred_fallthru
          _
        // Predicated region
        $region37: #{tpu_custom_call.1} parent=11 // pred_check
          %p330 = pneg %p196
        $region38: #{tpu_custom_call.1} parent=11 // pred_check_branch
          %332 = sbr.rel (%p330) target = $region40
        $region39: #{tpu_custom_call.1} parent=11 // pred_region
          %s334 = ssub.s32 57344, 57344
          %335 = vsyncadd [#allocation12], %s334
          %s336 = sshll.u32 [#allocation13], 4
          %s337 = int_to_ptr.vmem [resolvable:$true] %s336
          %342 = dma.hbm_to_vmem [thread:$0]  %s7, 57344, %s337, [#allocation12], 448, 448, 28
        $region40: #{tpu_custom_call.1} parent=11 // pred_fallthru
          _
        // Predicated region
        $region41: #{tpu_custom_call.1} parent=11 // pred_check
          %p343 = pneg %p217
        $region42: #{tpu_custom_call.1} parent=11 // pred_check_branch
          %345 = sbr.rel (%p343) target = $region44
        $region43: #{tpu_custom_call.1} parent=11 // pred_region
          %s347 = ssub.s32 112, 112
          %348 = vsyncadd [#allocation15], %s347
          %s350 = sshll.u32 [#allocation14], 4
          %s351 = int_to_ptr.vmem [resolvable:$true] %s350
          %353 = dma.hbm_to_vmem [thread:$0]  %s8, 112, %s351, [#allocation15]
        $region44: #{tpu_custom_call.1} parent=11 // pred_fallthru
          _
      $region12: #{tpu_custom_call.1} parent=5 // pred_fallthru
        _
      %p354 = scmp.lt.s32.totalorder %s23, 2
      // Predicated region
      $region45: #{tpu_custom_call.1} parent=5 // pred_check
        %p355 = pneg %p354
      $region46: #{tpu_custom_call.1} parent=5 // pred_check_branch
        %357 = sbr.rel (%p355) target = $region48
      $region47: #{tpu_custom_call.1} parent=5 // pred_region
        // Predicated region
        $region49: #{tpu_custom_call.1} parent=47 // pred_check
          %p358 = pneg %p43
        $region50: #{tpu_custom_call.1} parent=47 // pred_check_branch
          %360 = sbr.rel (%p358) target = $region52
        $region51: #{tpu_custom_call.1} parent=47 // pred_region
          %s361 = smul.u32 16, %s23
          %p362 = scmp.lt.s32.totalorder %s361, 31
          %s363 = scalar_select %p362, %s361, 31
          %s364 = smul.addr %s363, 4
          %s365 = scalar_lea.vmem %s0, %s364
          %s366 = smul.u32 16, %s23
        $region52: #{tpu_custom_call.1} parent=47 // pred_fallthru
          _
      $region48: #{tpu_custom_call.1} parent=5 // pred_fallthru
        _
      %p367 = scmp.le.s32.totalorder 1, %s23
      %p368 = scmp.lt.s32.totalorder %s23, 3
      %p369 = pnand %p367, %p368
      %p370 = pneg %p369
      // Predicated region
      $region53: #{tpu_custom_call.1} parent=5 // pred_check
        _
      $region54: #{tpu_custom_call.1} parent=5 // pred_check_branch
        %372 = sbr.rel (%p369) target = $region56
      $region55: #{tpu_custom_call.1} parent=5 // pred_region
        %s373 = ssub.s32 %s23, 1
        // Predicated region
        $region57: #{tpu_custom_call.1} parent=55 // pred_check
          %p374 = pneg %p70
        $region58: #{tpu_custom_call.1} parent=55 // pred_check_branch
          %376 = sbr.rel (%p374) target = $region60
        $region59: #{tpu_custom_call.1} parent=55 // pred_region
          %377 = dma.done [#allocation3], 1024
        $region60: #{tpu_custom_call.1} parent=55 // pred_fallthru
          _
        // Predicated region
        $region61: #{tpu_custom_call.1} parent=55 // pred_check
          %p378 = pneg %p91
        $region62: #{tpu_custom_call.1} parent=55 // pred_check_branch
          %380 = sbr.rel (%p378) target = $region64
        $region63: #{tpu_custom_call.1} parent=55 // pred_region
          %381 = dma.done [#allocation6], 32
        $region64: #{tpu_custom_call.1} parent=55 // pred_fallthru
          _
        // Predicated region
        $region65: #{tpu_custom_call.1} parent=55 // pred_check
          %p382 = pneg %p112
        $region66: #{tpu_custom_call.1} parent=55 // pred_check_branch
          %384 = sbr.rel (%p382) target = $region68
        $region67: #{tpu_custom_call.1} parent=55 // pred_region
          %385 = dma.done [#allocation6], 8192
        $region68: #{tpu_custom_call.1} parent=55 // pred_fallthru
          _
        // Predicated region
        $region69: #{tpu_custom_call.1} parent=55 // pred_check
          %p386 = pneg %p133
        $region70: #{tpu_custom_call.1} parent=55 // pred_check_branch
          %388 = sbr.rel (%p386) target = $region72
        $region71: #{tpu_custom_call.1} parent=55 // pred_region
          %389 = dma.done [#allocation9], 64
        $region72: #{tpu_custom_call.1} parent=55 // pred_fallthru
          _
        // Predicated region
        $region73: #{tpu_custom_call.1} parent=55 // pred_check
          %p390 = pneg %p154
        $region74: #{tpu_custom_call.1} parent=55 // pred_check_branch
          %392 = sbr.rel (%p390) target = $region76
        $region75: #{tpu_custom_call.1} parent=55 // pred_region
          %393 = dma.done [#allocation9], 32768
        $region76: #{tpu_custom_call.1} parent=55 // pred_fallthru
          _
        // Predicated region
        $region77: #{tpu_custom_call.1} parent=55 // pred_check
          %p394 = pneg %p175
        $region78: #{tpu_custom_call.1} parent=55 // pred_check_branch
          %396 = sbr.rel (%p394) target = $region80
        $region79: #{tpu_custom_call.1} parent=55 // pred_region
          %397 = dma.done [#allocation12], 128
        $region80: #{tpu_custom_call.1} parent=55 // pred_fallthru
          _
        // Predicated region
        $region81: #{tpu_custom_call.1} parent=55 // pred_check
          %p398 = pneg %p196
        $region82: #{tpu_custom_call.1} parent=55 // pred_check_branch
          %400 = sbr.rel (%p398) target = $region84
        $region83: #{tpu_custom_call.1} parent=55 // pred_region
          %401 = dma.done [#allocation12], 57344
        $region84: #{tpu_custom_call.1} parent=55 // pred_fallthru
          _
        // Predicated region
        $region85: #{tpu_custom_call.1} parent=55 // pred_check
          %p402 = pneg %p217
        $region86: #{tpu_custom_call.1} parent=55 // pred_check_branch
          %404 = sbr.rel (%p402) target = $region88
        $region87: #{tpu_custom_call.1} parent=55 // pred_region
          %405 = dma.done [#allocation15], 112
        $region88: #{tpu_custom_call.1} parent=55 // pred_fallthru
          _
        %s406 = smul.u32 16, %s28
        %p407 = scmp.lt.s32.totalorder %s406, 31
        %s408 = scalar_select %p407, %s406, 31
        %s409 = smul.addr %s408, 4
        %s410 = scalar_lea.vmem %s0, %s409
        %p411 = pneg %p49
        %p412 = pneg %p46
        %p413 = pneg %p70
        %p414 = pneg %p67
        %p415 = pneg %p91
        %p416 = pneg %p88
        %p417 = pneg %p112
        %p418 = pneg %p109
        %p419 = pneg %p133
        %p420 = pneg %p130
        %p421 = pneg %p154
        %p422 = pneg %p151
        %p423 = pneg %p175
        %p424 = pneg %p172
        %p425 = pneg %p196
        %p426 = pneg %p193
        %p427 = pneg %p217
        %p428 = pneg %p214
        %p429 = pneg %p243
        %p430 = pneg %p240
        %s431 = sand.u32 %s230, 1
        %s432 = scalar_lea.sflag [#allocation4], %s431
        %s433 = sand.u32 %s230, 1
        %s434 = smul.addr %s433, 896
        %s435 = scalar_lea.vmem [#allocation16], %s434
        %s436 = smul.u32 16, %s28
        %p437 = scmp.lt.s32.totalorder %s436, 31
        %s438 = scalar_select %p437, %s436, 31
        %s439 = smul.addr %s438, 4
        %s440 = scalar_lea.vmem %s0, %s439
        %s441 = smul.u32 16, %s28
        %s442 = smul.u32 16, %s28
        %v444 = vld [vmem:[%s440] sm:$0xf]
        %v445 = vld [vmem:[%s440 + $0x4] sm:$0xf]
        %v446 = vld [vmem:[%s440 + $0x8] sm:$0xf]
        %v447 = vld [vmem:[%s440 + $0xc] sm:$0xf]
        %v448 = vld [vmem:[%s440 + $0x10] sm:$0xf]
        %v449 = vld [vmem:[%s440 + $0x14] sm:$0xf]
        %v450 = vld [vmem:[%s440 + $0x18] sm:$0xf]
        %v451 = vld [vmem:[%s440 + $0x1c] sm:$0xf]
        %v452 = vld [vmem:[%s440 + $0x20] sm:$0xf]
        %v453 = vld [vmem:[%s440 + $0x24] sm:$0xf]
        %v454 = vld [vmem:[%s440 + $0x28] sm:$0xf]
        %v455 = vld [vmem:[%s440 + $0x2c] sm:$0xf]
        %v456 = vld [vmem:[%s440 + $0x30] sm:$0xf]
        %v457 = vld [vmem:[%s440 + $0x34] sm:$0xf]
        %v458 = vld [vmem:[%s440 + $0x38] sm:$0xf]
        %v459 = vld [vmem:[%s440 + $0x3c] sm:$0xf]
        %v460 = vld [vmem:[#allocation2] sm:$0xff]
        %v461 = vld [vmem:[#allocation2 + $0x8] sm:$0xff]
        %v462 = vld [vmem:[#allocation2 + $0x10] sm:$0xff]
        %v463 = vld [vmem:[#allocation2 + $0x18] sm:$0xff]
        %v464 = vld [vmem:[#allocation2 + $0x20] sm:$0xff]
        %v465 = vld [vmem:[#allocation2 + $0x28] sm:$0xff]
        %v466 = vld [vmem:[#allocation2 + $0x30] sm:$0xff]
        %v467 = vld [vmem:[#allocation2 + $0x38] sm:$0xff]
        %v468 = vld [vmem:[#allocation5] sm:$0x3]
        %v470 = vlaneseq
        %v471 = vshrl.u32 %v470, 7
        %v472 = vsub.s32 0, %v471
        %v473 = vrot.slane %v468, %v472
        %v474 = vlaneseq
        %v475 = vshrl.u32 %v474, 7
        %v476 = vsub.s32 1, %v475
        %v477 = vrot.slane %v468, %v476
        %v496 = vunpack.c.l.b16 %v444
        %v497 = vunpack.c.l.b16 %v445
        %v498 = vunpack.c.l.b16 %v446
        %v499 = vunpack.c.l.b16 %v447
        %v500 = vunpack.c.l.b16 %v448
        %v501 = vunpack.c.l.b16 %v449
        %v502 = vunpack.c.l.b16 %v450
        %v503 = vunpack.c.l.b16 %v451
        %v504 = vunpack.c.l.b16 %v452
        %v505 = vunpack.c.l.b16 %v453
        %v506 = vunpack.c.l.b16 %v454
        %v507 = vunpack.c.l.b16 %v455
        %v508 = vunpack.c.l.b16 %v456
        %v509 = vunpack.c.l.b16 %v457
        %v510 = vunpack.c.l.b16 %v458
        %v511 = vunpack.c.l.b16 %v459
        %v512 = vpack.c.b16 %v497, %v496
        %v513 = vpack.c.b16 %v499, %v498
        %v514 = vpack.c.b16 %v501, %v500
        %v515 = vpack.c.b16 %v503, %v502
        %v516 = vpack.c.b16 %v505, %v504
        %v517 = vpack.c.b16 %v507, %v506
        %v518 = vpack.c.b16 %v509, %v508
        %v519 = vpack.c.b16 %v511, %v510
        %v528 = vunpack.c.l.b16 %v460
        %v529 = vunpack.c.h.b16 %v460
        %v530 = vunpack.c.l.b16 %v461
        %v531 = vunpack.c.h.b16 %v461
        %v532 = vunpack.c.l.b16 %v462
        %v533 = vunpack.c.h.b16 %v462
        %v534 = vunpack.c.l.b16 %v463
        %v535 = vunpack.c.h.b16 %v463
        %v536 = vunpack.c.l.b16 %v464
        %v537 = vunpack.c.h.b16 %v464
        %v538 = vunpack.c.l.b16 %v465
        %v539 = vunpack.c.h.b16 %v465
        %v540 = vunpack.c.l.b16 %v466
        %v541 = vunpack.c.h.b16 %v466
        %v542 = vunpack.c.l.b16 %v467
        %v543 = vunpack.c.h.b16 %v467
        %v544 = vpack.c.b16 %v530, %v528
        %v545 = vpack.c.b16 %v531, %v529
        %v546 = vpack.c.b16 %v534, %v532
        %v547 = vpack.c.b16 %v535, %v533
        %v548 = vpack.c.b16 %v538, %v536
        %v549 = vpack.c.b16 %v539, %v537
        %v550 = vpack.c.b16 %v542, %v540
        %v551 = vpack.c.b16 %v543, %v541
        %vm560 = vcmask 523264
        %v562 = vsel %vm560, %v512, 0
        %v565 = vsel %vm560, %v513, 0
        %v568 = vsel %vm560, %v514, 0
        %v571 = vsel %vm560, %v515, 0
        %v574 = vsel %vm560, %v516, 0
        %v577 = vsel %vm560, %v517, 0
        %v580 = vsel %vm560, %v518, 0
        %v583 = vsel %vm560, %v519, 0
        %585 = vmatprep.subr.bf16.mxu0 %v545
        %586 = vmatpush1.bf16.msra.mxu0 %v544
        %587 = vmatprep.subr.bf16.mxu0 %v547
        %588 = vmatpush1.bf16.msra.mxu0 %v546
        %589 = vmatprep.subr.bf16.mxu0 %v549
        %590 = vmatpush1.bf16.msra.mxu0 %v548
        %591 = vmatprep.subr.bf16.mxu0 %v551
        %592 = vmatpush1.bf16.msra.mxu0 %v550
        %593 = vmatprep.subr.bf16.mxu0 0
        %594 = vmatpush1.bf16.msra.mxu0 0
        %595 = vmatprep.subr.bf16.mxu0 0
        %596 = vmatpush1.bf16.msra.mxu0 0
        %597 = vmatprep.subr.bf16.mxu0 0
        %598 = vmatpush1.bf16.msra.mxu0 0
        %599 = vmatprep.subr.bf16.mxu0 0
        %600 = vmatpush1.bf16.msra.mxu0 0
        %601 = vmatprep.subr.bf16.mxu0 0
        %602 = vmatpush1.bf16.msra.mxu0 0
        %603 = vmatprep.subr.bf16.mxu0 0
        %604 = vmatpush1.bf16.msra.mxu0 0
        %605 = vmatprep.subr.bf16.mxu0 0
        %606 = vmatpush1.bf16.msra.mxu0 0
        %607 = vmatprep.subr.bf16.mxu0 0
        %608 = vmatpush1.bf16.msra.mxu0 0
        %609 = vmatprep.subr.bf16.mxu0 0
        %610 = vmatpush1.bf16.msra.mxu0 0
        %611 = vmatprep.subr.bf16.mxu0 0
        %612 = vmatpush1.bf16.msra.mxu0 0
        %613 = vmatprep.subr.bf16.mxu0 0
        %614 = vmatpush1.bf16.msra.mxu0 0
        %615 = vmatprep.subr.bf16.mxu0 0
        %616 = vmatpush1.bf16.msra.mxu0 0
        %617 = vmatprep.mubr.bf16.mxu0 0
        %618 = vmatmul.mubr.bf16.gmra.mrb[0].mxu0 %v562
        %v619 = vpop.f32.mrb[0].mxu0
        %v620 = vadd.f32 %v473, %v619
        %v621 = vpop.f32.mrb[0].mxu0
        %v622 = vadd.f32 %v477, %v621
        %v623 = vpop.f32.mrb[0].mxu0
        %v624 = vadd.f32 %v473, %v623
        %v625 = vpop.f32.mrb[0].mxu0
        %v626 = vadd.f32 %v477, %v625
        %627 = vmatprep.mubr.bf16.mxu0 0
        %628 = vmatmul.mubr.bf16.gmra.mrb[0].mxu0 %v565
        %v629 = vpop.f32.mrb[0].mxu0
        %v630 = vadd.f32 %v473, %v629
        %v631 = vpop.f32.mrb[0].mxu0
        %v632 = vadd.f32 %v477, %v631
        %v633 = vpop.f32.mrb[0].mxu0
        %v634 = vadd.f32 %v473, %v633
        %v635 = vpop.f32.mrb[0].mxu0
        %v636 = vadd.f32 %v477, %v635
        %637 = vmatprep.mubr.bf16.mxu0 0
        %638 = vmatmul.mubr.bf16.gmra.mrb[0].mxu0 %v568
        %v639 = vpop.f32.mrb[0].mxu0
        %v640 = vadd.f32 %v473, %v639
        %v641 = vpop.f32.mrb[0].mxu0
        %v642 = vadd.f32 %v477, %v641
        %v643 = vpop.f32.mrb[0].mxu0
        %v644 = vadd.f32 %v473, %v643
        %v645 = vpop.f32.mrb[0].mxu0
        %v646 = vadd.f32 %v477, %v645
        %647 = vmatprep.mubr.bf16.mxu0 0
        %648 = vmatmul.mubr.bf16.gmra.mrb[0].mxu0 %v571
        %v649 = vpop.f32.mrb[0].mxu0
        %v650 = vadd.f32 %v473, %v649
        %v651 = vpop.f32.mrb[0].mxu0
        %v652 = vadd.f32 %v477, %v651
        %v653 = vpop.f32.mrb[0].mxu0
        %v654 = vadd.f32 %v473, %v653
        %v655 = vpop.f32.mrb[0].mxu0
        %v656 = vadd.f32 %v477, %v655
        %657 = vmatprep.mubr.bf16.mxu0 0
        %658 = vmatmul.mubr.bf16.gmra.mrb[0].mxu0 %v574
        %v659 = vpop.f32.mrb[0].mxu0
        %v660 = vadd.f32 %v473, %v659
        %v661 = vpop.f32.mrb[0].mxu0
        %v662 = vadd.f32 %v477, %v661
        %v663 = vpop.f32.mrb[0].mxu0
        %v664 = vadd.f32 %v473, %v663
        %v665 = vpop.f32.mrb[0].mxu0
        %v666 = vadd.f32 %v477, %v665
        %667 = vmatprep.mubr.bf16.mxu0 0
        %668 = vmatmul.mubr.bf16.gmra.mrb[0].mxu0 %v577
        %v669 = vpop.f32.mrb[0].mxu0
        %v670 = vadd.f32 %v473, %v669
        %v671 = vpop.f32.mrb[0].mxu0
        %v672 = vadd.f32 %v477, %v671
        %v673 = vpop.f32.mrb[0].mxu0
        %v674 = vadd.f32 %v473, %v673
        %v675 = vpop.f32.mrb[0].mxu0
        %v676 = vadd.f32 %v477, %v675
        %677 = vmatprep.mubr.bf16.mxu0 0
        %678 = vmatmul.mubr.bf16.gmra.mrb[0].mxu0 %v580
        %v679 = vpop.f32.mrb[0].mxu0
        %v680 = vadd.f32 %v473, %v679
        %v681 = vpop.f32.mrb[0].mxu0
        %v682 = vadd.f32 %v477, %v681
        %v683 = vpop.f32.mrb[0].mxu0
        %v684 = vadd.f32 %v473, %v683
        %v685 = vpop.f32.mrb[0].mxu0
        %v686 = vadd.f32 %v477, %v685
        %687 = vmatprep.mubr.bf16.mxu0 0
        %688 = vmatmul.mubr.bf16.gmra.mrb[0].mxu0 %v583
        %v689 = vpop.f32.mrb[0].mxu0
        %v690 = vadd.f32 %v473, %v689
        %v691 = vpop.f32.mrb[0].mxu0
        %v692 = vadd.f32 %v477, %v691
        %v693 = vpop.f32.mrb[0].mxu0
        %v694 = vadd.f32 %v473, %v693
        %v695 = vpop.f32.mrb[0].mxu0
        %v696 = vadd.f32 %v477, %v695
        %697 = vdwg.mxu0
        %vm698 = vcmp.gt.f32.partialorder %v620, 0.0
        %vm699 = vcmp.gt.f32.partialorder %v622, 0.0
        %vm700 = vcmp.gt.f32.partialorder %v624, 0.0
        %vm701 = vcmp.gt.f32.partialorder %v626, 0.0
        %vm702 = vcmp.gt.f32.partialorder %v630, 0.0
        %vm703 = vcmp.gt.f32.partialorder %v632, 0.0
        %vm704 = vcmp.gt.f32.partialorder %v634, 0.0
        %vm705 = vcmp.gt.f32.partialorder %v636, 0.0
        %vm706 = vcmp.gt.f32.partialorder %v640, 0.0
        %vm707 = vcmp.gt.f32.partialorder %v642, 0.0
        %vm708 = vcmp.gt.f32.partialorder %v644, 0.0
        %vm709 = vcmp.gt.f32.partialorder %v646, 0.0
        %vm710 = vcmp.gt.f32.partialorder %v650, 0.0
        %vm711 = vcmp.gt.f32.partialorder %v652, 0.0
        %vm712 = vcmp.gt.f32.partialorder %v654, 0.0
        %vm713 = vcmp.gt.f32.partialorder %v656, 0.0
        %vm714 = vcmp.gt.f32.partialorder %v660, 0.0
        %vm715 = vcmp.gt.f32.partialorder %v662, 0.0
        %vm716 = vcmp.gt.f32.partialorder %v664, 0.0
        %vm717 = vcmp.gt.f32.partialorder %v666, 0.0
        %vm718 = vcmp.gt.f32.partialorder %v670, 0.0
        %vm719 = vcmp.gt.f32.partialorder %v672, 0.0
        %vm720 = vcmp.gt.f32.partialorder %v674, 0.0
        %vm721 = vcmp.gt.f32.partialorder %v676, 0.0
        %vm722 = vcmp.gt.f32.partialorder %v680, 0.0
        %vm723 = vcmp.gt.f32.partialorder %v682, 0.0
        %vm724 = vcmp.gt.f32.partialorder %v684, 0.0
        %vm725 = vcmp.gt.f32.partialorder %v686, 0.0
        %vm726 = vcmp.gt.f32.partialorder %v690, 0.0
        %vm727 = vcmp.gt.f32.partialorder %v692, 0.0
        %vm728 = vcmp.gt.f32.partialorder %v694, 0.0
        %vm729 = vcmp.gt.f32.partialorder %v696, 0.0
        %v730 = vmul.f32 %v620, 0.2
        %v731 = vmul.f32 %v622, 0.2
        %v732 = vmul.f32 %v624, 0.2
        %v733 = vmul.f32 %v626, 0.2
        %v734 = vmul.f32 %v630, 0.2
        %v735 = vmul.f32 %v632, 0.2
        %v736 = vmul.f32 %v634, 0.2
        %v737 = vmul.f32 %v636, 0.2
        %v738 = vmul.f32 %v640, 0.2
        %v739 = vmul.f32 %v642, 0.2
        %v740 = vmul.f32 %v644, 0.2
        %v741 = vmul.f32 %v646, 0.2
        %v742 = vmul.f32 %v650, 0.2
        %v743 = vmul.f32 %v652, 0.2
        %v744 = vmul.f32 %v654, 0.2
        %v745 = vmul.f32 %v656, 0.2
        %v746 = vmul.f32 %v660, 0.2
        %v747 = vmul.f32 %v662, 0.2
        %v748 = vmul.f32 %v664, 0.2
        %v749 = vmul.f32 %v666, 0.2
        %v750 = vmul.f32 %v670, 0.2
        %v751 = vmul.f32 %v672, 0.2
        %v752 = vmul.f32 %v674, 0.2
        %v753 = vmul.f32 %v676, 0.2
        %v754 = vmul.f32 %v680, 0.2
        %v755 = vmul.f32 %v682, 0.2
        %v756 = vmul.f32 %v684, 0.2
        %v757 = vmul.f32 %v686, 0.2
        %v758 = vmul.f32 %v690, 0.2
        %v759 = vmul.f32 %v692, 0.2
        %v760 = vmul.f32 %v694, 0.2
        %v761 = vmul.f32 %v696, 0.2
        %v762 = vsel %vm698, %v620, %v730
        %v763 = vsel %vm699, %v622, %v731
        %v764 = vsel %vm700, %v624, %v732
        %v765 = vsel %vm701, %v626, %v733
        %v766 = vsel %vm702, %v630, %v734
        %v767 = vsel %vm703, %v632, %v735
        %v768 = vsel %vm704, %v634, %v736
        %v769 = vsel %vm705, %v636, %v737
        %v770 = vsel %vm706, %v640, %v738
        %v771 = vsel %vm707, %v642, %v739
        %v772 = vsel %vm708, %v644, %v740
        %v773 = vsel %vm709, %v646, %v741
        %v774 = vsel %vm710, %v650, %v742
        %v775 = vsel %vm711, %v652, %v743
        %v776 = vsel %vm712, %v654, %v744
        %v777 = vsel %vm713, %v656, %v745
        %v778 = vsel %vm714, %v660, %v746
        %v779 = vsel %vm715, %v662, %v747
        %v780 = vsel %vm716, %v664, %v748
        %v781 = vsel %vm717, %v666, %v749
        %v782 = vsel %vm718, %v670, %v750
        %v783 = vsel %vm719, %v672, %v751
        %v784 = vsel %vm720, %v674, %v752
        %v785 = vsel %vm721, %v676, %v753
        %v786 = vsel %vm722, %v680, %v754
        %v787 = vsel %vm723, %v682, %v755
        %v788 = vsel %vm724, %v684, %v756
        %v789 = vsel %vm725, %v686, %v757
        %v790 = vsel %vm726, %v690, %v758
        %v791 = vsel %vm727, %v692, %v759
        %v792 = vsel %vm728, %v694, %v760
        %v793 = vsel %vm729, %v696, %v761
        %v794 = vpack.c.bf16 %v764, %v762
        %v795 = vpack.c.bf16 %v765, %v763
        %v796 = vpack.c.bf16 %v768, %v766
        %v797 = vpack.c.bf16 %v769, %v767
        %v798 = vpack.c.bf16 %v772, %v770
        %v799 = vpack.c.bf16 %v773, %v771
        %v800 = vpack.c.bf16 %v776, %v774
        %v801 = vpack.c.bf16 %v777, %v775
        %v802 = vpack.c.bf16 %v780, %v778
        %v803 = vpack.c.bf16 %v781, %v779
        %v804 = vpack.c.bf16 %v784, %v782
        %v805 = vpack.c.bf16 %v785, %v783
        %v806 = vpack.c.bf16 %v788, %v786
        %v807 = vpack.c.bf16 %v789, %v787
        %v808 = vpack.c.bf16 %v792, %v790
        %v809 = vpack.c.bf16 %v793, %v791
        %v810 = vld [vmem:[#allocation7] sm:$0xff]
        %v811 = vld [vmem:[#allocation7 + $0x8] sm:$0xff]
        %v812 = vld [vmem:[#allocation7 + $0x10] sm:$0xff]
        %v813 = vld [vmem:[#allocation7 + $0x18] sm:$0xff]
        %v814 = vld [vmem:[#allocation7 + $0x20] sm:$0xff]
        %v815 = vld [vmem:[#allocation7 + $0x28] sm:$0xff]
        %v816 = vld [vmem:[#allocation7 + $0x30] sm:$0xff]
        %v817 = vld [vmem:[#allocation7 + $0x38] sm:$0xff]
        %v818 = vld [vmem:[#allocation7 + $0x40] sm:$0xff]
        %v819 = vld [vmem:[#allocation7 + $0x48] sm:$0xff]
        %v820 = vld [vmem:[#allocation7 + $0x50] sm:$0xff]
        %v821 = vld [vmem:[#allocation7 + $0x58] sm:$0xff]
        %v822 = vld [vmem:[#allocation7 + $0x60] sm:$0xff]
        %v823 = vld [vmem:[#allocation7 + $0x68] sm:$0xff]
        %v824 = vld [vmem:[#allocation7 + $0x70] sm:$0xff]
        %v825 = vld [vmem:[#allocation7 + $0x78] sm:$0xff]
        %v826 = vld [vmem:[#allocation7 + $0x80] sm:$0xff]
        %v827 = vld [vmem:[#allocation7 + $0x88] sm:$0xff]
        %v828 = vld [vmem:[#allocation7 + $0x90] sm:$0xff]
        %v829 = vld [vmem:[#allocation7 + $0x98] sm:$0xff]
        %v830 = vld [vmem:[#allocation7 + $0xa0] sm:$0xff]
        %v831 = vld [vmem:[#allocation7 + $0xa8] sm:$0xff]
        %v832 = vld [vmem:[#allocation7 + $0xb0] sm:$0xff]
        %v833 = vld [vmem:[#allocation7 + $0xb8] sm:$0xff]
        %v834 = vld [vmem:[#allocation7 + $0xc0] sm:$0xff]
        %v835 = vld [vmem:[#allocation7 + $0xc8] sm:$0xff]
        %v836 = vld [vmem:[#allocation7 + $0xd0] sm:$0xff]
        %v837 = vld [vmem:[#allocation7 + $0xd8] sm:$0xff]
        %v838 = vld [vmem:[#allocation7 + $0xe0] sm:$0xff]
        %v839 = vld [vmem:[#allocation7 + $0xe8] sm:$0xff]
        %v840 = vld [vmem:[#allocation7 + $0xf0] sm:$0xff]
        %v841 = vld [vmem:[#allocation7 + $0xf8] sm:$0xff]
        %v842 = vld [vmem:[#allocation7 + $0x100] sm:$0xff]
        %v843 = vld [vmem:[#allocation7 + $0x108] sm:$0xff]
        %v844 = vld [vmem:[#allocation7 + $0x110] sm:$0xff]
        %v845 = vld [vmem:[#allocation7 + $0x118] sm:$0xff]
        %v846 = vld [vmem:[#allocation7 + $0x120] sm:$0xff]
        %v847 = vld [vmem:[#allocation7 + $0x128] sm:$0xff]
        %v848 = vld [vmem:[#allocation7 + $0x130] sm:$0xff]
        %v849 = vld [vmem:[#allocation7 + $0x138] sm:$0xff]
        %v850 = vld [vmem:[#allocation7 + $0x140] sm:$0xff]
        %v851 = vld [vmem:[#allocation7 + $0x148] sm:$0xff]
        %v852 = vld [vmem:[#allocation7 + $0x150] sm:$0xff]
        %v853 = vld [vmem:[#allocation7 + $0x158] sm:$0xff]
        %v854 = vld [vmem:[#allocation7 + $0x160] sm:$0xff]
        %v855 = vld [vmem:[#allocation7 + $0x168] sm:$0xff]
        %v856 = vld [vmem:[#allocation7 + $0x170] sm:$0xff]
        %v857 = vld [vmem:[#allocation7 + $0x178] sm:$0xff]
        %v858 = vld [vmem:[#allocation7 + $0x180] sm:$0xff]
        %v859 = vld [vmem:[#allocation7 + $0x188] sm:$0xff]
        %v860 = vld [vmem:[#allocation7 + $0x190] sm:$0xff]
        %v861 = vld [vmem:[#allocation7 + $0x198] sm:$0xff]
        %v862 = vld [vmem:[#allocation7 + $0x1a0] sm:$0xff]
        %v863 = vld [vmem:[#allocation7 + $0x1a8] sm:$0xff]
        %v864 = vld [vmem:[#allocation7 + $0x1b0] sm:$0xff]
        %v865 = vld [vmem:[#allocation7 + $0x1b8] sm:$0xff]
        %v866 = vld [vmem:[#allocation7 + $0x1c0] sm:$0xff]
        %v867 = vld [vmem:[#allocation7 + $0x1c8] sm:$0xff]
        %v868 = vld [vmem:[#allocation7 + $0x1d0] sm:$0xff]
        %v869 = vld [vmem:[#allocation7 + $0x1d8] sm:$0xff]
        %v870 = vld [vmem:[#allocation7 + $0x1e0] sm:$0xff]
        %v871 = vld [vmem:[#allocation7 + $0x1e8] sm:$0xff]
        %v872 = vld [vmem:[#allocation7 + $0x1f0] sm:$0xff]
        %v873 = vld [vmem:[#allocation7 + $0x1f8] sm:$0xff]
        %v874 = vld [vmem:[#allocation8] sm:$0xf]
        %v876 = vlaneseq
        %v877 = vshrl.u32 %v876, 7
        %v878 = vsub.s32 0, %v877
        %v879 = vrot.slane %v874, %v878
        %v880 = vlaneseq
        %v881 = vshrl.u32 %v880, 7
        %v882 = vsub.s32 1, %v881
        %v883 = vrot.slane %v874, %v882
        %v884 = vlaneseq
        %v885 = vshrl.u32 %v884, 7
        %v886 = vsub.s32 2, %v885
        %v887 = vrot.slane %v874, %v886
        %v888 = vlaneseq
        %v889 = vshrl.u32 %v888, 7
        %v890 = vsub.s32 3, %v889
        %v891 = vrot.slane %v874, %v890
        %v960 = vunpack.c.l.b16 %v810
        %v961 = vunpack.c.h.b16 %v810
        %v962 = vunpack.c.l.b16 %v811
        %v963 = vunpack.c.h.b16 %v811
        %v964 = vunpack.c.l.b16 %v812
        %v965 = vunpack.c.h.b16 %v812
        %v966 = vunpack.c.l.b16 %v813
        %v967 = vunpack.c.h.b16 %v813
        %v968 = vunpack.c.l.b16 %v814
        %v969 = vunpack.c.h.b16 %v814
        %v970 = vunpack.c.l.b16 %v815
        %v971 = vunpack.c.h.b16 %v815
        %v972 = vunpack.c.l.b16 %v816
        %v973 = vunpack.c.h.b16 %v816
        %v974 = vunpack.c.l.b16 %v817
        %v975 = vunpack.c.h.b16 %v817
        %v976 = vunpack.c.l.b16 %v818
        %v977 = vunpack.c.h.b16 %v818
        %v978 = vunpack.c.l.b16 %v819
        %v979 = vunpack.c.h.b16 %v819
        %v980 = vunpack.c.l.b16 %v820
        %v981 = vunpack.c.h.b16 %v820
        %v982 = vunpack.c.l.b16 %v821
        %v983 = vunpack.c.h.b16 %v821
        %v984 = vunpack.c.l.b16 %v822
        %v985 = vunpack.c.h.b16 %v822
        %v986 = vunpack.c.l.b16 %v823
        %v987 = vunpack.c.h.b16 %v823
        %v988 = vunpack.c.l.b16 %v824
        %v989 = vunpack.c.h.b16 %v824
        %v990 = vunpack.c.l.b16 %v825
        %v991 = vunpack.c.h.b16 %v825
        %v992 = vunpack.c.l.b16 %v826
        %v993 = vunpack.c.h.b16 %v826
        %v994 = vunpack.c.l.b16 %v827
        %v995 = vunpack.c.h.b16 %v827
        %v996 = vunpack.c.l.b16 %v828
        %v997 = vunpack.c.h.b16 %v828
        %v998 = vunpack.c.l.b16 %v829
        %v999 = vunpack.c.h.b16 %v829
        %v1000 = vunpack.c.l.b16 %v830
        %v1001 = vunpack.c.h.b16 %v830
        %v1002 = vunpack.c.l.b16 %v831
        %v1003 = vunpack.c.h.b16 %v831
        %v1004 = vunpack.c.l.b16 %v832
        %v1005 = vunpack.c.h.b16 %v832
        %v1006 = vunpack.c.l.b16 %v833
        %v1007 = vunpack.c.h.b16 %v833
        %v1008 = vunpack.c.l.b16 %v834
        %v1009 = vunpack.c.h.b16 %v834
        %v1010 = vunpack.c.l.b16 %v835
        %v1011 = vunpack.c.h.b16 %v835
        %v1012 = vunpack.c.l.b16 %v836
        %v1013 = vunpack.c.h.b16 %v836
        %v1014 = vunpack.c.l.b16 %v837
        %v1015 = vunpack.c.h.b16 %v837
        %v1016 = vunpack.c.l.b16 %v838
        %v1017 = vunpack.c.h.b16 %v838
        %v1018 = vunpack.c.l.b16 %v839
        %v1019 = vunpack.c.h.b16 %v839
        %v1020 = vunpack.c.l.b16 %v840
        %v1021 = vunpack.c.h.b16 %v840
        %v1022 = vunpack.c.l.b16 %v841
        %v1023 = vunpack.c.h.b16 %v841
        %v1024 = vunpack.c.l.b16 %v842
        %v1025 = vunpack.c.h.b16 %v842
        %v1026 = vunpack.c.l.b16 %v843
        %v1027 = vunpack.c.h.b16 %v843
        %v1028 = vunpack.c.l.b16 %v844
        %v1029 = vunpack.c.h.b16 %v844
        %v1030 = vunpack.c.l.b16 %v845
        %v1031 = vunpack.c.h.b16 %v845
        %v1032 = vunpack.c.l.b16 %v846
        %v1033 = vunpack.c.h.b16 %v846
        %v1034 = vunpack.c.l.b16 %v847
        %v1035 = vunpack.c.h.b16 %v847
        %v1036 = vunpack.c.l.b16 %v848
        %v1037 = vunpack.c.h.b16 %v848
        %v1038 = vunpack.c.l.b16 %v849
        %v1039 = vunpack.c.h.b16 %v849
        %v1040 = vunpack.c.l.b16 %v850
        %v1041 = vunpack.c.h.b16 %v850
        %v1042 = vunpack.c.l.b16 %v851
        %v1043 = vunpack.c.h.b16 %v851
        %v1044 = vunpack.c.l.b16 %v852
        %v1045 = vunpack.c.h.b16 %v852
        %v1046 = vunpack.c.l.b16 %v853
        %v1047 = vunpack.c.h.b16 %v853
        %v1048 = vunpack.c.l.b16 %v854
        %v1049 = vunpack.c.h.b16 %v854
        %v1050 = vunpack.c.l.b16 %v855
        %v1051 = vunpack.c.h.b16 %v855
        %v1052 = vunpack.c.l.b16 %v856
        %v1053 = vunpack.c.h.b16 %v856
        %v1054 = vunpack.c.l.b16 %v857
        %v1055 = vunpack.c.h.b16 %v857
        %v1056 = vunpack.c.l.b16 %v858
        %v1057 = vunpack.c.h.b16 %v858
        %v1058 = vunpack.c.l.b16 %v859
        %v1059 = vunpack.c.h.b16 %v859
        %v1060 = vunpack.c.l.b16 %v860
        %v1061 = vunpack.c.h.b16 %v860
        %v1062 = vunpack.c.l.b16 %v861
        %v1063 = vunpack.c.h.b16 %v861
        %v1064 = vunpack.c.l.b16 %v862
        %v1065 = vunpack.c.h.b16 %v862
        %v1066 = vunpack.c.l.b16 %v863
        %v1067 = vunpack.c.h.b16 %v863
        %v1068 = vunpack.c.l.b16 %v864
        %v1069 = vunpack.c.h.b16 %v864
        %v1070 = vunpack.c.l.b16 %v865
        %v1071 = vunpack.c.h.b16 %v865
        %v1072 = vunpack.c.l.b16 %v866
        %v1073 = vunpack.c.h.b16 %v866
        %v1074 = vunpack.c.l.b16 %v867
        %v1075 = vunpack.c.h.b16 %v867
        %v1076 = vunpack.c.l.b16 %v868
        %v1077 = vunpack.c.h.b16 %v868
        %v1078 = vunpack.c.l.b16 %v869
        %v1079 = vunpack.c.h.b16 %v869
        %v1080 = vunpack.c.l.b16 %v870
        %v1081 = vunpack.c.h.b16 %v870
        %v1082 = vunpack.c.l.b16 %v871
        %v1083 = vunpack.c.h.b16 %v871
        %v1084 = vunpack.c.l.b16 %v872
        %v1085 = vunpack.c.h.b16 %v872
        %v1086 = vunpack.c.l.b16 %v873
        %v1087 = vunpack.c.h.b16 %v873
        %v1088 = vpack.c.b16 %v964, %v960
        %v1089 = vpack.c.b16 %v965, %v961
        %v1090 = vpack.c.b16 %v966, %v962
        %v1091 = vpack.c.b16 %v967, %v963
        %v1092 = vpack.c.b16 %v972, %v968
        %v1093 = vpack.c.b16 %v973, %v969
        %v1094 = vpack.c.b16 %v974, %v970
        %v1095 = vpack.c.b16 %v975, %v971
        %v1096 = vpack.c.b16 %v980, %v976
        %v1097 = vpack.c.b16 %v981, %v977
        %v1098 = vpack.c.b16 %v982, %v978
        %v1099 = vpack.c.b16 %v983, %v979
        %v1100 = vpack.c.b16 %v988, %v984
        %v1101 = vpack.c.b16 %v989, %v985
        %v1102 = vpack.c.b16 %v990, %v986
        %v1103 = vpack.c.b16 %v991, %v987
        %v1104 = vpack.c.b16 %v996, %v992
        %v1105 = vpack.c.b16 %v997, %v993
        %v1106 = vpack.c.b16 %v998, %v994
        %v1107 = vpack.c.b16 %v999, %v995
        %v1108 = vpack.c.b16 %v1004, %v1000
        %v1109 = vpack.c.b16 %v1005, %v1001
        %v1110 = vpack.c.b16 %v1006, %v1002
        %v1111 = vpack.c.b16 %v1007, %v1003
        %v1112 = vpack.c.b16 %v1012, %v1008
        %v1113 = vpack.c.b16 %v1013, %v1009
        %v1114 = vpack.c.b16 %v1014, %v1010
        %v1115 = vpack.c.b16 %v1015, %v1011
        %v1116 = vpack.c.b16 %v1020, %v1016
        %v1117 = vpack.c.b16 %v1021, %v1017
        %v1118 = vpack.c.b16 %v1022, %v1018
        %v1119 = vpack.c.b16 %v1023, %v1019
        %v1120 = vpack.c.b16 %v1028, %v1024
        %v1121 = vpack.c.b16 %v1029, %v1025
        %v1122 = vpack.c.b16 %v1030, %v1026
        %v1123 = vpack.c.b16 %v1031, %v1027
        %v1124 = vpack.c.b16 %v1036, %v1032
        %v1125 = vpack.c.b16 %v1037, %v1033
        %v1126 = vpack.c.b16 %v1038, %v1034
        %v1127 = vpack.c.b16 %v1039, %v1035
        %v1128 = vpack.c.b16 %v1044, %v1040
        %v1129 = vpack.c.b16 %v1045, %v1041
        %v1130 = vpack.c.b16 %v1046, %v1042
        %v1131 = vpack.c.b16 %v1047, %v1043
        %v1132 = vpack.c.b16 %v1052, %v1048
        %v1133 = vpack.c.b16 %v1053, %v1049
        %v1134 = vpack.c.b16 %v1054, %v1050
        %v1135 = vpack.c.b16 %v1055, %v1051
        %v1136 = vpack.c.b16 %v1060, %v1056
        %v1137 = vpack.c.b16 %v1061, %v1057
        %v1138 = vpack.c.b16 %v1062, %v1058
        %v1139 = vpack.c.b16 %v1063, %v1059
        %v1140 = vpack.c.b16 %v1068, %v1064
        %v1141 = vpack.c.b16 %v1069, %v1065
        %v1142 = vpack.c.b16 %v1070, %v1066
        %v1143 = vpack.c.b16 %v1071, %v1067
        %v1144 = vpack.c.b16 %v1076, %v1072
        %v1145 = vpack.c.b16 %v1077, %v1073
        %v1146 = vpack.c.b16 %v1078, %v1074
        %v1147 = vpack.c.b16 %v1079, %v1075
        %v1148 = vpack.c.b16 %v1084, %v1080
        %v1149 = vpack.c.b16 %v1085, %v1081
        %v1150 = vpack.c.b16 %v1086, %v1082
        %v1151 = vpack.c.b16 %v1087, %v1083
        %1216 = vmatprep.subr.bf16.mxu0 %v1089
        %1217 = vmatpush1.bf16.msra.mxu0 %v1088
        %1218 = vmatprep.subr.bf16.mxu0 %v1093
        %1219 = vmatpush1.bf16.msra.mxu0 %v1092
        %1220 = vmatprep.subr.bf16.mxu0 %v1097
        %1221 = vmatpush1.bf16.msra.mxu0 %v1096
        %1222 = vmatprep.subr.bf16.mxu0 %v1101
        %1223 = vmatpush1.bf16.msra.mxu0 %v1100
        %1224 = vmatprep.subr.bf16.mxu0 %v1105
        %1225 = vmatpush1.bf16.msra.mxu0 %v1104
        %1226 = vmatprep.subr.bf16.mxu0 %v1109
        %1227 = vmatpush1.bf16.msra.mxu0 %v1108
        %1228 = vmatprep.subr.bf16.mxu0 %v1113
        %1229 = vmatpush1.bf16.msra.mxu0 %v1112
        %1230 = vmatprep.subr.bf16.mxu0 %v1117
        %1231 = vmatpush1.bf16.msra.mxu0 %v1116
        %1232 = vmatprep.subr.bf16.mxu0 %v1121
        %1233 = vmatpush1.bf16.msra.mxu0 %v1120
        %1234 = vmatprep.subr.bf16.mxu0 %v1125
        %1235 = vmatpush1.bf16.msra.mxu0 %v1124
        %1236 = vmatprep.subr.bf16.mxu0 %v1129
        %1237 = vmatpush1.bf16.msra.mxu0 %v1128
        %1238 = vmatprep.subr.bf16.mxu0 %v1133
        %1239 = vmatpush1.bf16.msra.mxu0 %v1132
        %1240 = vmatprep.subr.bf16.mxu0 %v1137
        %1241 = vmatpush1.bf16.msra.mxu0 %v1136
        %1242 = vmatprep.subr.bf16.mxu0 %v1141
        %1243 = vmatpush1.bf16.msra.mxu0 %v1140
        %1244 = vmatprep.subr.bf16.mxu0 %v1145
        %1245 = vmatpush1.bf16.msra.mxu0 %v1144
        %1246 = vmatprep.subr.bf16.mxu0 %v1149
        %1247 = vmatpush1.bf16.msra.mxu0 %v1148
        %1248 = vmatprep.mubr.bf16.mxu0 %v795
        %1249 = vmatmul.mubr.bf16.gmra.mrb[0].mxu0 %v794
        %v1250 = vpop.f32.mrb[0].mxu0
        %v1251 = vadd.f32 %v879, %v1250
        %v1252 = vpop.f32.mrb[0].mxu0
        %v1253 = vadd.f32 %v883, %v1252
        %v1254 = vpop.f32.mrb[0].mxu0
        %v1255 = vadd.f32 %v879, %v1254
        %v1256 = vpop.f32.mrb[0].mxu0
        %v1257 = vadd.f32 %v883, %v1256
        %1258 = vmatprep.mubr.bf16.mxu0 %v797
        %1259 = vmatmul.mubr.bf16.gmra.mrb[0].mxu0 %v796
        %v1260 = vpop.f32.mrb[0].mxu0
        %v1261 = vadd.f32 %v879, %v1260
        %v1262 = vpop.f32.mrb[0].mxu0
        %v1263 = vadd.f32 %v883, %v1262
        %v1264 = vpop.f32.mrb[0].mxu0
        %v1265 = vadd.f32 %v879, %v1264
        %v1266 = vpop.f32.mrb[0].mxu0
        %v1267 = vadd.f32 %v883, %v1266
        %1268 = vmatprep.mubr.bf16.mxu0 %v799
        %1269 = vmatmul.mubr.bf16.gmra.mrb[0].mxu0 %v798
        %v1270 = vpop.f32.mrb[0].mxu0
        %v1271 = vadd.f32 %v879, %v1270
        %v1272 = vpop.f32.mrb[0].mxu0
        %v1273 = vadd.f32 %v883, %v1272
        %v1274 = vpop.f32.mrb[0].mxu0
        %v1275 = vadd.f32 %v879, %v1274
        %v1276 = vpop.f32.mrb[0].mxu0
        %v1277 = vadd.f32 %v883, %v1276
        %1278 = vmatprep.mubr.bf16.mxu0 %v801
        %1279 = vmatmul.mubr.bf16.gmra.mrb[0].mxu0 %v800
        %v1280 = vpop.f32.mrb[0].mxu0
        %v1281 = vadd.f32 %v879, %v1280
        %v1282 = vpop.f32.mrb[0].mxu0
        %v1283 = vadd.f32 %v883, %v1282
        %v1284 = vpop.f32.mrb[0].mxu0
        %v1285 = vadd.f32 %v879, %v1284
        %v1286 = vpop.f32.mrb[0].mxu0
        %v1287 = vadd.f32 %v883, %v1286
        %1288 = vmatprep.mubr.bf16.mxu0 %v803
        %1289 = vmatmul.mubr.bf16.gmra.mrb[0].mxu0 %v802
        %v1290 = vpop.f32.mrb[0].mxu0
        %v1291 = vadd.f32 %v879, %v1290
        %v1292 = vpop.f32.mrb[0].mxu0
        %v1293 = vadd.f32 %v883, %v1292
        %v1294 = vpop.f32.mrb[0].mxu0
        %v1295 = vadd.f32 %v879, %v1294
        %v1296 = vpop.f32.mrb[0].mxu0
        %v1297 = vadd.f32 %v883, %v1296
        %1298 = vmatprep.mubr.bf16.mxu0 %v805
        %1299 = vmatmul.mubr.bf16.gmra.mrb[0].mxu0 %v804
        %v1300 = vpop.f32.mrb[0].mxu0
        %v1301 = vadd.f32 %v879, %v1300
        %v1302 = vpop.f32.mrb[0].mxu0
        %v1303 = vadd.f32 %v883, %v1302
        %v1304 = vpop.f32.mrb[0].mxu0
        %v1305 = vadd.f32 %v879, %v1304
        %v1306 = vpop.f32.mrb[0].mxu0
        %v1307 = vadd.f32 %v883, %v1306
        %1308 = vmatprep.mubr.bf16.mxu0 %v807
        %1309 = vmatmul.mubr.bf16.gmra.mrb[0].mxu0 %v806
        %v1310 = vpop.f32.mrb[0].mxu0
        %v1311 = vadd.f32 %v879, %v1310
        %v1312 = vpop.f32.mrb[0].mxu0
        %v1313 = vadd.f32 %v883, %v1312
        %v1314 = vpop.f32.mrb[0].mxu0
        %v1315 = vadd.f32 %v879, %v1314
        %v1316 = vpop.f32.mrb[0].mxu0
        %v1317 = vadd.f32 %v883, %v1316
        %1318 = vmatprep.mubr.bf16.mxu0 %v809
        %1319 = vmatmul.mubr.bf16.gmra.mrb[0].mxu0 %v808
        %v1320 = vpop.f32.mrb[0].mxu0
        %v1321 = vadd.f32 %v879, %v1320
        %v1322 = vpop.f32.mrb[0].mxu0
        %v1323 = vadd.f32 %v883, %v1322
        %v1324 = vpop.f32.mrb[0].mxu0
        %v1325 = vadd.f32 %v879, %v1324
        %v1326 = vpop.f32.mrb[0].mxu0
        %v1327 = vadd.f32 %v883, %v1326
        %1328 = vdwg.mxu0
        %1329 = vmatprep.subr.bf16.mxu0 %v1091
        %1330 = vmatpush1.bf16.msra.mxu0 %v1090
        %1331 = vmatprep.subr.bf16.mxu0 %v1095
        %1332 = vmatpush1.bf16.msra.mxu0 %v1094
        %1333 = vmatprep.subr.bf16.mxu0 %v1099
        %1334 = vmatpush1.bf16.msra.mxu0 %v1098
        %1335 = vmatprep.subr.bf16.mxu0 %v1103
        %1336 = vmatpush1.bf16.msra.mxu0 %v1102
        %1337 = vmatprep.subr.bf16.mxu0 %v1107
        %1338 = vmatpush1.bf16.msra.mxu0 %v1106
        %1339 = vmatprep.subr.bf16.mxu0 %v1111
        %1340 = vmatpush1.bf16.msra.mxu0 %v1110
        %1341 = vmatprep.subr.bf16.mxu0 %v1115
        %1342 = vmatpush1.bf16.msra.mxu0 %v1114
        %1343 = vmatprep.subr.bf16.mxu0 %v1119
        %1344 = vmatpush1.bf16.msra.mxu0 %v1118
        %1345 = vmatprep.subr.bf16.mxu0 %v1123
        %1346 = vmatpush1.bf16.msra.mxu0 %v1122
        %1347 = vmatprep.subr.bf16.mxu0 %v1127
        %1348 = vmatpush1.bf16.msra.mxu0 %v1126
        %1349 = vmatprep.subr.bf16.mxu0 %v1131
        %1350 = vmatpush1.bf16.msra.mxu0 %v1130
        %1351 = vmatprep.subr.bf16.mxu0 %v1135
        %1352 = vmatpush1.bf16.msra.mxu0 %v1134
        %1353 = vmatprep.subr.bf16.mxu0 %v1139
        %1354 = vmatpush1.bf16.msra.mxu0 %v1138
        %1355 = vmatprep.subr.bf16.mxu0 %v1143
        %1356 = vmatpush1.bf16.msra.mxu0 %v1142
        %1357 = vmatprep.subr.bf16.mxu0 %v1147
        %1358 = vmatpush1.bf16.msra.mxu0 %v1146
        %1359 = vmatprep.subr.bf16.mxu0 %v1151
        %1360 = vmatpush1.bf16.msra.mxu0 %v1150
        %1361 = vmatprep.mubr.bf16.mxu0 %v795
        %1362 = vmatmul.mubr.bf16.gmra.mrb[0].mxu0 %v794
        %v1363 = vpop.f32.mrb[0].mxu0
        %v1364 = vadd.f32 %v887, %v1363
        %v1365 = vpop.f32.mrb[0].mxu0
        %v1366 = vadd.f32 %v891, %v1365
        %v1367 = vpop.f32.mrb[0].mxu0
        %v1368 = vadd.f32 %v887, %v1367
        %v1369 = vpop.f32.mrb[0].mxu0
        %v1370 = vadd.f32 %v891, %v1369
        %1371 = vmatprep.mubr.bf16.mxu0 %v797
        %1372 = vmatmul.mubr.bf16.gmra.mrb[0].mxu0 %v796
        %v1373 = vpop.f32.mrb[0].mxu0
        %v1374 = vadd.f32 %v887, %v1373
        %v1375 = vpop.f32.mrb[0].mxu0
        %v1376 = vadd.f32 %v891, %v1375
        %v1377 = vpop.f32.mrb[0].mxu0
        %v1378 = vadd.f32 %v887, %v1377
        %v1379 = vpop.f32.mrb[0].mxu0
        %v1380 = vadd.f32 %v891, %v1379
        %1381 = vmatprep.mubr.bf16.mxu0 %v799
        %1382 = vmatmul.mubr.bf16.gmra.mrb[0].mxu0 %v798
        %v1383 = vpop.f32.mrb[0].mxu0
        %v1384 = vadd.f32 %v887, %v1383
        %v1385 = vpop.f32.mrb[0].mxu0
        %v1386 = vadd.f32 %v891, %v1385
        %v1387 = vpop.f32.mrb[0].mxu0
        %v1388 = vadd.f32 %v887, %v1387
        %v1389 = vpop.f32.mrb[0].mxu0
        %v1390 = vadd.f32 %v891, %v1389
        %1391 = vmatprep.mubr.bf16.mxu0 %v801
        %1392 = vmatmul.mubr.bf16.gmra.mrb[0].mxu0 %v800
        %v1393 = vpop.f32.mrb[0].mxu0
        %v1394 = vadd.f32 %v887, %v1393
        %v1395 = vpop.f32.mrb[0].mxu0
        %v1396 = vadd.f32 %v891, %v1395
        %v1397 = vpop.f32.mrb[0].mxu0
        %v1398 = vadd.f32 %v887, %v1397
        %v1399 = vpop.f32.mrb[0].mxu0
        %v1400 = vadd.f32 %v891, %v1399
        %1401 = vmatprep.mubr.bf16.mxu0 %v803
        %1402 = vmatmul.mubr.bf16.gmra.mrb[0].mxu0 %v802
        %v1403 = vpop.f32.mrb[0].mxu0
        %v1404 = vadd.f32 %v887, %v1403
        %v1405 = vpop.f32.mrb[0].mxu0
        %v1406 = vadd.f32 %v891, %v1405
        %v1407 = vpop.f32.mrb[0].mxu0
        %v1408 = vadd.f32 %v887, %v1407
        %v1409 = vpop.f32.mrb[0].mxu0
        %v1410 = vadd.f32 %v891, %v1409
        %1411 = vmatprep.mubr.bf16.mxu0 %v805
        %1412 = vmatmul.mubr.bf16.gmra.mrb[0].mxu0 %v804
        %v1413 = vpop.f32.mrb[0].mxu0
        %v1414 = vadd.f32 %v887, %v1413
        %v1415 = vpop.f32.mrb[0].mxu0
        %v1416 = vadd.f32 %v891, %v1415
        %v1417 = vpop.f32.mrb[0].mxu0
        %v1418 = vadd.f32 %v887, %v1417
        %v1419 = vpop.f32.mrb[0].mxu0
        %v1420 = vadd.f32 %v891, %v1419
        %1421 = vmatprep.mubr.bf16.mxu0 %v807
        %1422 = vmatmul.mubr.bf16.gmra.mrb[0].mxu0 %v806
        %v1423 = vpop.f32.mrb[0].mxu0
        %v1424 = vadd.f32 %v887, %v1423
        %v1425 = vpop.f32.mrb[0].mxu0
        %v1426 = vadd.f32 %v891, %v1425
        %v1427 = vpop.f32.mrb[0].mxu0
        %v1428 = vadd.f32 %v887, %v1427
        %v1429 = vpop.f32.mrb[0].mxu0
        %v1430 = vadd.f32 %v891, %v1429
        %1431 = vmatprep.mubr.bf16.mxu0 %v809
        %1432 = vmatmul.mubr.bf16.gmra.mrb[0].mxu0 %v808
        %v1433 = vpop.f32.mrb[0].mxu0
        %v1434 = vadd.f32 %v887, %v1433
        %v1435 = vpop.f32.mrb[0].mxu0
        %v1436 = vadd.f32 %v891, %v1435
        %v1437 = vpop.f32.mrb[0].mxu0
        %v1438 = vadd.f32 %v887, %v1437
        %v1439 = vpop.f32.mrb[0].mxu0
        %v1440 = vadd.f32 %v891, %v1439
        %1441 = vdwg.mxu0
        %vm1442 = vcmp.gt.f32.partialorder %v1251, 0.0
        %vm1443 = vcmp.gt.f32.partialorder %v1253, 0.0
        %vm1444 = vcmp.gt.f32.partialorder %v1364, 0.0
        %vm1445 = vcmp.gt.f32.partialorder %v1366, 0.0
        %vm1446 = vcmp.gt.f32.partialorder %v1255, 0.0
        %vm1447 = vcmp.gt.f32.partialorder %v1257, 0.0
        %vm1448 = vcmp.gt.f32.partialorder %v1368, 0.0
        %vm1449 = vcmp.gt.f32.partialorder %v1370, 0.0
        %vm1450 = vcmp.gt.f32.partialorder %v1261, 0.0
        %vm1451 = vcmp.gt.f32.partialorder %v1263, 0.0
        %vm1452 = vcmp.gt.f32.partialorder %v1374, 0.0
        %vm1453 = vcmp.gt.f32.partialorder %v1376, 0.0
        %vm1454 = vcmp.gt.f32.partialorder %v1265, 0.0
        %vm1455 = vcmp.gt.f32.partialorder %v1267, 0.0
        %vm1456 = vcmp.gt.f32.partialorder %v1378, 0.0
        %vm1457 = vcmp.gt.f32.partialorder %v1380, 0.0
        %vm1458 = vcmp.gt.f32.partialorder %v1271, 0.0
        %vm1459 = vcmp.gt.f32.partialorder %v1273, 0.0
        %vm1460 = vcmp.gt.f32.partialorder %v1384, 0.0
        %vm1461 = vcmp.gt.f32.partialorder %v1386, 0.0
        %vm1462 = vcmp.gt.f32.partialorder %v1275, 0.0
        %vm1463 = vcmp.gt.f32.partialorder %v1277, 0.0
        %vm1464 = vcmp.gt.f32.partialorder %v1388, 0.0
        %vm1465 = vcmp.gt.f32.partialorder %v1390, 0.0
        %vm1466 = vcmp.gt.f32.partialorder %v1281, 0.0
        %vm1467 = vcmp.gt.f32.partialorder %v1283, 0.0
        %vm1468 = vcmp.gt.f32.partialorder %v1394, 0.0
        %vm1469 = vcmp.gt.f32.partialorder %v1396, 0.0
        %vm1470 = vcmp.gt.f32.partialorder %v1285, 0.0
        %vm1471 = vcmp.gt.f32.partialorder %v1287, 0.0
        %vm1472 = vcmp.gt.f32.partialorder %v1398, 0.0
        %vm1473 = vcmp.gt.f32.partialorder %v1400, 0.0
        %vm1474 = vcmp.gt.f32.partialorder %v1291, 0.0
        %vm1475 = vcmp.gt.f32.partialorder %v1293, 0.0
        %vm1476 = vcmp.gt.f32.partialorder %v1404, 0.0
        %vm1477 = vcmp.gt.f32.partialorder %v1406, 0.0
        %vm1478 = vcmp.gt.f32.partialorder %v1295, 0.0
        %vm1479 = vcmp.gt.f32.partialorder %v1297, 0.0
        %vm1480 = vcmp.gt.f32.partialorder %v1408, 0.0
        %vm1481 = vcmp.gt.f32.partialorder %v1410, 0.0
        %vm1482 = vcmp.gt.f32.partialorder %v1301, 0.0
        %vm1483 = vcmp.gt.f32.partialorder %v1303, 0.0
        %vm1484 = vcmp.gt.f32.partialorder %v1414, 0.0
        %vm1485 = vcmp.gt.f32.partialorder %v1416, 0.0
        %vm1486 = vcmp.gt.f32.partialorder %v1305, 0.0
        %vm1487 = vcmp.gt.f32.partialorder %v1307, 0.0
        %vm1488 = vcmp.gt.f32.partialorder %v1418, 0.0
        %vm1489 = vcmp.gt.f32.partialorder %v1420, 0.0
        %vm1490 = vcmp.gt.f32.partialorder %v1311, 0.0
        %vm1491 = vcmp.gt.f32.partialorder %v1313, 0.0
        %vm1492 = vcmp.gt.f32.partialorder %v1424, 0.0
        %vm1493 = vcmp.gt.f32.partialorder %v1426, 0.0
        %vm1494 = vcmp.gt.f32.partialorder %v1315, 0.0
        %vm1495 = vcmp.gt.f32.partialorder %v1317, 0.0
        %vm1496 = vcmp.gt.f32.partialorder %v1428, 0.0
        %vm1497 = vcmp.gt.f32.partialorder %v1430, 0.0
        %vm1498 = vcmp.gt.f32.partialorder %v1321, 0.0
        %vm1499 = vcmp.gt.f32.partialorder %v1323, 0.0
        %vm1500 = vcmp.gt.f32.partialorder %v1434, 0.0
        %vm1501 = vcmp.gt.f32.partialorder %v1436, 0.0
        %vm1502 = vcmp.gt.f32.partialorder %v1325, 0.0
        %vm1503 = vcmp.gt.f32.partialorder %v1327, 0.0
        %vm1504 = vcmp.gt.f32.partialorder %v1438, 0.0
        %vm1505 = vcmp.gt.f32.partialorder %v1440, 0.0
        %v1506 = vmul.f32 %v1251, 0.2
        %v1507 = vmul.f32 %v1253, 0.2
        %v1508 = vmul.f32 %v1364, 0.2
        %v1509 = vmul.f32 %v1366, 0.2
        %v1510 = vmul.f32 %v1255, 0.2
        %v1511 = vmul.f32 %v1257, 0.2
        %v1512 = vmul.f32 %v1368, 0.2
        %v1513 = vmul.f32 %v1370, 0.2
        %v1514 = vmul.f32 %v1261, 0.2
        %v1515 = vmul.f32 %v1263, 0.2
        %v1516 = vmul.f32 %v1374, 0.2
        %v1517 = vmul.f32 %v1376, 0.2
        %v1518 = vmul.f32 %v1265, 0.2
        %v1519 = vmul.f32 %v1267, 0.2
        %v1520 = vmul.f32 %v1378, 0.2
        %v1521 = vmul.f32 %v1380, 0.2
        %v1522 = vmul.f32 %v1271, 0.2
        %v1523 = vmul.f32 %v1273, 0.2
        %v1524 = vmul.f32 %v1384, 0.2
        %v1525 = vmul.f32 %v1386, 0.2
        %v1526 = vmul.f32 %v1275, 0.2
        %v1527 = vmul.f32 %v1277, 0.2
        %v1528 = vmul.f32 %v1388, 0.2
        %v1529 = vmul.f32 %v1390, 0.2
        %v1530 = vmul.f32 %v1281, 0.2
        %v1531 = vmul.f32 %v1283, 0.2
        %v1532 = vmul.f32 %v1394, 0.2
        %v1533 = vmul.f32 %v1396, 0.2
        %v1534 = vmul.f32 %v1285, 0.2
        %v1535 = vmul.f32 %v1287, 0.2
        %v1536 = vmul.f32 %v1398, 0.2
        %v1537 = vmul.f32 %v1400, 0.2
        %v1538 = vmul.f32 %v1291, 0.2
        %v1539 = vmul.f32 %v1293, 0.2
        %v1540 = vmul.f32 %v1404, 0.2
        %v1541 = vmul.f32 %v1406, 0.2
        %v1542 = vmul.f32 %v1295, 0.2
        %v1543 = vmul.f32 %v1297, 0.2
        %v1544 = vmul.f32 %v1408, 0.2
        %v1545 = vmul.f32 %v1410, 0.2
        %v1546 = vmul.f32 %v1301, 0.2
        %v1547 = vmul.f32 %v1303, 0.2
        %v1548 = vmul.f32 %v1414, 0.2
        %v1549 = vmul.f32 %v1416, 0.2
        %v1550 = vmul.f32 %v1305, 0.2
        %v1551 = vmul.f32 %v1307, 0.2
        %v1552 = vmul.f32 %v1418, 0.2
        %v1553 = vmul.f32 %v1420, 0.2
        %v1554 = vmul.f32 %v1311, 0.2
        %v1555 = vmul.f32 %v1313, 0.2
        %v1556 = vmul.f32 %v1424, 0.2
        %v1557 = vmul.f32 %v1426, 0.2
        %v1558 = vmul.f32 %v1315, 0.2
        %v1559 = vmul.f32 %v1317, 0.2
        %v1560 = vmul.f32 %v1428, 0.2
        %v1561 = vmul.f32 %v1430, 0.2
        %v1562 = vmul.f32 %v1321, 0.2
        %v1563 = vmul.f32 %v1323, 0.2
        %v1564 = vmul.f32 %v1434, 0.2
        %v1565 = vmul.f32 %v1436, 0.2
        %v1566 = vmul.f32 %v1325, 0.2
        %v1567 = vmul.f32 %v1327, 0.2
        %v1568 = vmul.f32 %v1438, 0.2
        %v1569 = vmul.f32 %v1440, 0.2
        %v1570 = vsel %vm1442, %v1251, %v1506
        %v1571 = vsel %vm1443, %v1253, %v1507
        %v1572 = vsel %vm1444, %v1364, %v1508
        %v1573 = vsel %vm1445, %v1366, %v1509
        %v1574 = vsel %vm1446, %v1255, %v1510
        %v1575 = vsel %vm1447, %v1257, %v1511
        %v1576 = vsel %vm1448, %v1368, %v1512
        %v1577 = vsel %vm1449, %v1370, %v1513
        %v1578 = vsel %vm1450, %v1261, %v1514
        %v1579 = vsel %vm1451, %v1263, %v1515
        %v1580 = vsel %vm1452, %v1374, %v1516
        %v1581 = vsel %vm1453, %v1376, %v1517
        %v1582 = vsel %vm1454, %v1265, %v1518
        %v1583 = vsel %vm1455, %v1267, %v1519
        %v1584 = vsel %vm1456, %v1378, %v1520
        %v1585 = vsel %vm1457, %v1380, %v1521
        %v1586 = vsel %vm1458, %v1271, %v1522
        %v1587 = vsel %vm1459, %v1273, %v1523
        %v1588 = vsel %vm1460, %v1384, %v1524
        %v1589 = vsel %vm1461, %v1386, %v1525
        %v1590 = vsel %vm1462, %v1275, %v1526
        %v1591 = vsel %vm1463, %v1277, %v1527
        %v1592 = vsel %vm1464, %v1388, %v1528
        %v1593 = vsel %vm1465, %v1390, %v1529
        %v1594 = vsel %vm1466, %v1281, %v1530
        %v1595 = vsel %vm1467, %v1283, %v1531
        %v1596 = vsel %vm1468, %v1394, %v1532
        %v1597 = vsel %vm1469, %v1396, %v1533
        %v1598 = vsel %vm1470, %v1285, %v1534
        %v1599 = vsel %vm1471, %v1287, %v1535
        %v1600 = vsel %vm1472, %v1398, %v1536
        %v1601 = vsel %vm1473, %v1400, %v1537
        %v1602 = vsel %vm1474, %v1291, %v1538
        %v1603 = vsel %vm1475, %v1293, %v1539
        %v1604 = vsel %vm1476, %v1404, %v1540
        %v1605 = vsel %vm1477, %v1406, %v1541
        %v1606 = vsel %vm1478, %v1295, %v1542
        %v1607 = vsel %vm1479, %v1297, %v1543
        %v1608 = vsel %vm1480, %v1408, %v1544
        %v1609 = vsel %vm1481, %v1410, %v1545
        %v1610 = vsel %vm1482, %v1301, %v1546
        %v1611 = vsel %vm1483, %v1303, %v1547
        %v1612 = vsel %vm1484, %v1414, %v1548
        %v1613 = vsel %vm1485, %v1416, %v1549
        %v1614 = vsel %vm1486, %v1305, %v1550
        %v1615 = vsel %vm1487, %v1307, %v1551
        %v1616 = vsel %vm1488, %v1418, %v1552
        %v1617 = vsel %vm1489, %v1420, %v1553
        %v1618 = vsel %vm1490, %v1311, %v1554
        %v1619 = vsel %vm1491, %v1313, %v1555
        %v1620 = vsel %vm1492, %v1424, %v1556
        %v1621 = vsel %vm1493, %v1426, %v1557
        %v1622 = vsel %vm1494, %v1315, %v1558
        %v1623 = vsel %vm1495, %v1317, %v1559
        %v1624 = vsel %vm1496, %v1428, %v1560
        %v1625 = vsel %vm1497, %v1430, %v1561
        %v1626 = vsel %vm1498, %v1321, %v1562
        %v1627 = vsel %vm1499, %v1323, %v1563
        %v1628 = vsel %vm1500, %v1434, %v1564
        %v1629 = vsel %vm1501, %v1436, %v1565
        %v1630 = vsel %vm1502, %v1325, %v1566
        %v1631 = vsel %vm1503, %v1327, %v1567
        %v1632 = vsel %vm1504, %v1438, %v1568
        %v1633 = vsel %vm1505, %v1440, %v1569
        %v1634 = vpack.c.bf16 %v1574, %v1570
        %v1635 = vpack.c.bf16 %v1575, %v1571
        %v1636 = vpack.c.bf16 %v1576, %v1572
        %v1637 = vpack.c.bf16 %v1577, %v1573
        %v1638 = vpack.c.bf16 %v1582, %v1578
        %v1639 = vpack.c.bf16 %v1583, %v1579
        %v1640 = vpack.c.bf16 %v1584, %v1580
        %v1641 = vpack.c.bf16 %v1585, %v1581
        %v1642 = vpack.c.bf16 %v1590, %v1586
        %v1643 = vpack.c.bf16 %v1591, %v1587
        %v1644 = vpack.c.bf16 %v1592, %v1588
        %v1645 = vpack.c.bf16 %v1593, %v1589
        %v1646 = vpack.c.bf16 %v1598, %v1594
        %v1647 = vpack.c.bf16 %v1599, %v1595
        %v1648 = vpack.c.bf16 %v1600, %v1596
        %v1649 = vpack.c.bf16 %v1601, %v1597
        %v1650 = vpack.c.bf16 %v1606, %v1602
        %v1651 = vpack.c.bf16 %v1607, %v1603
        %v1652 = vpack.c.bf16 %v1608, %v1604
        %v1653 = vpack.c.bf16 %v1609, %v1605
        %v1654 = vpack.c.bf16 %v1614, %v1610
        %v1655 = vpack.c.bf16 %v1615, %v1611
        %v1656 = vpack.c.bf16 %v1616, %v1612
        %v1657 = vpack.c.bf16 %v1617, %v1613
        %v1658 = vpack.c.bf16 %v1622, %v1618
        %v1659 = vpack.c.bf16 %v1623, %v1619
        %v1660 = vpack.c.bf16 %v1624, %v1620
        %v1661 = vpack.c.bf16 %v1625, %v1621
        %v1662 = vpack.c.bf16 %v1630, %v1626
        %v1663 = vpack.c.bf16 %v1631, %v1627
        %v1664 = vpack.c.bf16 %v1632, %v1628
        %v1665 = vpack.c.bf16 %v1633, %v1629
        %v1666 = vld [vmem:[#allocation10] sm:$0xff]
        %v1667 = vld [vmem:[#allocation10 + $0x8] sm:$0xff]
        %v1668 = vld [vmem:[#allocation10 + $0x10] sm:$0xff]
        %v1669 = vld [vmem:[#allocation10 + $0x18] sm:$0xff]
        %v1670 = vld [vmem:[#allocation10 + $0x20] sm:$0xff]
        %v1671 = vld [vmem:[#allocation10 + $0x28] sm:$0xff]
        %v1672 = vld [vmem:[#allocation10 + $0x30] sm:$0xff]
        %v1673 = vld [vmem:[#allocation10 + $0x38] sm:$0xff]
        %v1674 = vld [vmem:[#allocation10 + $0x40] sm:$0xff]
        %v1675 = vld [vmem:[#allocation10 + $0x48] sm:$0xff]
        %v1676 = vld [vmem:[#allocation10 + $0x50] sm:$0xff]
        %v1677 = vld [vmem:[#allocation10 + $0x58] sm:$0xff]
        %v1678 = vld [vmem:[#allocation10 + $0x60] sm:$0xff]
        %v1679 = vld [vmem:[#allocation10 + $0x68] sm:$0xff]
        %v1680 = vld [vmem:[#allocation10 + $0x70] sm:$0xff]
        %v1681 = vld [vmem:[#allocation10 + $0x78] sm:$0xff]
        %v1682 = vld [vmem:[#allocation10 + $0x80] sm:$0xff]
        %v1683 = vld [vmem:[#allocation10 + $0x88] sm:$0xff]
        %v1684 = vld [vmem:[#allocation10 + $0x90] sm:$0xff]
        %v1685 = vld [vmem:[#allocation10 + $0x98] sm:$0xff]
        %v1686 = vld [vmem:[#allocation10 + $0xa0] sm:$0xff]
        %v1687 = vld [vmem:[#allocation10 + $0xa8] sm:$0xff]
        %v1688 = vld [vmem:[#allocation10 + $0xb0] sm:$0xff]
        %v1689 = vld [vmem:[#allocation10 + $0xb8] sm:$0xff]
        %v1690 = vld [vmem:[#allocation10 + $0xc0] sm:$0xff]
        %v1691 = vld [vmem:[#allocation10 + $0xc8] sm:$0xff]
        %v1692 = vld [vmem:[#allocation10 + $0xd0] sm:$0xff]
        %v1693 = vld [vmem:[#allocation10 + $0xd8] sm:$0xff]
        %v1694 = vld [vmem:[#allocation10 + $0xe0] sm:$0xff]
        %v1695 = vld [vmem:[#allocation10 + $0xe8] sm:$0xff]
        %v1696 = vld [vmem:[#allocation10 + $0xf0] sm:$0xff]
        %v1697 = vld [vmem:[#allocation10 + $0xf8] sm:$0xff]
        %v1698 = vld [vmem:[#allocation10 + $0x100] sm:$0xff]
        %v1699 = vld [vmem:[#allocation10 + $0x108] sm:$0xff]
        %v1700 = vld [vmem:[#allocation10 + $0x110] sm:$0xff]
        %v1701 = vld [vmem:[#allocation10 + $0x118] sm:$0xff]
        %v1702 = vld [vmem:[#allocation10 + $0x120] sm:$0xff]
        %v1703 = vld [vmem:[#allocation10 + $0x128] sm:$0xff]
        %v1704 = vld [vmem:[#allocation10 + $0x130] sm:$0xff]
        %v1705 = vld [vmem:[#allocation10 + $0x138] sm:$0xff]
        %v1706 = vld [vmem:[#allocation10 + $0x140] sm:$0xff]
        %v1707 = vld [vmem:[#allocation10 + $0x148] sm:$0xff]
        %v1708 = vld [vmem:[#allocation10 + $0x150] sm:$0xff]
        %v1709 = vld [vmem:[#allocation10 + $0x158] sm:$0xff]
        %v1710 = vld [vmem:[#allocation10 + $0x160] sm:$0xff]
        %v1711 = vld [vmem:[#allocation10 + $0x168] sm:$0xff]
        %v1712 = vld [vmem:[#allocation10 + $0x170] sm:$0xff]
        %v1713 = vld [vmem:[#allocation10 + $0x178] sm:$0xff]
        %v1714 = vld [vmem:[#allocation10 + $0x180] sm:$0xff]
        %v1715 = vld [vmem:[#allocation10 + $0x188] sm:$0xff]
        %v1716 = vld [vmem:[#allocation10 + $0x190] sm:$0xff]
        %v1717 = vld [vmem:[#allocation10 + $0x198] sm:$0xff]
        %v1718 = vld [vmem:[#allocation10 + $0x1a0] sm:$0xff]
        %v1719 = vld [vmem:[#allocation10 + $0x1a8] sm:$0xff]
        %v1720 = vld [vmem:[#allocation10 + $0x1b0] sm:$0xff]
        %v1721 = vld [vmem:[#allocation10 + $0x1b8] sm:$0xff]
        %v1722 = vld [vmem:[#allocation10 + $0x1c0] sm:$0xff]
        %v1723 = vld [vmem:[#allocation10 + $0x1c8] sm:$0xff]
        %v1724 = vld [vmem:[#allocation10 + $0x1d0] sm:$0xff]
        %v1725 = vld [vmem:[#allocation10 + $0x1d8] sm:$0xff]
        %v1726 = vld [vmem:[#allocation10 + $0x1e0] sm:$0xff]
        %v1727 = vld [vmem:[#allocation10 + $0x1e8] sm:$0xff]
        %v1728 = vld [vmem:[#allocation10 + $0x1f0] sm:$0xff]
        %v1729 = vld [vmem:[#allocation10 + $0x1f8] sm:$0xff]
        %v1730 = vld [vmem:[#allocation10 + $0x200] sm:$0xff]
        %v1731 = vld [vmem:[#allocation10 + $0x208] sm:$0xff]
        %v1732 = vld [vmem:[#allocation10 + $0x210] sm:$0xff]
        %v1733 = vld [vmem:[#allocation10 + $0x218] sm:$0xff]
        %v1734 = vld [vmem:[#allocation10 + $0x220] sm:$0xff]
        %v1735 = vld [vmem:[#allocation10 + $0x228] sm:$0xff]
        %v1736 = vld [vmem:[#allocation10 + $0x230] sm:$0xff]
        %v1737 = vld [vmem:[#allocation10 + $0x238] sm:$0xff]
        %v1738 = vld [vmem:[#allocation10 + $0x240] sm:$0xff]
        %v1739 = vld [vmem:[#allocation10 + $0x248] sm:$0xff]
        %v1740 = vld [vmem:[#allocation10 + $0x250] sm:$0xff]
        %v1741 = vld [vmem:[#allocation10 + $0x258] sm:$0xff]
        %v1742 = vld [vmem:[#allocation10 + $0x260] sm:$0xff]
        %v1743 = vld [vmem:[#allocation10 + $0x268] sm:$0xff]
        %v1744 = vld [vmem:[#allocation10 + $0x270] sm:$0xff]
        %v1745 = vld [vmem:[#allocation10 + $0x278] sm:$0xff]
        %v1746 = vld [vmem:[#allocation10 + $0x280] sm:$0xff]
        %v1747 = vld [vmem:[#allocation10 + $0x288] sm:$0xff]
        %v1748 = vld [vmem:[#allocation10 + $0x290] sm:$0xff]
        %v1749 = vld [vmem:[#allocation10 + $0x298] sm:$0xff]
        %v1750 = vld [vmem:[#allocation10 + $0x2a0] sm:$0xff]
        %v1751 = vld [vmem:[#allocation10 + $0x2a8] sm:$0xff]
        %v1752 = vld [vmem:[#allocation10 + $0x2b0] sm:$0xff]
        %v1753 = vld [vmem:[#allocation10 + $0x2b8] sm:$0xff]
        %v1754 = vld [vmem:[#allocation10 + $0x2c0] sm:$0xff]
        %v1755 = vld [vmem:[#allocation10 + $0x2c8] sm:$0xff]
        %v1756 = vld [vmem:[#allocation10 + $0x2d0] sm:$0xff]
        %v1757 = vld [vmem:[#allocation10 + $0x2d8] sm:$0xff]
        %v1758 = vld [vmem:[#allocation10 + $0x2e0] sm:$0xff]
        %v1759 = vld [vmem:[#allocation10 + $0x2e8] sm:$0xff]
        %v1760 = vld [vmem:[#allocation10 + $0x2f0] sm:$0xff]
        %v1761 = vld [vmem:[#allocation10 + $0x2f8] sm:$0xff]
        %v1762 = vld [vmem:[#allocation10 + $0x300] sm:$0xff]
        %v1763 = vld [vmem:[#allocation10 + $0x308] sm:$0xff]
        %v1764 = vld [vmem:[#allocation10 + $0x310] sm:$0xff]
        %v1765 = vld [vmem:[#allocation10 + $0x318] sm:$0xff]
        %v1766 = vld [vmem:[#allocation10 + $0x320] sm:$0xff]
        %v1767 = vld [vmem:[#allocation10 + $0x328] sm:$0xff]
        %v1768 = vld [vmem:[#allocation10 + $0x330] sm:$0xff]
        %v1769 = vld [vmem:[#allocation10 + $0x338] sm:$0xff]
        %v1770 = vld [vmem:[#allocation10 + $0x340] sm:$0xff]
        %v1771 = vld [vmem:[#allocation10 + $0x348] sm:$0xff]
        %v1772 = vld [vmem:[#allocation10 + $0x350] sm:$0xff]
        %v1773 = vld [vmem:[#allocation10 + $0x358] sm:$0xff]
        %v1774 = vld [vmem:[#allocation10 + $0x360] sm:$0xff]
        %v1775 = vld [vmem:[#allocation10 + $0x368] sm:$0xff]
        %v1776 = vld [vmem:[#allocation10 + $0x370] sm:$0xff]
        %v1777 = vld [vmem:[#allocation10 + $0x378] sm:$0xff]
        %v1778 = vld [vmem:[#allocation10 + $0x380] sm:$0xff]
        %v1779 = vld [vmem:[#allocation10 + $0x388] sm:$0xff]
        %v1780 = vld [vmem:[#allocation10 + $0x390] sm:$0xff]
        %v1781 = vld [vmem:[#allocation10 + $0x398] sm:$0xff]
        %v1782 = vld [vmem:[#allocation10 + $0x3a0] sm:$0xff]
        %v1783 = vld [vmem:[#allocation10 + $0x3a8] sm:$0xff]
        %v1784 = vld [vmem:[#allocation10 + $0x3b0] sm:$0xff]
        %v1785 = vld [vmem:[#allocation10 + $0x3b8] sm:$0xff]
        %v1786 = vld [vmem:[#allocation10 + $0x3c0] sm:$0xff]
        %v1787 = vld [vmem:[#allocation10 + $0x3c8] sm:$0xff]
        %v1788 = vld [vmem:[#allocation10 + $0x3d0] sm:$0xff]
        %v1789 = vld [vmem:[#allocation10 + $0x3d8] sm:$0xff]
        %v1790 = vld [vmem:[#allocation10 + $0x3e0] sm:$0xff]
        %v1791 = vld [vmem:[#allocation10 + $0x3e8] sm:$0xff]
        %v1792 = vld [vmem:[#allocation10 + $0x3f0] sm:$0xff]
        %v1793 = vld [vmem:[#allocation10 + $0x3f8] sm:$0xff]
        %v1794 = vld [vmem:[#allocation10 + $0x400] sm:$0xff]
        %v1795 = vld [vmem:[#allocation10 + $0x408] sm:$0xff]
        %v1796 = vld [vmem:[#allocation10 + $0x410] sm:$0xff]
        %v1797 = vld [vmem:[#allocation10 + $0x418] sm:$0xff]
        %v1798 = vld [vmem:[#allocation10 + $0x420] sm:$0xff]
        %v1799 = vld [vmem:[#allocation10 + $0x428] sm:$0xff]
        %v1800 = vld [vmem:[#allocation10 + $0x430] sm:$0xff]
        %v1801 = vld [vmem:[#allocation10 + $0x438] sm:$0xff]
        %v1802 = vld [vmem:[#allocation10 + $0x440] sm:$0xff]
        %v1803 = vld [vmem:[#allocation10 + $0x448] sm:$0xff]
        %v1804 = vld [vmem:[#allocation10 + $0x450] sm:$0xff]
        %v1805 = vld [vmem:[#allocation10 + $0x458] sm:$0xff]
        %v1806 = vld [vmem:[#allocation10 + $0x460] sm:$0xff]
        %v1807 = vld [vmem:[#allocation10 + $0x468] sm:$0xff]
        %v1808 = vld [vmem:[#allocation10 + $0x470] sm:$0xff]
        %v1809 = vld [vmem:[#allocation10 + $0x478] sm:$0xff]
        %v1810 = vld [vmem:[#allocation10 + $0x480] sm:$0xff]
        %v1811 = vld [vmem:[#allocation10 + $0x488] sm:$0xff]
        %v1812 = vld [vmem:[#allocation10 + $0x490] sm:$0xff]
        %v1813 = vld [vmem:[#allocation10 + $0x498] sm:$0xff]
        %v1814 = vld [vmem:[#allocation10 + $0x4a0] sm:$0xff]
        %v1815 = vld [vmem:[#allocation10 + $0x4a8] sm:$0xff]
        %v1816 = vld [vmem:[#allocation10 + $0x4b0] sm:$0xff]
        %v1817 = vld [vmem:[#allocation10 + $0x4b8] sm:$0xff]
        %v1818 = vld [vmem:[#allocation10 + $0x4c0] sm:$0xff]
        %v1819 = vld [vmem:[#allocation10 + $0x4c8] sm:$0xff]
        %v1820 = vld [vmem:[#allocation10 + $0x4d0] sm:$0xff]
        %v1821 = vld [vmem:[#allocation10 + $0x4d8] sm:$0xff]
        %v1822 = vld [vmem:[#allocation10 + $0x4e0] sm:$0xff]
        %v1823 = vld [vmem:[#allocation10 + $0x4e8] sm:$0xff]
        %v1824 = vld [vmem:[#allocation10 + $0x4f0] sm:$0xff]
        %v1825 = vld [vmem:[#allocation10 + $0x4f8] sm:$0xff]
        %v1826 = vld [vmem:[#allocation10 + $0x500] sm:$0xff]
        %v1827 = vld [vmem:[#allocation10 + $0x508] sm:$0xff]
        %v1828 = vld [vmem:[#allocation10 + $0x510] sm:$0xff]
        %v1829 = vld [vmem:[#allocation10 + $0x518] sm:$0xff]
        %v1830 = vld [vmem:[#allocation10 + $0x520] sm:$0xff]
        %v1831 = vld [vmem:[#allocation10 + $0x528] sm:$0xff]
        %v1832 = vld [vmem:[#allocation10 + $0x530] sm:$0xff]
        %v1833 = vld [vmem:[#allocation10 + $0x538] sm:$0xff]
        %v1834 = vld [vmem:[#allocation10 + $0x540] sm:$0xff]
        %v1835 = vld [vmem:[#allocation10 + $0x548] sm:$0xff]
        %v1836 = vld [vmem:[#allocation10 + $0x550] sm:$0xff]
        %v1837 = vld [vmem:[#allocation10 + $0x558] sm:$0xff]
        %v1838 = vld [vmem:[#allocation10 + $0x560] sm:$0xff]
        %v1839 = vld [vmem:[#allocation10 + $0x568] sm:$0xff]
        %v1840 = vld [vmem:[#allocation10 + $0x570] sm:$0xff]
        %v1841 = vld [vmem:[#allocation10 + $0x578] sm:$0xff]
        %v1842 = vld [vmem:[#allocation10 + $0x580] sm:$0xff]
        %v1843 = vld [vmem:[#allocation10 + $0x588] sm:$0xff]
        %v1844 = vld [vmem:[#allocation10 + $0x590] sm:$0xff]
        %v1845 = vld [vmem:[#allocation10 + $0x598] sm:$0xff]
        %v1846 = vld [vmem:[#allocation10 + $0x5a0] sm:$0xff]
        %v1847 = vld [vmem:[#allocation10 + $0x5a8] sm:$0xff]
        %v1848 = vld [vmem:[#allocation10 + $0x5b0] sm:$0xff]
        %v1849 = vld [vmem:[#allocation10 + $0x5b8] sm:$0xff]
        %v1850 = vld [vmem:[#allocation10 + $0x5c0] sm:$0xff]
        %v1851 = vld [vmem:[#allocation10 + $0x5c8] sm:$0xff]
        %v1852 = vld [vmem:[#allocation10 + $0x5d0] sm:$0xff]
        %v1853 = vld [vmem:[#allocation10 + $0x5d8] sm:$0xff]
        %v1854 = vld [vmem:[#allocation10 + $0x5e0] sm:$0xff]
        %v1855 = vld [vmem:[#allocation10 + $0x5e8] sm:$0xff]
        %v1856 = vld [vmem:[#allocation10 + $0x5f0] sm:$0xff]
        %v1857 = vld [vmem:[#allocation10 + $0x5f8] sm:$0xff]
        %v1858 = vld [vmem:[#allocation10 + $0x600] sm:$0xff]
        %v1859 = vld [vmem:[#allocation10 + $0x608] sm:$0xff]
        %v1860 = vld [vmem:[#allocation10 + $0x610] sm:$0xff]
        %v1861 = vld [vmem:[#allocation10 + $0x618] sm:$0xff]
        %v1862 = vld [vmem:[#allocation10 + $0x620] sm:$0xff]
        %v1863 = vld [vmem:[#allocation10 + $0x628] sm:$0xff]
        %v1864 = vld [vmem:[#allocation10 + $0x630] sm:$0xff]
        %v1865 = vld [vmem:[#allocation10 + $0x638] sm:$0xff]
        %v1866 = vld [vmem:[#allocation10 + $0x640] sm:$0xff]
        %v1867 = vld [vmem:[#allocation10 + $0x648] sm:$0xff]
        %v1868 = vld [vmem:[#allocation10 + $0x650] sm:$0xff]
        %v1869 = vld [vmem:[#allocation10 + $0x658] sm:$0xff]
        %v1870 = vld [vmem:[#allocation10 + $0x660] sm:$0xff]
        %v1871 = vld [vmem:[#allocation10 + $0x668] sm:$0xff]
        %v1872 = vld [vmem:[#allocation10 + $0x670] sm:$0xff]
        %v1873 = vld [vmem:[#allocation10 + $0x678] sm:$0xff]
        %v1874 = vld [vmem:[#allocation10 + $0x680] sm:$0xff]
        %v1875 = vld [vmem:[#allocation10 + $0x688] sm:$0xff]
        %v1876 = vld [vmem:[#allocation10 + $0x690] sm:$0xff]
        %v1877 = vld [vmem:[#allocation10 + $0x698] sm:$0xff]
        %v1878 = vld [vmem:[#allocation10 + $0x6a0] sm:$0xff]
        %v1879 = vld [vmem:[#allocation10 + $0x6a8] sm:$0xff]
        %v1880 = vld [vmem:[#allocation10 + $0x6b0] sm:$0xff]
        %v1881 = vld [vmem:[#allocation10 + $0x6b8] sm:$0xff]
        %v1882 = vld [vmem:[#allocation10 + $0x6c0] sm:$0xff]
        %v1883 = vld [vmem:[#allocation10 + $0x6c8] sm:$0xff]
        %v1884 = vld [vmem:[#allocation10 + $0x6d0] sm:$0xff]
        %v1885 = vld [vmem:[#allocation10 + $0x6d8] sm:$0xff]
        %v1886 = vld [vmem:[#allocation10 + $0x6e0] sm:$0xff]
        %v1887 = vld [vmem:[#allocation10 + $0x6e8] sm:$0xff]
        %v1888 = vld [vmem:[#allocation10 + $0x6f0] sm:$0xff]
        %v1889 = vld [vmem:[#allocation10 + $0x6f8] sm:$0xff]
        %v1890 = vld [vmem:[#allocation10 + $0x700] sm:$0xff]
        %v1891 = vld [vmem:[#allocation10 + $0x708] sm:$0xff]
        %v1892 = vld [vmem:[#allocation10 + $0x710] sm:$0xff]
        %v1893 = vld [vmem:[#allocation10 + $0x718] sm:$0xff]
        %v1894 = vld [vmem:[#allocation10 + $0x720] sm:$0xff]
        %v1895 = vld [vmem:[#allocation10 + $0x728] sm:$0xff]
        %v1896 = vld [vmem:[#allocation10 + $0x730] sm:$0xff]
        %v1897 = vld [vmem:[#allocation10 + $0x738] sm:$0xff]
        %v1898 = vld [vmem:[#allocation10 + $0x740] sm:$0xff]
        %v1899 = vld [vmem:[#allocation10 + $0x748] sm:$0xff]
        %v1900 = vld [vmem:[#allocation10 + $0x750] sm:$0xff]
        %v1901 = vld [vmem:[#allocation10 + $0x758] sm:$0xff]
        %v1902 = vld [vmem:[#allocation10 + $0x760] sm:$0xff]
        %v1903 = vld [vmem:[#allocation10 + $0x768] sm:$0xff]
        %v1904 = vld [vmem:[#allocation10 + $0x770] sm:$0xff]
        %v1905 = vld [vmem:[#allocation10 + $0x778] sm:$0xff]
        %v1906 = vld [vmem:[#allocation10 + $0x780] sm:$0xff]
        %v1907 = vld [vmem:[#allocation10 + $0x788] sm:$0xff]
        %v1908 = vld [vmem:[#allocation10 + $0x790] sm:$0xff]
        %v1909 = vld [vmem:[#allocation10 + $0x798] sm:$0xff]
        %v1910 = vld [vmem:[#allocation10 + $0x7a0] sm:$0xff]
        %v1911 = vld [vmem:[#allocation10 + $0x7a8] sm:$0xff]
        %v1912 = vld [vmem:[#allocation10 + $0x7b0] sm:$0xff]
        %v1913 = vld [vmem:[#allocation10 + $0x7b8] sm:$0xff]
        %v1914 = vld [vmem:[#allocation10 + $0x7c0] sm:$0xff]
        %v1915 = vld [vmem:[#allocation10 + $0x7c8] sm:$0xff]
        %v1916 = vld [vmem:[#allocation10 + $0x7d0] sm:$0xff]
        %v1917 = vld [vmem:[#allocation10 + $0x7d8] sm:$0xff]
        %v1918 = vld [vmem:[#allocation10 + $0x7e0] sm:$0xff]
        %v1919 = vld [vmem:[#allocation10 + $0x7e8] sm:$0xff]
        %v1920 = vld [vmem:[#allocation10 + $0x7f0] sm:$0xff]
        %v1921 = vld [vmem:[#allocation10 + $0x7f8] sm:$0xff]
        %v1922 = vld [vmem:[#allocation11] sm:$0xff]
        %v1924 = vlaneseq
        %v1925 = vshrl.u32 %v1924, 7
        %v1926 = vsub.s32 0, %v1925
        %v1927 = vrot.slane %v1922, %v1926
        %v1928 = vlaneseq
        %v1929 = vshrl.u32 %v1928, 7
        %v1930 = vsub.s32 1, %v1929
        %v1931 = vrot.slane %v1922, %v1930
        %v1932 = vlaneseq
        %v1933 = vshrl.u32 %v1932, 7
        %v1934 = vsub.s32 2, %v1933
        %v1935 = vrot.slane %v1922, %v1934
        %v1936 = vlaneseq
        %v1937 = vshrl.u32 %v1936, 7
        %v1938 = vsub.s32 3, %v1937
        %v1939 = vrot.slane %v1922, %v1938
        %v1940 = vlaneseq
        %v1941 = vshrl.u32 %v1940, 7
        %v1942 = vsub.s32 4, %v1941
        %v1943 = vrot.slane %v1922, %v1942
        %v1944 = vlaneseq
        %v1945 = vshrl.u32 %v1944, 7
        %v1946 = vsub.s32 5, %v1945
        %v1947 = vrot.slane %v1922, %v1946
        %v1948 = vlaneseq
        %v1949 = vshrl.u32 %v1948, 7
        %v1950 = vsub.s32 6, %v1949
        %v1951 = vrot.slane %v1922, %v1950
        %v1952 = vlaneseq
        %v1953 = vshrl.u32 %v1952, 7
        %v1954 = vsub.s32 7, %v1953
        %v1955 = vrot.slane %v1922, %v1954
        %v2220 = vunpack.c.l.b16 %v1666
        %v2221 = vunpack.c.h.b16 %v1666
        %v2222 = vunpack.c.l.b16 %v1667
        %v2223 = vunpack.c.h.b16 %v1667
        %v2224 = vunpack.c.l.b16 %v1668
        %v2225 = vunpack.c.h.b16 %v1668
        %v2226 = vunpack.c.l.b16 %v1669
        %v2227 = vunpack.c.h.b16 %v1669
        %v2228 = vunpack.c.l.b16 %v1670
        %v2229 = vunpack.c.h.b16 %v1670
        %v2230 = vunpack.c.l.b16 %v1671
        %v2231 = vunpack.c.h.b16 %v1671
        %v2232 = vunpack.c.l.b16 %v1672
        %v2233 = vunpack.c.h.b16 %v1672
        %v2234 = vunpack.c.l.b16 %v1673
        %v2235 = vunpack.c.h.b16 %v1673
        %v2236 = vunpack.c.l.b16 %v1674
        %v2237 = vunpack.c.h.b16 %v1674
        %v2238 = vunpack.c.l.b16 %v1675
        %v2239 = vunpack.c.h.b16 %v1675
        %v2240 = vunpack.c.l.b16 %v1676
        %v2241 = vunpack.c.h.b16 %v1676
        %v2242 = vunpack.c.l.b16 %v1677
        %v2243 = vunpack.c.h.b16 %v1677
        %v2244 = vunpack.c.l.b16 %v1678
        %v2245 = vunpack.c.h.b16 %v1678
        %v2246 = vunpack.c.l.b16 %v1679
        %v2247 = vunpack.c.h.b16 %v1679
        %v2248 = vunpack.c.l.b16 %v1680
        %v2249 = vunpack.c.h.b16 %v1680
        %v2250 = vunpack.c.l.b16 %v1681
        %v2251 = vunpack.c.h.b16 %v1681
        %v2252 = vunpack.c.l.b16 %v1682
        %v2253 = vunpack.c.h.b16 %v1682
        %v2254 = vunpack.c.l.b16 %v1683
        %v2255 = vunpack.c.h.b16 %v1683
        %v2256 = vunpack.c.l.b16 %v1684
        %v2257 = vunpack.c.h.b16 %v1684
        %v2258 = vunpack.c.l.b16 %v1685
        %v2259 = vunpack.c.h.b16 %v1685
        %v2260 = vunpack.c.l.b16 %v1686
        %v2261 = vunpack.c.h.b16 %v1686
        %v2262 = vunpack.c.l.b16 %v1687
        %v2263 = vunpack.c.h.b16 %v1687
        %v2264 = vunpack.c.l.b16 %v1688
        %v2265 = vunpack.c.h.b16 %v1688
        %v2266 = vunpack.c.l.b16 %v1689
        %v2267 = vunpack.c.h.b16 %v1689
        %v2268 = vunpack.c.l.b16 %v1690
        %v2269 = vunpack.c.h.b16 %v1690
        %v2270 = vunpack.c.l.b16 %v1691
        %v2271 = vunpack.c.h.b16 %v1691
        %v2272 = vunpack.c.l.b16 %v1692
        %v2273 = vunpack.c.h.b16 %v1692
        %v2274 = vunpack.c.l.b16 %v1693
        %v2275 = vunpack.c.h.b16 %v1693
        %v2276 = vunpack.c.l.b16 %v1694
        %v2277 = vunpack.c.h.b16 %v1694
        %v2278 = vunpack.c.l.b16 %v1695
        %v2279 = vunpack.c.h.b16 %v1695
        %v2280 = vunpack.c.l.b16 %v1696
        %v2281 = vunpack.c.h.b16 %v1696
        %v2282 = vunpack.c.l.b16 %v1697
        %v2283 = vunpack.c.h.b16 %v1697
        %v2284 = vunpack.c.l.b16 %v1698
        %v2285 = vunpack.c.h.b16 %v1698
        %v2286 = vunpack.c.l.b16 %v1699
        %v2287 = vunpack.c.h.b16 %v1699
        %v2288 = vunpack.c.l.b16 %v1700
        %v2289 = vunpack.c.h.b16 %v1700
        %v2290 = vunpack.c.l.b16 %v1701
        %v2291 = vunpack.c.h.b16 %v1701
        %v2292 = vunpack.c.l.b16 %v1702
        %v2293 = vunpack.c.h.b16 %v1702
        %v2294 = vunpack.c.l.b16 %v1703
        %v2295 = vunpack.c.h.b16 %v1703
        %v2296 = vunpack.c.l.b16 %v1704
        %v2297 = vunpack.c.h.b16 %v1704
        %v2298 = vunpack.c.l.b16 %v1705
        %v2299 = vunpack.c.h.b16 %v1705
        %v2300 = vunpack.c.l.b16 %v1706
        %v2301 = vunpack.c.h.b16 %v1706
        %v2302 = vunpack.c.l.b16 %v1707
        %v2303 = vunpack.c.h.b16 %v1707
        %v2304 = vunpack.c.l.b16 %v1708
        %v2305 = vunpack.c.h.b16 %v1708
        %v2306 = vunpack.c.l.b16 %v1709
        %v2307 = vunpack.c.h.b16 %v1709
        %v2308 = vunpack.c.l.b16 %v1710
        %v2309 = vunpack.c.h.b16 %v1710
        %v2310 = vunpack.c.l.b16 %v1711
        %v2311 = vunpack.c.h.b16 %v1711
        %v2312 = vunpack.c.l.b16 %v1712
        %v2313 = vunpack.c.h.b16 %v1712
        %v2314 = vunpack.c.l.b16 %v1713
        %v2315 = vunpack.c.h.b16 %v1713
        %v2316 = vunpack.c.l.b16 %v1714
        %v2317 = vunpack.c.h.b16 %v1714
        %v2318 = vunpack.c.l.b16 %v1715
        %v2319 = vunpack.c.h.b16 %v1715
        %v2320 = vunpack.c.l.b16 %v1716
        %v2321 = vunpack.c.h.b16 %v1716
        %v2322 = vunpack.c.l.b16 %v1717
        %v2323 = vunpack.c.h.b16 %v1717
        %v2324 = vunpack.c.l.b16 %v1718
        %v2325 = vunpack.c.h.b16 %v1718
        %v2326 = vunpack.c.l.b16 %v1719
        %v2327 = vunpack.c.h.b16 %v1719
        %v2328 = vunpack.c.l.b16 %v1720
        %v2329 = vunpack.c.h.b16 %v1720
        %v2330 = vunpack.c.l.b16 %v1721
        %v2331 = vunpack.c.h.b16 %v1721
        %v2332 = vunpack.c.l.b16 %v1722
        %v2333 = vunpack.c.h.b16 %v1722
        %v2334 = vunpack.c.l.b16 %v1723
        %v2335 = vunpack.c.h.b16 %v1723
        %v2336 = vunpack.c.l.b16 %v1724
        %v2337 = vunpack.c.h.b16 %v1724
        %v2338 = vunpack.c.l.b16 %v1725
        %v2339 = vunpack.c.h.b16 %v1725
        %v2340 = vunpack.c.l.b16 %v1726
        %v2341 = vunpack.c.h.b16 %v1726
        %v2342 = vunpack.c.l.b16 %v1727
        %v2343 = vunpack.c.h.b16 %v1727
        %v2344 = vunpack.c.l.b16 %v1728
        %v2345 = vunpack.c.h.b16 %v1728
        %v2346 = vunpack.c.l.b16 %v1729
        %v2347 = vunpack.c.h.b16 %v1729
        %v2348 = vunpack.c.l.b16 %v1730
        %v2349 = vunpack.c.h.b16 %v1730
        %v2350 = vunpack.c.l.b16 %v1731
        %v2351 = vunpack.c.h.b16 %v1731
        %v2352 = vunpack.c.l.b16 %v1732
        %v2353 = vunpack.c.h.b16 %v1732
        %v2354 = vunpack.c.l.b16 %v1733
        %v2355 = vunpack.c.h.b16 %v1733
        %v2356 = vunpack.c.l.b16 %v1734
        %v2357 = vunpack.c.h.b16 %v1734
        %v2358 = vunpack.c.l.b16 %v1735
        %v2359 = vunpack.c.h.b16 %v1735
        %v2360 = vunpack.c.l.b16 %v1736
        %v2361 = vunpack.c.h.b16 %v1736
        %v2362 = vunpack.c.l.b16 %v1737
        %v2363 = vunpack.c.h.b16 %v1737
        %v2364 = vunpack.c.l.b16 %v1738
        %v2365 = vunpack.c.h.b16 %v1738
        %v2366 = vunpack.c.l.b16 %v1739
        %v2367 = vunpack.c.h.b16 %v1739
        %v2368 = vunpack.c.l.b16 %v1740
        %v2369 = vunpack.c.h.b16 %v1740
        %v2370 = vunpack.c.l.b16 %v1741
        %v2371 = vunpack.c.h.b16 %v1741
        %v2372 = vunpack.c.l.b16 %v1742
        %v2373 = vunpack.c.h.b16 %v1742
        %v2374 = vunpack.c.l.b16 %v1743
        %v2375 = vunpack.c.h.b16 %v1743
        %v2376 = vunpack.c.l.b16 %v1744
        %v2377 = vunpack.c.h.b16 %v1744
        %v2378 = vunpack.c.l.b16 %v1745
        %v2379 = vunpack.c.h.b16 %v1745
        %v2380 = vunpack.c.l.b16 %v1746
        %v2381 = vunpack.c.h.b16 %v1746
        %v2382 = vunpack.c.l.b16 %v1747
        %v2383 = vunpack.c.h.b16 %v1747
        %v2384 = vunpack.c.l.b16 %v1748
        %v2385 = vunpack.c.h.b16 %v1748
        %v2386 = vunpack.c.l.b16 %v1749
        %v2387 = vunpack.c.h.b16 %v1749
        %v2388 = vunpack.c.l.b16 %v1750
        %v2389 = vunpack.c.h.b16 %v1750
        %v2390 = vunpack.c.l.b16 %v1751
        %v2391 = vunpack.c.h.b16 %v1751
        %v2392 = vunpack.c.l.b16 %v1752
        %v2393 = vunpack.c.h.b16 %v1752
        %v2394 = vunpack.c.l.b16 %v1753
        %v2395 = vunpack.c.h.b16 %v1753
        %v2396 = vunpack.c.l.b16 %v1754
        %v2397 = vunpack.c.h.b16 %v1754
        %v2398 = vunpack.c.l.b16 %v1755
        %v2399 = vunpack.c.h.b16 %v1755
        %v2400 = vunpack.c.l.b16 %v1756
        %v2401 = vunpack.c.h.b16 %v1756
        %v2402 = vunpack.c.l.b16 %v1757
        %v2403 = vunpack.c.h.b16 %v1757
        %v2404 = vunpack.c.l.b16 %v1758
        %v2405 = vunpack.c.h.b16 %v1758
        %v2406 = vunpack.c.l.b16 %v1759
        %v2407 = vunpack.c.h.b16 %v1759
        %v2408 = vunpack.c.l.b16 %v1760
        %v2409 = vunpack.c.h.b16 %v1760
        %v2410 = vunpack.c.l.b16 %v1761
        %v2411 = vunpack.c.h.b16 %v1761
        %v2412 = vunpack.c.l.b16 %v1762
        %v2413 = vunpack.c.h.b16 %v1762
        %v2414 = vunpack.c.l.b16 %v1763
        %v2415 = vunpack.c.h.b16 %v1763
        %v2416 = vunpack.c.l.b16 %v1764
        %v2417 = vunpack.c.h.b16 %v1764
        %v2418 = vunpack.c.l.b16 %v1765
        %v2419 = vunpack.c.h.b16 %v1765
        %v2420 = vunpack.c.l.b16 %v1766
        %v2421 = vunpack.c.h.b16 %v1766
        %v2422 = vunpack.c.l.b16 %v1767
        %v2423 = vunpack.c.h.b16 %v1767
        %v2424 = vunpack.c.l.b16 %v1768
        %v2425 = vunpack.c.h.b16 %v1768
        %v2426 = vunpack.c.l.b16 %v1769
        %v2427 = vunpack.c.h.b16 %v1769
        %v2428 = vunpack.c.l.b16 %v1770
        %v2429 = vunpack.c.h.b16 %v1770
        %v2430 = vunpack.c.l.b16 %v1771
        %v2431 = vunpack.c.h.b16 %v1771
        %v2432 = vunpack.c.l.b16 %v1772
        %v2433 = vunpack.c.h.b16 %v1772
        %v2434 = vunpack.c.l.b16 %v1773
        %v2435 = vunpack.c.h.b16 %v1773
        %v2436 = vunpack.c.l.b16 %v1774
        %v2437 = vunpack.c.h.b16 %v1774
        %v2438 = vunpack.c.l.b16 %v1775
        %v2439 = vunpack.c.h.b16 %v1775
        %v2440 = vunpack.c.l.b16 %v1776
        %v2441 = vunpack.c.h.b16 %v1776
        %v2442 = vunpack.c.l.b16 %v1777
        %v2443 = vunpack.c.h.b16 %v1777
        %v2444 = vunpack.c.l.b16 %v1778
        %v2445 = vunpack.c.h.b16 %v1778
        %v2446 = vunpack.c.l.b16 %v1779
        %v2447 = vunpack.c.h.b16 %v1779
        %v2448 = vunpack.c.l.b16 %v1780
        %v2449 = vunpack.c.h.b16 %v1780
        %v2450 = vunpack.c.l.b16 %v1781
        %v2451 = vunpack.c.h.b16 %v1781
        %v2452 = vunpack.c.l.b16 %v1782
        %v2453 = vunpack.c.h.b16 %v1782
        %v2454 = vunpack.c.l.b16 %v1783
        %v2455 = vunpack.c.h.b16 %v1783
        %v2456 = vunpack.c.l.b16 %v1784
        %v2457 = vunpack.c.h.b16 %v1784
        %v2458 = vunpack.c.l.b16 %v1785
        %v2459 = vunpack.c.h.b16 %v1785
        %v2460 = vunpack.c.l.b16 %v1786
        %v2461 = vunpack.c.h.b16 %v1786
        %v2462 = vunpack.c.l.b16 %v1787
        %v2463 = vunpack.c.h.b16 %v1787
        %v2464 = vunpack.c.l.b16 %v1788
        %v2465 = vunpack.c.h.b16 %v1788
        %v2466 = vunpack.c.l.b16 %v1789
        %v2467 = vunpack.c.h.b16 %v1789
        %v2468 = vunpack.c.l.b16 %v1790
        %v2469 = vunpack.c.h.b16 %v1790
        %v2470 = vunpack.c.l.b16 %v1791
        %v2471 = vunpack.c.h.b16 %v1791
        %v2472 = vunpack.c.l.b16 %v1792
        %v2473 = vunpack.c.h.b16 %v1792
        %v2474 = vunpack.c.l.b16 %v1793
        %v2475 = vunpack.c.h.b16 %v1793
        %v2476 = vunpack.c.l.b16 %v1794
        %v2477 = vunpack.c.h.b16 %v1794
        %v2478 = vunpack.c.l.b16 %v1795
        %v2479 = vunpack.c.h.b16 %v1795
        %v2480 = vunpack.c.l.b16 %v1796
        %v2481 = vunpack.c.h.b16 %v1796
        %v2482 = vunpack.c.l.b16 %v1797
        %v2483 = vunpack.c.h.b16 %v1797
        %v2484 = vunpack.c.l.b16 %v1798
        %v2485 = vunpack.c.h.b16 %v1798
        %v2486 = vunpack.c.l.b16 %v1799
        %v2487 = vunpack.c.h.b16 %v1799
        %v2488 = vunpack.c.l.b16 %v1800
        %v2489 = vunpack.c.h.b16 %v1800
        %v2490 = vunpack.c.l.b16 %v1801
        %v2491 = vunpack.c.h.b16 %v1801
        %v2492 = vunpack.c.l.b16 %v1802
        %v2493 = vunpack.c.h.b16 %v1802
        %v2494 = vunpack.c.l.b16 %v1803
        %v2495 = vunpack.c.h.b16 %v1803
        %v2496 = vunpack.c.l.b16 %v1804
        %v2497 = vunpack.c.h.b16 %v1804
        %v2498 = vunpack.c.l.b16 %v1805
        %v2499 = vunpack.c.h.b16 %v1805
        %v2500 = vunpack.c.l.b16 %v1806
        %v2501 = vunpack.c.h.b16 %v1806
        %v2502 = vunpack.c.l.b16 %v1807
        %v2503 = vunpack.c.h.b16 %v1807
        %v2504 = vunpack.c.l.b16 %v1808
        %v2505 = vunpack.c.h.b16 %v1808
        %v2506 = vunpack.c.l.b16 %v1809
        %v2507 = vunpack.c.h.b16 %v1809
        %v2508 = vunpack.c.l.b16 %v1810
        %v2509 = vunpack.c.h.b16 %v1810
        %v2510 = vunpack.c.l.b16 %v1811
        %v2511 = vunpack.c.h.b16 %v1811
        %v2512 = vunpack.c.l.b16 %v1812
        %v2513 = vunpack.c.h.b16 %v1812
        %v2514 = vunpack.c.l.b16 %v1813
        %v2515 = vunpack.c.h.b16 %v1813
        %v2516 = vunpack.c.l.b16 %v1814
        %v2517 = vunpack.c.h.b16 %v1814
        %v2518 = vunpack.c.l.b16 %v1815
        %v2519 = vunpack.c.h.b16 %v1815
        %v2520 = vunpack.c.l.b16 %v1816
        %v2521 = vunpack.c.h.b16 %v1816
        %v2522 = vunpack.c.l.b16 %v1817
        %v2523 = vunpack.c.h.b16 %v1817
        %v2524 = vunpack.c.l.b16 %v1818
        %v2525 = vunpack.c.h.b16 %v1818
        %v2526 = vunpack.c.l.b16 %v1819
        %v2527 = vunpack.c.h.b16 %v1819
        %v2528 = vunpack.c.l.b16 %v1820
        %v2529 = vunpack.c.h.b16 %v1820
        %v2530 = vunpack.c.l.b16 %v1821
        %v2531 = vunpack.c.h.b16 %v1821
        %v2532 = vunpack.c.l.b16 %v1822
        %v2533 = vunpack.c.h.b16 %v1822
        %v2534 = vunpack.c.l.b16 %v1823
        %v2535 = vunpack.c.h.b16 %v1823
        %v2536 = vunpack.c.l.b16 %v1824
        %v2537 = vunpack.c.h.b16 %v1824
        %v2538 = vunpack.c.l.b16 %v1825
        %v2539 = vunpack.c.h.b16 %v1825
        %v2540 = vunpack.c.l.b16 %v1826
        %v2541 = vunpack.c.h.b16 %v1826
        %v2542 = vunpack.c.l.b16 %v1827
        %v2543 = vunpack.c.h.b16 %v1827
        %v2544 = vunpack.c.l.b16 %v1828
        %v2545 = vunpack.c.h.b16 %v1828
        %v2546 = vunpack.c.l.b16 %v1829
        %v2547 = vunpack.c.h.b16 %v1829
        %v2548 = vunpack.c.l.b16 %v1830
        %v2549 = vunpack.c.h.b16 %v1830
        %v2550 = vunpack.c.l.b16 %v1831
        %v2551 = vunpack.c.h.b16 %v1831
        %v2552 = vunpack.c.l.b16 %v1832
        %v2553 = vunpack.c.h.b16 %v1832
        %v2554 = vunpack.c.l.b16 %v1833
        %v2555 = vunpack.c.h.b16 %v1833
        %v2556 = vunpack.c.l.b16 %v1834
        %v2557 = vunpack.c.h.b16 %v1834
        %v2558 = vunpack.c.l.b16 %v1835
        %v2559 = vunpack.c.h.b16 %v1835
        %v2560 = vunpack.c.l.b16 %v1836
        %v2561 = vunpack.c.h.b16 %v1836
        %v2562 = vunpack.c.l.b16 %v1837
        %v2563 = vunpack.c.h.b16 %v1837
        %v2564 = vunpack.c.l.b16 %v1838
        %v2565 = vunpack.c.h.b16 %v1838
        %v2566 = vunpack.c.l.b16 %v1839
        %v2567 = vunpack.c.h.b16 %v1839
        %v2568 = vunpack.c.l.b16 %v1840
        %v2569 = vunpack.c.h.b16 %v1840
        %v2570 = vunpack.c.l.b16 %v1841
        %v2571 = vunpack.c.h.b16 %v1841
        %v2572 = vunpack.c.l.b16 %v1842
        %v2573 = vunpack.c.h.b16 %v1842
        %v2574 = vunpack.c.l.b16 %v1843
        %v2575 = vunpack.c.h.b16 %v1843
        %v2576 = vunpack.c.l.b16 %v1844
        %v2577 = vunpack.c.h.b16 %v1844
        %v2578 = vunpack.c.l.b16 %v1845
        %v2579 = vunpack.c.h.b16 %v1845
        %v2580 = vunpack.c.l.b16 %v1846
        %v2581 = vunpack.c.h.b16 %v1846
        %v2582 = vunpack.c.l.b16 %v1847
        %v2583 = vunpack.c.h.b16 %v1847
        %v2584 = vunpack.c.l.b16 %v1848
        %v2585 = vunpack.c.h.b16 %v1848
        %v2586 = vunpack.c.l.b16 %v1849
        %v2587 = vunpack.c.h.b16 %v1849
        %v2588 = vunpack.c.l.b16 %v1850
        %v2589 = vunpack.c.h.b16 %v1850
        %v2590 = vunpack.c.l.b16 %v1851
        %v2591 = vunpack.c.h.b16 %v1851
        %v2592 = vunpack.c.l.b16 %v1852
        %v2593 = vunpack.c.h.b16 %v1852
        %v2594 = vunpack.c.l.b16 %v1853
        %v2595 = vunpack.c.h.b16 %v1853
        %v2596 = vunpack.c.l.b16 %v1854
        %v2597 = vunpack.c.h.b16 %v1854
        %v2598 = vunpack.c.l.b16 %v1855
        %v2599 = vunpack.c.h.b16 %v1855
        %v2600 = vunpack.c.l.b16 %v1856
        %v2601 = vunpack.c.h.b16 %v1856
        %v2602 = vunpack.c.l.b16 %v1857
        %v2603 = vunpack.c.h.b16 %v1857
        %v2604 = vunpack.c.l.b16 %v1858
        %v2605 = vunpack.c.h.b16 %v1858
        %v2606 = vunpack.c.l.b16 %v1859
        %v2607 = vunpack.c.h.b16 %v1859
        %v2608 = vunpack.c.l.b16 %v1860
        %v2609 = vunpack.c.h.b16 %v1860
        %v2610 = vunpack.c.l.b16 %v1861
        %v2611 = vunpack.c.h.b16 %v1861
        %v2612 = vunpack.c.l.b16 %v1862
        %v2613 = vunpack.c.h.b16 %v1862
        %v2614 = vunpack.c.l.b16 %v1863
        %v2615 = vunpack.c.h.b16 %v1863
        %v2616 = vunpack.c.l.b16 %v1864
        %v2617 = vunpack.c.h.b16 %v1864
        %v2618 = vunpack.c.l.b16 %v1865
        %v2619 = vunpack.c.h.b16 %v1865
        %v2620 = vunpack.c.l.b16 %v1866
        %v2621 = vunpack.c.h.b16 %v1866
        %v2622 = vunpack.c.l.b16 %v1867
        %v2623 = vunpack.c.h.b16 %v1867
        %v2624 = vunpack.c.l.b16 %v1868
        %v2625 = vunpack.c.h.b16 %v1868
        %v2626 = vunpack.c.l.b16 %v1869
        %v2627 = vunpack.c.h.b16 %v1869
        %v2628 = vunpack.c.l.b16 %v1870
        %v2629 = vunpack.c.h.b16 %v1870
        %v2630 = vunpack.c.l.b16 %v1871
        %v2631 = vunpack.c.h.b16 %v1871
        %v2632 = vunpack.c.l.b16 %v1872
        %v2633 = vunpack.c.h.b16 %v1872
        %v2634 = vunpack.c.l.b16 %v1873
        %v2635 = vunpack.c.h.b16 %v1873
        %v2636 = vunpack.c.l.b16 %v1874
        %v2637 = vunpack.c.h.b16 %v1874
        %v2638 = vunpack.c.l.b16 %v1875
        %v2639 = vunpack.c.h.b16 %v1875
        %v2640 = vunpack.c.l.b16 %v1876
        %v2641 = vunpack.c.h.b16 %v1876
        %v2642 = vunpack.c.l.b16 %v1877
        %v2643 = vunpack.c.h.b16 %v1877
        %v2644 = vunpack.c.l.b16 %v1878
        %v2645 = vunpack.c.h.b16 %v1878
        %v2646 = vunpack.c.l.b16 %v1879
        %v2647 = vunpack.c.h.b16 %v1879
        %v2648 = vunpack.c.l.b16 %v1880
        %v2649 = vunpack.c.h.b16 %v1880
        %v2650 = vunpack.c.l.b16 %v1881
        %v2651 = vunpack.c.h.b16 %v1881
        %v2652 = vunpack.c.l.b16 %v1882
        %v2653 = vunpack.c.h.b16 %v1882
        %v2654 = vunpack.c.l.b16 %v1883
        %v2655 = vunpack.c.h.b16 %v1883
        %v2656 = vunpack.c.l.b16 %v1884
        %v2657 = vunpack.c.h.b16 %v1884
        %v2658 = vunpack.c.l.b16 %v1885
        %v2659 = vunpack.c.h.b16 %v1885
        %v2660 = vunpack.c.l.b16 %v1886
        %v2661 = vunpack.c.h.b16 %v1886
        %v2662 = vunpack.c.l.b16 %v1887
        %v2663 = vunpack.c.h.b16 %v1887
        %v2664 = vunpack.c.l.b16 %v1888
        %v2665 = vunpack.c.h.b16 %v1888
        %v2666 = vunpack.c.l.b16 %v1889
        %v2667 = vunpack.c.h.b16 %v1889
        %v2668 = vunpack.c.l.b16 %v1890
        %v2669 = vunpack.c.h.b16 %v1890
        %v2670 = vunpack.c.l.b16 %v1891
        %v2671 = vunpack.c.h.b16 %v1891
        %v2672 = vunpack.c.l.b16 %v1892
        %v2673 = vunpack.c.h.b16 %v1892
        %v2674 = vunpack.c.l.b16 %v1893
        %v2675 = vunpack.c.h.b16 %v1893
        %v2676 = vunpack.c.l.b16 %v1894
        %v2677 = vunpack.c.h.b16 %v1894
        %v2678 = vunpack.c.l.b16 %v1895
        %v2679 = vunpack.c.h.b16 %v1895
        %v2680 = vunpack.c.l.b16 %v1896
        %v2681 = vunpack.c.h.b16 %v1896
        %v2682 = vunpack.c.l.b16 %v1897
        %v2683 = vunpack.c.h.b16 %v1897
        %v2684 = vunpack.c.l.b16 %v1898
        %v2685 = vunpack.c.h.b16 %v1898
        %v2686 = vunpack.c.l.b16 %v1899
        %v2687 = vunpack.c.h.b16 %v1899
        %v2688 = vunpack.c.l.b16 %v1900
        %v2689 = vunpack.c.h.b16 %v1900
        %v2690 = vunpack.c.l.b16 %v1901
        %v2691 = vunpack.c.h.b16 %v1901
        %v2692 = vunpack.c.l.b16 %v1902
        %v2693 = vunpack.c.h.b16 %v1902
        %v2694 = vunpack.c.l.b16 %v1903
        %v2695 = vunpack.c.h.b16 %v1903
        %v2696 = vunpack.c.l.b16 %v1904
        %v2697 = vunpack.c.h.b16 %v1904
        %v2698 = vunpack.c.l.b16 %v1905
        %v2699 = vunpack.c.h.b16 %v1905
        %v2700 = vunpack.c.l.b16 %v1906
        %v2701 = vunpack.c.h.b16 %v1906
        %v2702 = vunpack.c.l.b16 %v1907
        %v2703 = vunpack.c.h.b16 %v1907
        %v2704 = vunpack.c.l.b16 %v1908
        %v2705 = vunpack.c.h.b16 %v1908
        %v2706 = vunpack.c.l.b16 %v1909
        %v2707 = vunpack.c.h.b16 %v1909
        %v2708 = vunpack.c.l.b16 %v1910
        %v2709 = vunpack.c.h.b16 %v1910
        %v2710 = vunpack.c.l.b16 %v1911
        %v2711 = vunpack.c.h.b16 %v1911
        %v2712 = vunpack.c.l.b16 %v1912
        %v2713 = vunpack.c.h.b16 %v1912
        %v2714 = vunpack.c.l.b16 %v1913
        %v2715 = vunpack.c.h.b16 %v1913
        %v2716 = vunpack.c.l.b16 %v1914
        %v2717 = vunpack.c.h.b16 %v1914
        %v2718 = vunpack.c.l.b16 %v1915
        %v2719 = vunpack.c.h.b16 %v1915
        %v2720 = vunpack.c.l.b16 %v1916
        %v2721 = vunpack.c.h.b16 %v1916
        %v2722 = vunpack.c.l.b16 %v1917
        %v2723 = vunpack.c.h.b16 %v1917
        %v2724 = vunpack.c.l.b16 %v1918
        %v2725 = vunpack.c.h.b16 %v1918
        %v2726 = vunpack.c.l.b16 %v1919
        %v2727 = vunpack.c.h.b16 %v1919
        %v2728 = vunpack.c.l.b16 %v1920
        %v2729 = vunpack.c.h.b16 %v1920
        %v2730 = vunpack.c.l.b16 %v1921
        %v2731 = vunpack.c.h.b16 %v1921
        %v2732 = vpack.c.b16 %v2228, %v2220
        %v2733 = vpack.c.b16 %v2229, %v2221
        %v2734 = vpack.c.b16 %v2230, %v2222
        %v2735 = vpack.c.b16 %v2231, %v2223
        %v2736 = vpack.c.b16 %v2232, %v2224
        %v2737 = vpack.c.b16 %v2233, %v2225
        %v2738 = vpack.c.b16 %v2234, %v2226
        %v2739 = vpack.c.b16 %v2235, %v2227
        %v2740 = vpack.c.b16 %v2244, %v2236
        %v2741 = vpack.c.b16 %v2245, %v2237
        %v2742 = vpack.c.b16 %v2246, %v2238
        %v2743 = vpack.c.b16 %v2247, %v2239
        %v2744 = vpack.c.b16 %v2248, %v2240
        %v2745 = vpack.c.b16 %v2249, %v2241
        %v2746 = vpack.c.b16 %v2250, %v2242
        %v2747 = vpack.c.b16 %v2251, %v2243
        %v2748 = vpack.c.b16 %v2260, %v2252
        %v2749 = vpack.c.b16 %v2261, %v2253
        %v2750 = vpack.c.b16 %v2262, %v2254
        %v2751 = vpack.c.b16 %v2263, %v2255
        %v2752 = vpack.c.b16 %v2264, %v2256
        %v2753 = vpack.c.b16 %v2265, %v2257
        %v2754 = vpack.c.b16 %v2266, %v2258
        %v2755 = vpack.c.b16 %v2267, %v2259
        %v2756 = vpack.c.b16 %v2276, %v2268
        %v2757 = vpack.c.b16 %v2277, %v2269
        %v2758 = vpack.c.b16 %v2278, %v2270
        %v2759 = vpack.c.b16 %v2279, %v2271
        %v2760 = vpack.c.b16 %v2280, %v2272
        %v2761 = vpack.c.b16 %v2281, %v2273
        %v2762 = vpack.c.b16 %v2282, %v2274
        %v2763 = vpack.c.b16 %v2283, %v2275
        %v2764 = vpack.c.b16 %v2292, %v2284
        %v2765 = vpack.c.b16 %v2293, %v2285
        %v2766 = vpack.c.b16 %v2294, %v2286
        %v2767 = vpack.c.b16 %v2295, %v2287
        %v2768 = vpack.c.b16 %v2296, %v2288
        %v2769 = vpack.c.b16 %v2297, %v2289
        %v2770 = vpack.c.b16 %v2298, %v2290
        %v2771 = vpack.c.b16 %v2299, %v2291
        %v2772 = vpack.c.b16 %v2308, %v2300
        %v2773 = vpack.c.b16 %v2309, %v2301
        %v2774 = vpack.c.b16 %v2310, %v2302
        %v2775 = vpack.c.b16 %v2311, %v2303
        %v2776 = vpack.c.b16 %v2312, %v2304
        %v2777 = vpack.c.b16 %v2313, %v2305
        %v2778 = vpack.c.b16 %v2314, %v2306
        %v2779 = vpack.c.b16 %v2315, %v2307
        %v2780 = vpack.c.b16 %v2324, %v2316
        %v2781 = vpack.c.b16 %v2325, %v2317
        %v2782 = vpack.c.b16 %v2326, %v2318
        %v2783 = vpack.c.b16 %v2327, %v2319
        %v2784 = vpack.c.b16 %v2328, %v2320
        %v2785 = vpack.c.b16 %v2329, %v2321
        %v2786 = vpack.c.b16 %v2330, %v2322
        %v2787 = vpack.c.b16 %v2331, %v2323
        %v2788 = vpack.c.b16 %v2340, %v2332
        %v2789 = vpack.c.b16 %v2341, %v2333
        %v2790 = vpack.c.b16 %v2342, %v2334
        %v2791 = vpack.c.b16 %v2343, %v2335
        %v2792 = vpack.c.b16 %v2344, %v2336
        %v2793 = vpack.c.b16 %v2345, %v2337
        %v2794 = vpack.c.b16 %v2346, %v2338
        %v2795 = vpack.c.b16 %v2347, %v2339
        %v2796 = vpack.c.b16 %v2356, %v2348
        %v2797 = vpack.c.b16 %v2357, %v2349
        %v2798 = vpack.c.b16 %v2358, %v2350
        %v2799 = vpack.c.b16 %v2359, %v2351
        %v2800 = vpack.c.b16 %v2360, %v2352
        %v2801 = vpack.c.b16 %v2361, %v2353
        %v2802 = vpack.c.b16 %v2362, %v2354
        %v2803 = vpack.c.b16 %v2363, %v2355
        %v2804 = vpack.c.b16 %v2372, %v2364
        %v2805 = vpack.c.b16 %v2373, %v2365
        %v2806 = vpack.c.b16 %v2374, %v2366
        %v2807 = vpack.c.b16 %v2375, %v2367
        %v2808 = vpack.c.b16 %v2376, %v2368
        %v2809 = vpack.c.b16 %v2377, %v2369
        %v2810 = vpack.c.b16 %v2378, %v2370
        %v2811 = vpack.c.b16 %v2379, %v2371
        %v2812 = vpack.c.b16 %v2388, %v2380
        %v2813 = vpack.c.b16 %v2389, %v2381
        %v2814 = vpack.c.b16 %v2390, %v2382
        %v2815 = vpack.c.b16 %v2391, %v2383
        %v2816 = vpack.c.b16 %v2392, %v2384
        %v2817 = vpack.c.b16 %v2393, %v2385
        %v2818 = vpack.c.b16 %v2394, %v2386
        %v2819 = vpack.c.b16 %v2395, %v2387
        %v2820 = vpack.c.b16 %v2404, %v2396
        %v2821 = vpack.c.b16 %v2405, %v2397
        %v2822 = vpack.c.b16 %v2406, %v2398
        %v2823 = vpack.c.b16 %v2407, %v2399
        %v2824 = vpack.c.b16 %v2408, %v2400
        %v2825 = vpack.c.b16 %v2409, %v2401
        %v2826 = vpack.c.b16 %v2410, %v2402
        %v2827 = vpack.c.b16 %v2411, %v2403
        %v2828 = vpack.c.b16 %v2420, %v2412
        %v2829 = vpack.c.b16 %v2421, %v2413
        %v2830 = vpack.c.b16 %v2422, %v2414
        %v2831 = vpack.c.b16 %v2423, %v2415
        %v2832 = vpack.c.b16 %v2424, %v2416
        %v2833 = vpack.c.b16 %v2425, %v2417
        %v2834 = vpack.c.b16 %v2426, %v2418
        %v2835 = vpack.c.b16 %v2427, %v2419
        %v2836 = vpack.c.b16 %v2436, %v2428
        %v2837 = vpack.c.b16 %v2437, %v2429
        %v2838 = vpack.c.b16 %v2438, %v2430
        %v2839 = vpack.c.b16 %v2439, %v2431
        %v2840 = vpack.c.b16 %v2440, %v2432
        %v2841 = vpack.c.b16 %v2441, %v2433
        %v2842 = vpack.c.b16 %v2442, %v2434
        %v2843 = vpack.c.b16 %v2443, %v2435
        %v2844 = vpack.c.b16 %v2452, %v2444
        %v2845 = vpack.c.b16 %v2453, %v2445
        %v2846 = vpack.c.b16 %v2454, %v2446
        %v2847 = vpack.c.b16 %v2455, %v2447
        %v2848 = vpack.c.b16 %v2456, %v2448
        %v2849 = vpack.c.b16 %v2457, %v2449
        %v2850 = vpack.c.b16 %v2458, %v2450
        %v2851 = vpack.c.b16 %v2459, %v2451
        %v2852 = vpack.c.b16 %v2468, %v2460
        %v2853 = vpack.c.b16 %v2469, %v2461
        %v2854 = vpack.c.b16 %v2470, %v2462
        %v2855 = vpack.c.b16 %v2471, %v2463
        %v2856 = vpack.c.b16 %v2472, %v2464
        %v2857 = vpack.c.b16 %v2473, %v2465
        %v2858 = vpack.c.b16 %v2474, %v2466
        %v2859 = vpack.c.b16 %v2475, %v2467
        %v2860 = vpack.c.b16 %v2484, %v2476
        %v2861 = vpack.c.b16 %v2485, %v2477
        %v2862 = vpack.c.b16 %v2486, %v2478
        %v2863 = vpack.c.b16 %v2487, %v2479
        %v2864 = vpack.c.b16 %v2488, %v2480
        %v2865 = vpack.c.b16 %v2489, %v2481
        %v2866 = vpack.c.b16 %v2490, %v2482
        %v2867 = vpack.c.b16 %v2491, %v2483
        %v2868 = vpack.c.b16 %v2500, %v2492
        %v2869 = vpack.c.b16 %v2501, %v2493
        %v2870 = vpack.c.b16 %v2502, %v2494
        %v2871 = vpack.c.b16 %v2503, %v2495
        %v2872 = vpack.c.b16 %v2504, %v2496
        %v2873 = vpack.c.b16 %v2505, %v2497
        %v2874 = vpack.c.b16 %v2506, %v2498
        %v2875 = vpack.c.b16 %v2507, %v2499
        %v2876 = vpack.c.b16 %v2516, %v2508
        %v2877 = vpack.c.b16 %v2517, %v2509
        %v2878 = vpack.c.b16 %v2518, %v2510
        %v2879 = vpack.c.b16 %v2519, %v2511
        %v2880 = vpack.c.b16 %v2520, %v2512
        %v2881 = vpack.c.b16 %v2521, %v2513
        %v2882 = vpack.c.b16 %v2522, %v2514
        %v2883 = vpack.c.b16 %v2523, %v2515
        %v2884 = vpack.c.b16 %v2532, %v2524
        %v2885 = vpack.c.b16 %v2533, %v2525
        %v2886 = vpack.c.b16 %v2534, %v2526
        %v2887 = vpack.c.b16 %v2535, %v2527
        %v2888 = vpack.c.b16 %v2536, %v2528
        %v2889 = vpack.c.b16 %v2537, %v2529
        %v2890 = vpack.c.b16 %v2538, %v2530
        %v2891 = vpack.c.b16 %v2539, %v2531
        %v2892 = vpack.c.b16 %v2548, %v2540
        %v2893 = vpack.c.b16 %v2549, %v2541
        %v2894 = vpack.c.b16 %v2550, %v2542
        %v2895 = vpack.c.b16 %v2551, %v2543
        %v2896 = vpack.c.b16 %v2552, %v2544
        %v2897 = vpack.c.b16 %v2553, %v2545
        %v2898 = vpack.c.b16 %v2554, %v2546
        %v2899 = vpack.c.b16 %v2555, %v2547
        %v2900 = vpack.c.b16 %v2564, %v2556
        %v2901 = vpack.c.b16 %v2565, %v2557
        %v2902 = vpack.c.b16 %v2566, %v2558
        %v2903 = vpack.c.b16 %v2567, %v2559
        %v2904 = vpack.c.b16 %v2568, %v2560
        %v2905 = vpack.c.b16 %v2569, %v2561
        %v2906 = vpack.c.b16 %v2570, %v2562
        %v2907 = vpack.c.b16 %v2571, %v2563
        %v2908 = vpack.c.b16 %v2580, %v2572
        %v2909 = vpack.c.b16 %v2581, %v2573
        %v2910 = vpack.c.b16 %v2582, %v2574
        %v2911 = vpack.c.b16 %v2583, %v2575
        %v2912 = vpack.c.b16 %v2584, %v2576
        %v2913 = vpack.c.b16 %v2585, %v2577
        %v2914 = vpack.c.b16 %v2586, %v2578
        %v2915 = vpack.c.b16 %v2587, %v2579
        %v2916 = vpack.c.b16 %v2596, %v2588
        %v2917 = vpack.c.b16 %v2597, %v2589
        %v2918 = vpack.c.b16 %v2598, %v2590
        %v2919 = vpack.c.b16 %v2599, %v2591
        %v2920 = vpack.c.b16 %v2600, %v2592
        %v2921 = vpack.c.b16 %v2601, %v2593
        %v2922 = vpack.c.b16 %v2602, %v2594
        %v2923 = vpack.c.b16 %v2603, %v2595
        %v2924 = vpack.c.b16 %v2612, %v2604
        %v2925 = vpack.c.b16 %v2613, %v2605
        %v2926 = vpack.c.b16 %v2614, %v2606
        %v2927 = vpack.c.b16 %v2615, %v2607
        %v2928 = vpack.c.b16 %v2616, %v2608
        %v2929 = vpack.c.b16 %v2617, %v2609
        %v2930 = vpack.c.b16 %v2618, %v2610
        %v2931 = vpack.c.b16 %v2619, %v2611
        %v2932 = vpack.c.b16 %v2628, %v2620
        %v2933 = vpack.c.b16 %v2629, %v2621
        %v2934 = vpack.c.b16 %v2630, %v2622
        %v2935 = vpack.c.b16 %v2631, %v2623
        %v2936 = vpack.c.b16 %v2632, %v2624
        %v2937 = vpack.c.b16 %v2633, %v2625
        %v2938 = vpack.c.b16 %v2634, %v2626
        %v2939 = vpack.c.b16 %v2635, %v2627
        %v2940 = vpack.c.b16 %v2644, %v2636
        %v2941 = vpack.c.b16 %v2645, %v2637
        %v2942 = vpack.c.b16 %v2646, %v2638
        %v2943 = vpack.c.b16 %v2647, %v2639
        %v2944 = vpack.c.b16 %v2648, %v2640
        %v2945 = vpack.c.b16 %v2649, %v2641
        %v2946 = vpack.c.b16 %v2650, %v2642
        %v2947 = vpack.c.b16 %v2651, %v2643
        %v2948 = vpack.c.b16 %v2660, %v2652
        %v2949 = vpack.c.b16 %v2661, %v2653
        %v2950 = vpack.c.b16 %v2662, %v2654
        %v2951 = vpack.c.b16 %v2663, %v2655
        %v2952 = vpack.c.b16 %v2664, %v2656
        %v2953 = vpack.c.b16 %v2665, %v2657
        %v2954 = vpack.c.b16 %v2666, %v2658
        %v2955 = vpack.c.b16 %v2667, %v2659
        %v2956 = vpack.c.b16 %v2676, %v2668
        %v2957 = vpack.c.b16 %v2677, %v2669
        %v2958 = vpack.c.b16 %v2678, %v2670
        %v2959 = vpack.c.b16 %v2679, %v2671
        %v2960 = vpack.c.b16 %v2680, %v2672
        %v2961 = vpack.c.b16 %v2681, %v2673
        %v2962 = vpack.c.b16 %v2682, %v2674
        %v2963 = vpack.c.b16 %v2683, %v2675
        %v2964 = vpack.c.b16 %v2692, %v2684
        %v2965 = vpack.c.b16 %v2693, %v2685
        %v2966 = vpack.c.b16 %v2694, %v2686
        %v2967 = vpack.c.b16 %v2695, %v2687
        %v2968 = vpack.c.b16 %v2696, %v2688
        %v2969 = vpack.c.b16 %v2697, %v2689
        %v2970 = vpack.c.b16 %v2698, %v2690
        %v2971 = vpack.c.b16 %v2699, %v2691
        %v2972 = vpack.c.b16 %v2708, %v2700
        %v2973 = vpack.c.b16 %v2709, %v2701
        %v2974 = vpack.c.b16 %v2710, %v2702
        %v2975 = vpack.c.b16 %v2711, %v2703
        %v2976 = vpack.c.b16 %v2712, %v2704
        %v2977 = vpack.c.b16 %v2713, %v2705
        %v2978 = vpack.c.b16 %v2714, %v2706
        %v2979 = vpack.c.b16 %v2715, %v2707
        %v2980 = vpack.c.b16 %v2724, %v2716
        %v2981 = vpack.c.b16 %v2725, %v2717
        %v2982 = vpack.c.b16 %v2726, %v2718
        %v2983 = vpack.c.b16 %v2727, %v2719
        %v2984 = vpack.c.b16 %v2728, %v2720
        %v2985 = vpack.c.b16 %v2729, %v2721
        %v2986 = vpack.c.b16 %v2730, %v2722
        %v2987 = vpack.c.b16 %v2731, %v2723
        %3244 = vmatprep.subr.bf16.mxu0 %v2733
        %3245 = vmatpush1.bf16.msra.mxu0 %v2732
        %3246 = vmatprep.subr.bf16.mxu0 %v2741
        %3247 = vmatpush1.bf16.msra.mxu0 %v2740
        %3248 = vmatprep.subr.bf16.mxu0 %v2749
        %3249 = vmatpush1.bf16.msra.mxu0 %v2748
        %3250 = vmatprep.subr.bf16.mxu0 %v2757
        %3251 = vmatpush1.bf16.msra.mxu0 %v2756
        %3252 = vmatprep.subr.bf16.mxu0 %v2765
        %3253 = vmatpush1.bf16.msra.mxu0 %v2764
        %3254 = vmatprep.subr.bf16.mxu0 %v2773
        %3255 = vmatpush1.bf16.msra.mxu0 %v2772
        %3256 = vmatprep.subr.bf16.mxu0 %v2781
        %3257 = vmatpush1.bf16.msra.mxu0 %v2780
        %3258 = vmatprep.subr.bf16.mxu0 %v2789
        %3259 = vmatpush1.bf16.msra.mxu0 %v2788
        %3260 = vmatprep.subr.bf16.mxu0 %v2797
        %3261 = vmatpush1.bf16.msra.mxu0 %v2796
        %3262 = vmatprep.subr.bf16.mxu0 %v2805
        %3263 = vmatpush1.bf16.msra.mxu0 %v2804
        %3264 = vmatprep.subr.bf16.mxu0 %v2813
        %3265 = vmatpush1.bf16.msra.mxu0 %v2812
        %3266 = vmatprep.subr.bf16.mxu0 %v2821
        %3267 = vmatpush1.bf16.msra.mxu0 %v2820
        %3268 = vmatprep.subr.bf16.mxu0 %v2829
        %3269 = vmatpush1.bf16.msra.mxu0 %v2828
        %3270 = vmatprep.subr.bf16.mxu0 %v2837
        %3271 = vmatpush1.bf16.msra.mxu0 %v2836
        %3272 = vmatprep.subr.bf16.mxu0 %v2845
        %3273 = vmatpush1.bf16.msra.mxu0 %v2844
        %3274 = vmatprep.subr.bf16.mxu0 %v2853
        %3275 = vmatpush1.bf16.msra.mxu0 %v2852
        %3276 = vmatprep.mubr.bf16.mxu0 %v1635
        %3277 = vmatmul.mubr.bf16.gmra.mrb[0].mxu0 %v1634
        %v3278 = vpop.f32.mrb[0].mxu0
        %v3279 = vadd.f32 %v1927, %v3278
        %v3280 = vpop.f32.mrb[0].mxu0
        %v3281 = vadd.f32 %v1931, %v3280
        %v3282 = vpop.f32.mrb[0].mxu0
        %v3283 = vadd.f32 %v1927, %v3282
        %v3284 = vpop.f32.mrb[0].mxu0
        %v3285 = vadd.f32 %v1931, %v3284
        %3286 = vmatprep.mubr.bf16.mxu0 %v1639
        %3287 = vmatmul.mubr.bf16.gmra.mrb[0].mxu0 %v1638
        %v3288 = vpop.f32.mrb[0].mxu0
        %v3289 = vadd.f32 %v1927, %v3288
        %v3290 = vpop.f32.mrb[0].mxu0
        %v3291 = vadd.f32 %v1931, %v3290
        %v3292 = vpop.f32.mrb[0].mxu0
        %v3293 = vadd.f32 %v1927, %v3292
        %v3294 = vpop.f32.mrb[0].mxu0
        %v3295 = vadd.f32 %v1931, %v3294
        %3296 = vmatprep.mubr.bf16.mxu0 %v1643
        %3297 = vmatmul.mubr.bf16.gmra.mrb[0].mxu0 %v1642
        %v3298 = vpop.f32.mrb[0].mxu0
        %v3299 = vadd.f32 %v1927, %v3298
        %v3300 = vpop.f32.mrb[0].mxu0
        %v3301 = vadd.f32 %v1931, %v3300
        %v3302 = vpop.f32.mrb[0].mxu0
        %v3303 = vadd.f32 %v1927, %v3302
        %v3304 = vpop.f32.mrb[0].mxu0
        %v3305 = vadd.f32 %v1931, %v3304
        %3306 = vmatprep.mubr.bf16.mxu0 %v1647
        %3307 = vmatmul.mubr.bf16.gmra.mrb[0].mxu0 %v1646
        %v3308 = vpop.f32.mrb[0].mxu0
        %v3309 = vadd.f32 %v1927, %v3308
        %v3310 = vpop.f32.mrb[0].mxu0
        %v3311 = vadd.f32 %v1931, %v3310
        %v3312 = vpop.f32.mrb[0].mxu0
        %v3313 = vadd.f32 %v1927, %v3312
        %v3314 = vpop.f32.mrb[0].mxu0
        %v3315 = vadd.f32 %v1931, %v3314
        %3316 = vmatprep.mubr.bf16.mxu0 %v1651
        %3317 = vmatmul.mubr.bf16.gmra.mrb[0].mxu0 %v1650
        %v3318 = vpop.f32.mrb[0].mxu0
        %v3319 = vadd.f32 %v1927, %v3318
        %v3320 = vpop.f32.mrb[0].mxu0
        %v3321 = vadd.f32 %v1931, %v3320
        %v3322 = vpop.f32.mrb[0].mxu0
        %v3323 = vadd.f32 %v1927, %v3322
        %v3324 = vpop.f32.mrb[0].mxu0
        %v3325 = vadd.f32 %v1931, %v3324
        %3326 = vmatprep.mubr.bf16.mxu0 %v1655
        %3327 = vmatmul.mubr.bf16.gmra.mrb[0].mxu0 %v1654
        %v3328 = vpop.f32.mrb[0].mxu0
        %v3329 = vadd.f32 %v1927, %v3328
        %v3330 = vpop.f32.mrb[0].mxu0
        %v3331 = vadd.f32 %v1931, %v3330
        %v3332 = vpop.f32.mrb[0].mxu0
        %v3333 = vadd.f32 %v1927, %v3332
        %v3334 = vpop.f32.mrb[0].mxu0
        %v3335 = vadd.f32 %v1931, %v3334
        %3336 = vmatprep.mubr.bf16.mxu0 %v1659
        %3337 = vmatmul.mubr.bf16.gmra.mrb[0].mxu0 %v1658
        %v3338 = vpop.f32.mrb[0].mxu0
        %v3339 = vadd.f32 %v1927, %v3338
        %v3340 = vpop.f32.mrb[0].mxu0
        %v3341 = vadd.f32 %v1931, %v3340
        %v3342 = vpop.f32.mrb[0].mxu0
        %v3343 = vadd.f32 %v1927, %v3342
        %v3344 = vpop.f32.mrb[0].mxu0
        %v3345 = vadd.f32 %v1931, %v3344
        %3346 = vmatprep.mubr.bf16.mxu0 %v1663
        %3347 = vmatmul.mubr.bf16.gmra.mrb[0].mxu0 %v1662
        %v3348 = vpop.f32.mrb[0].mxu0
        %v3349 = vadd.f32 %v1927, %v3348
        %v3350 = vpop.f32.mrb[0].mxu0
        %v3351 = vadd.f32 %v1931, %v3350
        %v3352 = vpop.f32.mrb[0].mxu0
        %v3353 = vadd.f32 %v1927, %v3352
        %v3354 = vpop.f32.mrb[0].mxu0
        %v3355 = vadd.f32 %v1931, %v3354
        %3356 = vdwg.mxu0
        %3357 = vmatprep.subr.bf16.mxu0 %v2861
        %3358 = vmatpush1.bf16.msra.mxu0 %v2860
        %3359 = vmatprep.subr.bf16.mxu0 %v2869
        %3360 = vmatpush1.bf16.msra.mxu0 %v2868
        %3361 = vmatprep.subr.bf16.mxu0 %v2877
        %3362 = vmatpush1.bf16.msra.mxu0 %v2876
        %3363 = vmatprep.subr.bf16.mxu0 %v2885
        %3364 = vmatpush1.bf16.msra.mxu0 %v2884
        %3365 = vmatprep.subr.bf16.mxu0 %v2893
        %3366 = vmatpush1.bf16.msra.mxu0 %v2892
        %3367 = vmatprep.subr.bf16.mxu0 %v2901
        %3368 = vmatpush1.bf16.msra.mxu0 %v2900
        %3369 = vmatprep.subr.bf16.mxu0 %v2909
        %3370 = vmatpush1.bf16.msra.mxu0 %v2908
        %3371 = vmatprep.subr.bf16.mxu0 %v2917
        %3372 = vmatpush1.bf16.msra.mxu0 %v2916
        %3373 = vmatprep.subr.bf16.mxu0 %v2925
        %3374 = vmatpush1.bf16.msra.mxu0 %v2924
        %3375 = vmatprep.subr.bf16.mxu0 %v2933
        %3376 = vmatpush1.bf16.msra.mxu0 %v2932
        %3377 = vmatprep.subr.bf16.mxu0 %v2941
        %3378 = vmatpush1.bf16.msra.mxu0 %v2940
        %3379 = vmatprep.subr.bf16.mxu0 %v2949
        %3380 = vmatpush1.bf16.msra.mxu0 %v2948
        %3381 = vmatprep.subr.bf16.mxu0 %v2957
        %3382 = vmatpush1.bf16.msra.mxu0 %v2956
        %3383 = vmatprep.subr.bf16.mxu0 %v2965
        %3384 = vmatpush1.bf16.msra.mxu0 %v2964
        %3385 = vmatprep.subr.bf16.mxu0 %v2973
        %3386 = vmatpush1.bf16.msra.mxu0 %v2972
        %3387 = vmatprep.subr.bf16.mxu0 %v2981
        %3388 = vmatpush1.bf16.msra.mxu0 %v2980
        %3389 = vmatprep.mubr.bf16.mxu0 %v1637
        %3390 = vmatmul.mubr.bf16.gmra.mrb[0].mxu0 %v1636
        %v3391 = vpop.f32.mrb[0].mxu0
        %v3392 = vadd.f32 %v3279, %v3391
        %v3393 = vpop.f32.mrb[0].mxu0
        %v3394 = vadd.f32 %v3281, %v3393
        %v3395 = vpop.f32.mrb[0].mxu0
        %v3396 = vadd.f32 %v3283, %v3395
        %v3397 = vpop.f32.mrb[0].mxu0
        %v3398 = vadd.f32 %v3285, %v3397
        %3399 = vmatprep.mubr.bf16.mxu0 %v1641
        %3400 = vmatmul.mubr.bf16.gmra.mrb[0].mxu0 %v1640
        %v3401 = vpop.f32.mrb[0].mxu0
        %v3402 = vadd.f32 %v3289, %v3401
        %v3403 = vpop.f32.mrb[0].mxu0
        %v3404 = vadd.f32 %v3291, %v3403
        %v3405 = vpop.f32.mrb[0].mxu0
        %v3406 = vadd.f32 %v3293, %v3405
        %v3407 = vpop.f32.mrb[0].mxu0
        %v3408 = vadd.f32 %v3295, %v3407
        %3409 = vmatprep.mubr.bf16.mxu0 %v1645
        %3410 = vmatmul.mubr.bf16.gmra.mrb[0].mxu0 %v1644
        %v3411 = vpop.f32.mrb[0].mxu0
        %v3412 = vadd.f32 %v3299, %v3411
        %v3413 = vpop.f32.mrb[0].mxu0
        %v3414 = vadd.f32 %v3301, %v3413
        %v3415 = vpop.f32.mrb[0].mxu0
        %v3416 = vadd.f32 %v3303, %v3415
        %v3417 = vpop.f32.mrb[0].mxu0
        %v3418 = vadd.f32 %v3305, %v3417
        %3419 = vmatprep.mubr.bf16.mxu0 %v1649
        %3420 = vmatmul.mubr.bf16.gmra.mrb[0].mxu0 %v1648
        %v3421 = vpop.f32.mrb[0].mxu0
        %v3422 = vadd.f32 %v3309, %v3421
        %v3423 = vpop.f32.mrb[0].mxu0
        %v3424 = vadd.f32 %v3311, %v3423
        %v3425 = vpop.f32.mrb[0].mxu0
        %v3426 = vadd.f32 %v3313, %v3425
        %v3427 = vpop.f32.mrb[0].mxu0
        %v3428 = vadd.f32 %v3315, %v3427
        %3429 = vmatprep.mubr.bf16.mxu0 %v1653
        %3430 = vmatmul.mubr.bf16.gmra.mrb[0].mxu0 %v1652
        %v3431 = vpop.f32.mrb[0].mxu0
        %v3432 = vadd.f32 %v3319, %v3431
        %v3433 = vpop.f32.mrb[0].mxu0
        %v3434 = vadd.f32 %v3321, %v3433
        %v3435 = vpop.f32.mrb[0].mxu0
        %v3436 = vadd.f32 %v3323, %v3435
        %v3437 = vpop.f32.mrb[0].mxu0
        %v3438 = vadd.f32 %v3325, %v3437
        %3439 = vmatprep.mubr.bf16.mxu0 %v1657
        %3440 = vmatmul.mubr.bf16.gmra.mrb[0].mxu0 %v1656
        %v3441 = vpop.f32.mrb[0].mxu0
        %v3442 = vadd.f32 %v3329, %v3441
        %v3443 = vpop.f32.mrb[0].mxu0
        %v3444 = vadd.f32 %v3331, %v3443
        %v3445 = vpop.f32.mrb[0].mxu0
        %v3446 = vadd.f32 %v3333, %v3445
        %v3447 = vpop.f32.mrb[0].mxu0
        %v3448 = vadd.f32 %v3335, %v3447
        %3449 = vmatprep.mubr.bf16.mxu0 %v1661
        %3450 = vmatmul.mubr.bf16.gmra.mrb[0].mxu0 %v1660
        %v3451 = vpop.f32.mrb[0].mxu0
        %v3452 = vadd.f32 %v3339, %v3451
        %v3453 = vpop.f32.mrb[0].mxu0
        %v3454 = vadd.f32 %v3341, %v3453
        %v3455 = vpop.f32.mrb[0].mxu0
        %v3456 = vadd.f32 %v3343, %v3455
        %v3457 = vpop.f32.mrb[0].mxu0
        %v3458 = vadd.f32 %v3345, %v3457
        %3459 = vmatprep.mubr.bf16.mxu0 %v1665
        %3460 = vmatmul.mubr.bf16.gmra.mrb[0].mxu0 %v1664
        %v3461 = vpop.f32.mrb[0].mxu0
        %v3462 = vadd.f32 %v3349, %v3461
        %v3463 = vpop.f32.mrb[0].mxu0
        %v3464 = vadd.f32 %v3351, %v3463
        %v3465 = vpop.f32.mrb[0].mxu0
        %v3466 = vadd.f32 %v3353, %v3465
        %v3467 = vpop.f32.mrb[0].mxu0
        %v3468 = vadd.f32 %v3355, %v3467
        %3469 = vdwg.mxu0
        %3470 = vmatprep.subr.bf16.mxu0 %v2735
        %3471 = vmatpush1.bf16.msra.mxu0 %v2734
        %3472 = vmatprep.subr.bf16.mxu0 %v2743
        %3473 = vmatpush1.bf16.msra.mxu0 %v2742
        %3474 = vmatprep.subr.bf16.mxu0 %v2751
        %3475 = vmatpush1.bf16.msra.mxu0 %v2750
        %3476 = vmatprep.subr.bf16.mxu0 %v2759
        %3477 = vmatpush1.bf16.msra.mxu0 %v2758
        %3478 = vmatprep.subr.bf16.mxu0 %v2767
        %3479 = vmatpush1.bf16.msra.mxu0 %v2766
        %3480 = vmatprep.subr.bf16.mxu0 %v2775
        %3481 = vmatpush1.bf16.msra.mxu0 %v2774
        %3482 = vmatprep.subr.bf16.mxu0 %v2783
        %3483 = vmatpush1.bf16.msra.mxu0 %v2782
        %3484 = vmatprep.subr.bf16.mxu0 %v2791
        %3485 = vmatpush1.bf16.msra.mxu0 %v2790
        %3486 = vmatprep.subr.bf16.mxu0 %v2799
        %3487 = vmatpush1.bf16.msra.mxu0 %v2798
        %3488 = vmatprep.subr.bf16.mxu0 %v2807
        %3489 = vmatpush1.bf16.msra.mxu0 %v2806
        %3490 = vmatprep.subr.bf16.mxu0 %v2815
        %3491 = vmatpush1.bf16.msra.mxu0 %v2814
        %3492 = vmatprep.subr.bf16.mxu0 %v2823
        %3493 = vmatpush1.bf16.msra.mxu0 %v2822
        %3494 = vmatprep.subr.bf16.mxu0 %v2831
        %3495 = vmatpush1.bf16.msra.mxu0 %v2830
        %3496 = vmatprep.subr.bf16.mxu0 %v2839
        %3497 = vmatpush1.bf16.msra.mxu0 %v2838
        %3498 = vmatprep.subr.bf16.mxu0 %v2847
        %3499 = vmatpush1.bf16.msra.mxu0 %v2846
        %3500 = vmatprep.subr.bf16.mxu0 %v2855
        %3501 = vmatpush1.bf16.msra.mxu0 %v2854
        %3502 = vmatprep.mubr.bf16.mxu0 %v1635
        %3503 = vmatmul.mubr.bf16.gmra.mrb[0].mxu0 %v1634
        %v3504 = vpop.f32.mrb[0].mxu0
        %v3505 = vadd.f32 %v1935, %v3504
        %v3506 = vpop.f32.mrb[0].mxu0
        %v3507 = vadd.f32 %v1939, %v3506
        %v3508 = vpop.f32.mrb[0].mxu0
        %v3509 = vadd.f32 %v1935, %v3508
        %v3510 = vpop.f32.mrb[0].mxu0
        %v3511 = vadd.f32 %v1939, %v3510
        %3512 = vmatprep.mubr.bf16.mxu0 %v1639
        %3513 = vmatmul.mubr.bf16.gmra.mrb[0].mxu0 %v1638
        %v3514 = vpop.f32.mrb[0].mxu0
        %v3515 = vadd.f32 %v1935, %v3514
        %v3516 = vpop.f32.mrb[0].mxu0
        %v3517 = vadd.f32 %v1939, %v3516
        %v3518 = vpop.f32.mrb[0].mxu0
        %v3519 = vadd.f32 %v1935, %v3518
        %v3520 = vpop.f32.mrb[0].mxu0
        %v3521 = vadd.f32 %v1939, %v3520
        %3522 = vmatprep.mubr.bf16.mxu0 %v1643
        %3523 = vmatmul.mubr.bf16.gmra.mrb[0].mxu0 %v1642
        %v3524 = vpop.f32.mrb[0].mxu0
        %v3525 = vadd.f32 %v1935, %v3524
        %v3526 = vpop.f32.mrb[0].mxu0
        %v3527 = vadd.f32 %v1939, %v3526
        %v3528 = vpop.f32.mrb[0].mxu0
        %v3529 = vadd.f32 %v1935, %v3528
        %v3530 = vpop.f32.mrb[0].mxu0
        %v3531 = vadd.f32 %v1939, %v3530
        %3532 = vmatprep.mubr.bf16.mxu0 %v1647
        %3533 = vmatmul.mubr.bf16.gmra.mrb[0].mxu0 %v1646
        %v3534 = vpop.f32.mrb[0].mxu0
        %v3535 = vadd.f32 %v1935, %v3534
        %v3536 = vpop.f32.mrb[0].mxu0
        %v3537 = vadd.f32 %v1939, %v3536
        %v3538 = vpop.f32.mrb[0].mxu0
        %v3539 = vadd.f32 %v1935, %v3538
        %v3540 = vpop.f32.mrb[0].mxu0
        %v3541 = vadd.f32 %v1939, %v3540
        %3542 = vmatprep.mubr.bf16.mxu0 %v1651
        %3543 = vmatmul.mubr.bf16.gmra.mrb[0].mxu0 %v1650
        %v3544 = vpop.f32.mrb[0].mxu0
        %v3545 = vadd.f32 %v1935, %v3544
        %v3546 = vpop.f32.mrb[0].mxu0
        %v3547 = vadd.f32 %v1939, %v3546
        %v3548 = vpop.f32.mrb[0].mxu0
        %v3549 = vadd.f32 %v1935, %v3548
        %v3550 = vpop.f32.mrb[0].mxu0
        %v3551 = vadd.f32 %v1939, %v3550
        %3552 = vmatprep.mubr.bf16.mxu0 %v1655
        %3553 = vmatmul.mubr.bf16.gmra.mrb[0].mxu0 %v1654
        %v3554 = vpop.f32.mrb[0].mxu0
        %v3555 = vadd.f32 %v1935, %v3554
        %v3556 = vpop.f32.mrb[0].mxu0
        %v3557 = vadd.f32 %v1939, %v3556
        %v3558 = vpop.f32.mrb[0].mxu0
        %v3559 = vadd.f32 %v1935, %v3558
        %v3560 = vpop.f32.mrb[0].mxu0
        %v3561 = vadd.f32 %v1939, %v3560
        %3562 = vmatprep.mubr.bf16.mxu0 %v1659
        %3563 = vmatmul.mubr.bf16.gmra.mrb[0].mxu0 %v1658
        %v3564 = vpop.f32.mrb[0].mxu0
        %v3565 = vadd.f32 %v1935, %v3564
        %v3566 = vpop.f32.mrb[0].mxu0
        %v3567 = vadd.f32 %v1939, %v3566
        %v3568 = vpop.f32.mrb[0].mxu0
        %v3569 = vadd.f32 %v1935, %v3568
        %v3570 = vpop.f32.mrb[0].mxu0
        %v3571 = vadd.f32 %v1939, %v3570
        %3572 = vmatprep.mubr.bf16.mxu0 %v1663
        %3573 = vmatmul.mubr.bf16.gmra.mrb[0].mxu0 %v1662
        %v3574 = vpop.f32.mrb[0].mxu0
        %v3575 = vadd.f32 %v1935, %v3574
        %v3576 = vpop.f32.mrb[0].mxu0
        %v3577 = vadd.f32 %v1939, %v3576
        %v3578 = vpop.f32.mrb[0].mxu0
        %v3579 = vadd.f32 %v1935, %v3578
        %v3580 = vpop.f32.mrb[0].mxu0
        %v3581 = vadd.f32 %v1939, %v3580
        %3582 = vdwg.mxu0
        %3583 = vmatprep.subr.bf16.mxu0 %v2863
        %3584 = vmatpush1.bf16.msra.mxu0 %v2862
        %3585 = vmatprep.subr.bf16.mxu0 %v2871
        %3586 = vmatpush1.bf16.msra.mxu0 %v2870
        %3587 = vmatprep.subr.bf16.mxu0 %v2879
        %3588 = vmatpush1.bf16.msra.mxu0 %v2878
        %3589 = vmatprep.subr.bf16.mxu0 %v2887
        %3590 = vmatpush1.bf16.msra.mxu0 %v2886
        %3591 = vmatprep.subr.bf16.mxu0 %v2895
        %3592 = vmatpush1.bf16.msra.mxu0 %v2894
        %3593 = vmatprep.subr.bf16.mxu0 %v2903
        %3594 = vmatpush1.bf16.msra.mxu0 %v2902
        %3595 = vmatprep.subr.bf16.mxu0 %v2911
        %3596 = vmatpush1.bf16.msra.mxu0 %v2910
        %3597 = vmatprep.subr.bf16.mxu0 %v2919
        %3598 = vmatpush1.bf16.msra.mxu0 %v2918
        %3599 = vmatprep.subr.bf16.mxu0 %v2927
        %3600 = vmatpush1.bf16.msra.mxu0 %v2926
        %3601 = vmatprep.subr.bf16.mxu0 %v2935
        %3602 = vmatpush1.bf16.msra.mxu0 %v2934
        %3603 = vmatprep.subr.bf16.mxu0 %v2943
        %3604 = vmatpush1.bf16.msra.mxu0 %v2942
        %3605 = vmatprep.subr.bf16.mxu0 %v2951
        %3606 = vmatpush1.bf16.msra.mxu0 %v2950
        %3607 = vmatprep.subr.bf16.mxu0 %v2959
        %3608 = vmatpush1.bf16.msra.mxu0 %v2958
        %3609 = vmatprep.subr.bf16.mxu0 %v2967
        %3610 = vmatpush1.bf16.msra.mxu0 %v2966
        %3611 = vmatprep.subr.bf16.mxu0 %v2975
        %3612 = vmatpush1.bf16.msra.mxu0 %v2974
        %3613 = vmatprep.subr.bf16.mxu0 %v2983
        %3614 = vmatpush1.bf16.msra.mxu0 %v2982
        %3615 = vmatprep.mubr.bf16.mxu0 %v1637
        %3616 = vmatmul.mubr.bf16.gmra.mrb[0].mxu0 %v1636
        %v3617 = vpop.f32.mrb[0].mxu0
        %v3618 = vadd.f32 %v3505, %v3617
        %v3619 = vpop.f32.mrb[0].mxu0
        %v3620 = vadd.f32 %v3507, %v3619
        %v3621 = vpop.f32.mrb[0].mxu0
        %v3622 = vadd.f32 %v3509, %v3621
        %v3623 = vpop.f32.mrb[0].mxu0
        %v3624 = vadd.f32 %v3511, %v3623
        %3625 = vmatprep.mubr.bf16.mxu0 %v1641
        %3626 = vmatmul.mubr.bf16.gmra.mrb[0].mxu0 %v1640
        %v3627 = vpop.f32.mrb[0].mxu0
        %v3628 = vadd.f32 %v3515, %v3627
        %v3629 = vpop.f32.mrb[0].mxu0
        %v3630 = vadd.f32 %v3517, %v3629
        %v3631 = vpop.f32.mrb[0].mxu0
        %v3632 = vadd.f32 %v3519, %v3631
        %v3633 = vpop.f32.mrb[0].mxu0
        %v3634 = vadd.f32 %v3521, %v3633
        %3635 = vmatprep.mubr.bf16.mxu0 %v1645
        %3636 = vmatmul.mubr.bf16.gmra.mrb[0].mxu0 %v1644
        %v3637 = vpop.f32.mrb[0].mxu0
        %v3638 = vadd.f32 %v3525, %v3637
        %v3639 = vpop.f32.mrb[0].mxu0
        %v3640 = vadd.f32 %v3527, %v3639
        %v3641 = vpop.f32.mrb[0].mxu0
        %v3642 = vadd.f32 %v3529, %v3641
        %v3643 = vpop.f32.mrb[0].mxu0
        %v3644 = vadd.f32 %v3531, %v3643
        %3645 = vmatprep.mubr.bf16.mxu0 %v1649
        %3646 = vmatmul.mubr.bf16.gmra.mrb[0].mxu0 %v1648
        %v3647 = vpop.f32.mrb[0].mxu0
        %v3648 = vadd.f32 %v3535, %v3647
        %v3649 = vpop.f32.mrb[0].mxu0
        %v3650 = vadd.f32 %v3537, %v3649
        %v3651 = vpop.f32.mrb[0].mxu0
        %v3652 = vadd.f32 %v3539, %v3651
        %v3653 = vpop.f32.mrb[0].mxu0
        %v3654 = vadd.f32 %v3541, %v3653
        %3655 = vmatprep.mubr.bf16.mxu0 %v1653
        %3656 = vmatmul.mubr.bf16.gmra.mrb[0].mxu0 %v1652
        %v3657 = vpop.f32.mrb[0].mxu0
        %v3658 = vadd.f32 %v3545, %v3657
        %v3659 = vpop.f32.mrb[0].mxu0
        %v3660 = vadd.f32 %v3547, %v3659
        %v3661 = vpop.f32.mrb[0].mxu0
        %v3662 = vadd.f32 %v3549, %v3661
        %v3663 = vpop.f32.mrb[0].mxu0
        %v3664 = vadd.f32 %v3551, %v3663
        %3665 = vmatprep.mubr.bf16.mxu0 %v1657
        %3666 = vmatmul.mubr.bf16.gmra.mrb[0].mxu0 %v1656
        %v3667 = vpop.f32.mrb[0].mxu0
        %v3668 = vadd.f32 %v3555, %v3667
        %v3669 = vpop.f32.mrb[0].mxu0
        %v3670 = vadd.f32 %v3557, %v3669
        %v3671 = vpop.f32.mrb[0].mxu0
        %v3672 = vadd.f32 %v3559, %v3671
        %v3673 = vpop.f32.mrb[0].mxu0
        %v3674 = vadd.f32 %v3561, %v3673
        %3675 = vmatprep.mubr.bf16.mxu0 %v1661
        %3676 = vmatmul.mubr.bf16.gmra.mrb[0].mxu0 %v1660
        %v3677 = vpop.f32.mrb[0].mxu0
        %v3678 = vadd.f32 %v3565, %v3677
        %v3679 = vpop.f32.mrb[0].mxu0
        %v3680 = vadd.f32 %v3567, %v3679
        %v3681 = vpop.f32.mrb[0].mxu0
        %v3682 = vadd.f32 %v3569, %v3681
        %v3683 = vpop.f32.mrb[0].mxu0
        %v3684 = vadd.f32 %v3571, %v3683
        %3685 = vmatprep.mubr.bf16.mxu0 %v1665
        %3686 = vmatmul.mubr.bf16.gmra.mrb[0].mxu0 %v1664
        %v3687 = vpop.f32.mrb[0].mxu0
        %v3688 = vadd.f32 %v3575, %v3687
        %v3689 = vpop.f32.mrb[0].mxu0
        %v3690 = vadd.f32 %v3577, %v3689
        %v3691 = vpop.f32.mrb[0].mxu0
        %v3692 = vadd.f32 %v3579, %v3691
        %v3693 = vpop.f32.mrb[0].mxu0
        %v3694 = vadd.f32 %v3581, %v3693
        %3695 = vdwg.mxu0
        %3696 = vmatprep.subr.bf16.mxu0 %v2737
        %3697 = vmatpush1.bf16.msra.mxu0 %v2736
        %3698 = vmatprep.subr.bf16.mxu0 %v2745
        %3699 = vmatpush1.bf16.msra.mxu0 %v2744
        %3700 = vmatprep.subr.bf16.mxu0 %v2753
        %3701 = vmatpush1.bf16.msra.mxu0 %v2752
        %3702 = vmatprep.subr.bf16.mxu0 %v2761
        %3703 = vmatpush1.bf16.msra.mxu0 %v2760
        %3704 = vmatprep.subr.bf16.mxu0 %v2769
        %3705 = vmatpush1.bf16.msra.mxu0 %v2768
        %3706 = vmatprep.subr.bf16.mxu0 %v2777
        %3707 = vmatpush1.bf16.msra.mxu0 %v2776
        %3708 = vmatprep.subr.bf16.mxu0 %v2785
        %3709 = vmatpush1.bf16.msra.mxu0 %v2784
        %3710 = vmatprep.subr.bf16.mxu0 %v2793
        %3711 = vmatpush1.bf16.msra.mxu0 %v2792
        %3712 = vmatprep.subr.bf16.mxu0 %v2801
        %3713 = vmatpush1.bf16.msra.mxu0 %v2800
        %3714 = vmatprep.subr.bf16.mxu0 %v2809
        %3715 = vmatpush1.bf16.msra.mxu0 %v2808
        %3716 = vmatprep.subr.bf16.mxu0 %v2817
        %3717 = vmatpush1.bf16.msra.mxu0 %v2816
        %3718 = vmatprep.subr.bf16.mxu0 %v2825
        %3719 = vmatpush1.bf16.msra.mxu0 %v2824
        %3720 = vmatprep.subr.bf16.mxu0 %v2833
        %3721 = vmatpush1.bf16.msra.mxu0 %v2832
        %3722 = vmatprep.subr.bf16.mxu0 %v2841
        %3723 = vmatpush1.bf16.msra.mxu0 %v2840
        %3724 = vmatprep.subr.bf16.mxu0 %v2849
        %3725 = vmatpush1.bf16.msra.mxu0 %v2848
        %3726 = vmatprep.subr.bf16.mxu0 %v2857
        %3727 = vmatpush1.bf16.msra.mxu0 %v2856
        %3728 = vmatprep.mubr.bf16.mxu0 %v1635
        %3729 = vmatmul.mubr.bf16.gmra.mrb[0].mxu0 %v1634
        %v3730 = vpop.f32.mrb[0].mxu0
        %v3731 = vadd.f32 %v1943, %v3730
        %v3732 = vpop.f32.mrb[0].mxu0
        %v3733 = vadd.f32 %v1947, %v3732
        %v3734 = vpop.f32.mrb[0].mxu0
        %v3735 = vadd.f32 %v1943, %v3734
        %v3736 = vpop.f32.mrb[0].mxu0
        %v3737 = vadd.f32 %v1947, %v3736
        %3738 = vmatprep.mubr.bf16.mxu0 %v1639
        %3739 = vmatmul.mubr.bf16.gmra.mrb[0].mxu0 %v1638
        %v3740 = vpop.f32.mrb[0].mxu0
        %v3741 = vadd.f32 %v1943, %v3740
        %v3742 = vpop.f32.mrb[0].mxu0
        %v3743 = vadd.f32 %v1947, %v3742
        %v3744 = vpop.f32.mrb[0].mxu0
        %v3745 = vadd.f32 %v1943, %v3744
        %v3746 = vpop.f32.mrb[0].mxu0
        %v3747 = vadd.f32 %v1947, %v3746
        %3748 = vmatprep.mubr.bf16.mxu0 %v1643
        %3749 = vmatmul.mubr.bf16.gmra.mrb[0].mxu0 %v1642
        %v3750 = vpop.f32.mrb[0].mxu0
        %v3751 = vadd.f32 %v1943, %v3750
        %v3752 = vpop.f32.mrb[0].mxu0
        %v3753 = vadd.f32 %v1947, %v3752
        %v3754 = vpop.f32.mrb[0].mxu0
        %v3755 = vadd.f32 %v1943, %v3754
        %v3756 = vpop.f32.mrb[0].mxu0
        %v3757 = vadd.f32 %v1947, %v3756
        %3758 = vmatprep.mubr.bf16.mxu0 %v1647
        %3759 = vmatmul.mubr.bf16.gmra.mrb[0].mxu0 %v1646
        %v3760 = vpop.f32.mrb[0].mxu0
        %v3761 = vadd.f32 %v1943, %v3760
        %v3762 = vpop.f32.mrb[0].mxu0
        %v3763 = vadd.f32 %v1947, %v3762
        %v3764 = vpop.f32.mrb[0].mxu0
        %v3765 = vadd.f32 %v1943, %v3764
        %v3766 = vpop.f32.mrb[0].mxu0
        %v3767 = vadd.f32 %v1947, %v3766
        %3768 = vmatprep.mubr.bf16.mxu0 %v1651
        %3769 = vmatmul.mubr.bf16.gmra.mrb[0].mxu0 %v1650
        %v3770 = vpop.f32.mrb[0].mxu0
        %v3771 = vadd.f32 %v1943, %v3770
        %v3772 = vpop.f32.mrb[0].mxu0
        %v3773 = vadd.f32 %v1947, %v3772
        %v3774 = vpop.f32.mrb[0].mxu0
        %v3775 = vadd.f32 %v1943, %v3774
        %v3776 = vpop.f32.mrb[0].mxu0
        %v3777 = vadd.f32 %v1947, %v3776
        %3778 = vmatprep.mubr.bf16.mxu0 %v1655
        %3779 = vmatmul.mubr.bf16.gmra.mrb[0].mxu0 %v1654
        %v3780 = vpop.f32.mrb[0].mxu0
        %v3781 = vadd.f32 %v1943, %v3780
        %v3782 = vpop.f32.mrb[0].mxu0
        %v3783 = vadd.f32 %v1947, %v3782
        %v3784 = vpop.f32.mrb[0].mxu0
        %v3785 = vadd.f32 %v1943, %v3784
        %v3786 = vpop.f32.mrb[0].mxu0
        %v3787 = vadd.f32 %v1947, %v3786
        %3788 = vmatprep.mubr.bf16.mxu0 %v1659
        %3789 = vmatmul.mubr.bf16.gmra.mrb[0].mxu0 %v1658
        %v3790 = vpop.f32.mrb[0].mxu0
        %v3791 = vadd.f32 %v1943, %v3790
        %v3792 = vpop.f32.mrb[0].mxu0
        %v3793 = vadd.f32 %v1947, %v3792
        %v3794 = vpop.f32.mrb[0].mxu0
        %v3795 = vadd.f32 %v1943, %v3794
        %v3796 = vpop.f32.mrb[0].mxu0
        %v3797 = vadd.f32 %v1947, %v3796
        %3798 = vmatprep.mubr.bf16.mxu0 %v1663
        %3799 = vmatmul.mubr.bf16.gmra.mrb[0].mxu0 %v1662
        %v3800 = vpop.f32.mrb[0].mxu0
        %v3801 = vadd.f32 %v1943, %v3800
        %v3802 = vpop.f32.mrb[0].mxu0
        %v3803 = vadd.f32 %v1947, %v3802
        %v3804 = vpop.f32.mrb[0].mxu0
        %v3805 = vadd.f32 %v1943, %v3804
        %v3806 = vpop.f32.mrb[0].mxu0
        %v3807 = vadd.f32 %v1947, %v3806
        %3808 = vdwg.mxu0
        %3809 = vmatprep.subr.bf16.mxu0 %v2865
        %3810 = vmatpush1.bf16.msra.mxu0 %v2864
        %3811 = vmatprep.subr.bf16.mxu0 %v2873
        %3812 = vmatpush1.bf16.msra.mxu0 %v2872
        %3813 = vmatprep.subr.bf16.mxu0 %v2881
        %3814 = vmatpush1.bf16.msra.mxu0 %v2880
        %3815 = vmatprep.subr.bf16.mxu0 %v2889
        %3816 = vmatpush1.bf16.msra.mxu0 %v2888
        %3817 = vmatprep.subr.bf16.mxu0 %v2897
        %3818 = vmatpush1.bf16.msra.mxu0 %v2896
        %3819 = vmatprep.subr.bf16.mxu0 %v2905
        %3820 = vmatpush1.bf16.msra.mxu0 %v2904
        %3821 = vmatprep.subr.bf16.mxu0 %v2913
        %3822 = vmatpush1.bf16.msra.mxu0 %v2912
        %3823 = vmatprep.subr.bf16.mxu0 %v2921
        %3824 = vmatpush1.bf16.msra.mxu0 %v2920
        %3825 = vmatprep.subr.bf16.mxu0 %v2929
        %3826 = vmatpush1.bf16.msra.mxu0 %v2928
        %3827 = vmatprep.subr.bf16.mxu0 %v2937
        %3828 = vmatpush1.bf16.msra.mxu0 %v2936
        %3829 = vmatprep.subr.bf16.mxu0 %v2945
        %3830 = vmatpush1.bf16.msra.mxu0 %v2944
        %3831 = vmatprep.subr.bf16.mxu0 %v2953
        %3832 = vmatpush1.bf16.msra.mxu0 %v2952
        %3833 = vmatprep.subr.bf16.mxu0 %v2961
        %3834 = vmatpush1.bf16.msra.mxu0 %v2960
        %3835 = vmatprep.subr.bf16.mxu0 %v2969
        %3836 = vmatpush1.bf16.msra.mxu0 %v2968
        %3837 = vmatprep.subr.bf16.mxu0 %v2977
        %3838 = vmatpush1.bf16.msra.mxu0 %v2976
        %3839 = vmatprep.subr.bf16.mxu0 %v2985
        %3840 = vmatpush1.bf16.msra.mxu0 %v2984
        %3841 = vmatprep.mubr.bf16.mxu0 %v1637
        %3842 = vmatmul.mubr.bf16.gmra.mrb[0].mxu0 %v1636
        %v3843 = vpop.f32.mrb[0].mxu0
        %v3844 = vadd.f32 %v3731, %v3843
        %v3845 = vpop.f32.mrb[0].mxu0
        %v3846 = vadd.f32 %v3733, %v3845
        %v3847 = vpop.f32.mrb[0].mxu0
        %v3848 = vadd.f32 %v3735, %v3847
        %v3849 = vpop.f32.mrb[0].mxu0
        %v3850 = vadd.f32 %v3737, %v3849
        %3851 = vmatprep.mubr.bf16.mxu0 %v1641
        %3852 = vmatmul.mubr.bf16.gmra.mrb[0].mxu0 %v1640
        %v3853 = vpop.f32.mrb[0].mxu0
        %v3854 = vadd.f32 %v3741, %v3853
        %v3855 = vpop.f32.mrb[0].mxu0
        %v3856 = vadd.f32 %v3743, %v3855
        %v3857 = vpop.f32.mrb[0].mxu0
        %v3858 = vadd.f32 %v3745, %v3857
        %v3859 = vpop.f32.mrb[0].mxu0
        %v3860 = vadd.f32 %v3747, %v3859
        %3861 = vmatprep.mubr.bf16.mxu0 %v1645
        %3862 = vmatmul.mubr.bf16.gmra.mrb[0].mxu0 %v1644
        %v3863 = vpop.f32.mrb[0].mxu0
        %v3864 = vadd.f32 %v3751, %v3863
        %v3865 = vpop.f32.mrb[0].mxu0
        %v3866 = vadd.f32 %v3753, %v3865
        %v3867 = vpop.f32.mrb[0].mxu0
        %v3868 = vadd.f32 %v3755, %v3867
        %v3869 = vpop.f32.mrb[0].mxu0
        %v3870 = vadd.f32 %v3757, %v3869
        %3871 = vmatprep.mubr.bf16.mxu0 %v1649
        %3872 = vmatmul.mubr.bf16.gmra.mrb[0].mxu0 %v1648
        %v3873 = vpop.f32.mrb[0].mxu0
        %v3874 = vadd.f32 %v3761, %v3873
        %v3875 = vpop.f32.mrb[0].mxu0
        %v3876 = vadd.f32 %v3763, %v3875
        %v3877 = vpop.f32.mrb[0].mxu0
        %v3878 = vadd.f32 %v3765, %v3877
        %v3879 = vpop.f32.mrb[0].mxu0
        %v3880 = vadd.f32 %v3767, %v3879
        %3881 = vmatprep.mubr.bf16.mxu0 %v1653
        %3882 = vmatmul.mubr.bf16.gmra.mrb[0].mxu0 %v1652
        %v3883 = vpop.f32.mrb[0].mxu0
        %v3884 = vadd.f32 %v3771, %v3883
        %v3885 = vpop.f32.mrb[0].mxu0
        %v3886 = vadd.f32 %v3773, %v3885
        %v3887 = vpop.f32.mrb[0].mxu0
        %v3888 = vadd.f32 %v3775, %v3887
        %v3889 = vpop.f32.mrb[0].mxu0
        %v3890 = vadd.f32 %v3777, %v3889
        %3891 = vmatprep.mubr.bf16.mxu0 %v1657
        %3892 = vmatmul.mubr.bf16.gmra.mrb[0].mxu0 %v1656
        %v3893 = vpop.f32.mrb[0].mxu0
        %v3894 = vadd.f32 %v3781, %v3893
        %v3895 = vpop.f32.mrb[0].mxu0
        %v3896 = vadd.f32 %v3783, %v3895
        %v3897 = vpop.f32.mrb[0].mxu0
        %v3898 = vadd.f32 %v3785, %v3897
        %v3899 = vpop.f32.mrb[0].mxu0
        %v3900 = vadd.f32 %v3787, %v3899
        %3901 = vmatprep.mubr.bf16.mxu0 %v1661
        %3902 = vmatmul.mubr.bf16.gmra.mrb[0].mxu0 %v1660
        %v3903 = vpop.f32.mrb[0].mxu0
        %v3904 = vadd.f32 %v3791, %v3903
        %v3905 = vpop.f32.mrb[0].mxu0
        %v3906 = vadd.f32 %v3793, %v3905
        %v3907 = vpop.f32.mrb[0].mxu0
        %v3908 = vadd.f32 %v3795, %v3907
        %v3909 = vpop.f32.mrb[0].mxu0
        %v3910 = vadd.f32 %v3797, %v3909
        %3911 = vmatprep.mubr.bf16.mxu0 %v1665
        %3912 = vmatmul.mubr.bf16.gmra.mrb[0].mxu0 %v1664
        %v3913 = vpop.f32.mrb[0].mxu0
        %v3914 = vadd.f32 %v3801, %v3913
        %v3915 = vpop.f32.mrb[0].mxu0
        %v3916 = vadd.f32 %v3803, %v3915
        %v3917 = vpop.f32.mrb[0].mxu0
        %v3918 = vadd.f32 %v3805, %v3917
        %v3919 = vpop.f32.mrb[0].mxu0
        %v3920 = vadd.f32 %v3807, %v3919
        %3921 = vdwg.mxu0
        %3922 = vmatprep.subr.bf16.mxu0 %v2739
        %3923 = vmatpush1.bf16.msra.mxu0 %v2738
        %3924 = vmatprep.subr.bf16.mxu0 %v2747
        %3925 = vmatpush1.bf16.msra.mxu0 %v2746
        %3926 = vmatprep.subr.bf16.mxu0 %v2755
        %3927 = vmatpush1.bf16.msra.mxu0 %v2754
        %3928 = vmatprep.subr.bf16.mxu0 %v2763
        %3929 = vmatpush1.bf16.msra.mxu0 %v2762
        %3930 = vmatprep.subr.bf16.mxu0 %v2771
        %3931 = vmatpush1.bf16.msra.mxu0 %v2770
        %3932 = vmatprep.subr.bf16.mxu0 %v2779
        %3933 = vmatpush1.bf16.msra.mxu0 %v2778
        %3934 = vmatprep.subr.bf16.mxu0 %v2787
        %3935 = vmatpush1.bf16.msra.mxu0 %v2786
        %3936 = vmatprep.subr.bf16.mxu0 %v2795
        %3937 = vmatpush1.bf16.msra.mxu0 %v2794
        %3938 = vmatprep.subr.bf16.mxu0 %v2803
        %3939 = vmatpush1.bf16.msra.mxu0 %v2802
        %3940 = vmatprep.subr.bf16.mxu0 %v2811
        %3941 = vmatpush1.bf16.msra.mxu0 %v2810
        %3942 = vmatprep.subr.bf16.mxu0 %v2819
        %3943 = vmatpush1.bf16.msra.mxu0 %v2818
        %3944 = vmatprep.subr.bf16.mxu0 %v2827
        %3945 = vmatpush1.bf16.msra.mxu0 %v2826
        %3946 = vmatprep.subr.bf16.mxu0 %v2835
        %3947 = vmatpush1.bf16.msra.mxu0 %v2834
        %3948 = vmatprep.subr.bf16.mxu0 %v2843
        %3949 = vmatpush1.bf16.msra.mxu0 %v2842
        %3950 = vmatprep.subr.bf16.mxu0 %v2851
        %3951 = vmatpush1.bf16.msra.mxu0 %v2850
        %3952 = vmatprep.subr.bf16.mxu0 %v2859
        %3953 = vmatpush1.bf16.msra.mxu0 %v2858
        %3954 = vmatprep.mubr.bf16.mxu0 %v1635
        %3955 = vmatmul.mubr.bf16.gmra.mrb[0].mxu0 %v1634
        %v3956 = vpop.f32.mrb[0].mxu0
        %v3957 = vadd.f32 %v1951, %v3956
        %v3958 = vpop.f32.mrb[0].mxu0
        %v3959 = vadd.f32 %v1955, %v3958
        %v3960 = vpop.f32.mrb[0].mxu0
        %v3961 = vadd.f32 %v1951, %v3960
        %v3962 = vpop.f32.mrb[0].mxu0
        %v3963 = vadd.f32 %v1955, %v3962
        %3964 = vmatprep.mubr.bf16.mxu0 %v1639
        %3965 = vmatmul.mubr.bf16.gmra.mrb[0].mxu0 %v1638
        %v3966 = vpop.f32.mrb[0].mxu0
        %v3967 = vadd.f32 %v1951, %v3966
        %v3968 = vpop.f32.mrb[0].mxu0
        %v3969 = vadd.f32 %v1955, %v3968
        %v3970 = vpop.f32.mrb[0].mxu0
        %v3971 = vadd.f32 %v1951, %v3970
        %v3972 = vpop.f32.mrb[0].mxu0
        %v3973 = vadd.f32 %v1955, %v3972
        %3974 = vmatprep.mubr.bf16.mxu0 %v1643
        %3975 = vmatmul.mubr.bf16.gmra.mrb[0].mxu0 %v1642
        %v3976 = vpop.f32.mrb[0].mxu0
        %v3977 = vadd.f32 %v1951, %v3976
        %v3978 = vpop.f32.mrb[0].mxu0
        %v3979 = vadd.f32 %v1955, %v3978
        %v3980 = vpop.f32.mrb[0].mxu0
        %v3981 = vadd.f32 %v1951, %v3980
        %v3982 = vpop.f32.mrb[0].mxu0
        %v3983 = vadd.f32 %v1955, %v3982
        %3984 = vmatprep.mubr.bf16.mxu0 %v1647
        %3985 = vmatmul.mubr.bf16.gmra.mrb[0].mxu0 %v1646
        %v3986 = vpop.f32.mrb[0].mxu0
        %v3987 = vadd.f32 %v1951, %v3986
        %v3988 = vpop.f32.mrb[0].mxu0
        %v3989 = vadd.f32 %v1955, %v3988
        %v3990 = vpop.f32.mrb[0].mxu0
        %v3991 = vadd.f32 %v1951, %v3990
        %v3992 = vpop.f32.mrb[0].mxu0
        %v3993 = vadd.f32 %v1955, %v3992
        %3994 = vmatprep.mubr.bf16.mxu0 %v1651
        %3995 = vmatmul.mubr.bf16.gmra.mrb[0].mxu0 %v1650
        %v3996 = vpop.f32.mrb[0].mxu0
        %v3997 = vadd.f32 %v1951, %v3996
        %v3998 = vpop.f32.mrb[0].mxu0
        %v3999 = vadd.f32 %v1955, %v3998
        %v4000 = vpop.f32.mrb[0].mxu0
        %v4001 = vadd.f32 %v1951, %v4000
        %v4002 = vpop.f32.mrb[0].mxu0
        %v4003 = vadd.f32 %v1955, %v4002
        %4004 = vmatprep.mubr.bf16.mxu0 %v1655
        %4005 = vmatmul.mubr.bf16.gmra.mrb[0].mxu0 %v1654
        %v4006 = vpop.f32.mrb[0].mxu0
        %v4007 = vadd.f32 %v1951, %v4006
        %v4008 = vpop.f32.mrb[0].mxu0
        %v4009 = vadd.f32 %v1955, %v4008
        %v4010 = vpop.f32.mrb[0].mxu0
        %v4011 = vadd.f32 %v1951, %v4010
        %v4012 = vpop.f32.mrb[0].mxu0
        %v4013 = vadd.f32 %v1955, %v4012
        %4014 = vmatprep.mubr.bf16.mxu0 %v1659
        %4015 = vmatmul.mubr.bf16.gmra.mrb[0].mxu0 %v1658
        %v4016 = vpop.f32.mrb[0].mxu0
        %v4017 = vadd.f32 %v1951, %v4016
        %v4018 = vpop.f32.mrb[0].mxu0
        %v4019 = vadd.f32 %v1955, %v4018
        %v4020 = vpop.f32.mrb[0].mxu0
        %v4021 = vadd.f32 %v1951, %v4020
        %v4022 = vpop.f32.mrb[0].mxu0
        %v4023 = vadd.f32 %v1955, %v4022
        %4024 = vmatprep.mubr.bf16.mxu0 %v1663
        %4025 = vmatmul.mubr.bf16.gmra.mrb[0].mxu0 %v1662
        %v4026 = vpop.f32.mrb[0].mxu0
        %v4027 = vadd.f32 %v1951, %v4026
        %v4028 = vpop.f32.mrb[0].mxu0
        %v4029 = vadd.f32 %v1955, %v4028
        %v4030 = vpop.f32.mrb[0].mxu0
        %v4031 = vadd.f32 %v1951, %v4030
        %v4032 = vpop.f32.mrb[0].mxu0
        %v4033 = vadd.f32 %v1955, %v4032
        %4034 = vdwg.mxu0
        %4035 = vmatprep.subr.bf16.mxu0 %v2867
        %4036 = vmatpush1.bf16.msra.mxu0 %v2866
        %4037 = vmatprep.subr.bf16.mxu0 %v2875
        %4038 = vmatpush1.bf16.msra.mxu0 %v2874
        %4039 = vmatprep.subr.bf16.mxu0 %v2883
        %4040 = vmatpush1.bf16.msra.mxu0 %v2882
        %4041 = vmatprep.subr.bf16.mxu0 %v2891
        %4042 = vmatpush1.bf16.msra.mxu0 %v2890
        %4043 = vmatprep.subr.bf16.mxu0 %v2899
        %4044 = vmatpush1.bf16.msra.mxu0 %v2898
        %4045 = vmatprep.subr.bf16.mxu0 %v2907
        %4046 = vmatpush1.bf16.msra.mxu0 %v2906
        %4047 = vmatprep.subr.bf16.mxu0 %v2915
        %4048 = vmatpush1.bf16.msra.mxu0 %v2914
        %4049 = vmatprep.subr.bf16.mxu0 %v2923
        %4050 = vmatpush1.bf16.msra.mxu0 %v2922
        %4051 = vmatprep.subr.bf16.mxu0 %v2931
        %4052 = vmatpush1.bf16.msra.mxu0 %v2930
        %4053 = vmatprep.subr.bf16.mxu0 %v2939
        %4054 = vmatpush1.bf16.msra.mxu0 %v2938
        %4055 = vmatprep.subr.bf16.mxu0 %v2947
        %4056 = vmatpush1.bf16.msra.mxu0 %v2946
        %4057 = vmatprep.subr.bf16.mxu0 %v2955
        %4058 = vmatpush1.bf16.msra.mxu0 %v2954
        %4059 = vmatprep.subr.bf16.mxu0 %v2963
        %4060 = vmatpush1.bf16.msra.mxu0 %v2962
        %4061 = vmatprep.subr.bf16.mxu0 %v2971
        %4062 = vmatpush1.bf16.msra.mxu0 %v2970
        %4063 = vmatprep.subr.bf16.mxu0 %v2979
        %4064 = vmatpush1.bf16.msra.mxu0 %v2978
        %4065 = vmatprep.subr.bf16.mxu0 %v2987
        %4066 = vmatpush1.bf16.msra.mxu0 %v2986
        %4067 = vmatprep.mubr.bf16.mxu0 %v1637
        %4068 = vmatmul.mubr.bf16.gmra.mrb[0].mxu0 %v1636
        %v4069 = vpop.f32.mrb[0].mxu0
        %v4070 = vadd.f32 %v3957, %v4069
        %v4071 = vpop.f32.mrb[0].mxu0
        %v4072 = vadd.f32 %v3959, %v4071
        %v4073 = vpop.f32.mrb[0].mxu0
        %v4074 = vadd.f32 %v3961, %v4073
        %v4075 = vpop.f32.mrb[0].mxu0
        %v4076 = vadd.f32 %v3963, %v4075
        %4077 = vmatprep.mubr.bf16.mxu0 %v1641
        %4078 = vmatmul.mubr.bf16.gmra.mrb[0].mxu0 %v1640
        %v4079 = vpop.f32.mrb[0].mxu0
        %v4080 = vadd.f32 %v3967, %v4079
        %v4081 = vpop.f32.mrb[0].mxu0
        %v4082 = vadd.f32 %v3969, %v4081
        %v4083 = vpop.f32.mrb[0].mxu0
        %v4084 = vadd.f32 %v3971, %v4083
        %v4085 = vpop.f32.mrb[0].mxu0
        %v4086 = vadd.f32 %v3973, %v4085
        %4087 = vmatprep.mubr.bf16.mxu0 %v1645
        %4088 = vmatmul.mubr.bf16.gmra.mrb[0].mxu0 %v1644
        %v4089 = vpop.f32.mrb[0].mxu0
        %v4090 = vadd.f32 %v3977, %v4089
        %v4091 = vpop.f32.mrb[0].mxu0
        %v4092 = vadd.f32 %v3979, %v4091
        %v4093 = vpop.f32.mrb[0].mxu0
        %v4094 = vadd.f32 %v3981, %v4093
        %v4095 = vpop.f32.mrb[0].mxu0
        %v4096 = vadd.f32 %v3983, %v4095
        %4097 = vmatprep.mubr.bf16.mxu0 %v1649
        %4098 = vmatmul.mubr.bf16.gmra.mrb[0].mxu0 %v1648
        %v4099 = vpop.f32.mrb[0].mxu0
        %v4100 = vadd.f32 %v3987, %v4099
        %v4101 = vpop.f32.mrb[0].mxu0
        %v4102 = vadd.f32 %v3989, %v4101
        %v4103 = vpop.f32.mrb[0].mxu0
        %v4104 = vadd.f32 %v3991, %v4103
        %v4105 = vpop.f32.mrb[0].mxu0
        %v4106 = vadd.f32 %v3993, %v4105
        %4107 = vmatprep.mubr.bf16.mxu0 %v1653
        %4108 = vmatmul.mubr.bf16.gmra.mrb[0].mxu0 %v1652
        %v4109 = vpop.f32.mrb[0].mxu0
        %v4110 = vadd.f32 %v3997, %v4109
        %v4111 = vpop.f32.mrb[0].mxu0
        %v4112 = vadd.f32 %v3999, %v4111
        %v4113 = vpop.f32.mrb[0].mxu0
        %v4114 = vadd.f32 %v4001, %v4113
        %v4115 = vpop.f32.mrb[0].mxu0
        %v4116 = vadd.f32 %v4003, %v4115
        %4117 = vmatprep.mubr.bf16.mxu0 %v1657
        %4118 = vmatmul.mubr.bf16.gmra.mrb[0].mxu0 %v1656
        %v4119 = vpop.f32.mrb[0].mxu0
        %v4120 = vadd.f32 %v4007, %v4119
        %v4121 = vpop.f32.mrb[0].mxu0
        %v4122 = vadd.f32 %v4009, %v4121
        %v4123 = vpop.f32.mrb[0].mxu0
        %v4124 = vadd.f32 %v4011, %v4123
        %v4125 = vpop.f32.mrb[0].mxu0
        %v4126 = vadd.f32 %v4013, %v4125
        %4127 = vmatprep.mubr.bf16.mxu0 %v1661
        %4128 = vmatmul.mubr.bf16.gmra.mrb[0].mxu0 %v1660
        %v4129 = vpop.f32.mrb[0].mxu0
        %v4130 = vadd.f32 %v4017, %v4129
        %v4131 = vpop.f32.mrb[0].mxu0
        %v4132 = vadd.f32 %v4019, %v4131
        %v4133 = vpop.f32.mrb[0].mxu0
        %v4134 = vadd.f32 %v4021, %v4133
        %v4135 = vpop.f32.mrb[0].mxu0
        %v4136 = vadd.f32 %v4023, %v4135
        %4137 = vmatprep.mubr.bf16.mxu0 %v1665
        %4138 = vmatmul.mubr.bf16.gmra.mrb[0].mxu0 %v1664
        %v4139 = vpop.f32.mrb[0].mxu0
        %v4140 = vadd.f32 %v4027, %v4139
        %v4141 = vpop.f32.mrb[0].mxu0
        %v4142 = vadd.f32 %v4029, %v4141
        %v4143 = vpop.f32.mrb[0].mxu0
        %v4144 = vadd.f32 %v4031, %v4143
        %v4145 = vpop.f32.mrb[0].mxu0
        %v4146 = vadd.f32 %v4033, %v4145
        %4147 = vdwg.mxu0
        %vm4148 = vcmp.gt.f32.partialorder %v3392, 0.0
        %vm4149 = vcmp.gt.f32.partialorder %v3394, 0.0
        %vm4150 = vcmp.gt.f32.partialorder %v3618, 0.0
        %vm4151 = vcmp.gt.f32.partialorder %v3620, 0.0
        %vm4152 = vcmp.gt.f32.partialorder %v3844, 0.0
        %vm4153 = vcmp.gt.f32.partialorder %v3846, 0.0
        %vm4154 = vcmp.gt.f32.partialorder %v4070, 0.0
        %vm4155 = vcmp.gt.f32.partialorder %v4072, 0.0
        %vm4156 = vcmp.gt.f32.partialorder %v3396, 0.0
        %vm4157 = vcmp.gt.f32.partialorder %v3398, 0.0
        %vm4158 = vcmp.gt.f32.partialorder %v3622, 0.0
        %vm4159 = vcmp.gt.f32.partialorder %v3624, 0.0
        %vm4160 = vcmp.gt.f32.partialorder %v3848, 0.0
        %vm4161 = vcmp.gt.f32.partialorder %v3850, 0.0
        %vm4162 = vcmp.gt.f32.partialorder %v4074, 0.0
        %vm4163 = vcmp.gt.f32.partialorder %v4076, 0.0
        %vm4164 = vcmp.gt.f32.partialorder %v3402, 0.0
        %vm4165 = vcmp.gt.f32.partialorder %v3404, 0.0
        %vm4166 = vcmp.gt.f32.partialorder %v3628, 0.0
        %vm4167 = vcmp.gt.f32.partialorder %v3630, 0.0
        %vm4168 = vcmp.gt.f32.partialorder %v3854, 0.0
        %vm4169 = vcmp.gt.f32.partialorder %v3856, 0.0
        %vm4170 = vcmp.gt.f32.partialorder %v4080, 0.0
        %vm4171 = vcmp.gt.f32.partialorder %v4082, 0.0
        %vm4172 = vcmp.gt.f32.partialorder %v3406, 0.0
        %vm4173 = vcmp.gt.f32.partialorder %v3408, 0.0
        %vm4174 = vcmp.gt.f32.partialorder %v3632, 0.0
        %vm4175 = vcmp.gt.f32.partialorder %v3634, 0.0
        %vm4176 = vcmp.gt.f32.partialorder %v3858, 0.0
        %vm4177 = vcmp.gt.f32.partialorder %v3860, 0.0
        %vm4178 = vcmp.gt.f32.partialorder %v4084, 0.0
        %vm4179 = vcmp.gt.f32.partialorder %v4086, 0.0
        %vm4180 = vcmp.gt.f32.partialorder %v3412, 0.0
        %vm4181 = vcmp.gt.f32.partialorder %v3414, 0.0
        %vm4182 = vcmp.gt.f32.partialorder %v3638, 0.0
        %vm4183 = vcmp.gt.f32.partialorder %v3640, 0.0
        %vm4184 = vcmp.gt.f32.partialorder %v3864, 0.0
        %vm4185 = vcmp.gt.f32.partialorder %v3866, 0.0
        %vm4186 = vcmp.gt.f32.partialorder %v4090, 0.0
        %vm4187 = vcmp.gt.f32.partialorder %v4092, 0.0
        %vm4188 = vcmp.gt.f32.partialorder %v3416, 0.0
        %vm4189 = vcmp.gt.f32.partialorder %v3418, 0.0
        %vm4190 = vcmp.gt.f32.partialorder %v3642, 0.0
        %vm4191 = vcmp.gt.f32.partialorder %v3644, 0.0
        %vm4192 = vcmp.gt.f32.partialorder %v3868, 0.0
        %vm4193 = vcmp.gt.f32.partialorder %v3870, 0.0
        %vm4194 = vcmp.gt.f32.partialorder %v4094, 0.0
        %vm4195 = vcmp.gt.f32.partialorder %v4096, 0.0
        %vm4196 = vcmp.gt.f32.partialorder %v3422, 0.0
        %vm4197 = vcmp.gt.f32.partialorder %v3424, 0.0
        %vm4198 = vcmp.gt.f32.partialorder %v3648, 0.0
        %vm4199 = vcmp.gt.f32.partialorder %v3650, 0.0
        %vm4200 = vcmp.gt.f32.partialorder %v3874, 0.0
        %vm4201 = vcmp.gt.f32.partialorder %v3876, 0.0
        %vm4202 = vcmp.gt.f32.partialorder %v4100, 0.0
        %vm4203 = vcmp.gt.f32.partialorder %v4102, 0.0
        %vm4204 = vcmp.gt.f32.partialorder %v3426, 0.0
        %vm4205 = vcmp.gt.f32.partialorder %v3428, 0.0
        %vm4206 = vcmp.gt.f32.partialorder %v3652, 0.0
        %vm4207 = vcmp.gt.f32.partialorder %v3654, 0.0
        %vm4208 = vcmp.gt.f32.partialorder %v3878, 0.0
        %vm4209 = vcmp.gt.f32.partialorder %v3880, 0.0
        %vm4210 = vcmp.gt.f32.partialorder %v4104, 0.0
        %vm4211 = vcmp.gt.f32.partialorder %v4106, 0.0
        %vm4212 = vcmp.gt.f32.partialorder %v3432, 0.0
        %vm4213 = vcmp.gt.f32.partialorder %v3434, 0.0
        %vm4214 = vcmp.gt.f32.partialorder %v3658, 0.0
        %vm4215 = vcmp.gt.f32.partialorder %v3660, 0.0
        %vm4216 = vcmp.gt.f32.partialorder %v3884, 0.0
        %vm4217 = vcmp.gt.f32.partialorder %v3886, 0.0
        %vm4218 = vcmp.gt.f32.partialorder %v4110, 0.0
        %vm4219 = vcmp.gt.f32.partialorder %v4112, 0.0
        %vm4220 = vcmp.gt.f32.partialorder %v3436, 0.0
        %vm4221 = vcmp.gt.f32.partialorder %v3438, 0.0
        %vm4222 = vcmp.gt.f32.partialorder %v3662, 0.0
        %vm4223 = vcmp.gt.f32.partialorder %v3664, 0.0
        %vm4224 = vcmp.gt.f32.partialorder %v3888, 0.0
        %vm4225 = vcmp.gt.f32.partialorder %v3890, 0.0
        %vm4226 = vcmp.gt.f32.partialorder %v4114, 0.0
        %vm4227 = vcmp.gt.f32.partialorder %v4116, 0.0
        %vm4228 = vcmp.gt.f32.partialorder %v3442, 0.0
        %vm4229 = vcmp.gt.f32.partialorder %v3444, 0.0
        %vm4230 = vcmp.gt.f32.partialorder %v3668, 0.0
        %vm4231 = vcmp.gt.f32.partialorder %v3670, 0.0
        %vm4232 = vcmp.gt.f32.partialorder %v3894, 0.0
        %vm4233 = vcmp.gt.f32.partialorder %v3896, 0.0
        %vm4234 = vcmp.gt.f32.partialorder %v4120, 0.0
        %vm4235 = vcmp.gt.f32.partialorder %v4122, 0.0
        %vm4236 = vcmp.gt.f32.partialorder %v3446, 0.0
        %vm4237 = vcmp.gt.f32.partialorder %v3448, 0.0
        %vm4238 = vcmp.gt.f32.partialorder %v3672, 0.0
        %vm4239 = vcmp.gt.f32.partialorder %v3674, 0.0
        %vm4240 = vcmp.gt.f32.partialorder %v3898, 0.0
        %vm4241 = vcmp.gt.f32.partialorder %v3900, 0.0
        %vm4242 = vcmp.gt.f32.partialorder %v4124, 0.0
        %vm4243 = vcmp.gt.f32.partialorder %v4126, 0.0
        %vm4244 = vcmp.gt.f32.partialorder %v3452, 0.0
        %vm4245 = vcmp.gt.f32.partialorder %v3454, 0.0
        %vm4246 = vcmp.gt.f32.partialorder %v3678, 0.0
        %vm4247 = vcmp.gt.f32.partialorder %v3680, 0.0
        %vm4248 = vcmp.gt.f32.partialorder %v3904, 0.0
        %vm4249 = vcmp.gt.f32.partialorder %v3906, 0.0
        %vm4250 = vcmp.gt.f32.partialorder %v4130, 0.0
        %vm4251 = vcmp.gt.f32.partialorder %v4132, 0.0
        %vm4252 = vcmp.gt.f32.partialorder %v3456, 0.0
        %vm4253 = vcmp.gt.f32.partialorder %v3458, 0.0
        %vm4254 = vcmp.gt.f32.partialorder %v3682, 0.0
        %vm4255 = vcmp.gt.f32.partialorder %v3684, 0.0
        %vm4256 = vcmp.gt.f32.partialorder %v3908, 0.0
        %vm4257 = vcmp.gt.f32.partialorder %v3910, 0.0
        %vm4258 = vcmp.gt.f32.partialorder %v4134, 0.0
        %vm4259 = vcmp.gt.f32.partialorder %v4136, 0.0
        %vm4260 = vcmp.gt.f32.partialorder %v3462, 0.0
        %vm4261 = vcmp.gt.f32.partialorder %v3464, 0.0
        %vm4262 = vcmp.gt.f32.partialorder %v3688, 0.0
        %vm4263 = vcmp.gt.f32.partialorder %v3690, 0.0
        %vm4264 = vcmp.gt.f32.partialorder %v3914, 0.0
        %vm4265 = vcmp.gt.f32.partialorder %v3916, 0.0
        %vm4266 = vcmp.gt.f32.partialorder %v4140, 0.0
        %vm4267 = vcmp.gt.f32.partialorder %v4142, 0.0
        %vm4268 = vcmp.gt.f32.partialorder %v3466, 0.0
        %vm4269 = vcmp.gt.f32.partialorder %v3468, 0.0
        %vm4270 = vcmp.gt.f32.partialorder %v3692, 0.0
        %vm4271 = vcmp.gt.f32.partialorder %v3694, 0.0
        %vm4272 = vcmp.gt.f32.partialorder %v3918, 0.0
        %vm4273 = vcmp.gt.f32.partialorder %v3920, 0.0
        %vm4274 = vcmp.gt.f32.partialorder %v4144, 0.0
        %vm4275 = vcmp.gt.f32.partialorder %v4146, 0.0
        %v4276 = vmul.f32 %v3392, 0.2
        %v4277 = vmul.f32 %v3394, 0.2
        %v4278 = vmul.f32 %v3618, 0.2
        %v4279 = vmul.f32 %v3620, 0.2
        %v4280 = vmul.f32 %v3844, 0.2
        %v4281 = vmul.f32 %v3846, 0.2
        %v4282 = vmul.f32 %v4070, 0.2
        %v4283 = vmul.f32 %v4072, 0.2
        %v4284 = vmul.f32 %v3396, 0.2
        %v4285 = vmul.f32 %v3398, 0.2
        %v4286 = vmul.f32 %v3622, 0.2
        %v4287 = vmul.f32 %v3624, 0.2
        %v4288 = vmul.f32 %v3848, 0.2
        %v4289 = vmul.f32 %v3850, 0.2
        %v4290 = vmul.f32 %v4074, 0.2
        %v4291 = vmul.f32 %v4076, 0.2
        %v4292 = vmul.f32 %v3402, 0.2
        %v4293 = vmul.f32 %v3404, 0.2
        %v4294 = vmul.f32 %v3628, 0.2
        %v4295 = vmul.f32 %v3630, 0.2
        %v4296 = vmul.f32 %v3854, 0.2
        %v4297 = vmul.f32 %v3856, 0.2
        %v4298 = vmul.f32 %v4080, 0.2
        %v4299 = vmul.f32 %v4082, 0.2
        %v4300 = vmul.f32 %v3406, 0.2
        %v4301 = vmul.f32 %v3408, 0.2
        %v4302 = vmul.f32 %v3632, 0.2
        %v4303 = vmul.f32 %v3634, 0.2
        %v4304 = vmul.f32 %v3858, 0.2
        %v4305 = vmul.f32 %v3860, 0.2
        %v4306 = vmul.f32 %v4084, 0.2
        %v4307 = vmul.f32 %v4086, 0.2
        %v4308 = vmul.f32 %v3412, 0.2
        %v4309 = vmul.f32 %v3414, 0.2
        %v4310 = vmul.f32 %v3638, 0.2
        %v4311 = vmul.f32 %v3640, 0.2
        %v4312 = vmul.f32 %v3864, 0.2
        %v4313 = vmul.f32 %v3866, 0.2
        %v4314 = vmul.f32 %v4090, 0.2
        %v4315 = vmul.f32 %v4092, 0.2
        %v4316 = vmul.f32 %v3416, 0.2
        %v4317 = vmul.f32 %v3418, 0.2
        %v4318 = vmul.f32 %v3642, 0.2
        %v4319 = vmul.f32 %v3644, 0.2
        %v4320 = vmul.f32 %v3868, 0.2
        %v4321 = vmul.f32 %v3870, 0.2
        %v4322 = vmul.f32 %v4094, 0.2
        %v4323 = vmul.f32 %v4096, 0.2
        %v4324 = vmul.f32 %v3422, 0.2
        %v4325 = vmul.f32 %v3424, 0.2
        %v4326 = vmul.f32 %v3648, 0.2
        %v4327 = vmul.f32 %v3650, 0.2
        %v4328 = vmul.f32 %v3874, 0.2
        %v4329 = vmul.f32 %v3876, 0.2
        %v4330 = vmul.f32 %v4100, 0.2
        %v4331 = vmul.f32 %v4102, 0.2
        %v4332 = vmul.f32 %v3426, 0.2
        %v4333 = vmul.f32 %v3428, 0.2
        %v4334 = vmul.f32 %v3652, 0.2
        %v4335 = vmul.f32 %v3654, 0.2
        %v4336 = vmul.f32 %v3878, 0.2
        %v4337 = vmul.f32 %v3880, 0.2
        %v4338 = vmul.f32 %v4104, 0.2
        %v4339 = vmul.f32 %v4106, 0.2
        %v4340 = vmul.f32 %v3432, 0.2
        %v4341 = vmul.f32 %v3434, 0.2
        %v4342 = vmul.f32 %v3658, 0.2
        %v4343 = vmul.f32 %v3660, 0.2
        %v4344 = vmul.f32 %v3884, 0.2
        %v4345 = vmul.f32 %v3886, 0.2
        %v4346 = vmul.f32 %v4110, 0.2
        %v4347 = vmul.f32 %v4112, 0.2
        %v4348 = vmul.f32 %v3436, 0.2
        %v4349 = vmul.f32 %v3438, 0.2
        %v4350 = vmul.f32 %v3662, 0.2
        %v4351 = vmul.f32 %v3664, 0.2
        %v4352 = vmul.f32 %v3888, 0.2
        %v4353 = vmul.f32 %v3890, 0.2
        %v4354 = vmul.f32 %v4114, 0.2
        %v4355 = vmul.f32 %v4116, 0.2
        %v4356 = vmul.f32 %v3442, 0.2
        %v4357 = vmul.f32 %v3444, 0.2
        %v4358 = vmul.f32 %v3668, 0.2
        %v4359 = vmul.f32 %v3670, 0.2
        %v4360 = vmul.f32 %v3894, 0.2
        %v4361 = vmul.f32 %v3896, 0.2
        %v4362 = vmul.f32 %v4120, 0.2
        %v4363 = vmul.f32 %v4122, 0.2
        %v4364 = vmul.f32 %v3446, 0.2
        %v4365 = vmul.f32 %v3448, 0.2
        %v4366 = vmul.f32 %v3672, 0.2
        %v4367 = vmul.f32 %v3674, 0.2
        %v4368 = vmul.f32 %v3898, 0.2
        %v4369 = vmul.f32 %v3900, 0.2
        %v4370 = vmul.f32 %v4124, 0.2
        %v4371 = vmul.f32 %v4126, 0.2
        %v4372 = vmul.f32 %v3452, 0.2
        %v4373 = vmul.f32 %v3454, 0.2
        %v4374 = vmul.f32 %v3678, 0.2
        %v4375 = vmul.f32 %v3680, 0.2
        %v4376 = vmul.f32 %v3904, 0.2
        %v4377 = vmul.f32 %v3906, 0.2
        %v4378 = vmul.f32 %v4130, 0.2
        %v4379 = vmul.f32 %v4132, 0.2
        %v4380 = vmul.f32 %v3456, 0.2
        %v4381 = vmul.f32 %v3458, 0.2
        %v4382 = vmul.f32 %v3682, 0.2
        %v4383 = vmul.f32 %v3684, 0.2
        %v4384 = vmul.f32 %v3908, 0.2
        %v4385 = vmul.f32 %v3910, 0.2
        %v4386 = vmul.f32 %v4134, 0.2
        %v4387 = vmul.f32 %v4136, 0.2
        %v4388 = vmul.f32 %v3462, 0.2
        %v4389 = vmul.f32 %v3464, 0.2
        %v4390 = vmul.f32 %v3688, 0.2
        %v4391 = vmul.f32 %v3690, 0.2
        %v4392 = vmul.f32 %v3914, 0.2
        %v4393 = vmul.f32 %v3916, 0.2
        %v4394 = vmul.f32 %v4140, 0.2
        %v4395 = vmul.f32 %v4142, 0.2
        %v4396 = vmul.f32 %v3466, 0.2
        %v4397 = vmul.f32 %v3468, 0.2
        %v4398 = vmul.f32 %v3692, 0.2
        %v4399 = vmul.f32 %v3694, 0.2
        %v4400 = vmul.f32 %v3918, 0.2
        %v4401 = vmul.f32 %v3920, 0.2
        %v4402 = vmul.f32 %v4144, 0.2
        %v4403 = vmul.f32 %v4146, 0.2
        %v4404 = vsel %vm4148, %v3392, %v4276
        %v4405 = vsel %vm4149, %v3394, %v4277
        %v4406 = vsel %vm4150, %v3618, %v4278
        %v4407 = vsel %vm4151, %v3620, %v4279
        %v4408 = vsel %vm4152, %v3844, %v4280
        %v4409 = vsel %vm4153, %v3846, %v4281
        %v4410 = vsel %vm4154, %v4070, %v4282
        %v4411 = vsel %vm4155, %v4072, %v4283
        %v4412 = vsel %vm4156, %v3396, %v4284
        %v4413 = vsel %vm4157, %v3398, %v4285
        %v4414 = vsel %vm4158, %v3622, %v4286
        %v4415 = vsel %vm4159, %v3624, %v4287
        %v4416 = vsel %vm4160, %v3848, %v4288
        %v4417 = vsel %vm4161, %v3850, %v4289
        %v4418 = vsel %vm4162, %v4074, %v4290
        %v4419 = vsel %vm4163, %v4076, %v4291
        %v4420 = vsel %vm4164, %v3402, %v4292
        %v4421 = vsel %vm4165, %v3404, %v4293
        %v4422 = vsel %vm4166, %v3628, %v4294
        %v4423 = vsel %vm4167, %v3630, %v4295
        %v4424 = vsel %vm4168, %v3854, %v4296
        %v4425 = vsel %vm4169, %v3856, %v4297
        %v4426 = vsel %vm4170, %v4080, %v4298
        %v4427 = vsel %vm4171, %v4082, %v4299
        %v4428 = vsel %vm4172, %v3406, %v4300
        %v4429 = vsel %vm4173, %v3408, %v4301
        %v4430 = vsel %vm4174, %v3632, %v4302
        %v4431 = vsel %vm4175, %v3634, %v4303
        %v4432 = vsel %vm4176, %v3858, %v4304
        %v4433 = vsel %vm4177, %v3860, %v4305
        %v4434 = vsel %vm4178, %v4084, %v4306
        %v4435 = vsel %vm4179, %v4086, %v4307
        %v4436 = vsel %vm4180, %v3412, %v4308
        %v4437 = vsel %vm4181, %v3414, %v4309
        %v4438 = vsel %vm4182, %v3638, %v4310
        %v4439 = vsel %vm4183, %v3640, %v4311
        %v4440 = vsel %vm4184, %v3864, %v4312
        %v4441 = vsel %vm4185, %v3866, %v4313
        %v4442 = vsel %vm4186, %v4090, %v4314
        %v4443 = vsel %vm4187, %v4092, %v4315
        %v4444 = vsel %vm4188, %v3416, %v4316
        %v4445 = vsel %vm4189, %v3418, %v4317
        %v4446 = vsel %vm4190, %v3642, %v4318
        %v4447 = vsel %vm4191, %v3644, %v4319
        %v4448 = vsel %vm4192, %v3868, %v4320
        %v4449 = vsel %vm4193, %v3870, %v4321
        %v4450 = vsel %vm4194, %v4094, %v4322
        %v4451 = vsel %vm4195, %v4096, %v4323
        %v4452 = vsel %vm4196, %v3422, %v4324
        %v4453 = vsel %vm4197, %v3424, %v4325
        %v4454 = vsel %vm4198, %v3648, %v4326
        %v4455 = vsel %vm4199, %v3650, %v4327
        %v4456 = vsel %vm4200, %v3874, %v4328
        %v4457 = vsel %vm4201, %v3876, %v4329
        %v4458 = vsel %vm4202, %v4100, %v4330
        %v4459 = vsel %vm4203, %v4102, %v4331
        %v4460 = vsel %vm4204, %v3426, %v4332
        %v4461 = vsel %vm4205, %v3428, %v4333
        %v4462 = vsel %vm4206, %v3652, %v4334
        %v4463 = vsel %vm4207, %v3654, %v4335
        %v4464 = vsel %vm4208, %v3878, %v4336
        %v4465 = vsel %vm4209, %v3880, %v4337
        %v4466 = vsel %vm4210, %v4104, %v4338
        %v4467 = vsel %vm4211, %v4106, %v4339
        %v4468 = vsel %vm4212, %v3432, %v4340
        %v4469 = vsel %vm4213, %v3434, %v4341
        %v4470 = vsel %vm4214, %v3658, %v4342
        %v4471 = vsel %vm4215, %v3660, %v4343
        %v4472 = vsel %vm4216, %v3884, %v4344
        %v4473 = vsel %vm4217, %v3886, %v4345
        %v4474 = vsel %vm4218, %v4110, %v4346
        %v4475 = vsel %vm4219, %v4112, %v4347
        %v4476 = vsel %vm4220, %v3436, %v4348
        %v4477 = vsel %vm4221, %v3438, %v4349
        %v4478 = vsel %vm4222, %v3662, %v4350
        %v4479 = vsel %vm4223, %v3664, %v4351
        %v4480 = vsel %vm4224, %v3888, %v4352
        %v4481 = vsel %vm4225, %v3890, %v4353
        %v4482 = vsel %vm4226, %v4114, %v4354
        %v4483 = vsel %vm4227, %v4116, %v4355
        %v4484 = vsel %vm4228, %v3442, %v4356
        %v4485 = vsel %vm4229, %v3444, %v4357
        %v4486 = vsel %vm4230, %v3668, %v4358
        %v4487 = vsel %vm4231, %v3670, %v4359
        %v4488 = vsel %vm4232, %v3894, %v4360
        %v4489 = vsel %vm4233, %v3896, %v4361
        %v4490 = vsel %vm4234, %v4120, %v4362
        %v4491 = vsel %vm4235, %v4122, %v4363
        %v4492 = vsel %vm4236, %v3446, %v4364
        %v4493 = vsel %vm4237, %v3448, %v4365
        %v4494 = vsel %vm4238, %v3672, %v4366
        %v4495 = vsel %vm4239, %v3674, %v4367
        %v4496 = vsel %vm4240, %v3898, %v4368
        %v4497 = vsel %vm4241, %v3900, %v4369
        %v4498 = vsel %vm4242, %v4124, %v4370
        %v4499 = vsel %vm4243, %v4126, %v4371
        %v4500 = vsel %vm4244, %v3452, %v4372
        %v4501 = vsel %vm4245, %v3454, %v4373
        %v4502 = vsel %vm4246, %v3678, %v4374
        %v4503 = vsel %vm4247, %v3680, %v4375
        %v4504 = vsel %vm4248, %v3904, %v4376
        %v4505 = vsel %vm4249, %v3906, %v4377
        %v4506 = vsel %vm4250, %v4130, %v4378
        %v4507 = vsel %vm4251, %v4132, %v4379
        %v4508 = vsel %vm4252, %v3456, %v4380
        %v4509 = vsel %vm4253, %v3458, %v4381
        %v4510 = vsel %vm4254, %v3682, %v4382
        %v4511 = vsel %vm4255, %v3684, %v4383
        %v4512 = vsel %vm4256, %v3908, %v4384
        %v4513 = vsel %vm4257, %v3910, %v4385
        %v4514 = vsel %vm4258, %v4134, %v4386
        %v4515 = vsel %vm4259, %v4136, %v4387
        %v4516 = vsel %vm4260, %v3462, %v4388
        %v4517 = vsel %vm4261, %v3464, %v4389
        %v4518 = vsel %vm4262, %v3688, %v4390
        %v4519 = vsel %vm4263, %v3690, %v4391
        %v4520 = vsel %vm4264, %v3914, %v4392
        %v4521 = vsel %vm4265, %v3916, %v4393
        %v4522 = vsel %vm4266, %v4140, %v4394
        %v4523 = vsel %vm4267, %v4142, %v4395
        %v4524 = vsel %vm4268, %v3466, %v4396
        %v4525 = vsel %vm4269, %v3468, %v4397
        %v4526 = vsel %vm4270, %v3692, %v4398
        %v4527 = vsel %vm4271, %v3694, %v4399
        %v4528 = vsel %vm4272, %v3918, %v4400
        %v4529 = vsel %vm4273, %v3920, %v4401
        %v4530 = vsel %vm4274, %v4144, %v4402
        %v4531 = vsel %vm4275, %v4146, %v4403
        %v4532 = vpack.c.bf16 %v4412, %v4404
        %v4533 = vpack.c.bf16 %v4413, %v4405
        %v4534 = vpack.c.bf16 %v4414, %v4406
        %v4535 = vpack.c.bf16 %v4415, %v4407
        %v4536 = vpack.c.bf16 %v4416, %v4408
        %v4537 = vpack.c.bf16 %v4417, %v4409
        %v4538 = vpack.c.bf16 %v4418, %v4410
        %v4539 = vpack.c.bf16 %v4419, %v4411
        %v4540 = vpack.c.bf16 %v4428, %v4420
        %v4541 = vpack.c.bf16 %v4429, %v4421
        %v4542 = vpack.c.bf16 %v4430, %v4422
        %v4543 = vpack.c.bf16 %v4431, %v4423
        %v4544 = vpack.c.bf16 %v4432, %v4424
        %v4545 = vpack.c.bf16 %v4433, %v4425
        %v4546 = vpack.c.bf16 %v4434, %v4426
        %v4547 = vpack.c.bf16 %v4435, %v4427
        %v4548 = vpack.c.bf16 %v4444, %v4436
        %v4549 = vpack.c.bf16 %v4445, %v4437
        %v4550 = vpack.c.bf16 %v4446, %v4438
        %v4551 = vpack.c.bf16 %v4447, %v4439
        %v4552 = vpack.c.bf16 %v4448, %v4440
        %v4553 = vpack.c.bf16 %v4449, %v4441
        %v4554 = vpack.c.bf16 %v4450, %v4442
        %v4555 = vpack.c.bf16 %v4451, %v4443
        %v4556 = vpack.c.bf16 %v4460, %v4452
        %v4557 = vpack.c.bf16 %v4461, %v4453
        %v4558 = vpack.c.bf16 %v4462, %v4454
        %v4559 = vpack.c.bf16 %v4463, %v4455
        %v4560 = vpack.c.bf16 %v4464, %v4456
        %v4561 = vpack.c.bf16 %v4465, %v4457
        %v4562 = vpack.c.bf16 %v4466, %v4458
        %v4563 = vpack.c.bf16 %v4467, %v4459
        %v4564 = vpack.c.bf16 %v4476, %v4468
        %v4565 = vpack.c.bf16 %v4477, %v4469
        %v4566 = vpack.c.bf16 %v4478, %v4470
        %v4567 = vpack.c.bf16 %v4479, %v4471
        %v4568 = vpack.c.bf16 %v4480, %v4472
        %v4569 = vpack.c.bf16 %v4481, %v4473
        %v4570 = vpack.c.bf16 %v4482, %v4474
        %v4571 = vpack.c.bf16 %v4483, %v4475
        %v4572 = vpack.c.bf16 %v4492, %v4484
        %v4573 = vpack.c.bf16 %v4493, %v4485
        %v4574 = vpack.c.bf16 %v4494, %v4486
        %v4575 = vpack.c.bf16 %v4495, %v4487
        %v4576 = vpack.c.bf16 %v4496, %v4488
        %v4577 = vpack.c.bf16 %v4497, %v4489
        %v4578 = vpack.c.bf16 %v4498, %v4490
        %v4579 = vpack.c.bf16 %v4499, %v4491
        %v4580 = vpack.c.bf16 %v4508, %v4500
        %v4581 = vpack.c.bf16 %v4509, %v4501
        %v4582 = vpack.c.bf16 %v4510, %v4502
        %v4583 = vpack.c.bf16 %v4511, %v4503
        %v4584 = vpack.c.bf16 %v4512, %v4504
        %v4585 = vpack.c.bf16 %v4513, %v4505
        %v4586 = vpack.c.bf16 %v4514, %v4506
        %v4587 = vpack.c.bf16 %v4515, %v4507
        %v4588 = vpack.c.bf16 %v4524, %v4516
        %v4589 = vpack.c.bf16 %v4525, %v4517
        %v4590 = vpack.c.bf16 %v4526, %v4518
        %v4591 = vpack.c.bf16 %v4527, %v4519
        %v4592 = vpack.c.bf16 %v4528, %v4520
        %v4593 = vpack.c.bf16 %v4529, %v4521
        %v4594 = vpack.c.bf16 %v4530, %v4522
        %v4595 = vpack.c.bf16 %v4531, %v4523
        %v4596 = vld [vmem:[#allocation13] sm:$0xff]
        %v4597 = vld [vmem:[#allocation13 + $0x8] sm:$0xff]
        %v4598 = vld [vmem:[#allocation13 + $0x10] sm:$0xff]
        %v4599 = vld [vmem:[#allocation13 + $0x18] sm:$0xf]
        %v4600 = vld [vmem:[#allocation13 + $0x1c] sm:$0xff]
        %v4601 = vld [vmem:[#allocation13 + $0x24] sm:$0xff]
        %v4602 = vld [vmem:[#allocation13 + $0x2c] sm:$0xff]
        %v4603 = vld [vmem:[#allocation13 + $0x34] sm:$0xf]
        %v4604 = vld [vmem:[#allocation13 + $0x38] sm:$0xff]
        %v4605 = vld [vmem:[#allocation13 + $0x40] sm:$0xff]
        %v4606 = vld [vmem:[#allocation13 + $0x48] sm:$0xff]
        %v4607 = vld [vmem:[#allocation13 + $0x50] sm:$0xf]
        %v4608 = vld [vmem:[#allocation13 + $0x54] sm:$0xff]
        %v4609 = vld [vmem:[#allocation13 + $0x5c] sm:$0xff]
        %v4610 = vld [vmem:[#allocation13 + $0x64] sm:$0xff]
        %v4611 = vld [vmem:[#allocation13 + $0x6c] sm:$0xf]
        %v4612 = vld [vmem:[#allocation13 + $0x70] sm:$0xff]
        %v4613 = vld [vmem:[#allocation13 + $0x78] sm:$0xff]
        %v4614 = vld [vmem:[#allocation13 + $0x80] sm:$0xff]
        %v4615 = vld [vmem:[#allocation13 + $0x88] sm:$0xf]
        %v4616 = vld [vmem:[#allocation13 + $0x8c] sm:$0xff]
        %v4617 = vld [vmem:[#allocation13 + $0x94] sm:$0xff]
        %v4618 = vld [vmem:[#allocation13 + $0x9c] sm:$0xff]
        %v4619 = vld [vmem:[#allocation13 + $0xa4] sm:$0xf]
        %v4620 = vld [vmem:[#allocation13 + $0xa8] sm:$0xff]
        %v4621 = vld [vmem:[#allocation13 + $0xb0] sm:$0xff]
        %v4622 = vld [vmem:[#allocation13 + $0xb8] sm:$0xff]
        %v4623 = vld [vmem:[#allocation13 + $0xc0] sm:$0xf]
        %v4624 = vld [vmem:[#allocation13 + $0xc4] sm:$0xff]
        %v4625 = vld [vmem:[#allocation13 + $0xcc] sm:$0xff]
        %v4626 = vld [vmem:[#allocation13 + $0xd4] sm:$0xff]
        %v4627 = vld [vmem:[#allocation13 + $0xdc] sm:$0xf]
        %v4628 = vld [vmem:[#allocation13 + $0xe0] sm:$0xff]
        %v4629 = vld [vmem:[#allocation13 + $0xe8] sm:$0xff]
        %v4630 = vld [vmem:[#allocation13 + $0xf0] sm:$0xff]
        %v4631 = vld [vmem:[#allocation13 + $0xf8] sm:$0xf]
        %v4632 = vld [vmem:[#allocation13 + $0xfc] sm:$0xff]
        %v4633 = vld [vmem:[#allocation13 + $0x104] sm:$0xff]
        %v4634 = vld [vmem:[#allocation13 + $0x10c] sm:$0xff]
        %v4635 = vld [vmem:[#allocation13 + $0x114] sm:$0xf]
        %v4636 = vld [vmem:[#allocation13 + $0x118] sm:$0xff]
        %v4637 = vld [vmem:[#allocation13 + $0x120] sm:$0xff]
        %v4638 = vld [vmem:[#allocation13 + $0x128] sm:$0xff]
        %v4639 = vld [vmem:[#allocation13 + $0x130] sm:$0xf]
        %v4640 = vld [vmem:[#allocation13 + $0x134] sm:$0xff]
        %v4641 = vld [vmem:[#allocation13 + $0x13c] sm:$0xff]
        %v4642 = vld [vmem:[#allocation13 + $0x144] sm:$0xff]
        %v4643 = vld [vmem:[#allocation13 + $0x14c] sm:$0xf]
        %v4644 = vld [vmem:[#allocation13 + $0x150] sm:$0xff]
        %v4645 = vld [vmem:[#allocation13 + $0x158] sm:$0xff]
        %v4646 = vld [vmem:[#allocation13 + $0x160] sm:$0xff]
        %v4647 = vld [vmem:[#allocation13 + $0x168] sm:$0xf]
        %v4648 = vld [vmem:[#allocation13 + $0x16c] sm:$0xff]
        %v4649 = vld [vmem:[#allocation13 + $0x174] sm:$0xff]
        %v4650 = vld [vmem:[#allocation13 + $0x17c] sm:$0xff]
        %v4651 = vld [vmem:[#allocation13 + $0x184] sm:$0xf]
        %v4652 = vld [vmem:[#allocation13 + $0x188] sm:$0xff]
        %v4653 = vld [vmem:[#allocation13 + $0x190] sm:$0xff]
        %v4654 = vld [vmem:[#allocation13 + $0x198] sm:$0xff]
        %v4655 = vld [vmem:[#allocation13 + $0x1a0] sm:$0xf]
        %v4656 = vld [vmem:[#allocation13 + $0x1a4] sm:$0xff]
        %v4657 = vld [vmem:[#allocation13 + $0x1ac] sm:$0xff]
        %v4658 = vld [vmem:[#allocation13 + $0x1b4] sm:$0xff]
        %v4659 = vld [vmem:[#allocation13 + $0x1bc] sm:$0xf]
        %v4660 = vld [vmem:[#allocation13 + $0x1c0] sm:$0xff]
        %v4661 = vld [vmem:[#allocation13 + $0x1c8] sm:$0xff]
        %v4662 = vld [vmem:[#allocation13 + $0x1d0] sm:$0xff]
        %v4663 = vld [vmem:[#allocation13 + $0x1d8] sm:$0xf]
        %v4664 = vld [vmem:[#allocation13 + $0x1dc] sm:$0xff]
        %v4665 = vld [vmem:[#allocation13 + $0x1e4] sm:$0xff]
        %v4666 = vld [vmem:[#allocation13 + $0x1ec] sm:$0xff]
        %v4667 = vld [vmem:[#allocation13 + $0x1f4] sm:$0xf]
        %v4668 = vld [vmem:[#allocation13 + $0x1f8] sm:$0xff]
        %v4669 = vld [vmem:[#allocation13 + $0x200] sm:$0xff]
        %v4670 = vld [vmem:[#allocation13 + $0x208] sm:$0xff]
        %v4671 = vld [vmem:[#allocation13 + $0x210] sm:$0xf]
        %v4672 = vld [vmem:[#allocation13 + $0x214] sm:$0xff]
        %v4673 = vld [vmem:[#allocation13 + $0x21c] sm:$0xff]
        %v4674 = vld [vmem:[#allocation13 + $0x224] sm:$0xff]
        %v4675 = vld [vmem:[#allocation13 + $0x22c] sm:$0xf]
        %v4676 = vld [vmem:[#allocation13 + $0x230] sm:$0xff]
        %v4677 = vld [vmem:[#allocation13 + $0x238] sm:$0xff]
        %v4678 = vld [vmem:[#allocation13 + $0x240] sm:$0xff]
        %v4679 = vld [vmem:[#allocation13 + $0x248] sm:$0xf]
        %v4680 = vld [vmem:[#allocation13 + $0x24c] sm:$0xff]
        %v4681 = vld [vmem:[#allocation13 + $0x254] sm:$0xff]
        %v4682 = vld [vmem:[#allocation13 + $0x25c] sm:$0xff]
        %v4683 = vld [vmem:[#allocation13 + $0x264] sm:$0xf]
        %v4684 = vld [vmem:[#allocation13 + $0x268] sm:$0xff]
        %v4685 = vld [vmem:[#allocation13 + $0x270] sm:$0xff]
        %v4686 = vld [vmem:[#allocation13 + $0x278] sm:$0xff]
        %v4687 = vld [vmem:[#allocation13 + $0x280] sm:$0xf]
        %v4688 = vld [vmem:[#allocation13 + $0x284] sm:$0xff]
        %v4689 = vld [vmem:[#allocation13 + $0x28c] sm:$0xff]
        %v4690 = vld [vmem:[#allocation13 + $0x294] sm:$0xff]
        %v4691 = vld [vmem:[#allocation13 + $0x29c] sm:$0xf]
        %v4692 = vld [vmem:[#allocation13 + $0x2a0] sm:$0xff]
        %v4693 = vld [vmem:[#allocation13 + $0x2a8] sm:$0xff]
        %v4694 = vld [vmem:[#allocation13 + $0x2b0] sm:$0xff]
        %v4695 = vld [vmem:[#allocation13 + $0x2b8] sm:$0xf]
        %v4696 = vld [vmem:[#allocation13 + $0x2bc] sm:$0xff]
        %v4697 = vld [vmem:[#allocation13 + $0x2c4] sm:$0xff]
        %v4698 = vld [vmem:[#allocation13 + $0x2cc] sm:$0xff]
        %v4699 = vld [vmem:[#allocation13 + $0x2d4] sm:$0xf]
        %v4700 = vld [vmem:[#allocation13 + $0x2d8] sm:$0xff]
        %v4701 = vld [vmem:[#allocation13 + $0x2e0] sm:$0xff]
        %v4702 = vld [vmem:[#allocation13 + $0x2e8] sm:$0xff]
        %v4703 = vld [vmem:[#allocation13 + $0x2f0] sm:$0xf]
        %v4704 = vld [vmem:[#allocation13 + $0x2f4] sm:$0xff]
        %v4705 = vld [vmem:[#allocation13 + $0x2fc] sm:$0xff]
        %v4706 = vld [vmem:[#allocation13 + $0x304] sm:$0xff]
        %v4707 = vld [vmem:[#allocation13 + $0x30c] sm:$0xf]
        %v4708 = vld [vmem:[#allocation13 + $0x310] sm:$0xff]
        %v4709 = vld [vmem:[#allocation13 + $0x318] sm:$0xff]
        %v4710 = vld [vmem:[#allocation13 + $0x320] sm:$0xff]
        %v4711 = vld [vmem:[#allocation13 + $0x328] sm:$0xf]
        %v4712 = vld [vmem:[#allocation13 + $0x32c] sm:$0xff]
        %v4713 = vld [vmem:[#allocation13 + $0x334] sm:$0xff]
        %v4714 = vld [vmem:[#allocation13 + $0x33c] sm:$0xff]
        %v4715 = vld [vmem:[#allocation13 + $0x344] sm:$0xf]
        %v4716 = vld [vmem:[#allocation13 + $0x348] sm:$0xff]
        %v4717 = vld [vmem:[#allocation13 + $0x350] sm:$0xff]
        %v4718 = vld [vmem:[#allocation13 + $0x358] sm:$0xff]
        %v4719 = vld [vmem:[#allocation13 + $0x360] sm:$0xf]
        %v4720 = vld [vmem:[#allocation13 + $0x364] sm:$0xff]
        %v4721 = vld [vmem:[#allocation13 + $0x36c] sm:$0xff]
        %v4722 = vld [vmem:[#allocation13 + $0x374] sm:$0xff]
        %v4723 = vld [vmem:[#allocation13 + $0x37c] sm:$0xf]
        %v4724 = vld [vmem:[#allocation13 + $0x380] sm:$0xff]
        %v4725 = vld [vmem:[#allocation13 + $0x388] sm:$0xff]
        %v4726 = vld [vmem:[#allocation13 + $0x390] sm:$0xff]
        %v4727 = vld [vmem:[#allocation13 + $0x398] sm:$0xf]
        %v4728 = vld [vmem:[#allocation13 + $0x39c] sm:$0xff]
        %v4729 = vld [vmem:[#allocation13 + $0x3a4] sm:$0xff]
        %v4730 = vld [vmem:[#allocation13 + $0x3ac] sm:$0xff]
        %v4731 = vld [vmem:[#allocation13 + $0x3b4] sm:$0xf]
        %v4732 = vld [vmem:[#allocation13 + $0x3b8] sm:$0xff]
        %v4733 = vld [vmem:[#allocation13 + $0x3c0] sm:$0xff]
        %v4734 = vld [vmem:[#allocation13 + $0x3c8] sm:$0xff]
        %v4735 = vld [vmem:[#allocation13 + $0x3d0] sm:$0xf]
        %v4736 = vld [vmem:[#allocation13 + $0x3d4] sm:$0xff]
        %v4737 = vld [vmem:[#allocation13 + $0x3dc] sm:$0xff]
        %v4738 = vld [vmem:[#allocation13 + $0x3e4] sm:$0xff]
        %v4739 = vld [vmem:[#allocation13 + $0x3ec] sm:$0xf]
        %v4740 = vld [vmem:[#allocation13 + $0x3f0] sm:$0xff]
        %v4741 = vld [vmem:[#allocation13 + $0x3f8] sm:$0xff]
        %v4742 = vld [vmem:[#allocation13 + $0x400] sm:$0xff]
        %v4743 = vld [vmem:[#allocation13 + $0x408] sm:$0xf]
        %v4744 = vld [vmem:[#allocation13 + $0x40c] sm:$0xff]
        %v4745 = vld [vmem:[#allocation13 + $0x414] sm:$0xff]
        %v4746 = vld [vmem:[#allocation13 + $0x41c] sm:$0xff]
        %v4747 = vld [vmem:[#allocation13 + $0x424] sm:$0xf]
        %v4748 = vld [vmem:[#allocation13 + $0x428] sm:$0xff]
        %v4749 = vld [vmem:[#allocation13 + $0x430] sm:$0xff]
        %v4750 = vld [vmem:[#allocation13 + $0x438] sm:$0xff]
        %v4751 = vld [vmem:[#allocation13 + $0x440] sm:$0xf]
        %v4752 = vld [vmem:[#allocation13 + $0x444] sm:$0xff]
        %v4753 = vld [vmem:[#allocation13 + $0x44c] sm:$0xff]
        %v4754 = vld [vmem:[#allocation13 + $0x454] sm:$0xff]
        %v4755 = vld [vmem:[#allocation13 + $0x45c] sm:$0xf]
        %v4756 = vld [vmem:[#allocation13 + $0x460] sm:$0xff]
        %v4757 = vld [vmem:[#allocation13 + $0x468] sm:$0xff]
        %v4758 = vld [vmem:[#allocation13 + $0x470] sm:$0xff]
        %v4759 = vld [vmem:[#allocation13 + $0x478] sm:$0xf]
        %v4760 = vld [vmem:[#allocation13 + $0x47c] sm:$0xff]
        %v4761 = vld [vmem:[#allocation13 + $0x484] sm:$0xff]
        %v4762 = vld [vmem:[#allocation13 + $0x48c] sm:$0xff]
        %v4763 = vld [vmem:[#allocation13 + $0x494] sm:$0xf]
        %v4764 = vld [vmem:[#allocation13 + $0x498] sm:$0xff]
        %v4765 = vld [vmem:[#allocation13 + $0x4a0] sm:$0xff]
        %v4766 = vld [vmem:[#allocation13 + $0x4a8] sm:$0xff]
        %v4767 = vld [vmem:[#allocation13 + $0x4b0] sm:$0xf]
        %v4768 = vld [vmem:[#allocation13 + $0x4b4] sm:$0xff]
        %v4769 = vld [vmem:[#allocation13 + $0x4bc] sm:$0xff]
        %v4770 = vld [vmem:[#allocation13 + $0x4c4] sm:$0xff]
        %v4771 = vld [vmem:[#allocation13 + $0x4cc] sm:$0xf]
        %v4772 = vld [vmem:[#allocation13 + $0x4d0] sm:$0xff]
        %v4773 = vld [vmem:[#allocation13 + $0x4d8] sm:$0xff]
        %v4774 = vld [vmem:[#allocation13 + $0x4e0] sm:$0xff]
        %v4775 = vld [vmem:[#allocation13 + $0x4e8] sm:$0xf]
        %v4776 = vld [vmem:[#allocation13 + $0x4ec] sm:$0xff]
        %v4777 = vld [vmem:[#allocation13 + $0x4f4] sm:$0xff]
        %v4778 = vld [vmem:[#allocation13 + $0x4fc] sm:$0xff]
        %v4779 = vld [vmem:[#allocation13 + $0x504] sm:$0xf]
        %v4780 = vld [vmem:[#allocation13 + $0x508] sm:$0xff]
        %v4781 = vld [vmem:[#allocation13 + $0x510] sm:$0xff]
        %v4782 = vld [vmem:[#allocation13 + $0x518] sm:$0xff]
        %v4783 = vld [vmem:[#allocation13 + $0x520] sm:$0xf]
        %v4784 = vld [vmem:[#allocation13 + $0x524] sm:$0xff]
        %v4785 = vld [vmem:[#allocation13 + $0x52c] sm:$0xff]
        %v4786 = vld [vmem:[#allocation13 + $0x534] sm:$0xff]
        %v4787 = vld [vmem:[#allocation13 + $0x53c] sm:$0xf]
        %v4788 = vld [vmem:[#allocation13 + $0x540] sm:$0xff]
        %v4789 = vld [vmem:[#allocation13 + $0x548] sm:$0xff]
        %v4790 = vld [vmem:[#allocation13 + $0x550] sm:$0xff]
        %v4791 = vld [vmem:[#allocation13 + $0x558] sm:$0xf]
        %v4792 = vld [vmem:[#allocation13 + $0x55c] sm:$0xff]
        %v4793 = vld [vmem:[#allocation13 + $0x564] sm:$0xff]
        %v4794 = vld [vmem:[#allocation13 + $0x56c] sm:$0xff]
        %v4795 = vld [vmem:[#allocation13 + $0x574] sm:$0xf]
        %v4796 = vld [vmem:[#allocation13 + $0x578] sm:$0xff]
        %v4797 = vld [vmem:[#allocation13 + $0x580] sm:$0xff]
        %v4798 = vld [vmem:[#allocation13 + $0x588] sm:$0xff]
        %v4799 = vld [vmem:[#allocation13 + $0x590] sm:$0xf]
        %v4800 = vld [vmem:[#allocation13 + $0x594] sm:$0xff]
        %v4801 = vld [vmem:[#allocation13 + $0x59c] sm:$0xff]
        %v4802 = vld [vmem:[#allocation13 + $0x5a4] sm:$0xff]
        %v4803 = vld [vmem:[#allocation13 + $0x5ac] sm:$0xf]
        %v4804 = vld [vmem:[#allocation13 + $0x5b0] sm:$0xff]
        %v4805 = vld [vmem:[#allocation13 + $0x5b8] sm:$0xff]
        %v4806 = vld [vmem:[#allocation13 + $0x5c0] sm:$0xff]
        %v4807 = vld [vmem:[#allocation13 + $0x5c8] sm:$0xf]
        %v4808 = vld [vmem:[#allocation13 + $0x5cc] sm:$0xff]
        %v4809 = vld [vmem:[#allocation13 + $0x5d4] sm:$0xff]
        %v4810 = vld [vmem:[#allocation13 + $0x5dc] sm:$0xff]
        %v4811 = vld [vmem:[#allocation13 + $0x5e4] sm:$0xf]
        %v4812 = vld [vmem:[#allocation13 + $0x5e8] sm:$0xff]
        %v4813 = vld [vmem:[#allocation13 + $0x5f0] sm:$0xff]
        %v4814 = vld [vmem:[#allocation13 + $0x5f8] sm:$0xff]
        %v4815 = vld [vmem:[#allocation13 + $0x600] sm:$0xf]
        %v4816 = vld [vmem:[#allocation13 + $0x604] sm:$0xff]
        %v4817 = vld [vmem:[#allocation13 + $0x60c] sm:$0xff]
        %v4818 = vld [vmem:[#allocation13 + $0x614] sm:$0xff]
        %v4819 = vld [vmem:[#allocation13 + $0x61c] sm:$0xf]
        %v4820 = vld [vmem:[#allocation13 + $0x620] sm:$0xff]
        %v4821 = vld [vmem:[#allocation13 + $0x628] sm:$0xff]
        %v4822 = vld [vmem:[#allocation13 + $0x630] sm:$0xff]
        %v4823 = vld [vmem:[#allocation13 + $0x638] sm:$0xf]
        %v4824 = vld [vmem:[#allocation13 + $0x63c] sm:$0xff]
        %v4825 = vld [vmem:[#allocation13 + $0x644] sm:$0xff]
        %v4826 = vld [vmem:[#allocation13 + $0x64c] sm:$0xff]
        %v4827 = vld [vmem:[#allocation13 + $0x654] sm:$0xf]
        %v4828 = vld [vmem:[#allocation13 + $0x658] sm:$0xff]
        %v4829 = vld [vmem:[#allocation13 + $0x660] sm:$0xff]
        %v4830 = vld [vmem:[#allocation13 + $0x668] sm:$0xff]
        %v4831 = vld [vmem:[#allocation13 + $0x670] sm:$0xf]
        %v4832 = vld [vmem:[#allocation13 + $0x674] sm:$0xff]
        %v4833 = vld [vmem:[#allocation13 + $0x67c] sm:$0xff]
        %v4834 = vld [vmem:[#allocation13 + $0x684] sm:$0xff]
        %v4835 = vld [vmem:[#allocation13 + $0x68c] sm:$0xf]
        %v4836 = vld [vmem:[#allocation13 + $0x690] sm:$0xff]
        %v4837 = vld [vmem:[#allocation13 + $0x698] sm:$0xff]
        %v4838 = vld [vmem:[#allocation13 + $0x6a0] sm:$0xff]
        %v4839 = vld [vmem:[#allocation13 + $0x6a8] sm:$0xf]
        %v4840 = vld [vmem:[#allocation13 + $0x6ac] sm:$0xff]
        %v4841 = vld [vmem:[#allocation13 + $0x6b4] sm:$0xff]
        %v4842 = vld [vmem:[#allocation13 + $0x6bc] sm:$0xff]
        %v4843 = vld [vmem:[#allocation13 + $0x6c4] sm:$0xf]
        %v4844 = vld [vmem:[#allocation13 + $0x6c8] sm:$0xff]
        %v4845 = vld [vmem:[#allocation13 + $0x6d0] sm:$0xff]
        %v4846 = vld [vmem:[#allocation13 + $0x6d8] sm:$0xff]
        %v4847 = vld [vmem:[#allocation13 + $0x6e0] sm:$0xf]
        %v4848 = vld [vmem:[#allocation13 + $0x6e4] sm:$0xff]
        %v4849 = vld [vmem:[#allocation13 + $0x6ec] sm:$0xff]
        %v4850 = vld [vmem:[#allocation13 + $0x6f4] sm:$0xff]
        %v4851 = vld [vmem:[#allocation13 + $0x6fc] sm:$0xf]
        %v4852 = vld [vmem:[#allocation13 + $0x700] sm:$0xff]
        %v4853 = vld [vmem:[#allocation13 + $0x708] sm:$0xff]
        %v4854 = vld [vmem:[#allocation13 + $0x710] sm:$0xff]
        %v4855 = vld [vmem:[#allocation13 + $0x718] sm:$0xf]
        %v4856 = vld [vmem:[#allocation13 + $0x71c] sm:$0xff]
        %v4857 = vld [vmem:[#allocation13 + $0x724] sm:$0xff]
        %v4858 = vld [vmem:[#allocation13 + $0x72c] sm:$0xff]
        %v4859 = vld [vmem:[#allocation13 + $0x734] sm:$0xf]
        %v4860 = vld [vmem:[#allocation13 + $0x738] sm:$0xff]
        %v4861 = vld [vmem:[#allocation13 + $0x740] sm:$0xff]
        %v4862 = vld [vmem:[#allocation13 + $0x748] sm:$0xff]
        %v4863 = vld [vmem:[#allocation13 + $0x750] sm:$0xf]
        %v4864 = vld [vmem:[#allocation13 + $0x754] sm:$0xff]
        %v4865 = vld [vmem:[#allocation13 + $0x75c] sm:$0xff]
        %v4866 = vld [vmem:[#allocation13 + $0x764] sm:$0xff]
        %v4867 = vld [vmem:[#allocation13 + $0x76c] sm:$0xf]
        %v4868 = vld [vmem:[#allocation13 + $0x770] sm:$0xff]
        %v4869 = vld [vmem:[#allocation13 + $0x778] sm:$0xff]
        %v4870 = vld [vmem:[#allocation13 + $0x780] sm:$0xff]
        %v4871 = vld [vmem:[#allocation13 + $0x788] sm:$0xf]
        %v4872 = vld [vmem:[#allocation13 + $0x78c] sm:$0xff]
        %v4873 = vld [vmem:[#allocation13 + $0x794] sm:$0xff]
        %v4874 = vld [vmem:[#allocation13 + $0x79c] sm:$0xff]
        %v4875 = vld [vmem:[#allocation13 + $0x7a4] sm:$0xf]
        %v4876 = vld [vmem:[#allocation13 + $0x7a8] sm:$0xff]
        %v4877 = vld [vmem:[#allocation13 + $0x7b0] sm:$0xff]
        %v4878 = vld [vmem:[#allocation13 + $0x7b8] sm:$0xff]
        %v4879 = vld [vmem:[#allocation13 + $0x7c0] sm:$0xf]
        %v4880 = vld [vmem:[#allocation13 + $0x7c4] sm:$0xff]
        %v4881 = vld [vmem:[#allocation13 + $0x7cc] sm:$0xff]
        %v4882 = vld [vmem:[#allocation13 + $0x7d4] sm:$0xff]
        %v4883 = vld [vmem:[#allocation13 + $0x7dc] sm:$0xf]
        %v4884 = vld [vmem:[#allocation13 + $0x7e0] sm:$0xff]
        %v4885 = vld [vmem:[#allocation13 + $0x7e8] sm:$0xff]
        %v4886 = vld [vmem:[#allocation13 + $0x7f0] sm:$0xff]
        %v4887 = vld [vmem:[#allocation13 + $0x7f8] sm:$0xf]
        %v4888 = vld [vmem:[#allocation13 + $0x7fc] sm:$0xff]
        %v4889 = vld [vmem:[#allocation13 + $0x804] sm:$0xff]
        %v4890 = vld [vmem:[#allocation13 + $0x80c] sm:$0xff]
        %v4891 = vld [vmem:[#allocation13 + $0x814] sm:$0xf]
        %v4892 = vld [vmem:[#allocation13 + $0x818] sm:$0xff]
        %v4893 = vld [vmem:[#allocation13 + $0x820] sm:$0xff]
        %v4894 = vld [vmem:[#allocation13 + $0x828] sm:$0xff]
        %v4895 = vld [vmem:[#allocation13 + $0x830] sm:$0xf]
        %v4896 = vld [vmem:[#allocation13 + $0x834] sm:$0xff]
        %v4897 = vld [vmem:[#allocation13 + $0x83c] sm:$0xff]
        %v4898 = vld [vmem:[#allocation13 + $0x844] sm:$0xff]
        %v4899 = vld [vmem:[#allocation13 + $0x84c] sm:$0xf]
        %v4900 = vld [vmem:[#allocation13 + $0x850] sm:$0xff]
        %v4901 = vld [vmem:[#allocation13 + $0x858] sm:$0xff]
        %v4902 = vld [vmem:[#allocation13 + $0x860] sm:$0xff]
        %v4903 = vld [vmem:[#allocation13 + $0x868] sm:$0xf]
        %v4904 = vld [vmem:[#allocation13 + $0x86c] sm:$0xff]
        %v4905 = vld [vmem:[#allocation13 + $0x874] sm:$0xff]
        %v4906 = vld [vmem:[#allocation13 + $0x87c] sm:$0xff]
        %v4907 = vld [vmem:[#allocation13 + $0x884] sm:$0xf]
        %v4908 = vld [vmem:[#allocation13 + $0x888] sm:$0xff]
        %v4909 = vld [vmem:[#allocation13 + $0x890] sm:$0xff]
        %v4910 = vld [vmem:[#allocation13 + $0x898] sm:$0xff]
        %v4911 = vld [vmem:[#allocation13 + $0x8a0] sm:$0xf]
        %v4912 = vld [vmem:[#allocation13 + $0x8a4] sm:$0xff]
        %v4913 = vld [vmem:[#allocation13 + $0x8ac] sm:$0xff]
        %v4914 = vld [vmem:[#allocation13 + $0x8b4] sm:$0xff]
        %v4915 = vld [vmem:[#allocation13 + $0x8bc] sm:$0xf]
        %v4916 = vld [vmem:[#allocation13 + $0x8c0] sm:$0xff]
        %v4917 = vld [vmem:[#allocation13 + $0x8c8] sm:$0xff]
        %v4918 = vld [vmem:[#allocation13 + $0x8d0] sm:$0xff]
        %v4919 = vld [vmem:[#allocation13 + $0x8d8] sm:$0xf]
        %v4920 = vld [vmem:[#allocation13 + $0x8dc] sm:$0xff]
        %v4921 = vld [vmem:[#allocation13 + $0x8e4] sm:$0xff]
        %v4922 = vld [vmem:[#allocation13 + $0x8ec] sm:$0xff]
        %v4923 = vld [vmem:[#allocation13 + $0x8f4] sm:$0xf]
        %v4924 = vld [vmem:[#allocation13 + $0x8f8] sm:$0xff]
        %v4925 = vld [vmem:[#allocation13 + $0x900] sm:$0xff]
        %v4926 = vld [vmem:[#allocation13 + $0x908] sm:$0xff]
        %v4927 = vld [vmem:[#allocation13 + $0x910] sm:$0xf]
        %v4928 = vld [vmem:[#allocation13 + $0x914] sm:$0xff]
        %v4929 = vld [vmem:[#allocation13 + $0x91c] sm:$0xff]
        %v4930 = vld [vmem:[#allocation13 + $0x924] sm:$0xff]
        %v4931 = vld [vmem:[#allocation13 + $0x92c] sm:$0xf]
        %v4932 = vld [vmem:[#allocation13 + $0x930] sm:$0xff]
        %v4933 = vld [vmem:[#allocation13 + $0x938] sm:$0xff]
        %v4934 = vld [vmem:[#allocation13 + $0x940] sm:$0xff]
        %v4935 = vld [vmem:[#allocation13 + $0x948] sm:$0xf]
        %v4936 = vld [vmem:[#allocation13 + $0x94c] sm:$0xff]
        %v4937 = vld [vmem:[#allocation13 + $0x954] sm:$0xff]
        %v4938 = vld [vmem:[#allocation13 + $0x95c] sm:$0xff]
        %v4939 = vld [vmem:[#allocation13 + $0x964] sm:$0xf]
        %v4940 = vld [vmem:[#allocation13 + $0x968] sm:$0xff]
        %v4941 = vld [vmem:[#allocation13 + $0x970] sm:$0xff]
        %v4942 = vld [vmem:[#allocation13 + $0x978] sm:$0xff]
        %v4943 = vld [vmem:[#allocation13 + $0x980] sm:$0xf]
        %v4944 = vld [vmem:[#allocation13 + $0x984] sm:$0xff]
        %v4945 = vld [vmem:[#allocation13 + $0x98c] sm:$0xff]
        %v4946 = vld [vmem:[#allocation13 + $0x994] sm:$0xff]
        %v4947 = vld [vmem:[#allocation13 + $0x99c] sm:$0xf]
        %v4948 = vld [vmem:[#allocation13 + $0x9a0] sm:$0xff]
        %v4949 = vld [vmem:[#allocation13 + $0x9a8] sm:$0xff]
        %v4950 = vld [vmem:[#allocation13 + $0x9b0] sm:$0xff]
        %v4951 = vld [vmem:[#allocation13 + $0x9b8] sm:$0xf]
        %v4952 = vld [vmem:[#allocation13 + $0x9bc] sm:$0xff]
        %v4953 = vld [vmem:[#allocation13 + $0x9c4] sm:$0xff]
        %v4954 = vld [vmem:[#allocation13 + $0x9cc] sm:$0xff]
        %v4955 = vld [vmem:[#allocation13 + $0x9d4] sm:$0xf]
        %v4956 = vld [vmem:[#allocation13 + $0x9d8] sm:$0xff]
        %v4957 = vld [vmem:[#allocation13 + $0x9e0] sm:$0xff]
        %v4958 = vld [vmem:[#allocation13 + $0x9e8] sm:$0xff]
        %v4959 = vld [vmem:[#allocation13 + $0x9f0] sm:$0xf]
        %v4960 = vld [vmem:[#allocation13 + $0x9f4] sm:$0xff]
        %v4961 = vld [vmem:[#allocation13 + $0x9fc] sm:$0xff]
        %v4962 = vld [vmem:[#allocation13 + $0xa04] sm:$0xff]
        %v4963 = vld [vmem:[#allocation13 + $0xa0c] sm:$0xf]
        %v4964 = vld [vmem:[#allocation13 + $0xa10] sm:$0xff]
        %v4965 = vld [vmem:[#allocation13 + $0xa18] sm:$0xff]
        %v4966 = vld [vmem:[#allocation13 + $0xa20] sm:$0xff]
        %v4967 = vld [vmem:[#allocation13 + $0xa28] sm:$0xf]
        %v4968 = vld [vmem:[#allocation13 + $0xa2c] sm:$0xff]
        %v4969 = vld [vmem:[#allocation13 + $0xa34] sm:$0xff]
        %v4970 = vld [vmem:[#allocation13 + $0xa3c] sm:$0xff]
        %v4971 = vld [vmem:[#allocation13 + $0xa44] sm:$0xf]
        %v4972 = vld [vmem:[#allocation13 + $0xa48] sm:$0xff]
        %v4973 = vld [vmem:[#allocation13 + $0xa50] sm:$0xff]
        %v4974 = vld [vmem:[#allocation13 + $0xa58] sm:$0xff]
        %v4975 = vld [vmem:[#allocation13 + $0xa60] sm:$0xf]
        %v4976 = vld [vmem:[#allocation13 + $0xa64] sm:$0xff]
        %v4977 = vld [vmem:[#allocation13 + $0xa6c] sm:$0xff]
        %v4978 = vld [vmem:[#allocation13 + $0xa74] sm:$0xff]
        %v4979 = vld [vmem:[#allocation13 + $0xa7c] sm:$0xf]
        %v4980 = vld [vmem:[#allocation13 + $0xa80] sm:$0xff]
        %v4981 = vld [vmem:[#allocation13 + $0xa88] sm:$0xff]
        %v4982 = vld [vmem:[#allocation13 + $0xa90] sm:$0xff]
        %v4983 = vld [vmem:[#allocation13 + $0xa98] sm:$0xf]
        %v4984 = vld [vmem:[#allocation13 + $0xa9c] sm:$0xff]
        %v4985 = vld [vmem:[#allocation13 + $0xaa4] sm:$0xff]
        %v4986 = vld [vmem:[#allocation13 + $0xaac] sm:$0xff]
        %v4987 = vld [vmem:[#allocation13 + $0xab4] sm:$0xf]
        %v4988 = vld [vmem:[#allocation13 + $0xab8] sm:$0xff]
        %v4989 = vld [vmem:[#allocation13 + $0xac0] sm:$0xff]
        %v4990 = vld [vmem:[#allocation13 + $0xac8] sm:$0xff]
        %v4991 = vld [vmem:[#allocation13 + $0xad0] sm:$0xf]
        %v4992 = vld [vmem:[#allocation13 + $0xad4] sm:$0xff]
        %v4993 = vld [vmem:[#allocation13 + $0xadc] sm:$0xff]
        %v4994 = vld [vmem:[#allocation13 + $0xae4] sm:$0xff]
        %v4995 = vld [vmem:[#allocation13 + $0xaec] sm:$0xf]
        %v4996 = vld [vmem:[#allocation13 + $0xaf0] sm:$0xff]
        %v4997 = vld [vmem:[#allocation13 + $0xaf8] sm:$0xff]
        %v4998 = vld [vmem:[#allocation13 + $0xb00] sm:$0xff]
        %v4999 = vld [vmem:[#allocation13 + $0xb08] sm:$0xf]
        %v5000 = vld [vmem:[#allocation13 + $0xb0c] sm:$0xff]
        %v5001 = vld [vmem:[#allocation13 + $0xb14] sm:$0xff]
        %v5002 = vld [vmem:[#allocation13 + $0xb1c] sm:$0xff]
        %v5003 = vld [vmem:[#allocation13 + $0xb24] sm:$0xf]
        %v5004 = vld [vmem:[#allocation13 + $0xb28] sm:$0xff]
        %v5005 = vld [vmem:[#allocation13 + $0xb30] sm:$0xff]
        %v5006 = vld [vmem:[#allocation13 + $0xb38] sm:$0xff]
        %v5007 = vld [vmem:[#allocation13 + $0xb40] sm:$0xf]
        %v5008 = vld [vmem:[#allocation13 + $0xb44] sm:$0xff]
        %v5009 = vld [vmem:[#allocation13 + $0xb4c] sm:$0xff]
        %v5010 = vld [vmem:[#allocation13 + $0xb54] sm:$0xff]
        %v5011 = vld [vmem:[#allocation13 + $0xb5c] sm:$0xf]
        %v5012 = vld [vmem:[#allocation13 + $0xb60] sm:$0xff]
        %v5013 = vld [vmem:[#allocation13 + $0xb68] sm:$0xff]
        %v5014 = vld [vmem:[#allocation13 + $0xb70] sm:$0xff]
        %v5015 = vld [vmem:[#allocation13 + $0xb78] sm:$0xf]
        %v5016 = vld [vmem:[#allocation13 + $0xb7c] sm:$0xff]
        %v5017 = vld [vmem:[#allocation13 + $0xb84] sm:$0xff]
        %v5018 = vld [vmem:[#allocation13 + $0xb8c] sm:$0xff]
        %v5019 = vld [vmem:[#allocation13 + $0xb94] sm:$0xf]
        %v5020 = vld [vmem:[#allocation13 + $0xb98] sm:$0xff]
        %v5021 = vld [vmem:[#allocation13 + $0xba0] sm:$0xff]
        %v5022 = vld [vmem:[#allocation13 + $0xba8] sm:$0xff]
        %v5023 = vld [vmem:[#allocation13 + $0xbb0] sm:$0xf]
        %v5024 = vld [vmem:[#allocation13 + $0xbb4] sm:$0xff]
        %v5025 = vld [vmem:[#allocation13 + $0xbbc] sm:$0xff]
        %v5026 = vld [vmem:[#allocation13 + $0xbc4] sm:$0xff]
        %v5027 = vld [vmem:[#allocation13 + $0xbcc] sm:$0xf]
        %v5028 = vld [vmem:[#allocation13 + $0xbd0] sm:$0xff]
        %v5029 = vld [vmem:[#allocation13 + $0xbd8] sm:$0xff]
        %v5030 = vld [vmem:[#allocation13 + $0xbe0] sm:$0xff]
        %v5031 = vld [vmem:[#allocation13 + $0xbe8] sm:$0xf]
        %v5032 = vld [vmem:[#allocation13 + $0xbec] sm:$0xff]
        %v5033 = vld [vmem:[#allocation13 + $0xbf4] sm:$0xff]
        %v5034 = vld [vmem:[#allocation13 + $0xbfc] sm:$0xff]
        %v5035 = vld [vmem:[#allocation13 + $0xc04] sm:$0xf]
        %v5036 = vld [vmem:[#allocation13 + $0xc08] sm:$0xff]
        %v5037 = vld [vmem:[#allocation13 + $0xc10] sm:$0xff]
        %v5038 = vld [vmem:[#allocation13 + $0xc18] sm:$0xff]
        %v5039 = vld [vmem:[#allocation13 + $0xc20] sm:$0xf]
        %v5040 = vld [vmem:[#allocation13 + $0xc24] sm:$0xff]
        %v5041 = vld [vmem:[#allocation13 + $0xc2c] sm:$0xff]
        %v5042 = vld [vmem:[#allocation13 + $0xc34] sm:$0xff]
        %v5043 = vld [vmem:[#allocation13 + $0xc3c] sm:$0xf]
        %v5044 = vld [vmem:[#allocation13 + $0xc40] sm:$0xff]
        %v5045 = vld [vmem:[#allocation13 + $0xc48] sm:$0xff]
        %v5046 = vld [vmem:[#allocation13 + $0xc50] sm:$0xff]
        %v5047 = vld [vmem:[#allocation13 + $0xc58] sm:$0xf]
        %v5048 = vld [vmem:[#allocation13 + $0xc5c] sm:$0xff]
        %v5049 = vld [vmem:[#allocation13 + $0xc64] sm:$0xff]
        %v5050 = vld [vmem:[#allocation13 + $0xc6c] sm:$0xff]
        %v5051 = vld [vmem:[#allocation13 + $0xc74] sm:$0xf]
        %v5052 = vld [vmem:[#allocation13 + $0xc78] sm:$0xff]
        %v5053 = vld [vmem:[#allocation13 + $0xc80] sm:$0xff]
        %v5054 = vld [vmem:[#allocation13 + $0xc88] sm:$0xff]
        %v5055 = vld [vmem:[#allocation13 + $0xc90] sm:$0xf]
        %v5056 = vld [vmem:[#allocation13 + $0xc94] sm:$0xff]
        %v5057 = vld [vmem:[#allocation13 + $0xc9c] sm:$0xff]
        %v5058 = vld [vmem:[#allocation13 + $0xca4] sm:$0xff]
        %v5059 = vld [vmem:[#allocation13 + $0xcac] sm:$0xf]
        %v5060 = vld [vmem:[#allocation13 + $0xcb0] sm:$0xff]
        %v5061 = vld [vmem:[#allocation13 + $0xcb8] sm:$0xff]
        %v5062 = vld [vmem:[#allocation13 + $0xcc0] sm:$0xff]
        %v5063 = vld [vmem:[#allocation13 + $0xcc8] sm:$0xf]
        %v5064 = vld [vmem:[#allocation13 + $0xccc] sm:$0xff]
        %v5065 = vld [vmem:[#allocation13 + $0xcd4] sm:$0xff]
        %v5066 = vld [vmem:[#allocation13 + $0xcdc] sm:$0xff]
        %v5067 = vld [vmem:[#allocation13 + $0xce4] sm:$0xf]
        %v5068 = vld [vmem:[#allocation13 + $0xce8] sm:$0xff]
        %v5069 = vld [vmem:[#allocation13 + $0xcf0] sm:$0xff]
        %v5070 = vld [vmem:[#allocation13 + $0xcf8] sm:$0xff]
        %v5071 = vld [vmem:[#allocation13 + $0xd00] sm:$0xf]
        %v5072 = vld [vmem:[#allocation13 + $0xd04] sm:$0xff]
        %v5073 = vld [vmem:[#allocation13 + $0xd0c] sm:$0xff]
        %v5074 = vld [vmem:[#allocation13 + $0xd14] sm:$0xff]
        %v5075 = vld [vmem:[#allocation13 + $0xd1c] sm:$0xf]
        %v5076 = vld [vmem:[#allocation13 + $0xd20] sm:$0xff]
        %v5077 = vld [vmem:[#allocation13 + $0xd28] sm:$0xff]
        %v5078 = vld [vmem:[#allocation13 + $0xd30] sm:$0xff]
        %v5079 = vld [vmem:[#allocation13 + $0xd38] sm:$0xf]
        %v5080 = vld [vmem:[#allocation13 + $0xd3c] sm:$0xff]
        %v5081 = vld [vmem:[#allocation13 + $0xd44] sm:$0xff]
        %v5082 = vld [vmem:[#allocation13 + $0xd4c] sm:$0xff]
        %v5083 = vld [vmem:[#allocation13 + $0xd54] sm:$0xf]
        %v5084 = vld [vmem:[#allocation13 + $0xd58] sm:$0xff]
        %v5085 = vld [vmem:[#allocation13 + $0xd60] sm:$0xff]
        %v5086 = vld [vmem:[#allocation13 + $0xd68] sm:$0xff]
        %v5087 = vld [vmem:[#allocation13 + $0xd70] sm:$0xf]
        %v5088 = vld [vmem:[#allocation13 + $0xd74] sm:$0xff]
        %v5089 = vld [vmem:[#allocation13 + $0xd7c] sm:$0xff]
        %v5090 = vld [vmem:[#allocation13 + $0xd84] sm:$0xff]
        %v5091 = vld [vmem:[#allocation13 + $0xd8c] sm:$0xf]
        %v5092 = vld [vmem:[#allocation13 + $0xd90] sm:$0xff]
        %v5093 = vld [vmem:[#allocation13 + $0xd98] sm:$0xff]
        %v5094 = vld [vmem:[#allocation13 + $0xda0] sm:$0xff]
        %v5095 = vld [vmem:[#allocation13 + $0xda8] sm:$0xf]
        %v5096 = vld [vmem:[#allocation13 + $0xdac] sm:$0xff]
        %v5097 = vld [vmem:[#allocation13 + $0xdb4] sm:$0xff]
        %v5098 = vld [vmem:[#allocation13 + $0xdbc] sm:$0xff]
        %v5099 = vld [vmem:[#allocation13 + $0xdc4] sm:$0xf]
        %v5100 = vld [vmem:[#allocation13 + $0xdc8] sm:$0xff]
        %v5101 = vld [vmem:[#allocation13 + $0xdd0] sm:$0xff]
        %v5102 = vld [vmem:[#allocation13 + $0xdd8] sm:$0xff]
        %v5103 = vld [vmem:[#allocation13 + $0xde0] sm:$0xf]
        %v5104 = vld [vmem:[#allocation13 + $0xde4] sm:$0xff]
        %v5105 = vld [vmem:[#allocation13 + $0xdec] sm:$0xff]
        %v5106 = vld [vmem:[#allocation13 + $0xdf4] sm:$0xff]
        %v5107 = vld [vmem:[#allocation13 + $0xdfc] sm:$0xf]
        %v5108 = vld [vmem:[#allocation14] sm:$0xff]
        %v5110 = vlaneseq
        %v5111 = vshrl.u32 %v5110, 7
        %v5112 = vsub.s32 0, %v5111
        %v5113 = vrot.slane %v5108, %v5112
        %v5114 = vlaneseq
        %v5115 = vshrl.u32 %v5114, 7
        %v5116 = vsub.s32 1, %v5115
        %v5117 = vrot.slane %v5108, %v5116
        %v5118 = vlaneseq
        %v5119 = vshrl.u32 %v5118, 7
        %v5120 = vsub.s32 2, %v5119
        %v5121 = vrot.slane %v5108, %v5120
        %v5122 = vlaneseq
        %v5123 = vshrl.u32 %v5122, 7
        %v5124 = vsub.s32 3, %v5123
        %v5125 = vrot.slane %v5108, %v5124
        %v5126 = vlaneseq
        %v5127 = vshrl.u32 %v5126, 7
        %v5128 = vsub.s32 4, %v5127
        %v5129 = vrot.slane %v5108, %v5128
        %v5130 = vlaneseq
        %v5131 = vshrl.u32 %v5130, 7
        %v5132 = vsub.s32 5, %v5131
        %v5133 = vrot.slane %v5108, %v5132
        %v5134 = vlaneseq
        %v5135 = vshrl.u32 %v5134, 7
        %v5136 = vsub.s32 6, %v5135
        %v5137 = vrot.slane %v5108, %v5136
        %v5657 = vunpack.c.l.b16 %v4596
        %v5658 = vunpack.c.h.b16 %v4596
        %v5659 = vunpack.c.l.b16 %v4597
        %v5660 = vunpack.c.h.b16 %v4597
        %v5661 = vunpack.c.l.b16 %v4598
        %v5662 = vunpack.c.h.b16 %v4598
        %v5663 = vunpack.c.l.b16 %v4599
        %v5664 = vunpack.c.l.b16 %v4600
        %v5665 = vunpack.c.h.b16 %v4600
        %v5666 = vunpack.c.l.b16 %v4601
        %v5667 = vunpack.c.h.b16 %v4601
        %v5668 = vunpack.c.l.b16 %v4602
        %v5669 = vunpack.c.h.b16 %v4602
        %v5670 = vunpack.c.l.b16 %v4603
        %v5671 = vunpack.c.l.b16 %v4604
        %v5672 = vunpack.c.h.b16 %v4604
        %v5673 = vunpack.c.l.b16 %v4605
        %v5674 = vunpack.c.h.b16 %v4605
        %v5675 = vunpack.c.l.b16 %v4606
        %v5676 = vunpack.c.h.b16 %v4606
        %v5677 = vunpack.c.l.b16 %v4607
        %v5678 = vunpack.c.l.b16 %v4608
        %v5679 = vunpack.c.h.b16 %v4608
        %v5680 = vunpack.c.l.b16 %v4609
        %v5681 = vunpack.c.h.b16 %v4609
        %v5682 = vunpack.c.l.b16 %v4610
        %v5683 = vunpack.c.h.b16 %v4610
        %v5684 = vunpack.c.l.b16 %v4611
        %v5685 = vunpack.c.l.b16 %v4612
        %v5686 = vunpack.c.h.b16 %v4612
        %v5687 = vunpack.c.l.b16 %v4613
        %v5688 = vunpack.c.h.b16 %v4613
        %v5689 = vunpack.c.l.b16 %v4614
        %v5690 = vunpack.c.h.b16 %v4614
        %v5691 = vunpack.c.l.b16 %v4615
        %v5692 = vunpack.c.l.b16 %v4616
        %v5693 = vunpack.c.h.b16 %v4616
        %v5694 = vunpack.c.l.b16 %v4617
        %v5695 = vunpack.c.h.b16 %v4617
        %v5696 = vunpack.c.l.b16 %v4618
        %v5697 = vunpack.c.h.b16 %v4618
        %v5698 = vunpack.c.l.b16 %v4619
        %v5699 = vunpack.c.l.b16 %v4620
        %v5700 = vunpack.c.h.b16 %v4620
        %v5701 = vunpack.c.l.b16 %v4621
        %v5702 = vunpack.c.h.b16 %v4621
        %v5703 = vunpack.c.l.b16 %v4622
        %v5704 = vunpack.c.h.b16 %v4622
        %v5705 = vunpack.c.l.b16 %v4623
        %v5706 = vunpack.c.l.b16 %v4624
        %v5707 = vunpack.c.h.b16 %v4624
        %v5708 = vunpack.c.l.b16 %v4625
        %v5709 = vunpack.c.h.b16 %v4625
        %v5710 = vunpack.c.l.b16 %v4626
        %v5711 = vunpack.c.h.b16 %v4626
        %v5712 = vunpack.c.l.b16 %v4627
        %v5713 = vunpack.c.l.b16 %v4628
        %v5714 = vunpack.c.h.b16 %v4628
        %v5715 = vunpack.c.l.b16 %v4629
        %v5716 = vunpack.c.h.b16 %v4629
        %v5717 = vunpack.c.l.b16 %v4630
        %v5718 = vunpack.c.h.b16 %v4630
        %v5719 = vunpack.c.l.b16 %v4631
        %v5720 = vunpack.c.l.b16 %v4632
        %v5721 = vunpack.c.h.b16 %v4632
        %v5722 = vunpack.c.l.b16 %v4633
        %v5723 = vunpack.c.h.b16 %v4633
        %v5724 = vunpack.c.l.b16 %v4634
        %v5725 = vunpack.c.h.b16 %v4634
        %v5726 = vunpack.c.l.b16 %v4635
        %v5727 = vunpack.c.l.b16 %v4636
        %v5728 = vunpack.c.h.b16 %v4636
        %v5729 = vunpack.c.l.b16 %v4637
        %v5730 = vunpack.c.h.b16 %v4637
        %v5731 = vunpack.c.l.b16 %v4638
        %v5732 = vunpack.c.h.b16 %v4638
        %v5733 = vunpack.c.l.b16 %v4639
        %v5734 = vunpack.c.l.b16 %v4640
        %v5735 = vunpack.c.h.b16 %v4640
        %v5736 = vunpack.c.l.b16 %v4641
        %v5737 = vunpack.c.h.b16 %v4641
        %v5738 = vunpack.c.l.b16 %v4642
        %v5739 = vunpack.c.h.b16 %v4642
        %v5740 = vunpack.c.l.b16 %v4643
        %v5741 = vunpack.c.l.b16 %v4644
        %v5742 = vunpack.c.h.b16 %v4644
        %v5743 = vunpack.c.l.b16 %v4645
        %v5744 = vunpack.c.h.b16 %v4645
        %v5745 = vunpack.c.l.b16 %v4646
        %v5746 = vunpack.c.h.b16 %v4646
        %v5747 = vunpack.c.l.b16 %v4647
        %v5748 = vunpack.c.l.b16 %v4648
        %v5749 = vunpack.c.h.b16 %v4648
        %v5750 = vunpack.c.l.b16 %v4649
        %v5751 = vunpack.c.h.b16 %v4649
        %v5752 = vunpack.c.l.b16 %v4650
        %v5753 = vunpack.c.h.b16 %v4650
        %v5754 = vunpack.c.l.b16 %v4651
        %v5755 = vunpack.c.l.b16 %v4652
        %v5756 = vunpack.c.h.b16 %v4652
        %v5757 = vunpack.c.l.b16 %v4653
        %v5758 = vunpack.c.h.b16 %v4653
        %v5759 = vunpack.c.l.b16 %v4654
        %v5760 = vunpack.c.h.b16 %v4654
        %v5761 = vunpack.c.l.b16 %v4655
        %v5762 = vunpack.c.l.b16 %v4656
        %v5763 = vunpack.c.h.b16 %v4656
        %v5764 = vunpack.c.l.b16 %v4657
        %v5765 = vunpack.c.h.b16 %v4657
        %v5766 = vunpack.c.l.b16 %v4658
        %v5767 = vunpack.c.h.b16 %v4658
        %v5768 = vunpack.c.l.b16 %v4659
        %v5769 = vunpack.c.l.b16 %v4660
        %v5770 = vunpack.c.h.b16 %v4660
        %v5771 = vunpack.c.l.b16 %v4661
        %v5772 = vunpack.c.h.b16 %v4661
        %v5773 = vunpack.c.l.b16 %v4662
        %v5774 = vunpack.c.h.b16 %v4662
        %v5775 = vunpack.c.l.b16 %v4663
        %v5776 = vunpack.c.l.b16 %v4664
        %v5777 = vunpack.c.h.b16 %v4664
        %v5778 = vunpack.c.l.b16 %v4665
        %v5779 = vunpack.c.h.b16 %v4665
        %v5780 = vunpack.c.l.b16 %v4666
        %v5781 = vunpack.c.h.b16 %v4666
        %v5782 = vunpack.c.l.b16 %v4667
        %v5783 = vunpack.c.l.b16 %v4668
        %v5784 = vunpack.c.h.b16 %v4668
        %v5785 = vunpack.c.l.b16 %v4669
        %v5786 = vunpack.c.h.b16 %v4669
        %v5787 = vunpack.c.l.b16 %v4670
        %v5788 = vunpack.c.h.b16 %v4670
        %v5789 = vunpack.c.l.b16 %v4671
        %v5790 = vunpack.c.l.b16 %v4672
        %v5791 = vunpack.c.h.b16 %v4672
        %v5792 = vunpack.c.l.b16 %v4673
        %v5793 = vunpack.c.h.b16 %v4673
        %v5794 = vunpack.c.l.b16 %v4674
        %v5795 = vunpack.c.h.b16 %v4674
        %v5796 = vunpack.c.l.b16 %v4675
        %v5797 = vunpack.c.l.b16 %v4676
        %v5798 = vunpack.c.h.b16 %v4676
        %v5799 = vunpack.c.l.b16 %v4677
        %v5800 = vunpack.c.h.b16 %v4677
        %v5801 = vunpack.c.l.b16 %v4678
        %v5802 = vunpack.c.h.b16 %v4678
        %v5803 = vunpack.c.l.b16 %v4679
        %v5804 = vunpack.c.l.b16 %v4680
        %v5805 = vunpack.c.h.b16 %v4680
        %v5806 = vunpack.c.l.b16 %v4681
        %v5807 = vunpack.c.h.b16 %v4681
        %v5808 = vunpack.c.l.b16 %v4682
        %v5809 = vunpack.c.h.b16 %v4682
        %v5810 = vunpack.c.l.b16 %v4683
        %v5811 = vunpack.c.l.b16 %v4684
        %v5812 = vunpack.c.h.b16 %v4684
        %v5813 = vunpack.c.l.b16 %v4685
        %v5814 = vunpack.c.h.b16 %v4685
        %v5815 = vunpack.c.l.b16 %v4686
        %v5816 = vunpack.c.h.b16 %v4686
        %v5817 = vunpack.c.l.b16 %v4687
        %v5818 = vunpack.c.l.b16 %v4688
        %v5819 = vunpack.c.h.b16 %v4688
        %v5820 = vunpack.c.l.b16 %v4689
        %v5821 = vunpack.c.h.b16 %v4689
        %v5822 = vunpack.c.l.b16 %v4690
        %v5823 = vunpack.c.h.b16 %v4690
        %v5824 = vunpack.c.l.b16 %v4691
        %v5825 = vunpack.c.l.b16 %v4692
        %v5826 = vunpack.c.h.b16 %v4692
        %v5827 = vunpack.c.l.b16 %v4693
        %v5828 = vunpack.c.h.b16 %v4693
        %v5829 = vunpack.c.l.b16 %v4694
        %v5830 = vunpack.c.h.b16 %v4694
        %v5831 = vunpack.c.l.b16 %v4695
        %v5832 = vunpack.c.l.b16 %v4696
        %v5833 = vunpack.c.h.b16 %v4696
        %v5834 = vunpack.c.l.b16 %v4697
        %v5835 = vunpack.c.h.b16 %v4697
        %v5836 = vunpack.c.l.b16 %v4698
        %v5837 = vunpack.c.h.b16 %v4698
        %v5838 = vunpack.c.l.b16 %v4699
        %v5839 = vunpack.c.l.b16 %v4700
        %v5840 = vunpack.c.h.b16 %v4700
        %v5841 = vunpack.c.l.b16 %v4701
        %v5842 = vunpack.c.h.b16 %v4701
        %v5843 = vunpack.c.l.b16 %v4702
        %v5844 = vunpack.c.h.b16 %v4702
        %v5845 = vunpack.c.l.b16 %v4703
        %v5846 = vunpack.c.l.b16 %v4704
        %v5847 = vunpack.c.h.b16 %v4704
        %v5848 = vunpack.c.l.b16 %v4705
        %v5849 = vunpack.c.h.b16 %v4705
        %v5850 = vunpack.c.l.b16 %v4706
        %v5851 = vunpack.c.h.b16 %v4706
        %v5852 = vunpack.c.l.b16 %v4707
        %v5853 = vunpack.c.l.b16 %v4708
        %v5854 = vunpack.c.h.b16 %v4708
        %v5855 = vunpack.c.l.b16 %v4709
        %v5856 = vunpack.c.h.b16 %v4709
        %v5857 = vunpack.c.l.b16 %v4710
        %v5858 = vunpack.c.h.b16 %v4710
        %v5859 = vunpack.c.l.b16 %v4711
        %v5860 = vunpack.c.l.b16 %v4712
        %v5861 = vunpack.c.h.b16 %v4712
        %v5862 = vunpack.c.l.b16 %v4713
        %v5863 = vunpack.c.h.b16 %v4713
        %v5864 = vunpack.c.l.b16 %v4714
        %v5865 = vunpack.c.h.b16 %v4714
        %v5866 = vunpack.c.l.b16 %v4715
        %v5867 = vunpack.c.l.b16 %v4716
        %v5868 = vunpack.c.h.b16 %v4716
        %v5869 = vunpack.c.l.b16 %v4717
        %v5870 = vunpack.c.h.b16 %v4717
        %v5871 = vunpack.c.l.b16 %v4718
        %v5872 = vunpack.c.h.b16 %v4718
        %v5873 = vunpack.c.l.b16 %v4719
        %v5874 = vunpack.c.l.b16 %v4720
        %v5875 = vunpack.c.h.b16 %v4720
        %v5876 = vunpack.c.l.b16 %v4721
        %v5877 = vunpack.c.h.b16 %v4721
        %v5878 = vunpack.c.l.b16 %v4722
        %v5879 = vunpack.c.h.b16 %v4722
        %v5880 = vunpack.c.l.b16 %v4723
        %v5881 = vunpack.c.l.b16 %v4724
        %v5882 = vunpack.c.h.b16 %v4724
        %v5883 = vunpack.c.l.b16 %v4725
        %v5884 = vunpack.c.h.b16 %v4725
        %v5885 = vunpack.c.l.b16 %v4726
        %v5886 = vunpack.c.h.b16 %v4726
        %v5887 = vunpack.c.l.b16 %v4727
        %v5888 = vunpack.c.l.b16 %v4728
        %v5889 = vunpack.c.h.b16 %v4728
        %v5890 = vunpack.c.l.b16 %v4729
        %v5891 = vunpack.c.h.b16 %v4729
        %v5892 = vunpack.c.l.b16 %v4730
        %v5893 = vunpack.c.h.b16 %v4730
        %v5894 = vunpack.c.l.b16 %v4731
        %v5895 = vunpack.c.l.b16 %v4732
        %v5896 = vunpack.c.h.b16 %v4732
        %v5897 = vunpack.c.l.b16 %v4733
        %v5898 = vunpack.c.h.b16 %v4733
        %v5899 = vunpack.c.l.b16 %v4734
        %v5900 = vunpack.c.h.b16 %v4734
        %v5901 = vunpack.c.l.b16 %v4735
        %v5902 = vunpack.c.l.b16 %v4736
        %v5903 = vunpack.c.h.b16 %v4736
        %v5904 = vunpack.c.l.b16 %v4737
        %v5905 = vunpack.c.h.b16 %v4737
        %v5906 = vunpack.c.l.b16 %v4738
        %v5907 = vunpack.c.h.b16 %v4738
        %v5908 = vunpack.c.l.b16 %v4739
        %v5909 = vunpack.c.l.b16 %v4740
        %v5910 = vunpack.c.h.b16 %v4740
        %v5911 = vunpack.c.l.b16 %v4741
        %v5912 = vunpack.c.h.b16 %v4741
        %v5913 = vunpack.c.l.b16 %v4742
        %v5914 = vunpack.c.h.b16 %v4742
        %v5915 = vunpack.c.l.b16 %v4743
        %v5916 = vunpack.c.l.b16 %v4744
        %v5917 = vunpack.c.h.b16 %v4744
        %v5918 = vunpack.c.l.b16 %v4745
        %v5919 = vunpack.c.h.b16 %v4745
        %v5920 = vunpack.c.l.b16 %v4746
        %v5921 = vunpack.c.h.b16 %v4746
        %v5922 = vunpack.c.l.b16 %v4747
        %v5923 = vunpack.c.l.b16 %v4748
        %v5924 = vunpack.c.h.b16 %v4748
        %v5925 = vunpack.c.l.b16 %v4749
        %v5926 = vunpack.c.h.b16 %v4749
        %v5927 = vunpack.c.l.b16 %v4750
        %v5928 = vunpack.c.h.b16 %v4750
        %v5929 = vunpack.c.l.b16 %v4751
        %v5930 = vunpack.c.l.b16 %v4752
        %v5931 = vunpack.c.h.b16 %v4752
        %v5932 = vunpack.c.l.b16 %v4753
        %v5933 = vunpack.c.h.b16 %v4753
        %v5934 = vunpack.c.l.b16 %v4754
        %v5935 = vunpack.c.h.b16 %v4754
        %v5936 = vunpack.c.l.b16 %v4755
        %v5937 = vunpack.c.l.b16 %v4756
        %v5938 = vunpack.c.h.b16 %v4756
        %v5939 = vunpack.c.l.b16 %v4757
        %v5940 = vunpack.c.h.b16 %v4757
        %v5941 = vunpack.c.l.b16 %v4758
        %v5942 = vunpack.c.h.b16 %v4758
        %v5943 = vunpack.c.l.b16 %v4759
        %v5944 = vunpack.c.l.b16 %v4760
        %v5945 = vunpack.c.h.b16 %v4760
        %v5946 = vunpack.c.l.b16 %v4761
        %v5947 = vunpack.c.h.b16 %v4761
        %v5948 = vunpack.c.l.b16 %v4762
        %v5949 = vunpack.c.h.b16 %v4762
        %v5950 = vunpack.c.l.b16 %v4763
        %v5951 = vunpack.c.l.b16 %v4764
        %v5952 = vunpack.c.h.b16 %v4764
        %v5953 = vunpack.c.l.b16 %v4765
        %v5954 = vunpack.c.h.b16 %v4765
        %v5955 = vunpack.c.l.b16 %v4766
        %v5956 = vunpack.c.h.b16 %v4766
        %v5957 = vunpack.c.l.b16 %v4767
        %v5958 = vunpack.c.l.b16 %v4768
        %v5959 = vunpack.c.h.b16 %v4768
        %v5960 = vunpack.c.l.b16 %v4769
        %v5961 = vunpack.c.h.b16 %v4769
        %v5962 = vunpack.c.l.b16 %v4770
        %v5963 = vunpack.c.h.b16 %v4770
        %v5964 = vunpack.c.l.b16 %v4771
        %v5965 = vunpack.c.l.b16 %v4772
        %v5966 = vunpack.c.h.b16 %v4772
        %v5967 = vunpack.c.l.b16 %v4773
        %v5968 = vunpack.c.h.b16 %v4773
        %v5969 = vunpack.c.l.b16 %v4774
        %v5970 = vunpack.c.h.b16 %v4774
        %v5971 = vunpack.c.l.b16 %v4775
        %v5972 = vunpack.c.l.b16 %v4776
        %v5973 = vunpack.c.h.b16 %v4776
        %v5974 = vunpack.c.l.b16 %v4777
        %v5975 = vunpack.c.h.b16 %v4777
        %v5976 = vunpack.c.l.b16 %v4778
        %v5977 = vunpack.c.h.b16 %v4778
        %v5978 = vunpack.c.l.b16 %v4779
        %v5979 = vunpack.c.l.b16 %v4780
        %v5980 = vunpack.c.h.b16 %v4780
        %v5981 = vunpack.c.l.b16 %v4781
        %v5982 = vunpack.c.h.b16 %v4781
        %v5983 = vunpack.c.l.b16 %v4782
        %v5984 = vunpack.c.h.b16 %v4782
        %v5985 = vunpack.c.l.b16 %v4783
        %v5986 = vunpack.c.l.b16 %v4784
        %v5987 = vunpack.c.h.b16 %v4784
        %v5988 = vunpack.c.l.b16 %v4785
        %v5989 = vunpack.c.h.b16 %v4785
        %v5990 = vunpack.c.l.b16 %v4786
        %v5991 = vunpack.c.h.b16 %v4786
        %v5992 = vunpack.c.l.b16 %v4787
        %v5993 = vunpack.c.l.b16 %v4788
        %v5994 = vunpack.c.h.b16 %v4788
        %v5995 = vunpack.c.l.b16 %v4789
        %v5996 = vunpack.c.h.b16 %v4789
        %v5997 = vunpack.c.l.b16 %v4790
        %v5998 = vunpack.c.h.b16 %v4790
        %v5999 = vunpack.c.l.b16 %v4791
        %v6000 = vunpack.c.l.b16 %v4792
        %v6001 = vunpack.c.h.b16 %v4792
        %v6002 = vunpack.c.l.b16 %v4793
        %v6003 = vunpack.c.h.b16 %v4793
        %v6004 = vunpack.c.l.b16 %v4794
        %v6005 = vunpack.c.h.b16 %v4794
        %v6006 = vunpack.c.l.b16 %v4795
        %v6007 = vunpack.c.l.b16 %v4796
        %v6008 = vunpack.c.h.b16 %v4796
        %v6009 = vunpack.c.l.b16 %v4797
        %v6010 = vunpack.c.h.b16 %v4797
        %v6011 = vunpack.c.l.b16 %v4798
        %v6012 = vunpack.c.h.b16 %v4798
        %v6013 = vunpack.c.l.b16 %v4799
        %v6014 = vunpack.c.l.b16 %v4800
        %v6015 = vunpack.c.h.b16 %v4800
        %v6016 = vunpack.c.l.b16 %v4801
        %v6017 = vunpack.c.h.b16 %v4801
        %v6018 = vunpack.c.l.b16 %v4802
        %v6019 = vunpack.c.h.b16 %v4802
        %v6020 = vunpack.c.l.b16 %v4803
        %v6021 = vunpack.c.l.b16 %v4804
        %v6022 = vunpack.c.h.b16 %v4804
        %v6023 = vunpack.c.l.b16 %v4805
        %v6024 = vunpack.c.h.b16 %v4805
        %v6025 = vunpack.c.l.b16 %v4806
        %v6026 = vunpack.c.h.b16 %v4806
        %v6027 = vunpack.c.l.b16 %v4807
        %v6028 = vunpack.c.l.b16 %v4808
        %v6029 = vunpack.c.h.b16 %v4808
        %v6030 = vunpack.c.l.b16 %v4809
        %v6031 = vunpack.c.h.b16 %v4809
        %v6032 = vunpack.c.l.b16 %v4810
        %v6033 = vunpack.c.h.b16 %v4810
        %v6034 = vunpack.c.l.b16 %v4811
        %v6035 = vunpack.c.l.b16 %v4812
        %v6036 = vunpack.c.h.b16 %v4812
        %v6037 = vunpack.c.l.b16 %v4813
        %v6038 = vunpack.c.h.b16 %v4813
        %v6039 = vunpack.c.l.b16 %v4814
        %v6040 = vunpack.c.h.b16 %v4814
        %v6041 = vunpack.c.l.b16 %v4815
        %v6042 = vunpack.c.l.b16 %v4816
        %v6043 = vunpack.c.h.b16 %v4816
        %v6044 = vunpack.c.l.b16 %v4817
        %v6045 = vunpack.c.h.b16 %v4817
        %v6046 = vunpack.c.l.b16 %v4818
        %v6047 = vunpack.c.h.b16 %v4818
        %v6048 = vunpack.c.l.b16 %v4819
        %v6049 = vunpack.c.l.b16 %v4820
        %v6050 = vunpack.c.h.b16 %v4820
        %v6051 = vunpack.c.l.b16 %v4821
        %v6052 = vunpack.c.h.b16 %v4821
        %v6053 = vunpack.c.l.b16 %v4822
        %v6054 = vunpack.c.h.b16 %v4822
        %v6055 = vunpack.c.l.b16 %v4823
        %v6056 = vunpack.c.l.b16 %v4824
        %v6057 = vunpack.c.h.b16 %v4824
        %v6058 = vunpack.c.l.b16 %v4825
        %v6059 = vunpack.c.h.b16 %v4825
        %v6060 = vunpack.c.l.b16 %v4826
        %v6061 = vunpack.c.h.b16 %v4826
        %v6062 = vunpack.c.l.b16 %v4827
        %v6063 = vunpack.c.l.b16 %v4828
        %v6064 = vunpack.c.h.b16 %v4828
        %v6065 = vunpack.c.l.b16 %v4829
        %v6066 = vunpack.c.h.b16 %v4829
        %v6067 = vunpack.c.l.b16 %v4830
        %v6068 = vunpack.c.h.b16 %v4830
        %v6069 = vunpack.c.l.b16 %v4831
        %v6070 = vunpack.c.l.b16 %v4832
        %v6071 = vunpack.c.h.b16 %v4832
        %v6072 = vunpack.c.l.b16 %v4833
        %v6073 = vunpack.c.h.b16 %v4833
        %v6074 = vunpack.c.l.b16 %v4834
        %v6075 = vunpack.c.h.b16 %v4834
        %v6076 = vunpack.c.l.b16 %v4835
        %v6077 = vunpack.c.l.b16 %v4836
        %v6078 = vunpack.c.h.b16 %v4836
        %v6079 = vunpack.c.l.b16 %v4837
        %v6080 = vunpack.c.h.b16 %v4837
        %v6081 = vunpack.c.l.b16 %v4838
        %v6082 = vunpack.c.h.b16 %v4838
        %v6083 = vunpack.c.l.b16 %v4839
        %v6084 = vunpack.c.l.b16 %v4840
        %v6085 = vunpack.c.h.b16 %v4840
        %v6086 = vunpack.c.l.b16 %v4841
        %v6087 = vunpack.c.h.b16 %v4841
        %v6088 = vunpack.c.l.b16 %v4842
        %v6089 = vunpack.c.h.b16 %v4842
        %v6090 = vunpack.c.l.b16 %v4843
        %v6091 = vunpack.c.l.b16 %v4844
        %v6092 = vunpack.c.h.b16 %v4844
        %v6093 = vunpack.c.l.b16 %v4845
        %v6094 = vunpack.c.h.b16 %v4845
        %v6095 = vunpack.c.l.b16 %v4846
        %v6096 = vunpack.c.h.b16 %v4846
        %v6097 = vunpack.c.l.b16 %v4847
        %v6098 = vunpack.c.l.b16 %v4848
        %v6099 = vunpack.c.h.b16 %v4848
        %v6100 = vunpack.c.l.b16 %v4849
        %v6101 = vunpack.c.h.b16 %v4849
        %v6102 = vunpack.c.l.b16 %v4850
        %v6103 = vunpack.c.h.b16 %v4850
        %v6104 = vunpack.c.l.b16 %v4851
        %v6105 = vunpack.c.l.b16 %v4852
        %v6106 = vunpack.c.h.b16 %v4852
        %v6107 = vunpack.c.l.b16 %v4853
        %v6108 = vunpack.c.h.b16 %v4853
        %v6109 = vunpack.c.l.b16 %v4854
        %v6110 = vunpack.c.h.b16 %v4854
        %v6111 = vunpack.c.l.b16 %v4855
        %v6112 = vunpack.c.l.b16 %v4856
        %v6113 = vunpack.c.h.b16 %v4856
        %v6114 = vunpack.c.l.b16 %v4857
        %v6115 = vunpack.c.h.b16 %v4857
        %v6116 = vunpack.c.l.b16 %v4858
        %v6117 = vunpack.c.h.b16 %v4858
        %v6118 = vunpack.c.l.b16 %v4859
        %v6119 = vunpack.c.l.b16 %v4860
        %v6120 = vunpack.c.h.b16 %v4860
        %v6121 = vunpack.c.l.b16 %v4861
        %v6122 = vunpack.c.h.b16 %v4861
        %v6123 = vunpack.c.l.b16 %v4862
        %v6124 = vunpack.c.h.b16 %v4862
        %v6125 = vunpack.c.l.b16 %v4863
        %v6126 = vunpack.c.l.b16 %v4864
        %v6127 = vunpack.c.h.b16 %v4864
        %v6128 = vunpack.c.l.b16 %v4865
        %v6129 = vunpack.c.h.b16 %v4865
        %v6130 = vunpack.c.l.b16 %v4866
        %v6131 = vunpack.c.h.b16 %v4866
        %v6132 = vunpack.c.l.b16 %v4867
        %v6133 = vunpack.c.l.b16 %v4868
        %v6134 = vunpack.c.h.b16 %v4868
        %v6135 = vunpack.c.l.b16 %v4869
        %v6136 = vunpack.c.h.b16 %v4869
        %v6137 = vunpack.c.l.b16 %v4870
        %v6138 = vunpack.c.h.b16 %v4870
        %v6139 = vunpack.c.l.b16 %v4871
        %v6140 = vunpack.c.l.b16 %v4872
        %v6141 = vunpack.c.h.b16 %v4872
        %v6142 = vunpack.c.l.b16 %v4873
        %v6143 = vunpack.c.h.b16 %v4873
        %v6144 = vunpack.c.l.b16 %v4874
        %v6145 = vunpack.c.h.b16 %v4874
        %v6146 = vunpack.c.l.b16 %v4875
        %v6147 = vunpack.c.l.b16 %v4876
        %v6148 = vunpack.c.h.b16 %v4876
        %v6149 = vunpack.c.l.b16 %v4877
        %v6150 = vunpack.c.h.b16 %v4877
        %v6151 = vunpack.c.l.b16 %v4878
        %v6152 = vunpack.c.h.b16 %v4878
        %v6153 = vunpack.c.l.b16 %v4879
        %v6154 = vunpack.c.l.b16 %v4880
        %v6155 = vunpack.c.h.b16 %v4880
        %v6156 = vunpack.c.l.b16 %v4881
        %v6157 = vunpack.c.h.b16 %v4881
        %v6158 = vunpack.c.l.b16 %v4882
        %v6159 = vunpack.c.h.b16 %v4882
        %v6160 = vunpack.c.l.b16 %v4883
        %v6161 = vunpack.c.l.b16 %v4884
        %v6162 = vunpack.c.h.b16 %v4884
        %v6163 = vunpack.c.l.b16 %v4885
        %v6164 = vunpack.c.h.b16 %v4885
        %v6165 = vunpack.c.l.b16 %v4886
        %v6166 = vunpack.c.h.b16 %v4886
        %v6167 = vunpack.c.l.b16 %v4887
        %v6168 = vunpack.c.l.b16 %v4888
        %v6169 = vunpack.c.h.b16 %v4888
        %v6170 = vunpack.c.l.b16 %v4889
        %v6171 = vunpack.c.h.b16 %v4889
        %v6172 = vunpack.c.l.b16 %v4890
        %v6173 = vunpack.c.h.b16 %v4890
        %v6174 = vunpack.c.l.b16 %v4891
        %v6175 = vunpack.c.l.b16 %v4892
        %v6176 = vunpack.c.h.b16 %v4892
        %v6177 = vunpack.c.l.b16 %v4893
        %v6178 = vunpack.c.h.b16 %v4893
        %v6179 = vunpack.c.l.b16 %v4894
        %v6180 = vunpack.c.h.b16 %v4894
        %v6181 = vunpack.c.l.b16 %v4895
        %v6182 = vunpack.c.l.b16 %v4896
        %v6183 = vunpack.c.h.b16 %v4896
        %v6184 = vunpack.c.l.b16 %v4897
        %v6185 = vunpack.c.h.b16 %v4897
        %v6186 = vunpack.c.l.b16 %v4898
        %v6187 = vunpack.c.h.b16 %v4898
        %v6188 = vunpack.c.l.b16 %v4899
        %v6189 = vunpack.c.l.b16 %v4900
        %v6190 = vunpack.c.h.b16 %v4900
        %v6191 = vunpack.c.l.b16 %v4901
        %v6192 = vunpack.c.h.b16 %v4901
        %v6193 = vunpack.c.l.b16 %v4902
        %v6194 = vunpack.c.h.b16 %v4902
        %v6195 = vunpack.c.l.b16 %v4903
        %v6196 = vunpack.c.l.b16 %v4904
        %v6197 = vunpack.c.h.b16 %v4904
        %v6198 = vunpack.c.l.b16 %v4905
        %v6199 = vunpack.c.h.b16 %v4905
        %v6200 = vunpack.c.l.b16 %v4906
        %v6201 = vunpack.c.h.b16 %v4906
        %v6202 = vunpack.c.l.b16 %v4907
        %v6203 = vunpack.c.l.b16 %v4908
        %v6204 = vunpack.c.h.b16 %v4908
        %v6205 = vunpack.c.l.b16 %v4909
        %v6206 = vunpack.c.h.b16 %v4909
        %v6207 = vunpack.c.l.b16 %v4910
        %v6208 = vunpack.c.h.b16 %v4910
        %v6209 = vunpack.c.l.b16 %v4911
        %v6210 = vunpack.c.l.b16 %v4912
        %v6211 = vunpack.c.h.b16 %v4912
        %v6212 = vunpack.c.l.b16 %v4913
        %v6213 = vunpack.c.h.b16 %v4913
        %v6214 = vunpack.c.l.b16 %v4914
        %v6215 = vunpack.c.h.b16 %v4914
        %v6216 = vunpack.c.l.b16 %v4915
        %v6217 = vunpack.c.l.b16 %v4916
        %v6218 = vunpack.c.h.b16 %v4916
        %v6219 = vunpack.c.l.b16 %v4917
        %v6220 = vunpack.c.h.b16 %v4917
        %v6221 = vunpack.c.l.b16 %v4918
        %v6222 = vunpack.c.h.b16 %v4918
        %v6223 = vunpack.c.l.b16 %v4919
        %v6224 = vunpack.c.l.b16 %v4920
        %v6225 = vunpack.c.h.b16 %v4920
        %v6226 = vunpack.c.l.b16 %v4921
        %v6227 = vunpack.c.h.b16 %v4921
        %v6228 = vunpack.c.l.b16 %v4922
        %v6229 = vunpack.c.h.b16 %v4922
        %v6230 = vunpack.c.l.b16 %v4923
        %v6231 = vunpack.c.l.b16 %v4924
        %v6232 = vunpack.c.h.b16 %v4924
        %v6233 = vunpack.c.l.b16 %v4925
        %v6234 = vunpack.c.h.b16 %v4925
        %v6235 = vunpack.c.l.b16 %v4926
        %v6236 = vunpack.c.h.b16 %v4926
        %v6237 = vunpack.c.l.b16 %v4927
        %v6238 = vunpack.c.l.b16 %v4928
        %v6239 = vunpack.c.h.b16 %v4928
        %v6240 = vunpack.c.l.b16 %v4929
        %v6241 = vunpack.c.h.b16 %v4929
        %v6242 = vunpack.c.l.b16 %v4930
        %v6243 = vunpack.c.h.b16 %v4930
        %v6244 = vunpack.c.l.b16 %v4931
        %v6245 = vunpack.c.l.b16 %v4932
        %v6246 = vunpack.c.h.b16 %v4932
        %v6247 = vunpack.c.l.b16 %v4933
        %v6248 = vunpack.c.h.b16 %v4933
        %v6249 = vunpack.c.l.b16 %v4934
        %v6250 = vunpack.c.h.b16 %v4934
        %v6251 = vunpack.c.l.b16 %v4935
        %v6252 = vunpack.c.l.b16 %v4936
        %v6253 = vunpack.c.h.b16 %v4936
        %v6254 = vunpack.c.l.b16 %v4937
        %v6255 = vunpack.c.h.b16 %v4937
        %v6256 = vunpack.c.l.b16 %v4938
        %v6257 = vunpack.c.h.b16 %v4938
        %v6258 = vunpack.c.l.b16 %v4939
        %v6259 = vunpack.c.l.b16 %v4940
        %v6260 = vunpack.c.h.b16 %v4940
        %v6261 = vunpack.c.l.b16 %v4941
        %v6262 = vunpack.c.h.b16 %v4941
        %v6263 = vunpack.c.l.b16 %v4942
        %v6264 = vunpack.c.h.b16 %v4942
        %v6265 = vunpack.c.l.b16 %v4943
        %v6266 = vunpack.c.l.b16 %v4944
        %v6267 = vunpack.c.h.b16 %v4944
        %v6268 = vunpack.c.l.b16 %v4945
        %v6269 = vunpack.c.h.b16 %v4945
        %v6270 = vunpack.c.l.b16 %v4946
        %v6271 = vunpack.c.h.b16 %v4946
        %v6272 = vunpack.c.l.b16 %v4947
        %v6273 = vunpack.c.l.b16 %v4948
        %v6274 = vunpack.c.h.b16 %v4948
        %v6275 = vunpack.c.l.b16 %v4949
        %v6276 = vunpack.c.h.b16 %v4949
        %v6277 = vunpack.c.l.b16 %v4950
        %v6278 = vunpack.c.h.b16 %v4950
        %v6279 = vunpack.c.l.b16 %v4951
        %v6280 = vunpack.c.l.b16 %v4952
        %v6281 = vunpack.c.h.b16 %v4952
        %v6282 = vunpack.c.l.b16 %v4953
        %v6283 = vunpack.c.h.b16 %v4953
        %v6284 = vunpack.c.l.b16 %v4954
        %v6285 = vunpack.c.h.b16 %v4954
        %v6286 = vunpack.c.l.b16 %v4955
        %v6287 = vunpack.c.l.b16 %v4956
        %v6288 = vunpack.c.h.b16 %v4956
        %v6289 = vunpack.c.l.b16 %v4957
        %v6290 = vunpack.c.h.b16 %v4957
        %v6291 = vunpack.c.l.b16 %v4958
        %v6292 = vunpack.c.h.b16 %v4958
        %v6293 = vunpack.c.l.b16 %v4959
        %v6294 = vunpack.c.l.b16 %v4960
        %v6295 = vunpack.c.h.b16 %v4960
        %v6296 = vunpack.c.l.b16 %v4961
        %v6297 = vunpack.c.h.b16 %v4961
        %v6298 = vunpack.c.l.b16 %v4962
        %v6299 = vunpack.c.h.b16 %v4962
        %v6300 = vunpack.c.l.b16 %v4963
        %v6301 = vunpack.c.l.b16 %v4964
        %v6302 = vunpack.c.h.b16 %v4964
        %v6303 = vunpack.c.l.b16 %v4965
        %v6304 = vunpack.c.h.b16 %v4965
        %v6305 = vunpack.c.l.b16 %v4966
        %v6306 = vunpack.c.h.b16 %v4966
        %v6307 = vunpack.c.l.b16 %v4967
        %v6308 = vunpack.c.l.b16 %v4968
        %v6309 = vunpack.c.h.b16 %v4968
        %v6310 = vunpack.c.l.b16 %v4969
        %v6311 = vunpack.c.h.b16 %v4969
        %v6312 = vunpack.c.l.b16 %v4970
        %v6313 = vunpack.c.h.b16 %v4970
        %v6314 = vunpack.c.l.b16 %v4971
        %v6315 = vunpack.c.l.b16 %v4972
        %v6316 = vunpack.c.h.b16 %v4972
        %v6317 = vunpack.c.l.b16 %v4973
        %v6318 = vunpack.c.h.b16 %v4973
        %v6319 = vunpack.c.l.b16 %v4974
        %v6320 = vunpack.c.h.b16 %v4974
        %v6321 = vunpack.c.l.b16 %v4975
        %v6322 = vunpack.c.l.b16 %v4976
        %v6323 = vunpack.c.h.b16 %v4976
        %v6324 = vunpack.c.l.b16 %v4977
        %v6325 = vunpack.c.h.b16 %v4977
        %v6326 = vunpack.c.l.b16 %v4978
        %v6327 = vunpack.c.h.b16 %v4978
        %v6328 = vunpack.c.l.b16 %v4979
        %v6329 = vunpack.c.l.b16 %v4980
        %v6330 = vunpack.c.h.b16 %v4980
        %v6331 = vunpack.c.l.b16 %v4981
        %v6332 = vunpack.c.h.b16 %v4981
        %v6333 = vunpack.c.l.b16 %v4982
        %v6334 = vunpack.c.h.b16 %v4982
        %v6335 = vunpack.c.l.b16 %v4983
        %v6336 = vunpack.c.l.b16 %v4984
        %v6337 = vunpack.c.h.b16 %v4984
        %v6338 = vunpack.c.l.b16 %v4985
        %v6339 = vunpack.c.h.b16 %v4985
        %v6340 = vunpack.c.l.b16 %v4986
        %v6341 = vunpack.c.h.b16 %v4986
        %v6342 = vunpack.c.l.b16 %v4987
        %v6343 = vunpack.c.l.b16 %v4988
        %v6344 = vunpack.c.h.b16 %v4988
        %v6345 = vunpack.c.l.b16 %v4989
        %v6346 = vunpack.c.h.b16 %v4989
        %v6347 = vunpack.c.l.b16 %v4990
        %v6348 = vunpack.c.h.b16 %v4990
        %v6349 = vunpack.c.l.b16 %v4991
        %v6350 = vunpack.c.l.b16 %v4992
        %v6351 = vunpack.c.h.b16 %v4992
        %v6352 = vunpack.c.l.b16 %v4993
        %v6353 = vunpack.c.h.b16 %v4993
        %v6354 = vunpack.c.l.b16 %v4994
        %v6355 = vunpack.c.h.b16 %v4994
        %v6356 = vunpack.c.l.b16 %v4995
        %v6357 = vunpack.c.l.b16 %v4996
        %v6358 = vunpack.c.h.b16 %v4996
        %v6359 = vunpack.c.l.b16 %v4997
        %v6360 = vunpack.c.h.b16 %v4997
        %v6361 = vunpack.c.l.b16 %v4998
        %v6362 = vunpack.c.h.b16 %v4998
        %v6363 = vunpack.c.l.b16 %v4999
        %v6364 = vunpack.c.l.b16 %v5000
        %v6365 = vunpack.c.h.b16 %v5000
        %v6366 = vunpack.c.l.b16 %v5001
        %v6367 = vunpack.c.h.b16 %v5001
        %v6368 = vunpack.c.l.b16 %v5002
        %v6369 = vunpack.c.h.b16 %v5002
        %v6370 = vunpack.c.l.b16 %v5003
        %v6371 = vunpack.c.l.b16 %v5004
        %v6372 = vunpack.c.h.b16 %v5004
        %v6373 = vunpack.c.l.b16 %v5005
        %v6374 = vunpack.c.h.b16 %v5005
        %v6375 = vunpack.c.l.b16 %v5006
        %v6376 = vunpack.c.h.b16 %v5006
        %v6377 = vunpack.c.l.b16 %v5007
        %v6378 = vunpack.c.l.b16 %v5008
        %v6379 = vunpack.c.h.b16 %v5008
        %v6380 = vunpack.c.l.b16 %v5009
        %v6381 = vunpack.c.h.b16 %v5009
        %v6382 = vunpack.c.l.b16 %v5010
        %v6383 = vunpack.c.h.b16 %v5010
        %v6384 = vunpack.c.l.b16 %v5011
        %v6385 = vunpack.c.l.b16 %v5012
        %v6386 = vunpack.c.h.b16 %v5012
        %v6387 = vunpack.c.l.b16 %v5013
        %v6388 = vunpack.c.h.b16 %v5013
        %v6389 = vunpack.c.l.b16 %v5014
        %v6390 = vunpack.c.h.b16 %v5014
        %v6391 = vunpack.c.l.b16 %v5015
        %v6392 = vunpack.c.l.b16 %v5016
        %v6393 = vunpack.c.h.b16 %v5016
        %v6394 = vunpack.c.l.b16 %v5017
        %v6395 = vunpack.c.h.b16 %v5017
        %v6396 = vunpack.c.l.b16 %v5018
        %v6397 = vunpack.c.h.b16 %v5018
        %v6398 = vunpack.c.l.b16 %v5019
        %v6399 = vunpack.c.l.b16 %v5020
        %v6400 = vunpack.c.h.b16 %v5020
        %v6401 = vunpack.c.l.b16 %v5021
        %v6402 = vunpack.c.h.b16 %v5021
        %v6403 = vunpack.c.l.b16 %v5022
        %v6404 = vunpack.c.h.b16 %v5022
        %v6405 = vunpack.c.l.b16 %v5023
        %v6406 = vunpack.c.l.b16 %v5024
        %v6407 = vunpack.c.h.b16 %v5024
        %v6408 = vunpack.c.l.b16 %v5025
        %v6409 = vunpack.c.h.b16 %v5025
        %v6410 = vunpack.c.l.b16 %v5026
        %v6411 = vunpack.c.h.b16 %v5026
        %v6412 = vunpack.c.l.b16 %v5027
        %v6413 = vunpack.c.l.b16 %v5028
        %v6414 = vunpack.c.h.b16 %v5028
        %v6415 = vunpack.c.l.b16 %v5029
        %v6416 = vunpack.c.h.b16 %v5029
        %v6417 = vunpack.c.l.b16 %v5030
        %v6418 = vunpack.c.h.b16 %v5030
        %v6419 = vunpack.c.l.b16 %v5031
        %v6420 = vunpack.c.l.b16 %v5032
        %v6421 = vunpack.c.h.b16 %v5032
        %v6422 = vunpack.c.l.b16 %v5033
        %v6423 = vunpack.c.h.b16 %v5033
        %v6424 = vunpack.c.l.b16 %v5034
        %v6425 = vunpack.c.h.b16 %v5034
        %v6426 = vunpack.c.l.b16 %v5035
        %v6427 = vunpack.c.l.b16 %v5036
        %v6428 = vunpack.c.h.b16 %v5036
        %v6429 = vunpack.c.l.b16 %v5037
        %v6430 = vunpack.c.h.b16 %v5037
        %v6431 = vunpack.c.l.b16 %v5038
        %v6432 = vunpack.c.h.b16 %v5038
        %v6433 = vunpack.c.l.b16 %v5039
        %v6434 = vunpack.c.l.b16 %v5040
        %v6435 = vunpack.c.h.b16 %v5040
        %v6436 = vunpack.c.l.b16 %v5041
        %v6437 = vunpack.c.h.b16 %v5041
        %v6438 = vunpack.c.l.b16 %v5042
        %v6439 = vunpack.c.h.b16 %v5042
        %v6440 = vunpack.c.l.b16 %v5043
        %v6441 = vunpack.c.l.b16 %v5044
        %v6442 = vunpack.c.h.b16 %v5044
        %v6443 = vunpack.c.l.b16 %v5045
        %v6444 = vunpack.c.h.b16 %v5045
        %v6445 = vunpack.c.l.b16 %v5046
        %v6446 = vunpack.c.h.b16 %v5046
        %v6447 = vunpack.c.l.b16 %v5047
        %v6448 = vunpack.c.l.b16 %v5048
        %v6449 = vunpack.c.h.b16 %v5048
        %v6450 = vunpack.c.l.b16 %v5049
        %v6451 = vunpack.c.h.b16 %v5049
        %v6452 = vunpack.c.l.b16 %v5050
        %v6453 = vunpack.c.h.b16 %v5050
        %v6454 = vunpack.c.l.b16 %v5051
        %v6455 = vunpack.c.l.b16 %v5052
        %v6456 = vunpack.c.h.b16 %v5052
        %v6457 = vunpack.c.l.b16 %v5053
        %v6458 = vunpack.c.h.b16 %v5053
        %v6459 = vunpack.c.l.b16 %v5054
        %v6460 = vunpack.c.h.b16 %v5054
        %v6461 = vunpack.c.l.b16 %v5055
        %v6462 = vunpack.c.l.b16 %v5056
        %v6463 = vunpack.c.h.b16 %v5056
        %v6464 = vunpack.c.l.b16 %v5057
        %v6465 = vunpack.c.h.b16 %v5057
        %v6466 = vunpack.c.l.b16 %v5058
        %v6467 = vunpack.c.h.b16 %v5058
        %v6468 = vunpack.c.l.b16 %v5059
        %v6469 = vunpack.c.l.b16 %v5060
        %v6470 = vunpack.c.h.b16 %v5060
        %v6471 = vunpack.c.l.b16 %v5061
        %v6472 = vunpack.c.h.b16 %v5061
        %v6473 = vunpack.c.l.b16 %v5062
        %v6474 = vunpack.c.h.b16 %v5062
        %v6475 = vunpack.c.l.b16 %v5063
        %v6476 = vunpack.c.l.b16 %v5064
        %v6477 = vunpack.c.h.b16 %v5064
        %v6478 = vunpack.c.l.b16 %v5065
        %v6479 = vunpack.c.h.b16 %v5065
        %v6480 = vunpack.c.l.b16 %v5066
        %v6481 = vunpack.c.h.b16 %v5066
        %v6482 = vunpack.c.l.b16 %v5067
        %v6483 = vunpack.c.l.b16 %v5068
        %v6484 = vunpack.c.h.b16 %v5068
        %v6485 = vunpack.c.l.b16 %v5069
        %v6486 = vunpack.c.h.b16 %v5069
        %v6487 = vunpack.c.l.b16 %v5070
        %v6488 = vunpack.c.h.b16 %v5070
        %v6489 = vunpack.c.l.b16 %v5071
        %v6490 = vunpack.c.l.b16 %v5072
        %v6491 = vunpack.c.h.b16 %v5072
        %v6492 = vunpack.c.l.b16 %v5073
        %v6493 = vunpack.c.h.b16 %v5073
        %v6494 = vunpack.c.l.b16 %v5074
        %v6495 = vunpack.c.h.b16 %v5074
        %v6496 = vunpack.c.l.b16 %v5075
        %v6497 = vunpack.c.l.b16 %v5076
        %v6498 = vunpack.c.h.b16 %v5076
        %v6499 = vunpack.c.l.b16 %v5077
        %v6500 = vunpack.c.h.b16 %v5077
        %v6501 = vunpack.c.l.b16 %v5078
        %v6502 = vunpack.c.h.b16 %v5078
        %v6503 = vunpack.c.l.b16 %v5079
        %v6504 = vunpack.c.l.b16 %v5080
        %v6505 = vunpack.c.h.b16 %v5080
        %v6506 = vunpack.c.l.b16 %v5081
        %v6507 = vunpack.c.h.b16 %v5081
        %v6508 = vunpack.c.l.b16 %v5082
        %v6509 = vunpack.c.h.b16 %v5082
        %v6510 = vunpack.c.l.b16 %v5083
        %v6511 = vunpack.c.l.b16 %v5084
        %v6512 = vunpack.c.h.b16 %v5084
        %v6513 = vunpack.c.l.b16 %v5085
        %v6514 = vunpack.c.h.b16 %v5085
        %v6515 = vunpack.c.l.b16 %v5086
        %v6516 = vunpack.c.h.b16 %v5086
        %v6517 = vunpack.c.l.b16 %v5087
        %v6518 = vunpack.c.l.b16 %v5088
        %v6519 = vunpack.c.h.b16 %v5088
        %v6520 = vunpack.c.l.b16 %v5089
        %v6521 = vunpack.c.h.b16 %v5089
        %v6522 = vunpack.c.l.b16 %v5090
        %v6523 = vunpack.c.h.b16 %v5090
        %v6524 = vunpack.c.l.b16 %v5091
        %v6525 = vunpack.c.l.b16 %v5092
        %v6526 = vunpack.c.h.b16 %v5092
        %v6527 = vunpack.c.l.b16 %v5093
        %v6528 = vunpack.c.h.b16 %v5093
        %v6529 = vunpack.c.l.b16 %v5094
        %v6530 = vunpack.c.h.b16 %v5094
        %v6531 = vunpack.c.l.b16 %v5095
        %v6532 = vunpack.c.l.b16 %v5096
        %v6533 = vunpack.c.h.b16 %v5096
        %v6534 = vunpack.c.l.b16 %v5097
        %v6535 = vunpack.c.h.b16 %v5097
        %v6536 = vunpack.c.l.b16 %v5098
        %v6537 = vunpack.c.h.b16 %v5098
        %v6538 = vunpack.c.l.b16 %v5099
        %v6539 = vunpack.c.l.b16 %v5100
        %v6540 = vunpack.c.h.b16 %v5100
        %v6541 = vunpack.c.l.b16 %v5101
        %v6542 = vunpack.c.h.b16 %v5101
        %v6543 = vunpack.c.l.b16 %v5102
        %v6544 = vunpack.c.h.b16 %v5102
        %v6545 = vunpack.c.l.b16 %v5103
        %v6546 = vunpack.c.l.b16 %v5104
        %v6547 = vunpack.c.h.b16 %v5104
        %v6548 = vunpack.c.l.b16 %v5105
        %v6549 = vunpack.c.h.b16 %v5105
        %v6550 = vunpack.c.l.b16 %v5106
        %v6551 = vunpack.c.h.b16 %v5106
        %v6552 = vunpack.c.l.b16 %v5107
        %v6553 = vpack.c.b16 %v5664, %v5657
        %v6554 = vpack.c.b16 %v5665, %v5658
        %v6555 = vpack.c.b16 %v5666, %v5659
        %v6556 = vpack.c.b16 %v5667, %v5660
        %v6557 = vpack.c.b16 %v5668, %v5661
        %v6558 = vpack.c.b16 %v5669, %v5662
        %v6559 = vpack.c.b16 %v5670, %v5663
        %v6560 = vpack.c.b16 %v5678, %v5671
        %v6561 = vpack.c.b16 %v5679, %v5672
        %v6562 = vpack.c.b16 %v5680, %v5673
        %v6563 = vpack.c.b16 %v5681, %v5674
        %v6564 = vpack.c.b16 %v5682, %v5675
        %v6565 = vpack.c.b16 %v5683, %v5676
        %v6566 = vpack.c.b16 %v5684, %v5677
        %v6567 = vpack.c.b16 %v5692, %v5685
        %v6568 = vpack.c.b16 %v5693, %v5686
        %v6569 = vpack.c.b16 %v5694, %v5687
        %v6570 = vpack.c.b16 %v5695, %v5688
        %v6571 = vpack.c.b16 %v5696, %v5689
        %v6572 = vpack.c.b16 %v5697, %v5690
        %v6573 = vpack.c.b16 %v5698, %v5691
        %v6574 = vpack.c.b16 %v5706, %v5699
        %v6575 = vpack.c.b16 %v5707, %v5700
        %v6576 = vpack.c.b16 %v5708, %v5701
        %v6577 = vpack.c.b16 %v5709, %v5702
        %v6578 = vpack.c.b16 %v5710, %v5703
        %v6579 = vpack.c.b16 %v5711, %v5704
        %v6580 = vpack.c.b16 %v5712, %v5705
        %v6581 = vpack.c.b16 %v5720, %v5713
        %v6582 = vpack.c.b16 %v5721, %v5714
        %v6583 = vpack.c.b16 %v5722, %v5715
        %v6584 = vpack.c.b16 %v5723, %v5716
        %v6585 = vpack.c.b16 %v5724, %v5717
        %v6586 = vpack.c.b16 %v5725, %v5718
        %v6587 = vpack.c.b16 %v5726, %v5719
        %v6588 = vpack.c.b16 %v5734, %v5727
        %v6589 = vpack.c.b16 %v5735, %v5728
        %v6590 = vpack.c.b16 %v5736, %v5729
        %v6591 = vpack.c.b16 %v5737, %v5730
        %v6592 = vpack.c.b16 %v5738, %v5731
        %v6593 = vpack.c.b16 %v5739, %v5732
        %v6594 = vpack.c.b16 %v5740, %v5733
        %v6595 = vpack.c.b16 %v5748, %v5741
        %v6596 = vpack.c.b16 %v5749, %v5742
        %v6597 = vpack.c.b16 %v5750, %v5743
        %v6598 = vpack.c.b16 %v5751, %v5744
        %v6599 = vpack.c.b16 %v5752, %v5745
        %v6600 = vpack.c.b16 %v5753, %v5746
        %v6601 = vpack.c.b16 %v5754, %v5747
        %v6602 = vpack.c.b16 %v5762, %v5755
        %v6603 = vpack.c.b16 %v5763, %v5756
        %v6604 = vpack.c.b16 %v5764, %v5757
        %v6605 = vpack.c.b16 %v5765, %v5758
        %v6606 = vpack.c.b16 %v5766, %v5759
        %v6607 = vpack.c.b16 %v5767, %v5760
        %v6608 = vpack.c.b16 %v5768, %v5761
        %v6609 = vpack.c.b16 %v5776, %v5769
        %v6610 = vpack.c.b16 %v5777, %v5770
        %v6611 = vpack.c.b16 %v5778, %v5771
        %v6612 = vpack.c.b16 %v5779, %v5772
        %v6613 = vpack.c.b16 %v5780, %v5773
        %v6614 = vpack.c.b16 %v5781, %v5774
        %v6615 = vpack.c.b16 %v5782, %v5775
        %v6616 = vpack.c.b16 %v5790, %v5783
        %v6617 = vpack.c.b16 %v5791, %v5784
        %v6618 = vpack.c.b16 %v5792, %v5785
        %v6619 = vpack.c.b16 %v5793, %v5786
        %v6620 = vpack.c.b16 %v5794, %v5787
        %v6621 = vpack.c.b16 %v5795, %v5788
        %v6622 = vpack.c.b16 %v5796, %v5789
        %v6623 = vpack.c.b16 %v5804, %v5797
        %v6624 = vpack.c.b16 %v5805, %v5798
        %v6625 = vpack.c.b16 %v5806, %v5799
        %v6626 = vpack.c.b16 %v5807, %v5800
        %v6627 = vpack.c.b16 %v5808, %v5801
        %v6628 = vpack.c.b16 %v5809, %v5802
        %v6629 = vpack.c.b16 %v5810, %v5803
        %v6630 = vpack.c.b16 %v5818, %v5811
        %v6631 = vpack.c.b16 %v5819, %v5812
        %v6632 = vpack.c.b16 %v5820, %v5813
        %v6633 = vpack.c.b16 %v5821, %v5814
        %v6634 = vpack.c.b16 %v5822, %v5815
        %v6635 = vpack.c.b16 %v5823, %v5816
        %v6636 = vpack.c.b16 %v5824, %v5817
        %v6637 = vpack.c.b16 %v5832, %v5825
        %v6638 = vpack.c.b16 %v5833, %v5826
        %v6639 = vpack.c.b16 %v5834, %v5827
        %v6640 = vpack.c.b16 %v5835, %v5828
        %v6641 = vpack.c.b16 %v5836, %v5829
        %v6642 = vpack.c.b16 %v5837, %v5830
        %v6643 = vpack.c.b16 %v5838, %v5831
        %v6644 = vpack.c.b16 %v5846, %v5839
        %v6645 = vpack.c.b16 %v5847, %v5840
        %v6646 = vpack.c.b16 %v5848, %v5841
        %v6647 = vpack.c.b16 %v5849, %v5842
        %v6648 = vpack.c.b16 %v5850, %v5843
        %v6649 = vpack.c.b16 %v5851, %v5844
        %v6650 = vpack.c.b16 %v5852, %v5845
        %v6651 = vpack.c.b16 %v5860, %v5853
        %v6652 = vpack.c.b16 %v5861, %v5854
        %v6653 = vpack.c.b16 %v5862, %v5855
        %v6654 = vpack.c.b16 %v5863, %v5856
        %v6655 = vpack.c.b16 %v5864, %v5857
        %v6656 = vpack.c.b16 %v5865, %v5858
        %v6657 = vpack.c.b16 %v5866, %v5859
        %v6658 = vpack.c.b16 %v5874, %v5867
        %v6659 = vpack.c.b16 %v5875, %v5868
        %v6660 = vpack.c.b16 %v5876, %v5869
        %v6661 = vpack.c.b16 %v5877, %v5870
        %v6662 = vpack.c.b16 %v5878, %v5871
        %v6663 = vpack.c.b16 %v5879, %v5872
        %v6664 = vpack.c.b16 %v5880, %v5873
        %v6665 = vpack.c.b16 %v5888, %v5881
        %v6666 = vpack.c.b16 %v5889, %v5882
        %v6667 = vpack.c.b16 %v5890, %v5883
        %v6668 = vpack.c.b16 %v5891, %v5884
        %v6669 = vpack.c.b16 %v5892, %v5885
        %v6670 = vpack.c.b16 %v5893, %v5886
        %v6671 = vpack.c.b16 %v5894, %v5887
        %v6672 = vpack.c.b16 %v5902, %v5895
        %v6673 = vpack.c.b16 %v5903, %v5896
        %v6674 = vpack.c.b16 %v5904, %v5897
        %v6675 = vpack.c.b16 %v5905, %v5898
        %v6676 = vpack.c.b16 %v5906, %v5899
        %v6677 = vpack.c.b16 %v5907, %v5900
        %v6678 = vpack.c.b16 %v5908, %v5901
        %v6679 = vpack.c.b16 %v5916, %v5909
        %v6680 = vpack.c.b16 %v5917, %v5910
        %v6681 = vpack.c.b16 %v5918, %v5911
        %v6682 = vpack.c.b16 %v5919, %v5912
        %v6683 = vpack.c.b16 %v5920, %v5913
        %v6684 = vpack.c.b16 %v5921, %v5914
        %v6685 = vpack.c.b16 %v5922, %v5915
        %v6686 = vpack.c.b16 %v5930, %v5923
        %v6687 = vpack.c.b16 %v5931, %v5924
        %v6688 = vpack.c.b16 %v5932, %v5925
        %v6689 = vpack.c.b16 %v5933, %v5926
        %v6690 = vpack.c.b16 %v5934, %v5927
        %v6691 = vpack.c.b16 %v5935, %v5928
        %v6692 = vpack.c.b16 %v5936, %v5929
        %v6693 = vpack.c.b16 %v5944, %v5937
        %v6694 = vpack.c.b16 %v5945, %v5938
        %v6695 = vpack.c.b16 %v5946, %v5939
        %v6696 = vpack.c.b16 %v5947, %v5940
        %v6697 = vpack.c.b16 %v5948, %v5941
        %v6698 = vpack.c.b16 %v5949, %v5942
        %v6699 = vpack.c.b16 %v5950, %v5943
        %v6700 = vpack.c.b16 %v5958, %v5951
        %v6701 = vpack.c.b16 %v5959, %v5952
        %v6702 = vpack.c.b16 %v5960, %v5953
        %v6703 = vpack.c.b16 %v5961, %v5954
        %v6704 = vpack.c.b16 %v5962, %v5955
        %v6705 = vpack.c.b16 %v5963, %v5956
        %v6706 = vpack.c.b16 %v5964, %v5957
        %v6707 = vpack.c.b16 %v5972, %v5965
        %v6708 = vpack.c.b16 %v5973, %v5966
        %v6709 = vpack.c.b16 %v5974, %v5967
        %v6710 = vpack.c.b16 %v5975, %v5968
        %v6711 = vpack.c.b16 %v5976, %v5969
        %v6712 = vpack.c.b16 %v5977, %v5970
        %v6713 = vpack.c.b16 %v5978, %v5971
        %v6714 = vpack.c.b16 %v5986, %v5979
        %v6715 = vpack.c.b16 %v5987, %v5980
        %v6716 = vpack.c.b16 %v5988, %v5981
        %v6717 = vpack.c.b16 %v5989, %v5982
        %v6718 = vpack.c.b16 %v5990, %v5983
        %v6719 = vpack.c.b16 %v5991, %v5984
        %v6720 = vpack.c.b16 %v5992, %v5985
        %v6721 = vpack.c.b16 %v6000, %v5993
        %v6722 = vpack.c.b16 %v6001, %v5994
        %v6723 = vpack.c.b16 %v6002, %v5995
        %v6724 = vpack.c.b16 %v6003, %v5996
        %v6725 = vpack.c.b16 %v6004, %v5997
        %v6726 = vpack.c.b16 %v6005, %v5998
        %v6727 = vpack.c.b16 %v6006, %v5999
        %v6728 = vpack.c.b16 %v6014, %v6007
        %v6729 = vpack.c.b16 %v6015, %v6008
        %v6730 = vpack.c.b16 %v6016, %v6009
        %v6731 = vpack.c.b16 %v6017, %v6010
        %v6732 = vpack.c.b16 %v6018, %v6011
        %v6733 = vpack.c.b16 %v6019, %v6012
        %v6734 = vpack.c.b16 %v6020, %v6013
        %v6735 = vpack.c.b16 %v6028, %v6021
        %v6736 = vpack.c.b16 %v6029, %v6022
        %v6737 = vpack.c.b16 %v6030, %v6023
        %v6738 = vpack.c.b16 %v6031, %v6024
        %v6739 = vpack.c.b16 %v6032, %v6025
        %v6740 = vpack.c.b16 %v6033, %v6026
        %v6741 = vpack.c.b16 %v6034, %v6027
        %v6742 = vpack.c.b16 %v6042, %v6035
        %v6743 = vpack.c.b16 %v6043, %v6036
        %v6744 = vpack.c.b16 %v6044, %v6037
        %v6745 = vpack.c.b16 %v6045, %v6038
        %v6746 = vpack.c.b16 %v6046, %v6039
        %v6747 = vpack.c.b16 %v6047, %v6040
        %v6748 = vpack.c.b16 %v6048, %v6041
        %v6749 = vpack.c.b16 %v6056, %v6049
        %v6750 = vpack.c.b16 %v6057, %v6050
        %v6751 = vpack.c.b16 %v6058, %v6051
        %v6752 = vpack.c.b16 %v6059, %v6052
        %v6753 = vpack.c.b16 %v6060, %v6053
        %v6754 = vpack.c.b16 %v6061, %v6054
        %v6755 = vpack.c.b16 %v6062, %v6055
        %v6756 = vpack.c.b16 %v6070, %v6063
        %v6757 = vpack.c.b16 %v6071, %v6064
        %v6758 = vpack.c.b16 %v6072, %v6065
        %v6759 = vpack.c.b16 %v6073, %v6066
        %v6760 = vpack.c.b16 %v6074, %v6067
        %v6761 = vpack.c.b16 %v6075, %v6068
        %v6762 = vpack.c.b16 %v6076, %v6069
        %v6763 = vpack.c.b16 %v6084, %v6077
        %v6764 = vpack.c.b16 %v6085, %v6078
        %v6765 = vpack.c.b16 %v6086, %v6079
        %v6766 = vpack.c.b16 %v6087, %v6080
        %v6767 = vpack.c.b16 %v6088, %v6081
        %v6768 = vpack.c.b16 %v6089, %v6082
        %v6769 = vpack.c.b16 %v6090, %v6083
        %v6770 = vpack.c.b16 %v6098, %v6091
        %v6771 = vpack.c.b16 %v6099, %v6092
        %v6772 = vpack.c.b16 %v6100, %v6093
        %v6773 = vpack.c.b16 %v6101, %v6094
        %v6774 = vpack.c.b16 %v6102, %v6095
        %v6775 = vpack.c.b16 %v6103, %v6096
        %v6776 = vpack.c.b16 %v6104, %v6097
        %v6777 = vpack.c.b16 %v6112, %v6105
        %v6778 = vpack.c.b16 %v6113, %v6106
        %v6779 = vpack.c.b16 %v6114, %v6107
        %v6780 = vpack.c.b16 %v6115, %v6108
        %v6781 = vpack.c.b16 %v6116, %v6109
        %v6782 = vpack.c.b16 %v6117, %v6110
        %v6783 = vpack.c.b16 %v6118, %v6111
        %v6784 = vpack.c.b16 %v6126, %v6119
        %v6785 = vpack.c.b16 %v6127, %v6120
        %v6786 = vpack.c.b16 %v6128, %v6121
        %v6787 = vpack.c.b16 %v6129, %v6122
        %v6788 = vpack.c.b16 %v6130, %v6123
        %v6789 = vpack.c.b16 %v6131, %v6124
        %v6790 = vpack.c.b16 %v6132, %v6125
        %v6791 = vpack.c.b16 %v6140, %v6133
        %v6792 = vpack.c.b16 %v6141, %v6134
        %v6793 = vpack.c.b16 %v6142, %v6135
        %v6794 = vpack.c.b16 %v6143, %v6136
        %v6795 = vpack.c.b16 %v6144, %v6137
        %v6796 = vpack.c.b16 %v6145, %v6138
        %v6797 = vpack.c.b16 %v6146, %v6139
        %v6798 = vpack.c.b16 %v6154, %v6147
        %v6799 = vpack.c.b16 %v6155, %v6148
        %v6800 = vpack.c.b16 %v6156, %v6149
        %v6801 = vpack.c.b16 %v6157, %v6150
        %v6802 = vpack.c.b16 %v6158, %v6151
        %v6803 = vpack.c.b16 %v6159, %v6152
        %v6804 = vpack.c.b16 %v6160, %v6153
        %v6805 = vpack.c.b16 %v6168, %v6161
        %v6806 = vpack.c.b16 %v6169, %v6162
        %v6807 = vpack.c.b16 %v6170, %v6163
        %v6808 = vpack.c.b16 %v6171, %v6164
        %v6809 = vpack.c.b16 %v6172, %v6165
        %v6810 = vpack.c.b16 %v6173, %v6166
        %v6811 = vpack.c.b16 %v6174, %v6167
        %v6812 = vpack.c.b16 %v6182, %v6175
        %v6813 = vpack.c.b16 %v6183, %v6176
        %v6814 = vpack.c.b16 %v6184, %v6177
        %v6815 = vpack.c.b16 %v6185, %v6178
        %v6816 = vpack.c.b16 %v6186, %v6179
        %v6817 = vpack.c.b16 %v6187, %v6180
        %v6818 = vpack.c.b16 %v6188, %v6181
        %v6819 = vpack.c.b16 %v6196, %v6189
        %v6820 = vpack.c.b16 %v6197, %v6190
        %v6821 = vpack.c.b16 %v6198, %v6191
        %v6822 = vpack.c.b16 %v6199, %v6192
        %v6823 = vpack.c.b16 %v6200, %v6193
        %v6824 = vpack.c.b16 %v6201, %v6194
        %v6825 = vpack.c.b16 %v6202, %v6195
        %v6826 = vpack.c.b16 %v6210, %v6203
        %v6827 = vpack.c.b16 %v6211, %v6204
        %v6828 = vpack.c.b16 %v6212, %v6205
        %v6829 = vpack.c.b16 %v6213, %v6206
        %v6830 = vpack.c.b16 %v6214, %v6207
        %v6831 = vpack.c.b16 %v6215, %v6208
        %v6832 = vpack.c.b16 %v6216, %v6209
        %v6833 = vpack.c.b16 %v6224, %v6217
        %v6834 = vpack.c.b16 %v6225, %v6218
        %v6835 = vpack.c.b16 %v6226, %v6219
        %v6836 = vpack.c.b16 %v6227, %v6220
        %v6837 = vpack.c.b16 %v6228, %v6221
        %v6838 = vpack.c.b16 %v6229, %v6222
        %v6839 = vpack.c.b16 %v6230, %v6223
        %v6840 = vpack.c.b16 %v6238, %v6231
        %v6841 = vpack.c.b16 %v6239, %v6232
        %v6842 = vpack.c.b16 %v6240, %v6233
        %v6843 = vpack.c.b16 %v6241, %v6234
        %v6844 = vpack.c.b16 %v6242, %v6235
        %v6845 = vpack.c.b16 %v6243, %v6236
        %v6846 = vpack.c.b16 %v6244, %v6237
        %v6847 = vpack.c.b16 %v6252, %v6245
        %v6848 = vpack.c.b16 %v6253, %v6246
        %v6849 = vpack.c.b16 %v6254, %v6247
        %v6850 = vpack.c.b16 %v6255, %v6248
        %v6851 = vpack.c.b16 %v6256, %v6249
        %v6852 = vpack.c.b16 %v6257, %v6250
        %v6853 = vpack.c.b16 %v6258, %v6251
        %v6854 = vpack.c.b16 %v6266, %v6259
        %v6855 = vpack.c.b16 %v6267, %v6260
        %v6856 = vpack.c.b16 %v6268, %v6261
        %v6857 = vpack.c.b16 %v6269, %v6262
        %v6858 = vpack.c.b16 %v6270, %v6263
        %v6859 = vpack.c.b16 %v6271, %v6264
        %v6860 = vpack.c.b16 %v6272, %v6265
        %v6861 = vpack.c.b16 %v6280, %v6273
        %v6862 = vpack.c.b16 %v6281, %v6274
        %v6863 = vpack.c.b16 %v6282, %v6275
        %v6864 = vpack.c.b16 %v6283, %v6276
        %v6865 = vpack.c.b16 %v6284, %v6277
        %v6866 = vpack.c.b16 %v6285, %v6278
        %v6867 = vpack.c.b16 %v6286, %v6279
        %v6868 = vpack.c.b16 %v6294, %v6287
        %v6869 = vpack.c.b16 %v6295, %v6288
        %v6870 = vpack.c.b16 %v6296, %v6289
        %v6871 = vpack.c.b16 %v6297, %v6290
        %v6872 = vpack.c.b16 %v6298, %v6291
        %v6873 = vpack.c.b16 %v6299, %v6292
        %v6874 = vpack.c.b16 %v6300, %v6293
        %v6875 = vpack.c.b16 %v6308, %v6301
        %v6876 = vpack.c.b16 %v6309, %v6302
        %v6877 = vpack.c.b16 %v6310, %v6303
        %v6878 = vpack.c.b16 %v6311, %v6304
        %v6879 = vpack.c.b16 %v6312, %v6305
        %v6880 = vpack.c.b16 %v6313, %v6306
        %v6881 = vpack.c.b16 %v6314, %v6307
        %v6882 = vpack.c.b16 %v6322, %v6315
        %v6883 = vpack.c.b16 %v6323, %v6316
        %v6884 = vpack.c.b16 %v6324, %v6317
        %v6885 = vpack.c.b16 %v6325, %v6318
        %v6886 = vpack.c.b16 %v6326, %v6319
        %v6887 = vpack.c.b16 %v6327, %v6320
        %v6888 = vpack.c.b16 %v6328, %v6321
        %v6889 = vpack.c.b16 %v6336, %v6329
        %v6890 = vpack.c.b16 %v6337, %v6330
        %v6891 = vpack.c.b16 %v6338, %v6331
        %v6892 = vpack.c.b16 %v6339, %v6332
        %v6893 = vpack.c.b16 %v6340, %v6333
        %v6894 = vpack.c.b16 %v6341, %v6334
        %v6895 = vpack.c.b16 %v6342, %v6335
        %v6896 = vpack.c.b16 %v6350, %v6343
        %v6897 = vpack.c.b16 %v6351, %v6344
        %v6898 = vpack.c.b16 %v6352, %v6345
        %v6899 = vpack.c.b16 %v6353, %v6346
        %v6900 = vpack.c.b16 %v6354, %v6347
        %v6901 = vpack.c.b16 %v6355, %v6348
        %v6902 = vpack.c.b16 %v6356, %v6349
        %v6903 = vpack.c.b16 %v6364, %v6357
        %v6904 = vpack.c.b16 %v6365, %v6358
        %v6905 = vpack.c.b16 %v6366, %v6359
        %v6906 = vpack.c.b16 %v6367, %v6360
        %v6907 = vpack.c.b16 %v6368, %v6361
        %v6908 = vpack.c.b16 %v6369, %v6362
        %v6909 = vpack.c.b16 %v6370, %v6363
        %v6910 = vpack.c.b16 %v6378, %v6371
        %v6911 = vpack.c.b16 %v6379, %v6372
        %v6912 = vpack.c.b16 %v6380, %v6373
        %v6913 = vpack.c.b16 %v6381, %v6374
        %v6914 = vpack.c.b16 %v6382, %v6375
        %v6915 = vpack.c.b16 %v6383, %v6376
        %v6916 = vpack.c.b16 %v6384, %v6377
        %v6917 = vpack.c.b16 %v6392, %v6385
        %v6918 = vpack.c.b16 %v6393, %v6386
        %v6919 = vpack.c.b16 %v6394, %v6387
        %v6920 = vpack.c.b16 %v6395, %v6388
        %v6921 = vpack.c.b16 %v6396, %v6389
        %v6922 = vpack.c.b16 %v6397, %v6390
        %v6923 = vpack.c.b16 %v6398, %v6391
        %v6924 = vpack.c.b16 %v6406, %v6399
        %v6925 = vpack.c.b16 %v6407, %v6400
        %v6926 = vpack.c.b16 %v6408, %v6401
        %v6927 = vpack.c.b16 %v6409, %v6402
        %v6928 = vpack.c.b16 %v6410, %v6403
        %v6929 = vpack.c.b16 %v6411, %v6404
        %v6930 = vpack.c.b16 %v6412, %v6405
        %v6931 = vpack.c.b16 %v6420, %v6413
        %v6932 = vpack.c.b16 %v6421, %v6414
        %v6933 = vpack.c.b16 %v6422, %v6415
        %v6934 = vpack.c.b16 %v6423, %v6416
        %v6935 = vpack.c.b16 %v6424, %v6417
        %v6936 = vpack.c.b16 %v6425, %v6418
        %v6937 = vpack.c.b16 %v6426, %v6419
        %v6938 = vpack.c.b16 %v6434, %v6427
        %v6939 = vpack.c.b16 %v6435, %v6428
        %v6940 = vpack.c.b16 %v6436, %v6429
        %v6941 = vpack.c.b16 %v6437, %v6430
        %v6942 = vpack.c.b16 %v6438, %v6431
        %v6943 = vpack.c.b16 %v6439, %v6432
        %v6944 = vpack.c.b16 %v6440, %v6433
        %v6945 = vpack.c.b16 %v6448, %v6441
        %v6946 = vpack.c.b16 %v6449, %v6442
        %v6947 = vpack.c.b16 %v6450, %v6443
        %v6948 = vpack.c.b16 %v6451, %v6444
        %v6949 = vpack.c.b16 %v6452, %v6445
        %v6950 = vpack.c.b16 %v6453, %v6446
        %v6951 = vpack.c.b16 %v6454, %v6447
        %v6952 = vpack.c.b16 %v6462, %v6455
        %v6953 = vpack.c.b16 %v6463, %v6456
        %v6954 = vpack.c.b16 %v6464, %v6457
        %v6955 = vpack.c.b16 %v6465, %v6458
        %v6956 = vpack.c.b16 %v6466, %v6459
        %v6957 = vpack.c.b16 %v6467, %v6460
        %v6958 = vpack.c.b16 %v6468, %v6461
        %v6959 = vpack.c.b16 %v6476, %v6469
        %v6960 = vpack.c.b16 %v6477, %v6470
        %v6961 = vpack.c.b16 %v6478, %v6471
        %v6962 = vpack.c.b16 %v6479, %v6472
        %v6963 = vpack.c.b16 %v6480, %v6473
        %v6964 = vpack.c.b16 %v6481, %v6474
        %v6965 = vpack.c.b16 %v6482, %v6475
        %v6966 = vpack.c.b16 %v6490, %v6483
        %v6967 = vpack.c.b16 %v6491, %v6484
        %v6968 = vpack.c.b16 %v6492, %v6485
        %v6969 = vpack.c.b16 %v6493, %v6486
        %v6970 = vpack.c.b16 %v6494, %v6487
        %v6971 = vpack.c.b16 %v6495, %v6488
        %v6972 = vpack.c.b16 %v6496, %v6489
        %v6973 = vpack.c.b16 %v6504, %v6497
        %v6974 = vpack.c.b16 %v6505, %v6498
        %v6975 = vpack.c.b16 %v6506, %v6499
        %v6976 = vpack.c.b16 %v6507, %v6500
        %v6977 = vpack.c.b16 %v6508, %v6501
        %v6978 = vpack.c.b16 %v6509, %v6502
        %v6979 = vpack.c.b16 %v6510, %v6503
        %v6980 = vpack.c.b16 %v6518, %v6511
        %v6981 = vpack.c.b16 %v6519, %v6512
        %v6982 = vpack.c.b16 %v6520, %v6513
        %v6983 = vpack.c.b16 %v6521, %v6514
        %v6984 = vpack.c.b16 %v6522, %v6515
        %v6985 = vpack.c.b16 %v6523, %v6516
        %v6986 = vpack.c.b16 %v6524, %v6517
        %v6987 = vpack.c.b16 %v6532, %v6525
        %v6988 = vpack.c.b16 %v6533, %v6526
        %v6989 = vpack.c.b16 %v6534, %v6527
        %v6990 = vpack.c.b16 %v6535, %v6528
        %v6991 = vpack.c.b16 %v6536, %v6529
        %v6992 = vpack.c.b16 %v6537, %v6530
        %v6993 = vpack.c.b16 %v6538, %v6531
        %v6994 = vpack.c.b16 %v6546, %v6539
        %v6995 = vpack.c.b16 %v6547, %v6540
        %v6996 = vpack.c.b16 %v6548, %v6541
        %v6997 = vpack.c.b16 %v6549, %v6542
        %v6998 = vpack.c.b16 %v6550, %v6543
        %v6999 = vpack.c.b16 %v6551, %v6544
        %v7000 = vpack.c.b16 %v6552, %v6545
        %7449 = vmatprep.subr.bf16.mxu0 %v6554
        %7450 = vmatpush1.bf16.msra.mxu0 %v6553
        %7451 = vmatprep.subr.bf16.mxu0 %v6561
        %7452 = vmatpush1.bf16.msra.mxu0 %v6560
        %7453 = vmatprep.subr.bf16.mxu0 %v6568
        %7454 = vmatpush1.bf16.msra.mxu0 %v6567
        %7455 = vmatprep.subr.bf16.mxu0 %v6575
        %7456 = vmatpush1.bf16.msra.mxu0 %v6574
        %7457 = vmatprep.subr.bf16.mxu0 %v6582
        %7458 = vmatpush1.bf16.msra.mxu0 %v6581
        %7459 = vmatprep.subr.bf16.mxu0 %v6589
        %7460 = vmatpush1.bf16.msra.mxu0 %v6588
        %7461 = vmatprep.subr.bf16.mxu0 %v6596
        %7462 = vmatpush1.bf16.msra.mxu0 %v6595
        %7463 = vmatprep.subr.bf16.mxu0 %v6603
        %7464 = vmatpush1.bf16.msra.mxu0 %v6602
        %7465 = vmatprep.subr.bf16.mxu0 %v6610
        %7466 = vmatpush1.bf16.msra.mxu0 %v6609
        %7467 = vmatprep.subr.bf16.mxu0 %v6617
        %7468 = vmatpush1.bf16.msra.mxu0 %v6616
        %7469 = vmatprep.subr.bf16.mxu0 %v6624
        %7470 = vmatpush1.bf16.msra.mxu0 %v6623
        %7471 = vmatprep.subr.bf16.mxu0 %v6631
        %7472 = vmatpush1.bf16.msra.mxu0 %v6630
        %7473 = vmatprep.subr.bf16.mxu0 %v6638
        %7474 = vmatpush1.bf16.msra.mxu0 %v6637
        %7475 = vmatprep.subr.bf16.mxu0 %v6645
        %7476 = vmatpush1.bf16.msra.mxu0 %v6644
        %7477 = vmatprep.subr.bf16.mxu0 %v6652
        %7478 = vmatpush1.bf16.msra.mxu0 %v6651
        %7479 = vmatprep.subr.bf16.mxu0 %v6659
        %7480 = vmatpush1.bf16.msra.mxu0 %v6658
        %7481 = vmatprep.mubr.bf16.mxu0 %v4533
        %7482 = vmatmul.mubr.bf16.gmra.mrb[0].mxu0 %v4532
        %v7483 = vpop.f32.mrb[0].mxu0
        %v7484 = vadd.f32 %v5113, %v7483
        %v7485 = vpop.f32.mrb[0].mxu0
        %v7486 = vadd.f32 %v5117, %v7485
        %v7487 = vpop.f32.mrb[0].mxu0
        %v7488 = vadd.f32 %v5113, %v7487
        %v7489 = vpop.f32.mrb[0].mxu0
        %v7490 = vadd.f32 %v5117, %v7489
        %7491 = vmatprep.mubr.bf16.mxu0 %v4541
        %7492 = vmatmul.mubr.bf16.gmra.mrb[0].mxu0 %v4540
        %v7493 = vpop.f32.mrb[0].mxu0
        %v7494 = vadd.f32 %v5113, %v7493
        %v7495 = vpop.f32.mrb[0].mxu0
        %v7496 = vadd.f32 %v5117, %v7495
        %v7497 = vpop.f32.mrb[0].mxu0
        %v7498 = vadd.f32 %v5113, %v7497
        %v7499 = vpop.f32.mrb[0].mxu0
        %v7500 = vadd.f32 %v5117, %v7499
        %7501 = vmatprep.mubr.bf16.mxu0 %v4549
        %7502 = vmatmul.mubr.bf16.gmra.mrb[0].mxu0 %v4548
        %v7503 = vpop.f32.mrb[0].mxu0
        %v7504 = vadd.f32 %v5113, %v7503
        %v7505 = vpop.f32.mrb[0].mxu0
        %v7506 = vadd.f32 %v5117, %v7505
        %v7507 = vpop.f32.mrb[0].mxu0
        %v7508 = vadd.f32 %v5113, %v7507
        %v7509 = vpop.f32.mrb[0].mxu0
        %v7510 = vadd.f32 %v5117, %v7509
        %7511 = vmatprep.mubr.bf16.mxu0 %v4557
        %7512 = vmatmul.mubr.bf16.gmra.mrb[0].mxu0 %v4556
        %v7513 = vpop.f32.mrb[0].mxu0
        %v7514 = vadd.f32 %v5113, %v7513
        %v7515 = vpop.f32.mrb[0].mxu0
        %v7516 = vadd.f32 %v5117, %v7515
        %v7517 = vpop.f32.mrb[0].mxu0
        %v7518 = vadd.f32 %v5113, %v7517
        %v7519 = vpop.f32.mrb[0].mxu0
        %v7520 = vadd.f32 %v5117, %v7519
        %7521 = vmatprep.mubr.bf16.mxu0 %v4565
        %7522 = vmatmul.mubr.bf16.gmra.mrb[0].mxu0 %v4564
        %v7523 = vpop.f32.mrb[0].mxu0
        %v7524 = vadd.f32 %v5113, %v7523
        %v7525 = vpop.f32.mrb[0].mxu0
        %v7526 = vadd.f32 %v5117, %v7525
        %v7527 = vpop.f32.mrb[0].mxu0
        %v7528 = vadd.f32 %v5113, %v7527
        %v7529 = vpop.f32.mrb[0].mxu0
        %v7530 = vadd.f32 %v5117, %v7529
        %7531 = vmatprep.mubr.bf16.mxu0 %v4573
        %7532 = vmatmul.mubr.bf16.gmra.mrb[0].mxu0 %v4572
        %v7533 = vpop.f32.mrb[0].mxu0
        %v7534 = vadd.f32 %v5113, %v7533
        %v7535 = vpop.f32.mrb[0].mxu0
        %v7536 = vadd.f32 %v5117, %v7535
        %v7537 = vpop.f32.mrb[0].mxu0
        %v7538 = vadd.f32 %v5113, %v7537
        %v7539 = vpop.f32.mrb[0].mxu0
        %v7540 = vadd.f32 %v5117, %v7539
        %7541 = vmatprep.mubr.bf16.mxu0 %v4581
        %7542 = vmatmul.mubr.bf16.gmra.mrb[0].mxu0 %v4580
        %v7543 = vpop.f32.mrb[0].mxu0
        %v7544 = vadd.f32 %v5113, %v7543
        %v7545 = vpop.f32.mrb[0].mxu0
        %v7546 = vadd.f32 %v5117, %v7545
        %v7547 = vpop.f32.mrb[0].mxu0
        %v7548 = vadd.f32 %v5113, %v7547
        %v7549 = vpop.f32.mrb[0].mxu0
        %v7550 = vadd.f32 %v5117, %v7549
        %7551 = vmatprep.mubr.bf16.mxu0 %v4589
        %7552 = vmatmul.mubr.bf16.gmra.mrb[0].mxu0 %v4588
        %v7553 = vpop.f32.mrb[0].mxu0
        %v7554 = vadd.f32 %v5113, %v7553
        %v7555 = vpop.f32.mrb[0].mxu0
        %v7556 = vadd.f32 %v5117, %v7555
        %v7557 = vpop.f32.mrb[0].mxu0
        %v7558 = vadd.f32 %v5113, %v7557
        %v7559 = vpop.f32.mrb[0].mxu0
        %v7560 = vadd.f32 %v5117, %v7559
        %7561 = vdwg.mxu0
        %7562 = vmatprep.subr.bf16.mxu0 %v6666
        %7563 = vmatpush1.bf16.msra.mxu0 %v6665
        %7564 = vmatprep.subr.bf16.mxu0 %v6673
        %7565 = vmatpush1.bf16.msra.mxu0 %v6672
        %7566 = vmatprep.subr.bf16.mxu0 %v6680
        %7567 = vmatpush1.bf16.msra.mxu0 %v6679
        %7568 = vmatprep.subr.bf16.mxu0 %v6687
        %7569 = vmatpush1.bf16.msra.mxu0 %v6686
        %7570 = vmatprep.subr.bf16.mxu0 %v6694
        %7571 = vmatpush1.bf16.msra.mxu0 %v6693
        %7572 = vmatprep.subr.bf16.mxu0 %v6701
        %7573 = vmatpush1.bf16.msra.mxu0 %v6700
        %7574 = vmatprep.subr.bf16.mxu0 %v6708
        %7575 = vmatpush1.bf16.msra.mxu0 %v6707
        %7576 = vmatprep.subr.bf16.mxu0 %v6715
        %7577 = vmatpush1.bf16.msra.mxu0 %v6714
        %7578 = vmatprep.subr.bf16.mxu0 %v6722
        %7579 = vmatpush1.bf16.msra.mxu0 %v6721
        %7580 = vmatprep.subr.bf16.mxu0 %v6729
        %7581 = vmatpush1.bf16.msra.mxu0 %v6728
        %7582 = vmatprep.subr.bf16.mxu0 %v6736
        %7583 = vmatpush1.bf16.msra.mxu0 %v6735
        %7584 = vmatprep.subr.bf16.mxu0 %v6743
        %7585 = vmatpush1.bf16.msra.mxu0 %v6742
        %7586 = vmatprep.subr.bf16.mxu0 %v6750
        %7587 = vmatpush1.bf16.msra.mxu0 %v6749
        %7588 = vmatprep.subr.bf16.mxu0 %v6757
        %7589 = vmatpush1.bf16.msra.mxu0 %v6756
        %7590 = vmatprep.subr.bf16.mxu0 %v6764
        %7591 = vmatpush1.bf16.msra.mxu0 %v6763
        %7592 = vmatprep.subr.bf16.mxu0 %v6771
        %7593 = vmatpush1.bf16.msra.mxu0 %v6770
        %7594 = vmatprep.mubr.bf16.mxu0 %v4535
        %7595 = vmatmul.mubr.bf16.gmra.mrb[0].mxu0 %v4534
        %v7596 = vpop.f32.mrb[0].mxu0
        %v7597 = vadd.f32 %v7484, %v7596
        %v7598 = vpop.f32.mrb[0].mxu0
        %v7599 = vadd.f32 %v7486, %v7598
        %v7600 = vpop.f32.mrb[0].mxu0
        %v7601 = vadd.f32 %v7488, %v7600
        %v7602 = vpop.f32.mrb[0].mxu0
        %v7603 = vadd.f32 %v7490, %v7602
        %7604 = vmatprep.mubr.bf16.mxu0 %v4543
        %7605 = vmatmul.mubr.bf16.gmra.mrb[0].mxu0 %v4542
        %v7606 = vpop.f32.mrb[0].mxu0
        %v7607 = vadd.f32 %v7494, %v7606
        %v7608 = vpop.f32.mrb[0].mxu0
        %v7609 = vadd.f32 %v7496, %v7608
        %v7610 = vpop.f32.mrb[0].mxu0
        %v7611 = vadd.f32 %v7498, %v7610
        %v7612 = vpop.f32.mrb[0].mxu0
        %v7613 = vadd.f32 %v7500, %v7612
        %7614 = vmatprep.mubr.bf16.mxu0 %v4551
        %7615 = vmatmul.mubr.bf16.gmra.mrb[0].mxu0 %v4550
        %v7616 = vpop.f32.mrb[0].mxu0
        %v7617 = vadd.f32 %v7504, %v7616
        %v7618 = vpop.f32.mrb[0].mxu0
        %v7619 = vadd.f32 %v7506, %v7618
        %v7620 = vpop.f32.mrb[0].mxu0
        %v7621 = vadd.f32 %v7508, %v7620
        %v7622 = vpop.f32.mrb[0].mxu0
        %v7623 = vadd.f32 %v7510, %v7622
        %7624 = vmatprep.mubr.bf16.mxu0 %v4559
        %7625 = vmatmul.mubr.bf16.gmra.mrb[0].mxu0 %v4558
        %v7626 = vpop.f32.mrb[0].mxu0
        %v7627 = vadd.f32 %v7514, %v7626
        %v7628 = vpop.f32.mrb[0].mxu0
        %v7629 = vadd.f32 %v7516, %v7628
        %v7630 = vpop.f32.mrb[0].mxu0
        %v7631 = vadd.f32 %v7518, %v7630
        %v7632 = vpop.f32.mrb[0].mxu0
        %v7633 = vadd.f32 %v7520, %v7632
        %7634 = vmatprep.mubr.bf16.mxu0 %v4567
        %7635 = vmatmul.mubr.bf16.gmra.mrb[0].mxu0 %v4566
        %v7636 = vpop.f32.mrb[0].mxu0
        %v7637 = vadd.f32 %v7524, %v7636
        %v7638 = vpop.f32.mrb[0].mxu0
        %v7639 = vadd.f32 %v7526, %v7638
        %v7640 = vpop.f32.mrb[0].mxu0
        %v7641 = vadd.f32 %v7528, %v7640
        %v7642 = vpop.f32.mrb[0].mxu0
        %v7643 = vadd.f32 %v7530, %v7642
        %7644 = vmatprep.mubr.bf16.mxu0 %v4575
        %7645 = vmatmul.mubr.bf16.gmra.mrb[0].mxu0 %v4574
        %v7646 = vpop.f32.mrb[0].mxu0
        %v7647 = vadd.f32 %v7534, %v7646
        %v7648 = vpop.f32.mrb[0].mxu0
        %v7649 = vadd.f32 %v7536, %v7648
        %v7650 = vpop.f32.mrb[0].mxu0
        %v7651 = vadd.f32 %v7538, %v7650
        %v7652 = vpop.f32.mrb[0].mxu0
        %v7653 = vadd.f32 %v7540, %v7652
        %7654 = vmatprep.mubr.bf16.mxu0 %v4583
        %7655 = vmatmul.mubr.bf16.gmra.mrb[0].mxu0 %v4582
        %v7656 = vpop.f32.mrb[0].mxu0
        %v7657 = vadd.f32 %v7544, %v7656
        %v7658 = vpop.f32.mrb[0].mxu0
        %v7659 = vadd.f32 %v7546, %v7658
        %v7660 = vpop.f32.mrb[0].mxu0
        %v7661 = vadd.f32 %v7548, %v7660
        %v7662 = vpop.f32.mrb[0].mxu0
        %v7663 = vadd.f32 %v7550, %v7662
        %7664 = vmatprep.mubr.bf16.mxu0 %v4591
        %7665 = vmatmul.mubr.bf16.gmra.mrb[0].mxu0 %v4590
        %v7666 = vpop.f32.mrb[0].mxu0
        %v7667 = vadd.f32 %v7554, %v7666
        %v7668 = vpop.f32.mrb[0].mxu0
        %v7669 = vadd.f32 %v7556, %v7668
        %v7670 = vpop.f32.mrb[0].mxu0
        %v7671 = vadd.f32 %v7558, %v7670
        %v7672 = vpop.f32.mrb[0].mxu0
        %v7673 = vadd.f32 %v7560, %v7672
        %7674 = vdwg.mxu0
        %7675 = vmatprep.subr.bf16.mxu0 %v6778
        %7676 = vmatpush1.bf16.msra.mxu0 %v6777
        %7677 = vmatprep.subr.bf16.mxu0 %v6785
        %7678 = vmatpush1.bf16.msra.mxu0 %v6784
        %7679 = vmatprep.subr.bf16.mxu0 %v6792
        %7680 = vmatpush1.bf16.msra.mxu0 %v6791
        %7681 = vmatprep.subr.bf16.mxu0 %v6799
        %7682 = vmatpush1.bf16.msra.mxu0 %v6798
        %7683 = vmatprep.subr.bf16.mxu0 %v6806
        %7684 = vmatpush1.bf16.msra.mxu0 %v6805
        %7685 = vmatprep.subr.bf16.mxu0 %v6813
        %7686 = vmatpush1.bf16.msra.mxu0 %v6812
        %7687 = vmatprep.subr.bf16.mxu0 %v6820
        %7688 = vmatpush1.bf16.msra.mxu0 %v6819
        %7689 = vmatprep.subr.bf16.mxu0 %v6827
        %7690 = vmatpush1.bf16.msra.mxu0 %v6826
        %7691 = vmatprep.subr.bf16.mxu0 %v6834
        %7692 = vmatpush1.bf16.msra.mxu0 %v6833
        %7693 = vmatprep.subr.bf16.mxu0 %v6841
        %7694 = vmatpush1.bf16.msra.mxu0 %v6840
        %7695 = vmatprep.subr.bf16.mxu0 %v6848
        %7696 = vmatpush1.bf16.msra.mxu0 %v6847
        %7697 = vmatprep.subr.bf16.mxu0 %v6855
        %7698 = vmatpush1.bf16.msra.mxu0 %v6854
        %7699 = vmatprep.subr.bf16.mxu0 %v6862
        %7700 = vmatpush1.bf16.msra.mxu0 %v6861
        %7701 = vmatprep.subr.bf16.mxu0 %v6869
        %7702 = vmatpush1.bf16.msra.mxu0 %v6868
        %7703 = vmatprep.subr.bf16.mxu0 %v6876
        %7704 = vmatpush1.bf16.msra.mxu0 %v6875
        %7705 = vmatprep.subr.bf16.mxu0 %v6883
        %7706 = vmatpush1.bf16.msra.mxu0 %v6882
        %7707 = vmatprep.mubr.bf16.mxu0 %v4537
        %7708 = vmatmul.mubr.bf16.gmra.mrb[0].mxu0 %v4536
        %v7709 = vpop.f32.mrb[0].mxu0
        %v7710 = vadd.f32 %v7597, %v7709
        %v7711 = vpop.f32.mrb[0].mxu0
        %v7712 = vadd.f32 %v7599, %v7711
        %v7713 = vpop.f32.mrb[0].mxu0
        %v7714 = vadd.f32 %v7601, %v7713
        %v7715 = vpop.f32.mrb[0].mxu0
        %v7716 = vadd.f32 %v7603, %v7715
        %7717 = vmatprep.mubr.bf16.mxu0 %v4545
        %7718 = vmatmul.mubr.bf16.gmra.mrb[0].mxu0 %v4544
        %v7719 = vpop.f32.mrb[0].mxu0
        %v7720 = vadd.f32 %v7607, %v7719
        %v7721 = vpop.f32.mrb[0].mxu0
        %v7722 = vadd.f32 %v7609, %v7721
        %v7723 = vpop.f32.mrb[0].mxu0
        %v7724 = vadd.f32 %v7611, %v7723
        %v7725 = vpop.f32.mrb[0].mxu0
        %v7726 = vadd.f32 %v7613, %v7725
        %7727 = vmatprep.mubr.bf16.mxu0 %v4553
        %7728 = vmatmul.mubr.bf16.gmra.mrb[0].mxu0 %v4552
        %v7729 = vpop.f32.mrb[0].mxu0
        %v7730 = vadd.f32 %v7617, %v7729
        %v7731 = vpop.f32.mrb[0].mxu0
        %v7732 = vadd.f32 %v7619, %v7731
        %v7733 = vpop.f32.mrb[0].mxu0
        %v7734 = vadd.f32 %v7621, %v7733
        %v7735 = vpop.f32.mrb[0].mxu0
        %v7736 = vadd.f32 %v7623, %v7735
        %7737 = vmatprep.mubr.bf16.mxu0 %v4561
        %7738 = vmatmul.mubr.bf16.gmra.mrb[0].mxu0 %v4560
        %v7739 = vpop.f32.mrb[0].mxu0
        %v7740 = vadd.f32 %v7627, %v7739
        %v7741 = vpop.f32.mrb[0].mxu0
        %v7742 = vadd.f32 %v7629, %v7741
        %v7743 = vpop.f32.mrb[0].mxu0
        %v7744 = vadd.f32 %v7631, %v7743
        %v7745 = vpop.f32.mrb[0].mxu0
        %v7746 = vadd.f32 %v7633, %v7745
        %7747 = vmatprep.mubr.bf16.mxu0 %v4569
        %7748 = vmatmul.mubr.bf16.gmra.mrb[0].mxu0 %v4568
        %v7749 = vpop.f32.mrb[0].mxu0
        %v7750 = vadd.f32 %v7637, %v7749
        %v7751 = vpop.f32.mrb[0].mxu0
        %v7752 = vadd.f32 %v7639, %v7751
        %v7753 = vpop.f32.mrb[0].mxu0
        %v7754 = vadd.f32 %v7641, %v7753
        %v7755 = vpop.f32.mrb[0].mxu0
        %v7756 = vadd.f32 %v7643, %v7755
        %7757 = vmatprep.mubr.bf16.mxu0 %v4577
        %7758 = vmatmul.mubr.bf16.gmra.mrb[0].mxu0 %v4576
        %v7759 = vpop.f32.mrb[0].mxu0
        %v7760 = vadd.f32 %v7647, %v7759
        %v7761 = vpop.f32.mrb[0].mxu0
        %v7762 = vadd.f32 %v7649, %v7761
        %v7763 = vpop.f32.mrb[0].mxu0
        %v7764 = vadd.f32 %v7651, %v7763
        %v7765 = vpop.f32.mrb[0].mxu0
        %v7766 = vadd.f32 %v7653, %v7765
        %7767 = vmatprep.mubr.bf16.mxu0 %v4585
        %7768 = vmatmul.mubr.bf16.gmra.mrb[0].mxu0 %v4584
        %v7769 = vpop.f32.mrb[0].mxu0
        %v7770 = vadd.f32 %v7657, %v7769
        %v7771 = vpop.f32.mrb[0].mxu0
        %v7772 = vadd.f32 %v7659, %v7771
        %v7773 = vpop.f32.mrb[0].mxu0
        %v7774 = vadd.f32 %v7661, %v7773
        %v7775 = vpop.f32.mrb[0].mxu0
        %v7776 = vadd.f32 %v7663, %v7775
        %7777 = vmatprep.mubr.bf16.mxu0 %v4593
        %7778 = vmatmul.mubr.bf16.gmra.mrb[0].mxu0 %v4592
        %v7779 = vpop.f32.mrb[0].mxu0
        %v7780 = vadd.f32 %v7667, %v7779
        %v7781 = vpop.f32.mrb[0].mxu0
        %v7782 = vadd.f32 %v7669, %v7781
        %v7783 = vpop.f32.mrb[0].mxu0
        %v7784 = vadd.f32 %v7671, %v7783
        %v7785 = vpop.f32.mrb[0].mxu0
        %v7786 = vadd.f32 %v7673, %v7785
        %7787 = vdwg.mxu0
        %7788 = vmatprep.subr.bf16.mxu0 %v6890
        %7789 = vmatpush1.bf16.msra.mxu0 %v6889
        %7790 = vmatprep.subr.bf16.mxu0 %v6897
        %7791 = vmatpush1.bf16.msra.mxu0 %v6896
        %7792 = vmatprep.subr.bf16.mxu0 %v6904
        %7793 = vmatpush1.bf16.msra.mxu0 %v6903
        %7794 = vmatprep.subr.bf16.mxu0 %v6911
        %7795 = vmatpush1.bf16.msra.mxu0 %v6910
        %7796 = vmatprep.subr.bf16.mxu0 %v6918
        %7797 = vmatpush1.bf16.msra.mxu0 %v6917
        %7798 = vmatprep.subr.bf16.mxu0 %v6925
        %7799 = vmatpush1.bf16.msra.mxu0 %v6924
        %7800 = vmatprep.subr.bf16.mxu0 %v6932
        %7801 = vmatpush1.bf16.msra.mxu0 %v6931
        %7802 = vmatprep.subr.bf16.mxu0 %v6939
        %7803 = vmatpush1.bf16.msra.mxu0 %v6938
        %7804 = vmatprep.subr.bf16.mxu0 %v6946
        %7805 = vmatpush1.bf16.msra.mxu0 %v6945
        %7806 = vmatprep.subr.bf16.mxu0 %v6953
        %7807 = vmatpush1.bf16.msra.mxu0 %v6952
        %7808 = vmatprep.subr.bf16.mxu0 %v6960
        %7809 = vmatpush1.bf16.msra.mxu0 %v6959
        %7810 = vmatprep.subr.bf16.mxu0 %v6967
        %7811 = vmatpush1.bf16.msra.mxu0 %v6966
        %7812 = vmatprep.subr.bf16.mxu0 %v6974
        %7813 = vmatpush1.bf16.msra.mxu0 %v6973
        %7814 = vmatprep.subr.bf16.mxu0 %v6981
        %7815 = vmatpush1.bf16.msra.mxu0 %v6980
        %7816 = vmatprep.subr.bf16.mxu0 %v6988
        %7817 = vmatpush1.bf16.msra.mxu0 %v6987
        %7818 = vmatprep.subr.bf16.mxu0 %v6995
        %7819 = vmatpush1.bf16.msra.mxu0 %v6994
        %7820 = vmatprep.mubr.bf16.mxu0 %v4539
        %7821 = vmatmul.mubr.bf16.gmra.mrb[0].mxu0 %v4538
        %v7822 = vpop.f32.mrb[0].mxu0
        %v7823 = vadd.f32 %v7710, %v7822
        %v7824 = vpop.f32.mrb[0].mxu0
        %v7825 = vadd.f32 %v7712, %v7824
        %v7826 = vpop.f32.mrb[0].mxu0
        %v7827 = vadd.f32 %v7714, %v7826
        %v7828 = vpop.f32.mrb[0].mxu0
        %v7829 = vadd.f32 %v7716, %v7828
        %7830 = vmatprep.mubr.bf16.mxu0 %v4547
        %7831 = vmatmul.mubr.bf16.gmra.mrb[0].mxu0 %v4546
        %v7832 = vpop.f32.mrb[0].mxu0
        %v7833 = vadd.f32 %v7720, %v7832
        %v7834 = vpop.f32.mrb[0].mxu0
        %v7835 = vadd.f32 %v7722, %v7834
        %v7836 = vpop.f32.mrb[0].mxu0
        %v7837 = vadd.f32 %v7724, %v7836
        %v7838 = vpop.f32.mrb[0].mxu0
        %v7839 = vadd.f32 %v7726, %v7838
        %7840 = vmatprep.mubr.bf16.mxu0 %v4555
        %7841 = vmatmul.mubr.bf16.gmra.mrb[0].mxu0 %v4554
        %v7842 = vpop.f32.mrb[0].mxu0
        %v7843 = vadd.f32 %v7730, %v7842
        %v7844 = vpop.f32.mrb[0].mxu0
        %v7845 = vadd.f32 %v7732, %v7844
        %v7846 = vpop.f32.mrb[0].mxu0
        %v7847 = vadd.f32 %v7734, %v7846
        %v7848 = vpop.f32.mrb[0].mxu0
        %v7849 = vadd.f32 %v7736, %v7848
        %7850 = vmatprep.mubr.bf16.mxu0 %v4563
        %7851 = vmatmul.mubr.bf16.gmra.mrb[0].mxu0 %v4562
        %v7852 = vpop.f32.mrb[0].mxu0
        %v7853 = vadd.f32 %v7740, %v7852
        %v7854 = vpop.f32.mrb[0].mxu0
        %v7855 = vadd.f32 %v7742, %v7854
        %v7856 = vpop.f32.mrb[0].mxu0
        %v7857 = vadd.f32 %v7744, %v7856
        %v7858 = vpop.f32.mrb[0].mxu0
        %v7859 = vadd.f32 %v7746, %v7858
        %7860 = vmatprep.mubr.bf16.mxu0 %v4571
        %7861 = vmatmul.mubr.bf16.gmra.mrb[0].mxu0 %v4570
        %v7862 = vpop.f32.mrb[0].mxu0
        %v7863 = vadd.f32 %v7750, %v7862
        %v7864 = vpop.f32.mrb[0].mxu0
        %v7865 = vadd.f32 %v7752, %v7864
        %v7866 = vpop.f32.mrb[0].mxu0
        %v7867 = vadd.f32 %v7754, %v7866
        %v7868 = vpop.f32.mrb[0].mxu0
        %v7869 = vadd.f32 %v7756, %v7868
        %7870 = vmatprep.mubr.bf16.mxu0 %v4579
        %7871 = vmatmul.mubr.bf16.gmra.mrb[0].mxu0 %v4578
        %v7872 = vpop.f32.mrb[0].mxu0
        %v7873 = vadd.f32 %v7760, %v7872
        %v7874 = vpop.f32.mrb[0].mxu0
        %v7875 = vadd.f32 %v7762, %v7874
        %v7876 = vpop.f32.mrb[0].mxu0
        %v7877 = vadd.f32 %v7764, %v7876
        %v7878 = vpop.f32.mrb[0].mxu0
        %v7879 = vadd.f32 %v7766, %v7878
        %7880 = vmatprep.mubr.bf16.mxu0 %v4587
        %7881 = vmatmul.mubr.bf16.gmra.mrb[0].mxu0 %v4586
        %v7882 = vpop.f32.mrb[0].mxu0
        %v7883 = vadd.f32 %v7770, %v7882
        %v7884 = vpop.f32.mrb[0].mxu0
        %v7885 = vadd.f32 %v7772, %v7884
        %v7886 = vpop.f32.mrb[0].mxu0
        %v7887 = vadd.f32 %v7774, %v7886
        %v7888 = vpop.f32.mrb[0].mxu0
        %v7889 = vadd.f32 %v7776, %v7888
        %7890 = vmatprep.mubr.bf16.mxu0 %v4595
        %7891 = vmatmul.mubr.bf16.gmra.mrb[0].mxu0 %v4594
        %v7892 = vpop.f32.mrb[0].mxu0
        %v7893 = vadd.f32 %v7780, %v7892
        %v7894 = vpop.f32.mrb[0].mxu0
        %v7895 = vadd.f32 %v7782, %v7894
        %v7896 = vpop.f32.mrb[0].mxu0
        %v7897 = vadd.f32 %v7784, %v7896
        %v7898 = vpop.f32.mrb[0].mxu0
        %v7899 = vadd.f32 %v7786, %v7898
        %7900 = vdwg.mxu0
        %7901 = vmatprep.subr.bf16.mxu0 %v6556
        %7902 = vmatpush1.bf16.msra.mxu0 %v6555
        %7903 = vmatprep.subr.bf16.mxu0 %v6563
        %7904 = vmatpush1.bf16.msra.mxu0 %v6562
        %7905 = vmatprep.subr.bf16.mxu0 %v6570
        %7906 = vmatpush1.bf16.msra.mxu0 %v6569
        %7907 = vmatprep.subr.bf16.mxu0 %v6577
        %7908 = vmatpush1.bf16.msra.mxu0 %v6576
        %7909 = vmatprep.subr.bf16.mxu0 %v6584
        %7910 = vmatpush1.bf16.msra.mxu0 %v6583
        %7911 = vmatprep.subr.bf16.mxu0 %v6591
        %7912 = vmatpush1.bf16.msra.mxu0 %v6590
        %7913 = vmatprep.subr.bf16.mxu0 %v6598
        %7914 = vmatpush1.bf16.msra.mxu0 %v6597
        %7915 = vmatprep.subr.bf16.mxu0 %v6605
        %7916 = vmatpush1.bf16.msra.mxu0 %v6604
        %7917 = vmatprep.subr.bf16.mxu0 %v6612
        %7918 = vmatpush1.bf16.msra.mxu0 %v6611
        %7919 = vmatprep.subr.bf16.mxu0 %v6619
        %7920 = vmatpush1.bf16.msra.mxu0 %v6618
        %7921 = vmatprep.subr.bf16.mxu0 %v6626
        %7922 = vmatpush1.bf16.msra.mxu0 %v6625
        %7923 = vmatprep.subr.bf16.mxu0 %v6633
        %7924 = vmatpush1.bf16.msra.mxu0 %v6632
        %7925 = vmatprep.subr.bf16.mxu0 %v6640
        %7926 = vmatpush1.bf16.msra.mxu0 %v6639
        %7927 = vmatprep.subr.bf16.mxu0 %v6647
        %7928 = vmatpush1.bf16.msra.mxu0 %v6646
        %7929 = vmatprep.subr.bf16.mxu0 %v6654
        %7930 = vmatpush1.bf16.msra.mxu0 %v6653
        %7931 = vmatprep.subr.bf16.mxu0 %v6661
        %7932 = vmatpush1.bf16.msra.mxu0 %v6660
        %7933 = vmatprep.mubr.bf16.mxu0 %v4533
        %7934 = vmatmul.mubr.bf16.gmra.mrb[0].mxu0 %v4532
        %v7935 = vpop.f32.mrb[0].mxu0
        %v7936 = vadd.f32 %v5121, %v7935
        %v7937 = vpop.f32.mrb[0].mxu0
        %v7938 = vadd.f32 %v5125, %v7937
        %v7939 = vpop.f32.mrb[0].mxu0
        %v7940 = vadd.f32 %v5121, %v7939
        %v7941 = vpop.f32.mrb[0].mxu0
        %v7942 = vadd.f32 %v5125, %v7941
        %7943 = vmatprep.mubr.bf16.mxu0 %v4541
        %7944 = vmatmul.mubr.bf16.gmra.mrb[0].mxu0 %v4540
        %v7945 = vpop.f32.mrb[0].mxu0
        %v7946 = vadd.f32 %v5121, %v7945
        %v7947 = vpop.f32.mrb[0].mxu0
        %v7948 = vadd.f32 %v5125, %v7947
        %v7949 = vpop.f32.mrb[0].mxu0
        %v7950 = vadd.f32 %v5121, %v7949
        %v7951 = vpop.f32.mrb[0].mxu0
        %v7952 = vadd.f32 %v5125, %v7951
        %7953 = vmatprep.mubr.bf16.mxu0 %v4549
        %7954 = vmatmul.mubr.bf16.gmra.mrb[0].mxu0 %v4548
        %v7955 = vpop.f32.mrb[0].mxu0
        %v7956 = vadd.f32 %v5121, %v7955
        %v7957 = vpop.f32.mrb[0].mxu0
        %v7958 = vadd.f32 %v5125, %v7957
        %v7959 = vpop.f32.mrb[0].mxu0
        %v7960 = vadd.f32 %v5121, %v7959
        %v7961 = vpop.f32.mrb[0].mxu0
        %v7962 = vadd.f32 %v5125, %v7961
        %7963 = vmatprep.mubr.bf16.mxu0 %v4557
        %7964 = vmatmul.mubr.bf16.gmra.mrb[0].mxu0 %v4556
        %v7965 = vpop.f32.mrb[0].mxu0
        %v7966 = vadd.f32 %v5121, %v7965
        %v7967 = vpop.f32.mrb[0].mxu0
        %v7968 = vadd.f32 %v5125, %v7967
        %v7969 = vpop.f32.mrb[0].mxu0
        %v7970 = vadd.f32 %v5121, %v7969
        %v7971 = vpop.f32.mrb[0].mxu0
        %v7972 = vadd.f32 %v5125, %v7971
        %7973 = vmatprep.mubr.bf16.mxu0 %v4565
        %7974 = vmatmul.mubr.bf16.gmra.mrb[0].mxu0 %v4564
        %v7975 = vpop.f32.mrb[0].mxu0
        %v7976 = vadd.f32 %v5121, %v7975
        %v7977 = vpop.f32.mrb[0].mxu0
        %v7978 = vadd.f32 %v5125, %v7977
        %v7979 = vpop.f32.mrb[0].mxu0
        %v7980 = vadd.f32 %v5121, %v7979
        %v7981 = vpop.f32.mrb[0].mxu0
        %v7982 = vadd.f32 %v5125, %v7981
        %7983 = vmatprep.mubr.bf16.mxu0 %v4573
        %7984 = vmatmul.mubr.bf16.gmra.mrb[0].mxu0 %v4572
        %v7985 = vpop.f32.mrb[0].mxu0
        %v7986 = vadd.f32 %v5121, %v7985
        %v7987 = vpop.f32.mrb[0].mxu0
        %v7988 = vadd.f32 %v5125, %v7987
        %v7989 = vpop.f32.mrb[0].mxu0
        %v7990 = vadd.f32 %v5121, %v7989
        %v7991 = vpop.f32.mrb[0].mxu0
        %v7992 = vadd.f32 %v5125, %v7991
        %7993 = vmatprep.mubr.bf16.mxu0 %v4581
        %7994 = vmatmul.mubr.bf16.gmra.mrb[0].mxu0 %v4580
        %v7995 = vpop.f32.mrb[0].mxu0
        %v7996 = vadd.f32 %v5121, %v7995
        %v7997 = vpop.f32.mrb[0].mxu0
        %v7998 = vadd.f32 %v5125, %v7997
        %v7999 = vpop.f32.mrb[0].mxu0
        %v8000 = vadd.f32 %v5121, %v7999
        %v8001 = vpop.f32.mrb[0].mxu0
        %v8002 = vadd.f32 %v5125, %v8001
        %8003 = vmatprep.mubr.bf16.mxu0 %v4589
        %8004 = vmatmul.mubr.bf16.gmra.mrb[0].mxu0 %v4588
        %v8005 = vpop.f32.mrb[0].mxu0
        %v8006 = vadd.f32 %v5121, %v8005
        %v8007 = vpop.f32.mrb[0].mxu0
        %v8008 = vadd.f32 %v5125, %v8007
        %v8009 = vpop.f32.mrb[0].mxu0
        %v8010 = vadd.f32 %v5121, %v8009
        %v8011 = vpop.f32.mrb[0].mxu0
        %v8012 = vadd.f32 %v5125, %v8011
        %8013 = vdwg.mxu0
        %8014 = vmatprep.subr.bf16.mxu0 %v6668
        %8015 = vmatpush1.bf16.msra.mxu0 %v6667
        %8016 = vmatprep.subr.bf16.mxu0 %v6675
        %8017 = vmatpush1.bf16.msra.mxu0 %v6674
        %8018 = vmatprep.subr.bf16.mxu0 %v6682
        %8019 = vmatpush1.bf16.msra.mxu0 %v6681
        %8020 = vmatprep.subr.bf16.mxu0 %v6689
        %8021 = vmatpush1.bf16.msra.mxu0 %v6688
        %8022 = vmatprep.subr.bf16.mxu0 %v6696
        %8023 = vmatpush1.bf16.msra.mxu0 %v6695
        %8024 = vmatprep.subr.bf16.mxu0 %v6703
        %8025 = vmatpush1.bf16.msra.mxu0 %v6702
        %8026 = vmatprep.subr.bf16.mxu0 %v6710
        %8027 = vmatpush1.bf16.msra.mxu0 %v6709
        %8028 = vmatprep.subr.bf16.mxu0 %v6717
        %8029 = vmatpush1.bf16.msra.mxu0 %v6716
        %8030 = vmatprep.subr.bf16.mxu0 %v6724
        %8031 = vmatpush1.bf16.msra.mxu0 %v6723
        %8032 = vmatprep.subr.bf16.mxu0 %v6731
        %8033 = vmatpush1.bf16.msra.mxu0 %v6730
        %8034 = vmatprep.subr.bf16.mxu0 %v6738
        %8035 = vmatpush1.bf16.msra.mxu0 %v6737
        %8036 = vmatprep.subr.bf16.mxu0 %v6745
        %8037 = vmatpush1.bf16.msra.mxu0 %v6744
        %8038 = vmatprep.subr.bf16.mxu0 %v6752
        %8039 = vmatpush1.bf16.msra.mxu0 %v6751
        %8040 = vmatprep.subr.bf16.mxu0 %v6759
        %8041 = vmatpush1.bf16.msra.mxu0 %v6758
        %8042 = vmatprep.subr.bf16.mxu0 %v6766
        %8043 = vmatpush1.bf16.msra.mxu0 %v6765
        %8044 = vmatprep.subr.bf16.mxu0 %v6773
        %8045 = vmatpush1.bf16.msra.mxu0 %v6772
        %8046 = vmatprep.mubr.bf16.mxu0 %v4535
        %8047 = vmatmul.mubr.bf16.gmra.mrb[0].mxu0 %v4534
        %v8048 = vpop.f32.mrb[0].mxu0
        %v8049 = vadd.f32 %v7936, %v8048
        %v8050 = vpop.f32.mrb[0].mxu0
        %v8051 = vadd.f32 %v7938, %v8050
        %v8052 = vpop.f32.mrb[0].mxu0
        %v8053 = vadd.f32 %v7940, %v8052
        %v8054 = vpop.f32.mrb[0].mxu0
        %v8055 = vadd.f32 %v7942, %v8054
        %8056 = vmatprep.mubr.bf16.mxu0 %v4543
        %8057 = vmatmul.mubr.bf16.gmra.mrb[0].mxu0 %v4542
        %v8058 = vpop.f32.mrb[0].mxu0
        %v8059 = vadd.f32 %v7946, %v8058
        %v8060 = vpop.f32.mrb[0].mxu0
        %v8061 = vadd.f32 %v7948, %v8060
        %v8062 = vpop.f32.mrb[0].mxu0
        %v8063 = vadd.f32 %v7950, %v8062
        %v8064 = vpop.f32.mrb[0].mxu0
        %v8065 = vadd.f32 %v7952, %v8064
        %8066 = vmatprep.mubr.bf16.mxu0 %v4551
        %8067 = vmatmul.mubr.bf16.gmra.mrb[0].mxu0 %v4550
        %v8068 = vpop.f32.mrb[0].mxu0
        %v8069 = vadd.f32 %v7956, %v8068
        %v8070 = vpop.f32.mrb[0].mxu0
        %v8071 = vadd.f32 %v7958, %v8070
        %v8072 = vpop.f32.mrb[0].mxu0
        %v8073 = vadd.f32 %v7960, %v8072
        %v8074 = vpop.f32.mrb[0].mxu0
        %v8075 = vadd.f32 %v7962, %v8074
        %8076 = vmatprep.mubr.bf16.mxu0 %v4559
        %8077 = vmatmul.mubr.bf16.gmra.mrb[0].mxu0 %v4558
        %v8078 = vpop.f32.mrb[0].mxu0
        %v8079 = vadd.f32 %v7966, %v8078
        %v8080 = vpop.f32.mrb[0].mxu0
        %v8081 = vadd.f32 %v7968, %v8080
        %v8082 = vpop.f32.mrb[0].mxu0
        %v8083 = vadd.f32 %v7970, %v8082
        %v8084 = vpop.f32.mrb[0].mxu0
        %v8085 = vadd.f32 %v7972, %v8084
        %8086 = vmatprep.mubr.bf16.mxu0 %v4567
        %8087 = vmatmul.mubr.bf16.gmra.mrb[0].mxu0 %v4566
        %v8088 = vpop.f32.mrb[0].mxu0
        %v8089 = vadd.f32 %v7976, %v8088
        %v8090 = vpop.f32.mrb[0].mxu0
        %v8091 = vadd.f32 %v7978, %v8090
        %v8092 = vpop.f32.mrb[0].mxu0
        %v8093 = vadd.f32 %v7980, %v8092
        %v8094 = vpop.f32.mrb[0].mxu0
        %v8095 = vadd.f32 %v7982, %v8094
        %8096 = vmatprep.mubr.bf16.mxu0 %v4575
        %8097 = vmatmul.mubr.bf16.gmra.mrb[0].mxu0 %v4574
        %v8098 = vpop.f32.mrb[0].mxu0
        %v8099 = vadd.f32 %v7986, %v8098
        %v8100 = vpop.f32.mrb[0].mxu0
        %v8101 = vadd.f32 %v7988, %v8100
        %v8102 = vpop.f32.mrb[0].mxu0
        %v8103 = vadd.f32 %v7990, %v8102
        %v8104 = vpop.f32.mrb[0].mxu0
        %v8105 = vadd.f32 %v7992, %v8104
        %8106 = vmatprep.mubr.bf16.mxu0 %v4583
        %8107 = vmatmul.mubr.bf16.gmra.mrb[0].mxu0 %v4582
        %v8108 = vpop.f32.mrb[0].mxu0
        %v8109 = vadd.f32 %v7996, %v8108
        %v8110 = vpop.f32.mrb[0].mxu0
        %v8111 = vadd.f32 %v7998, %v8110
        %v8112 = vpop.f32.mrb[0].mxu0
        %v8113 = vadd.f32 %v8000, %v8112
        %v8114 = vpop.f32.mrb[0].mxu0
        %v8115 = vadd.f32 %v8002, %v8114
        %8116 = vmatprep.mubr.bf16.mxu0 %v4591
        %8117 = vmatmul.mubr.bf16.gmra.mrb[0].mxu0 %v4590
        %v8118 = vpop.f32.mrb[0].mxu0
        %v8119 = vadd.f32 %v8006, %v8118
        %v8120 = vpop.f32.mrb[0].mxu0
        %v8121 = vadd.f32 %v8008, %v8120
        %v8122 = vpop.f32.mrb[0].mxu0
        %v8123 = vadd.f32 %v8010, %v8122
        %v8124 = vpop.f32.mrb[0].mxu0
        %v8125 = vadd.f32 %v8012, %v8124
        %8126 = vdwg.mxu0
        %8127 = vmatprep.subr.bf16.mxu0 %v6780
        %8128 = vmatpush1.bf16.msra.mxu0 %v6779
        %8129 = vmatprep.subr.bf16.mxu0 %v6787
        %8130 = vmatpush1.bf16.msra.mxu0 %v6786
        %8131 = vmatprep.subr.bf16.mxu0 %v6794
        %8132 = vmatpush1.bf16.msra.mxu0 %v6793
        %8133 = vmatprep.subr.bf16.mxu0 %v6801
        %8134 = vmatpush1.bf16.msra.mxu0 %v6800
        %8135 = vmatprep.subr.bf16.mxu0 %v6808
        %8136 = vmatpush1.bf16.msra.mxu0 %v6807
        %8137 = vmatprep.subr.bf16.mxu0 %v6815
        %8138 = vmatpush1.bf16.msra.mxu0 %v6814
        %8139 = vmatprep.subr.bf16.mxu0 %v6822
        %8140 = vmatpush1.bf16.msra.mxu0 %v6821
        %8141 = vmatprep.subr.bf16.mxu0 %v6829
        %8142 = vmatpush1.bf16.msra.mxu0 %v6828
        %8143 = vmatprep.subr.bf16.mxu0 %v6836
        %8144 = vmatpush1.bf16.msra.mxu0 %v6835
        %8145 = vmatprep.subr.bf16.mxu0 %v6843
        %8146 = vmatpush1.bf16.msra.mxu0 %v6842
        %8147 = vmatprep.subr.bf16.mxu0 %v6850
        %8148 = vmatpush1.bf16.msra.mxu0 %v6849
        %8149 = vmatprep.subr.bf16.mxu0 %v6857
        %8150 = vmatpush1.bf16.msra.mxu0 %v6856
        %8151 = vmatprep.subr.bf16.mxu0 %v6864
        %8152 = vmatpush1.bf16.msra.mxu0 %v6863
        %8153 = vmatprep.subr.bf16.mxu0 %v6871
        %8154 = vmatpush1.bf16.msra.mxu0 %v6870
        %8155 = vmatprep.subr.bf16.mxu0 %v6878
        %8156 = vmatpush1.bf16.msra.mxu0 %v6877
        %8157 = vmatprep.subr.bf16.mxu0 %v6885
        %8158 = vmatpush1.bf16.msra.mxu0 %v6884
        %8159 = vmatprep.mubr.bf16.mxu0 %v4537
        %8160 = vmatmul.mubr.bf16.gmra.mrb[0].mxu0 %v4536
        %v8161 = vpop.f32.mrb[0].mxu0
        %v8162 = vadd.f32 %v8049, %v8161
        %v8163 = vpop.f32.mrb[0].mxu0
        %v8164 = vadd.f32 %v8051, %v8163
        %v8165 = vpop.f32.mrb[0].mxu0
        %v8166 = vadd.f32 %v8053, %v8165
        %v8167 = vpop.f32.mrb[0].mxu0
        %v8168 = vadd.f32 %v8055, %v8167
        %8169 = vmatprep.mubr.bf16.mxu0 %v4545
        %8170 = vmatmul.mubr.bf16.gmra.mrb[0].mxu0 %v4544
        %v8171 = vpop.f32.mrb[0].mxu0
        %v8172 = vadd.f32 %v8059, %v8171
        %v8173 = vpop.f32.mrb[0].mxu0
        %v8174 = vadd.f32 %v8061, %v8173
        %v8175 = vpop.f32.mrb[0].mxu0
        %v8176 = vadd.f32 %v8063, %v8175
        %v8177 = vpop.f32.mrb[0].mxu0
        %v8178 = vadd.f32 %v8065, %v8177
        %8179 = vmatprep.mubr.bf16.mxu0 %v4553
        %8180 = vmatmul.mubr.bf16.gmra.mrb[0].mxu0 %v4552
        %v8181 = vpop.f32.mrb[0].mxu0
        %v8182 = vadd.f32 %v8069, %v8181
        %v8183 = vpop.f32.mrb[0].mxu0
        %v8184 = vadd.f32 %v8071, %v8183
        %v8185 = vpop.f32.mrb[0].mxu0
        %v8186 = vadd.f32 %v8073, %v8185
        %v8187 = vpop.f32.mrb[0].mxu0
        %v8188 = vadd.f32 %v8075, %v8187
        %8189 = vmatprep.mubr.bf16.mxu0 %v4561
        %8190 = vmatmul.mubr.bf16.gmra.mrb[0].mxu0 %v4560
        %v8191 = vpop.f32.mrb[0].mxu0
        %v8192 = vadd.f32 %v8079, %v8191
        %v8193 = vpop.f32.mrb[0].mxu0
        %v8194 = vadd.f32 %v8081, %v8193
        %v8195 = vpop.f32.mrb[0].mxu0
        %v8196 = vadd.f32 %v8083, %v8195
        %v8197 = vpop.f32.mrb[0].mxu0
        %v8198 = vadd.f32 %v8085, %v8197
        %8199 = vmatprep.mubr.bf16.mxu0 %v4569
        %8200 = vmatmul.mubr.bf16.gmra.mrb[0].mxu0 %v4568
        %v8201 = vpop.f32.mrb[0].mxu0
        %v8202 = vadd.f32 %v8089, %v8201
        %v8203 = vpop.f32.mrb[0].mxu0
        %v8204 = vadd.f32 %v8091, %v8203
        %v8205 = vpop.f32.mrb[0].mxu0
        %v8206 = vadd.f32 %v8093, %v8205
        %v8207 = vpop.f32.mrb[0].mxu0
        %v8208 = vadd.f32 %v8095, %v8207
        %8209 = vmatprep.mubr.bf16.mxu0 %v4577
        %8210 = vmatmul.mubr.bf16.gmra.mrb[0].mxu0 %v4576
        %v8211 = vpop.f32.mrb[0].mxu0
        %v8212 = vadd.f32 %v8099, %v8211
        %v8213 = vpop.f32.mrb[0].mxu0
        %v8214 = vadd.f32 %v8101, %v8213
        %v8215 = vpop.f32.mrb[0].mxu0
        %v8216 = vadd.f32 %v8103, %v8215
        %v8217 = vpop.f32.mrb[0].mxu0
        %v8218 = vadd.f32 %v8105, %v8217
        %8219 = vmatprep.mubr.bf16.mxu0 %v4585
        %8220 = vmatmul.mubr.bf16.gmra.mrb[0].mxu0 %v4584
        %v8221 = vpop.f32.mrb[0].mxu0
        %v8222 = vadd.f32 %v8109, %v8221
        %v8223 = vpop.f32.mrb[0].mxu0
        %v8224 = vadd.f32 %v8111, %v8223
        %v8225 = vpop.f32.mrb[0].mxu0
        %v8226 = vadd.f32 %v8113, %v8225
        %v8227 = vpop.f32.mrb[0].mxu0
        %v8228 = vadd.f32 %v8115, %v8227
        %8229 = vmatprep.mubr.bf16.mxu0 %v4593
        %8230 = vmatmul.mubr.bf16.gmra.mrb[0].mxu0 %v4592
        %v8231 = vpop.f32.mrb[0].mxu0
        %v8232 = vadd.f32 %v8119, %v8231
        %v8233 = vpop.f32.mrb[0].mxu0
        %v8234 = vadd.f32 %v8121, %v8233
        %v8235 = vpop.f32.mrb[0].mxu0
        %v8236 = vadd.f32 %v8123, %v8235
        %v8237 = vpop.f32.mrb[0].mxu0
        %v8238 = vadd.f32 %v8125, %v8237
        %8239 = vdwg.mxu0
        %8240 = vmatprep.subr.bf16.mxu0 %v6892
        %8241 = vmatpush1.bf16.msra.mxu0 %v6891
        %8242 = vmatprep.subr.bf16.mxu0 %v6899
        %8243 = vmatpush1.bf16.msra.mxu0 %v6898
        %8244 = vmatprep.subr.bf16.mxu0 %v6906
        %8245 = vmatpush1.bf16.msra.mxu0 %v6905
        %8246 = vmatprep.subr.bf16.mxu0 %v6913
        %8247 = vmatpush1.bf16.msra.mxu0 %v6912
        %8248 = vmatprep.subr.bf16.mxu0 %v6920
        %8249 = vmatpush1.bf16.msra.mxu0 %v6919
        %8250 = vmatprep.subr.bf16.mxu0 %v6927
        %8251 = vmatpush1.bf16.msra.mxu0 %v6926
        %8252 = vmatprep.subr.bf16.mxu0 %v6934
        %8253 = vmatpush1.bf16.msra.mxu0 %v6933
        %8254 = vmatprep.subr.bf16.mxu0 %v6941
        %8255 = vmatpush1.bf16.msra.mxu0 %v6940
        %8256 = vmatprep.subr.bf16.mxu0 %v6948
        %8257 = vmatpush1.bf16.msra.mxu0 %v6947
        %8258 = vmatprep.subr.bf16.mxu0 %v6955
        %8259 = vmatpush1.bf16.msra.mxu0 %v6954
        %8260 = vmatprep.subr.bf16.mxu0 %v6962
        %8261 = vmatpush1.bf16.msra.mxu0 %v6961
        %8262 = vmatprep.subr.bf16.mxu0 %v6969
        %8263 = vmatpush1.bf16.msra.mxu0 %v6968
        %8264 = vmatprep.subr.bf16.mxu0 %v6976
        %8265 = vmatpush1.bf16.msra.mxu0 %v6975
        %8266 = vmatprep.subr.bf16.mxu0 %v6983
        %8267 = vmatpush1.bf16.msra.mxu0 %v6982
        %8268 = vmatprep.subr.bf16.mxu0 %v6990
        %8269 = vmatpush1.bf16.msra.mxu0 %v6989
        %8270 = vmatprep.subr.bf16.mxu0 %v6997
        %8271 = vmatpush1.bf16.msra.mxu0 %v6996
        %8272 = vmatprep.mubr.bf16.mxu0 %v4539
        %8273 = vmatmul.mubr.bf16.gmra.mrb[0].mxu0 %v4538
        %v8274 = vpop.f32.mrb[0].mxu0
        %v8275 = vadd.f32 %v8162, %v8274
        %v8276 = vpop.f32.mrb[0].mxu0
        %v8277 = vadd.f32 %v8164, %v8276
        %v8278 = vpop.f32.mrb[0].mxu0
        %v8279 = vadd.f32 %v8166, %v8278
        %v8280 = vpop.f32.mrb[0].mxu0
        %v8281 = vadd.f32 %v8168, %v8280
        %8282 = vmatprep.mubr.bf16.mxu0 %v4547
        %8283 = vmatmul.mubr.bf16.gmra.mrb[0].mxu0 %v4546
        %v8284 = vpop.f32.mrb[0].mxu0
        %v8285 = vadd.f32 %v8172, %v8284
        %v8286 = vpop.f32.mrb[0].mxu0
        %v8287 = vadd.f32 %v8174, %v8286
        %v8288 = vpop.f32.mrb[0].mxu0
        %v8289 = vadd.f32 %v8176, %v8288
        %v8290 = vpop.f32.mrb[0].mxu0
        %v8291 = vadd.f32 %v8178, %v8290
        %8292 = vmatprep.mubr.bf16.mxu0 %v4555
        %8293 = vmatmul.mubr.bf16.gmra.mrb[0].mxu0 %v4554
        %v8294 = vpop.f32.mrb[0].mxu0
        %v8295 = vadd.f32 %v8182, %v8294
        %v8296 = vpop.f32.mrb[0].mxu0
        %v8297 = vadd.f32 %v8184, %v8296
        %v8298 = vpop.f32.mrb[0].mxu0
        %v8299 = vadd.f32 %v8186, %v8298
        %v8300 = vpop.f32.mrb[0].mxu0
        %v8301 = vadd.f32 %v8188, %v8300
        %8302 = vmatprep.mubr.bf16.mxu0 %v4563
        %8303 = vmatmul.mubr.bf16.gmra.mrb[0].mxu0 %v4562
        %v8304 = vpop.f32.mrb[0].mxu0
        %v8305 = vadd.f32 %v8192, %v8304
        %v8306 = vpop.f32.mrb[0].mxu0
        %v8307 = vadd.f32 %v8194, %v8306
        %v8308 = vpop.f32.mrb[0].mxu0
        %v8309 = vadd.f32 %v8196, %v8308
        %v8310 = vpop.f32.mrb[0].mxu0
        %v8311 = vadd.f32 %v8198, %v8310
        %8312 = vmatprep.mubr.bf16.mxu0 %v4571
        %8313 = vmatmul.mubr.bf16.gmra.mrb[0].mxu0 %v4570
        %v8314 = vpop.f32.mrb[0].mxu0
        %v8315 = vadd.f32 %v8202, %v8314
        %v8316 = vpop.f32.mrb[0].mxu0
        %v8317 = vadd.f32 %v8204, %v8316
        %v8318 = vpop.f32.mrb[0].mxu0
        %v8319 = vadd.f32 %v8206, %v8318
        %v8320 = vpop.f32.mrb[0].mxu0
        %v8321 = vadd.f32 %v8208, %v8320
        %8322 = vmatprep.mubr.bf16.mxu0 %v4579
        %8323 = vmatmul.mubr.bf16.gmra.mrb[0].mxu0 %v4578
        %v8324 = vpop.f32.mrb[0].mxu0
        %v8325 = vadd.f32 %v8212, %v8324
        %v8326 = vpop.f32.mrb[0].mxu0
        %v8327 = vadd.f32 %v8214, %v8326
        %v8328 = vpop.f32.mrb[0].mxu0
        %v8329 = vadd.f32 %v8216, %v8328
        %v8330 = vpop.f32.mrb[0].mxu0
        %v8331 = vadd.f32 %v8218, %v8330
        %8332 = vmatprep.mubr.bf16.mxu0 %v4587
        %8333 = vmatmul.mubr.bf16.gmra.mrb[0].mxu0 %v4586
        %v8334 = vpop.f32.mrb[0].mxu0
        %v8335 = vadd.f32 %v8222, %v8334
        %v8336 = vpop.f32.mrb[0].mxu0
        %v8337 = vadd.f32 %v8224, %v8336
        %v8338 = vpop.f32.mrb[0].mxu0
        %v8339 = vadd.f32 %v8226, %v8338
        %v8340 = vpop.f32.mrb[0].mxu0
        %v8341 = vadd.f32 %v8228, %v8340
        %8342 = vmatprep.mubr.bf16.mxu0 %v4595
        %8343 = vmatmul.mubr.bf16.gmra.mrb[0].mxu0 %v4594
        %v8344 = vpop.f32.mrb[0].mxu0
        %v8345 = vadd.f32 %v8232, %v8344
        %v8346 = vpop.f32.mrb[0].mxu0
        %v8347 = vadd.f32 %v8234, %v8346
        %v8348 = vpop.f32.mrb[0].mxu0
        %v8349 = vadd.f32 %v8236, %v8348
        %v8350 = vpop.f32.mrb[0].mxu0
        %v8351 = vadd.f32 %v8238, %v8350
        %8352 = vdwg.mxu0
        %8353 = vmatprep.subr.bf16.mxu0 %v6558
        %8354 = vmatpush1.bf16.msra.mxu0 %v6557
        %8355 = vmatprep.subr.bf16.mxu0 %v6565
        %8356 = vmatpush1.bf16.msra.mxu0 %v6564
        %8357 = vmatprep.subr.bf16.mxu0 %v6572
        %8358 = vmatpush1.bf16.msra.mxu0 %v6571
        %8359 = vmatprep.subr.bf16.mxu0 %v6579
        %8360 = vmatpush1.bf16.msra.mxu0 %v6578
        %8361 = vmatprep.subr.bf16.mxu0 %v6586
        %8362 = vmatpush1.bf16.msra.mxu0 %v6585
        %8363 = vmatprep.subr.bf16.mxu0 %v6593
        %8364 = vmatpush1.bf16.msra.mxu0 %v6592
        %8365 = vmatprep.subr.bf16.mxu0 %v6600
        %8366 = vmatpush1.bf16.msra.mxu0 %v6599
        %8367 = vmatprep.subr.bf16.mxu0 %v6607
        %8368 = vmatpush1.bf16.msra.mxu0 %v6606
        %8369 = vmatprep.subr.bf16.mxu0 %v6614
        %8370 = vmatpush1.bf16.msra.mxu0 %v6613
        %8371 = vmatprep.subr.bf16.mxu0 %v6621
        %8372 = vmatpush1.bf16.msra.mxu0 %v6620
        %8373 = vmatprep.subr.bf16.mxu0 %v6628
        %8374 = vmatpush1.bf16.msra.mxu0 %v6627
        %8375 = vmatprep.subr.bf16.mxu0 %v6635
        %8376 = vmatpush1.bf16.msra.mxu0 %v6634
        %8377 = vmatprep.subr.bf16.mxu0 %v6642
        %8378 = vmatpush1.bf16.msra.mxu0 %v6641
        %8379 = vmatprep.subr.bf16.mxu0 %v6649
        %8380 = vmatpush1.bf16.msra.mxu0 %v6648
        %8381 = vmatprep.subr.bf16.mxu0 %v6656
        %8382 = vmatpush1.bf16.msra.mxu0 %v6655
        %8383 = vmatprep.subr.bf16.mxu0 %v6663
        %8384 = vmatpush1.bf16.msra.mxu0 %v6662
        %8385 = vmatprep.mubr.bf16.mxu0 %v4533
        %8386 = vmatmul.mubr.bf16.gmra.mrb[0].mxu0 %v4532
        %v8387 = vpop.f32.mrb[0].mxu0
        %v8388 = vadd.f32 %v5129, %v8387
        %v8389 = vpop.f32.mrb[0].mxu0
        %v8390 = vadd.f32 %v5133, %v8389
        %v8391 = vpop.f32.mrb[0].mxu0
        %v8392 = vadd.f32 %v5129, %v8391
        %v8393 = vpop.f32.mrb[0].mxu0
        %v8394 = vadd.f32 %v5133, %v8393
        %8395 = vmatprep.mubr.bf16.mxu0 %v4541
        %8396 = vmatmul.mubr.bf16.gmra.mrb[0].mxu0 %v4540
        %v8397 = vpop.f32.mrb[0].mxu0
        %v8398 = vadd.f32 %v5129, %v8397
        %v8399 = vpop.f32.mrb[0].mxu0
        %v8400 = vadd.f32 %v5133, %v8399
        %v8401 = vpop.f32.mrb[0].mxu0
        %v8402 = vadd.f32 %v5129, %v8401
        %v8403 = vpop.f32.mrb[0].mxu0
        %v8404 = vadd.f32 %v5133, %v8403
        %8405 = vmatprep.mubr.bf16.mxu0 %v4549
        %8406 = vmatmul.mubr.bf16.gmra.mrb[0].mxu0 %v4548
        %v8407 = vpop.f32.mrb[0].mxu0
        %v8408 = vadd.f32 %v5129, %v8407
        %v8409 = vpop.f32.mrb[0].mxu0
        %v8410 = vadd.f32 %v5133, %v8409
        %v8411 = vpop.f32.mrb[0].mxu0
        %v8412 = vadd.f32 %v5129, %v8411
        %v8413 = vpop.f32.mrb[0].mxu0
        %v8414 = vadd.f32 %v5133, %v8413
        %8415 = vmatprep.mubr.bf16.mxu0 %v4557
        %8416 = vmatmul.mubr.bf16.gmra.mrb[0].mxu0 %v4556
        %v8417 = vpop.f32.mrb[0].mxu0
        %v8418 = vadd.f32 %v5129, %v8417
        %v8419 = vpop.f32.mrb[0].mxu0
        %v8420 = vadd.f32 %v5133, %v8419
        %v8421 = vpop.f32.mrb[0].mxu0
        %v8422 = vadd.f32 %v5129, %v8421
        %v8423 = vpop.f32.mrb[0].mxu0
        %v8424 = vadd.f32 %v5133, %v8423
        %8425 = vmatprep.mubr.bf16.mxu0 %v4565
        %8426 = vmatmul.mubr.bf16.gmra.mrb[0].mxu0 %v4564
        %v8427 = vpop.f32.mrb[0].mxu0
        %v8428 = vadd.f32 %v5129, %v8427
        %v8429 = vpop.f32.mrb[0].mxu0
        %v8430 = vadd.f32 %v5133, %v8429
        %v8431 = vpop.f32.mrb[0].mxu0
        %v8432 = vadd.f32 %v5129, %v8431
        %v8433 = vpop.f32.mrb[0].mxu0
        %v8434 = vadd.f32 %v5133, %v8433
        %8435 = vmatprep.mubr.bf16.mxu0 %v4573
        %8436 = vmatmul.mubr.bf16.gmra.mrb[0].mxu0 %v4572
        %v8437 = vpop.f32.mrb[0].mxu0
        %v8438 = vadd.f32 %v5129, %v8437
        %v8439 = vpop.f32.mrb[0].mxu0
        %v8440 = vadd.f32 %v5133, %v8439
        %v8441 = vpop.f32.mrb[0].mxu0
        %v8442 = vadd.f32 %v5129, %v8441
        %v8443 = vpop.f32.mrb[0].mxu0
        %v8444 = vadd.f32 %v5133, %v8443
        %8445 = vmatprep.mubr.bf16.mxu0 %v4581
        %8446 = vmatmul.mubr.bf16.gmra.mrb[0].mxu0 %v4580
        %v8447 = vpop.f32.mrb[0].mxu0
        %v8448 = vadd.f32 %v5129, %v8447
        %v8449 = vpop.f32.mrb[0].mxu0
        %v8450 = vadd.f32 %v5133, %v8449
        %v8451 = vpop.f32.mrb[0].mxu0
        %v8452 = vadd.f32 %v5129, %v8451
        %v8453 = vpop.f32.mrb[0].mxu0
        %v8454 = vadd.f32 %v5133, %v8453
        %8455 = vmatprep.mubr.bf16.mxu0 %v4589
        %8456 = vmatmul.mubr.bf16.gmra.mrb[0].mxu0 %v4588
        %v8457 = vpop.f32.mrb[0].mxu0
        %v8458 = vadd.f32 %v5129, %v8457
        %v8459 = vpop.f32.mrb[0].mxu0
        %v8460 = vadd.f32 %v5133, %v8459
        %v8461 = vpop.f32.mrb[0].mxu0
        %v8462 = vadd.f32 %v5129, %v8461
        %v8463 = vpop.f32.mrb[0].mxu0
        %v8464 = vadd.f32 %v5133, %v8463
        %8465 = vdwg.mxu0
        %8466 = vmatprep.subr.bf16.mxu0 %v6670
        %8467 = vmatpush1.bf16.msra.mxu0 %v6669
        %8468 = vmatprep.subr.bf16.mxu0 %v6677
        %8469 = vmatpush1.bf16.msra.mxu0 %v6676
        %8470 = vmatprep.subr.bf16.mxu0 %v6684
        %8471 = vmatpush1.bf16.msra.mxu0 %v6683
        %8472 = vmatprep.subr.bf16.mxu0 %v6691
        %8473 = vmatpush1.bf16.msra.mxu0 %v6690
        %8474 = vmatprep.subr.bf16.mxu0 %v6698
        %8475 = vmatpush1.bf16.msra.mxu0 %v6697
        %8476 = vmatprep.subr.bf16.mxu0 %v6705
        %8477 = vmatpush1.bf16.msra.mxu0 %v6704
        %8478 = vmatprep.subr.bf16.mxu0 %v6712
        %8479 = vmatpush1.bf16.msra.mxu0 %v6711
        %8480 = vmatprep.subr.bf16.mxu0 %v6719
        %8481 = vmatpush1.bf16.msra.mxu0 %v6718
        %8482 = vmatprep.subr.bf16.mxu0 %v6726
        %8483 = vmatpush1.bf16.msra.mxu0 %v6725
        %8484 = vmatprep.subr.bf16.mxu0 %v6733
        %8485 = vmatpush1.bf16.msra.mxu0 %v6732
        %8486 = vmatprep.subr.bf16.mxu0 %v6740
        %8487 = vmatpush1.bf16.msra.mxu0 %v6739
        %8488 = vmatprep.subr.bf16.mxu0 %v6747
        %8489 = vmatpush1.bf16.msra.mxu0 %v6746
        %8490 = vmatprep.subr.bf16.mxu0 %v6754
        %8491 = vmatpush1.bf16.msra.mxu0 %v6753
        %8492 = vmatprep.subr.bf16.mxu0 %v6761
        %8493 = vmatpush1.bf16.msra.mxu0 %v6760
        %8494 = vmatprep.subr.bf16.mxu0 %v6768
        %8495 = vmatpush1.bf16.msra.mxu0 %v6767
        %8496 = vmatprep.subr.bf16.mxu0 %v6775
        %8497 = vmatpush1.bf16.msra.mxu0 %v6774
        %8498 = vmatprep.mubr.bf16.mxu0 %v4535
        %8499 = vmatmul.mubr.bf16.gmra.mrb[0].mxu0 %v4534
        %v8500 = vpop.f32.mrb[0].mxu0
        %v8501 = vadd.f32 %v8388, %v8500
        %v8502 = vpop.f32.mrb[0].mxu0
        %v8503 = vadd.f32 %v8390, %v8502
        %v8504 = vpop.f32.mrb[0].mxu0
        %v8505 = vadd.f32 %v8392, %v8504
        %v8506 = vpop.f32.mrb[0].mxu0
        %v8507 = vadd.f32 %v8394, %v8506
        %8508 = vmatprep.mubr.bf16.mxu0 %v4543
        %8509 = vmatmul.mubr.bf16.gmra.mrb[0].mxu0 %v4542
        %v8510 = vpop.f32.mrb[0].mxu0
        %v8511 = vadd.f32 %v8398, %v8510
        %v8512 = vpop.f32.mrb[0].mxu0
        %v8513 = vadd.f32 %v8400, %v8512
        %v8514 = vpop.f32.mrb[0].mxu0
        %v8515 = vadd.f32 %v8402, %v8514
        %v8516 = vpop.f32.mrb[0].mxu0
        %v8517 = vadd.f32 %v8404, %v8516
        %8518 = vmatprep.mubr.bf16.mxu0 %v4551
        %8519 = vmatmul.mubr.bf16.gmra.mrb[0].mxu0 %v4550
        %v8520 = vpop.f32.mrb[0].mxu0
        %v8521 = vadd.f32 %v8408, %v8520
        %v8522 = vpop.f32.mrb[0].mxu0
        %v8523 = vadd.f32 %v8410, %v8522
        %v8524 = vpop.f32.mrb[0].mxu0
        %v8525 = vadd.f32 %v8412, %v8524
        %v8526 = vpop.f32.mrb[0].mxu0
        %v8527 = vadd.f32 %v8414, %v8526
        %8528 = vmatprep.mubr.bf16.mxu0 %v4559
        %8529 = vmatmul.mubr.bf16.gmra.mrb[0].mxu0 %v4558
        %v8530 = vpop.f32.mrb[0].mxu0
        %v8531 = vadd.f32 %v8418, %v8530
        %v8532 = vpop.f32.mrb[0].mxu0
        %v8533 = vadd.f32 %v8420, %v8532
        %v8534 = vpop.f32.mrb[0].mxu0
        %v8535 = vadd.f32 %v8422, %v8534
        %v8536 = vpop.f32.mrb[0].mxu0
        %v8537 = vadd.f32 %v8424, %v8536
        %8538 = vmatprep.mubr.bf16.mxu0 %v4567
        %8539 = vmatmul.mubr.bf16.gmra.mrb[0].mxu0 %v4566
        %v8540 = vpop.f32.mrb[0].mxu0
        %v8541 = vadd.f32 %v8428, %v8540
        %v8542 = vpop.f32.mrb[0].mxu0
        %v8543 = vadd.f32 %v8430, %v8542
        %v8544 = vpop.f32.mrb[0].mxu0
        %v8545 = vadd.f32 %v8432, %v8544
        %v8546 = vpop.f32.mrb[0].mxu0
        %v8547 = vadd.f32 %v8434, %v8546
        %8548 = vmatprep.mubr.bf16.mxu0 %v4575
        %8549 = vmatmul.mubr.bf16.gmra.mrb[0].mxu0 %v4574
        %v8550 = vpop.f32.mrb[0].mxu0
        %v8551 = vadd.f32 %v8438, %v8550
        %v8552 = vpop.f32.mrb[0].mxu0
        %v8553 = vadd.f32 %v8440, %v8552
        %v8554 = vpop.f32.mrb[0].mxu0
        %v8555 = vadd.f32 %v8442, %v8554
        %v8556 = vpop.f32.mrb[0].mxu0
        %v8557 = vadd.f32 %v8444, %v8556
        %8558 = vmatprep.mubr.bf16.mxu0 %v4583
        %8559 = vmatmul.mubr.bf16.gmra.mrb[0].mxu0 %v4582
        %v8560 = vpop.f32.mrb[0].mxu0
        %v8561 = vadd.f32 %v8448, %v8560
        %v8562 = vpop.f32.mrb[0].mxu0
        %v8563 = vadd.f32 %v8450, %v8562
        %v8564 = vpop.f32.mrb[0].mxu0
        %v8565 = vadd.f32 %v8452, %v8564
        %v8566 = vpop.f32.mrb[0].mxu0
        %v8567 = vadd.f32 %v8454, %v8566
        %8568 = vmatprep.mubr.bf16.mxu0 %v4591
        %8569 = vmatmul.mubr.bf16.gmra.mrb[0].mxu0 %v4590
        %v8570 = vpop.f32.mrb[0].mxu0
        %v8571 = vadd.f32 %v8458, %v8570
        %v8572 = vpop.f32.mrb[0].mxu0
        %v8573 = vadd.f32 %v8460, %v8572
        %v8574 = vpop.f32.mrb[0].mxu0
        %v8575 = vadd.f32 %v8462, %v8574
        %v8576 = vpop.f32.mrb[0].mxu0
        %v8577 = vadd.f32 %v8464, %v8576
        %8578 = vdwg.mxu0
        %8579 = vmatprep.subr.bf16.mxu0 %v6782
        %8580 = vmatpush1.bf16.msra.mxu0 %v6781
        %8581 = vmatprep.subr.bf16.mxu0 %v6789
        %8582 = vmatpush1.bf16.msra.mxu0 %v6788
        %8583 = vmatprep.subr.bf16.mxu0 %v6796
        %8584 = vmatpush1.bf16.msra.mxu0 %v6795
        %8585 = vmatprep.subr.bf16.mxu0 %v6803
        %8586 = vmatpush1.bf16.msra.mxu0 %v6802
        %8587 = vmatprep.subr.bf16.mxu0 %v6810
        %8588 = vmatpush1.bf16.msra.mxu0 %v6809
        %8589 = vmatprep.subr.bf16.mxu0 %v6817
        %8590 = vmatpush1.bf16.msra.mxu0 %v6816
        %8591 = vmatprep.subr.bf16.mxu0 %v6824
        %8592 = vmatpush1.bf16.msra.mxu0 %v6823
        %8593 = vmatprep.subr.bf16.mxu0 %v6831
        %8594 = vmatpush1.bf16.msra.mxu0 %v6830
        %8595 = vmatprep.subr.bf16.mxu0 %v6838
        %8596 = vmatpush1.bf16.msra.mxu0 %v6837
        %8597 = vmatprep.subr.bf16.mxu0 %v6845
        %8598 = vmatpush1.bf16.msra.mxu0 %v6844
        %8599 = vmatprep.subr.bf16.mxu0 %v6852
        %8600 = vmatpush1.bf16.msra.mxu0 %v6851
        %8601 = vmatprep.subr.bf16.mxu0 %v6859
        %8602 = vmatpush1.bf16.msra.mxu0 %v6858
        %8603 = vmatprep.subr.bf16.mxu0 %v6866
        %8604 = vmatpush1.bf16.msra.mxu0 %v6865
        %8605 = vmatprep.subr.bf16.mxu0 %v6873
        %8606 = vmatpush1.bf16.msra.mxu0 %v6872
        %8607 = vmatprep.subr.bf16.mxu0 %v6880
        %8608 = vmatpush1.bf16.msra.mxu0 %v6879
        %8609 = vmatprep.subr.bf16.mxu0 %v6887
        %8610 = vmatpush1.bf16.msra.mxu0 %v6886
        %8611 = vmatprep.mubr.bf16.mxu0 %v4537
        %8612 = vmatmul.mubr.bf16.gmra.mrb[0].mxu0 %v4536
        %v8613 = vpop.f32.mrb[0].mxu0
        %v8614 = vadd.f32 %v8501, %v8613
        %v8615 = vpop.f32.mrb[0].mxu0
        %v8616 = vadd.f32 %v8503, %v8615
        %v8617 = vpop.f32.mrb[0].mxu0
        %v8618 = vadd.f32 %v8505, %v8617
        %v8619 = vpop.f32.mrb[0].mxu0
        %v8620 = vadd.f32 %v8507, %v8619
        %8621 = vmatprep.mubr.bf16.mxu0 %v4545
        %8622 = vmatmul.mubr.bf16.gmra.mrb[0].mxu0 %v4544
        %v8623 = vpop.f32.mrb[0].mxu0
        %v8624 = vadd.f32 %v8511, %v8623
        %v8625 = vpop.f32.mrb[0].mxu0
        %v8626 = vadd.f32 %v8513, %v8625
        %v8627 = vpop.f32.mrb[0].mxu0
        %v8628 = vadd.f32 %v8515, %v8627
        %v8629 = vpop.f32.mrb[0].mxu0
        %v8630 = vadd.f32 %v8517, %v8629
        %8631 = vmatprep.mubr.bf16.mxu0 %v4553
        %8632 = vmatmul.mubr.bf16.gmra.mrb[0].mxu0 %v4552
        %v8633 = vpop.f32.mrb[0].mxu0
        %v8634 = vadd.f32 %v8521, %v8633
        %v8635 = vpop.f32.mrb[0].mxu0
        %v8636 = vadd.f32 %v8523, %v8635
        %v8637 = vpop.f32.mrb[0].mxu0
        %v8638 = vadd.f32 %v8525, %v8637
        %v8639 = vpop.f32.mrb[0].mxu0
        %v8640 = vadd.f32 %v8527, %v8639
        %8641 = vmatprep.mubr.bf16.mxu0 %v4561
        %8642 = vmatmul.mubr.bf16.gmra.mrb[0].mxu0 %v4560
        %v8643 = vpop.f32.mrb[0].mxu0
        %v8644 = vadd.f32 %v8531, %v8643
        %v8645 = vpop.f32.mrb[0].mxu0
        %v8646 = vadd.f32 %v8533, %v8645
        %v8647 = vpop.f32.mrb[0].mxu0
        %v8648 = vadd.f32 %v8535, %v8647
        %v8649 = vpop.f32.mrb[0].mxu0
        %v8650 = vadd.f32 %v8537, %v8649
        %8651 = vmatprep.mubr.bf16.mxu0 %v4569
        %8652 = vmatmul.mubr.bf16.gmra.mrb[0].mxu0 %v4568
        %v8653 = vpop.f32.mrb[0].mxu0
        %v8654 = vadd.f32 %v8541, %v8653
        %v8655 = vpop.f32.mrb[0].mxu0
        %v8656 = vadd.f32 %v8543, %v8655
        %v8657 = vpop.f32.mrb[0].mxu0
        %v8658 = vadd.f32 %v8545, %v8657
        %v8659 = vpop.f32.mrb[0].mxu0
        %v8660 = vadd.f32 %v8547, %v8659
        %8661 = vmatprep.mubr.bf16.mxu0 %v4577
        %8662 = vmatmul.mubr.bf16.gmra.mrb[0].mxu0 %v4576
        %v8663 = vpop.f32.mrb[0].mxu0
        %v8664 = vadd.f32 %v8551, %v8663
        %v8665 = vpop.f32.mrb[0].mxu0
        %v8666 = vadd.f32 %v8553, %v8665
        %v8667 = vpop.f32.mrb[0].mxu0
        %v8668 = vadd.f32 %v8555, %v8667
        %v8669 = vpop.f32.mrb[0].mxu0
        %v8670 = vadd.f32 %v8557, %v8669
        %8671 = vmatprep.mubr.bf16.mxu0 %v4585
        %8672 = vmatmul.mubr.bf16.gmra.mrb[0].mxu0 %v4584
        %v8673 = vpop.f32.mrb[0].mxu0
        %v8674 = vadd.f32 %v8561, %v8673
        %v8675 = vpop.f32.mrb[0].mxu0
        %v8676 = vadd.f32 %v8563, %v8675
        %v8677 = vpop.f32.mrb[0].mxu0
        %v8678 = vadd.f32 %v8565, %v8677
        %v8679 = vpop.f32.mrb[0].mxu0
        %v8680 = vadd.f32 %v8567, %v8679
        %8681 = vmatprep.mubr.bf16.mxu0 %v4593
        %8682 = vmatmul.mubr.bf16.gmra.mrb[0].mxu0 %v4592
        %v8683 = vpop.f32.mrb[0].mxu0
        %v8684 = vadd.f32 %v8571, %v8683
        %v8685 = vpop.f32.mrb[0].mxu0
        %v8686 = vadd.f32 %v8573, %v8685
        %v8687 = vpop.f32.mrb[0].mxu0
        %v8688 = vadd.f32 %v8575, %v8687
        %v8689 = vpop.f32.mrb[0].mxu0
        %v8690 = vadd.f32 %v8577, %v8689
        %8691 = vdwg.mxu0
        %8692 = vmatprep.subr.bf16.mxu0 %v6894
        %8693 = vmatpush1.bf16.msra.mxu0 %v6893
        %8694 = vmatprep.subr.bf16.mxu0 %v6901
        %8695 = vmatpush1.bf16.msra.mxu0 %v6900
        %8696 = vmatprep.subr.bf16.mxu0 %v6908
        %8697 = vmatpush1.bf16.msra.mxu0 %v6907
        %8698 = vmatprep.subr.bf16.mxu0 %v6915
        %8699 = vmatpush1.bf16.msra.mxu0 %v6914
        %8700 = vmatprep.subr.bf16.mxu0 %v6922
        %8701 = vmatpush1.bf16.msra.mxu0 %v6921
        %8702 = vmatprep.subr.bf16.mxu0 %v6929
        %8703 = vmatpush1.bf16.msra.mxu0 %v6928
        %8704 = vmatprep.subr.bf16.mxu0 %v6936
        %8705 = vmatpush1.bf16.msra.mxu0 %v6935
        %8706 = vmatprep.subr.bf16.mxu0 %v6943
        %8707 = vmatpush1.bf16.msra.mxu0 %v6942
        %8708 = vmatprep.subr.bf16.mxu0 %v6950
        %8709 = vmatpush1.bf16.msra.mxu0 %v6949
        %8710 = vmatprep.subr.bf16.mxu0 %v6957
        %8711 = vmatpush1.bf16.msra.mxu0 %v6956
        %8712 = vmatprep.subr.bf16.mxu0 %v6964
        %8713 = vmatpush1.bf16.msra.mxu0 %v6963
        %8714 = vmatprep.subr.bf16.mxu0 %v6971
        %8715 = vmatpush1.bf16.msra.mxu0 %v6970
        %8716 = vmatprep.subr.bf16.mxu0 %v6978
        %8717 = vmatpush1.bf16.msra.mxu0 %v6977
        %8718 = vmatprep.subr.bf16.mxu0 %v6985
        %8719 = vmatpush1.bf16.msra.mxu0 %v6984
        %8720 = vmatprep.subr.bf16.mxu0 %v6992
        %8721 = vmatpush1.bf16.msra.mxu0 %v6991
        %8722 = vmatprep.subr.bf16.mxu0 %v6999
        %8723 = vmatpush1.bf16.msra.mxu0 %v6998
        %8724 = vmatprep.mubr.bf16.mxu0 %v4539
        %8725 = vmatmul.mubr.bf16.gmra.mrb[0].mxu0 %v4538
        %v8726 = vpop.f32.mrb[0].mxu0
        %v8727 = vadd.f32 %v8614, %v8726
        %v8728 = vpop.f32.mrb[0].mxu0
        %v8729 = vadd.f32 %v8616, %v8728
        %v8730 = vpop.f32.mrb[0].mxu0
        %v8731 = vadd.f32 %v8618, %v8730
        %v8732 = vpop.f32.mrb[0].mxu0
        %v8733 = vadd.f32 %v8620, %v8732
        %8734 = vmatprep.mubr.bf16.mxu0 %v4547
        %8735 = vmatmul.mubr.bf16.gmra.mrb[0].mxu0 %v4546
        %v8736 = vpop.f32.mrb[0].mxu0
        %v8737 = vadd.f32 %v8624, %v8736
        %v8738 = vpop.f32.mrb[0].mxu0
        %v8739 = vadd.f32 %v8626, %v8738
        %v8740 = vpop.f32.mrb[0].mxu0
        %v8741 = vadd.f32 %v8628, %v8740
        %v8742 = vpop.f32.mrb[0].mxu0
        %v8743 = vadd.f32 %v8630, %v8742
        %8744 = vmatprep.mubr.bf16.mxu0 %v4555
        %8745 = vmatmul.mubr.bf16.gmra.mrb[0].mxu0 %v4554
        %v8746 = vpop.f32.mrb[0].mxu0
        %v8747 = vadd.f32 %v8634, %v8746
        %v8748 = vpop.f32.mrb[0].mxu0
        %v8749 = vadd.f32 %v8636, %v8748
        %v8750 = vpop.f32.mrb[0].mxu0
        %v8751 = vadd.f32 %v8638, %v8750
        %v8752 = vpop.f32.mrb[0].mxu0
        %v8753 = vadd.f32 %v8640, %v8752
        %8754 = vmatprep.mubr.bf16.mxu0 %v4563
        %8755 = vmatmul.mubr.bf16.gmra.mrb[0].mxu0 %v4562
        %v8756 = vpop.f32.mrb[0].mxu0
        %v8757 = vadd.f32 %v8644, %v8756
        %v8758 = vpop.f32.mrb[0].mxu0
        %v8759 = vadd.f32 %v8646, %v8758
        %v8760 = vpop.f32.mrb[0].mxu0
        %v8761 = vadd.f32 %v8648, %v8760
        %v8762 = vpop.f32.mrb[0].mxu0
        %v8763 = vadd.f32 %v8650, %v8762
        %8764 = vmatprep.mubr.bf16.mxu0 %v4571
        %8765 = vmatmul.mubr.bf16.gmra.mrb[0].mxu0 %v4570
        %v8766 = vpop.f32.mrb[0].mxu0
        %v8767 = vadd.f32 %v8654, %v8766
        %v8768 = vpop.f32.mrb[0].mxu0
        %v8769 = vadd.f32 %v8656, %v8768
        %v8770 = vpop.f32.mrb[0].mxu0
        %v8771 = vadd.f32 %v8658, %v8770
        %v8772 = vpop.f32.mrb[0].mxu0
        %v8773 = vadd.f32 %v8660, %v8772
        %8774 = vmatprep.mubr.bf16.mxu0 %v4579
        %8775 = vmatmul.mubr.bf16.gmra.mrb[0].mxu0 %v4578
        %v8776 = vpop.f32.mrb[0].mxu0
        %v8777 = vadd.f32 %v8664, %v8776
        %v8778 = vpop.f32.mrb[0].mxu0
        %v8779 = vadd.f32 %v8666, %v8778
        %v8780 = vpop.f32.mrb[0].mxu0
        %v8781 = vadd.f32 %v8668, %v8780
        %v8782 = vpop.f32.mrb[0].mxu0
        %v8783 = vadd.f32 %v8670, %v8782
        %8784 = vmatprep.mubr.bf16.mxu0 %v4587
        %8785 = vmatmul.mubr.bf16.gmra.mrb[0].mxu0 %v4586
        %v8786 = vpop.f32.mrb[0].mxu0
        %v8787 = vadd.f32 %v8674, %v8786
        %v8788 = vpop.f32.mrb[0].mxu0
        %v8789 = vadd.f32 %v8676, %v8788
        %v8790 = vpop.f32.mrb[0].mxu0
        %v8791 = vadd.f32 %v8678, %v8790
        %v8792 = vpop.f32.mrb[0].mxu0
        %v8793 = vadd.f32 %v8680, %v8792
        %8794 = vmatprep.mubr.bf16.mxu0 %v4595
        %8795 = vmatmul.mubr.bf16.gmra.mrb[0].mxu0 %v4594
        %v8796 = vpop.f32.mrb[0].mxu0
        %v8797 = vadd.f32 %v8684, %v8796
        %v8798 = vpop.f32.mrb[0].mxu0
        %v8799 = vadd.f32 %v8686, %v8798
        %v8800 = vpop.f32.mrb[0].mxu0
        %v8801 = vadd.f32 %v8688, %v8800
        %v8802 = vpop.f32.mrb[0].mxu0
        %v8803 = vadd.f32 %v8690, %v8802
        %8804 = vdwg.mxu0
        %8805 = vmatprep.subr.bf16.mxu0 0
        %8806 = vmatpush1.bf16.msra.mxu0 %v6559
        %8807 = vmatprep.subr.bf16.mxu0 0
        %8808 = vmatpush1.bf16.msra.mxu0 %v6566
        %8809 = vmatprep.subr.bf16.mxu0 0
        %8810 = vmatpush1.bf16.msra.mxu0 %v6573
        %8811 = vmatprep.subr.bf16.mxu0 0
        %8812 = vmatpush1.bf16.msra.mxu0 %v6580
        %8813 = vmatprep.subr.bf16.mxu0 0
        %8814 = vmatpush1.bf16.msra.mxu0 %v6587
        %8815 = vmatprep.subr.bf16.mxu0 0
        %8816 = vmatpush1.bf16.msra.mxu0 %v6594
        %8817 = vmatprep.subr.bf16.mxu0 0
        %8818 = vmatpush1.bf16.msra.mxu0 %v6601
        %8819 = vmatprep.subr.bf16.mxu0 0
        %8820 = vmatpush1.bf16.msra.mxu0 %v6608
        %8821 = vmatprep.subr.bf16.mxu0 0
        %8822 = vmatpush1.bf16.msra.mxu0 %v6615
        %8823 = vmatprep.subr.bf16.mxu0 0
        %8824 = vmatpush1.bf16.msra.mxu0 %v6622
        %8825 = vmatprep.subr.bf16.mxu0 0
        %8826 = vmatpush1.bf16.msra.mxu0 %v6629
        %8827 = vmatprep.subr.bf16.mxu0 0
        %8828 = vmatpush1.bf16.msra.mxu0 %v6636
        %8829 = vmatprep.subr.bf16.mxu0 0
        %8830 = vmatpush1.bf16.msra.mxu0 %v6643
        %8831 = vmatprep.subr.bf16.mxu0 0
        %8832 = vmatpush1.bf16.msra.mxu0 %v6650
        %8833 = vmatprep.subr.bf16.mxu0 0
        %8834 = vmatpush1.bf16.msra.mxu0 %v6657
        %8835 = vmatprep.subr.bf16.mxu0 0
        %8836 = vmatpush1.bf16.msra.mxu0 %v6664
        %8837 = vmatprep.mubr.bf16.mxu0 %v4533
        %8838 = vmatmul.mubr.bf16.gmra.mrb[0].mxu0 %v4532
        %v8839 = vpop.f32.mrb[0].mxu0
        %v8840 = vadd.f32 %v5137, %v8839
        %v8841 = vpop.f32.mrb[0].mxu0
        %v8842 = vpop.f32.mrb[0].mxu0
        %v8843 = vadd.f32 %v5137, %v8842
        %v8844 = vpop.f32.mrb[0].mxu0
        %8845 = vmatprep.mubr.bf16.mxu0 %v4541
        %8846 = vmatmul.mubr.bf16.gmra.mrb[0].mxu0 %v4540
        %v8847 = vpop.f32.mrb[0].mxu0
        %v8848 = vadd.f32 %v5137, %v8847
        %v8849 = vpop.f32.mrb[0].mxu0
        %v8850 = vpop.f32.mrb[0].mxu0
        %v8851 = vadd.f32 %v5137, %v8850
        %v8852 = vpop.f32.mrb[0].mxu0
        %8853 = vmatprep.mubr.bf16.mxu0 %v4549
        %8854 = vmatmul.mubr.bf16.gmra.mrb[0].mxu0 %v4548
        %v8855 = vpop.f32.mrb[0].mxu0
        %v8856 = vadd.f32 %v5137, %v8855
        %v8857 = vpop.f32.mrb[0].mxu0
        %v8858 = vpop.f32.mrb[0].mxu0
        %v8859 = vadd.f32 %v5137, %v8858
        %v8860 = vpop.f32.mrb[0].mxu0
        %8861 = vmatprep.mubr.bf16.mxu0 %v4557
        %8862 = vmatmul.mubr.bf16.gmra.mrb[0].mxu0 %v4556
        %v8863 = vpop.f32.mrb[0].mxu0
        %v8864 = vadd.f32 %v5137, %v8863
        %v8865 = vpop.f32.mrb[0].mxu0
        %v8866 = vpop.f32.mrb[0].mxu0
        %v8867 = vadd.f32 %v5137, %v8866
        %v8868 = vpop.f32.mrb[0].mxu0
        %8869 = vmatprep.mubr.bf16.mxu0 %v4565
        %8870 = vmatmul.mubr.bf16.gmra.mrb[0].mxu0 %v4564
        %v8871 = vpop.f32.mrb[0].mxu0
        %v8872 = vadd.f32 %v5137, %v8871
        %v8873 = vpop.f32.mrb[0].mxu0
        %v8874 = vpop.f32.mrb[0].mxu0
        %v8875 = vadd.f32 %v5137, %v8874
        %v8876 = vpop.f32.mrb[0].mxu0
        %8877 = vmatprep.mubr.bf16.mxu0 %v4573
        %8878 = vmatmul.mubr.bf16.gmra.mrb[0].mxu0 %v4572
        %v8879 = vpop.f32.mrb[0].mxu0
        %v8880 = vadd.f32 %v5137, %v8879
        %v8881 = vpop.f32.mrb[0].mxu0
        %v8882 = vpop.f32.mrb[0].mxu0
        %v8883 = vadd.f32 %v5137, %v8882
        %v8884 = vpop.f32.mrb[0].mxu0
        %8885 = vmatprep.mubr.bf16.mxu0 %v4581
        %8886 = vmatmul.mubr.bf16.gmra.mrb[0].mxu0 %v4580
        %v8887 = vpop.f32.mrb[0].mxu0
        %v8888 = vadd.f32 %v5137, %v8887
        %v8889 = vpop.f32.mrb[0].mxu0
        %v8890 = vpop.f32.mrb[0].mxu0
        %v8891 = vadd.f32 %v5137, %v8890
        %v8892 = vpop.f32.mrb[0].mxu0
        %8893 = vmatprep.mubr.bf16.mxu0 %v4589
        %8894 = vmatmul.mubr.bf16.gmra.mrb[0].mxu0 %v4588
        %v8895 = vpop.f32.mrb[0].mxu0
        %v8896 = vadd.f32 %v5137, %v8895
        %v8897 = vpop.f32.mrb[0].mxu0
        %v8898 = vpop.f32.mrb[0].mxu0
        %v8899 = vadd.f32 %v5137, %v8898
        %v8900 = vpop.f32.mrb[0].mxu0
        %8901 = vdwg.mxu0
        %8902 = vmatprep.subr.bf16.mxu0 0
        %8903 = vmatpush1.bf16.msra.mxu0 %v6671
        %8904 = vmatprep.subr.bf16.mxu0 0
        %8905 = vmatpush1.bf16.msra.mxu0 %v6678
        %8906 = vmatprep.subr.bf16.mxu0 0
        %8907 = vmatpush1.bf16.msra.mxu0 %v6685
        %8908 = vmatprep.subr.bf16.mxu0 0
        %8909 = vmatpush1.bf16.msra.mxu0 %v6692
        %8910 = vmatprep.subr.bf16.mxu0 0
        %8911 = vmatpush1.bf16.msra.mxu0 %v6699
        %8912 = vmatprep.subr.bf16.mxu0 0
        %8913 = vmatpush1.bf16.msra.mxu0 %v6706
        %8914 = vmatprep.subr.bf16.mxu0 0
        %8915 = vmatpush1.bf16.msra.mxu0 %v6713
        %8916 = vmatprep.subr.bf16.mxu0 0
        %8917 = vmatpush1.bf16.msra.mxu0 %v6720
        %8918 = vmatprep.subr.bf16.mxu0 0
        %8919 = vmatpush1.bf16.msra.mxu0 %v6727
        %8920 = vmatprep.subr.bf16.mxu0 0
        %8921 = vmatpush1.bf16.msra.mxu0 %v6734
        %8922 = vmatprep.subr.bf16.mxu0 0
        %8923 = vmatpush1.bf16.msra.mxu0 %v6741
        %8924 = vmatprep.subr.bf16.mxu0 0
        %8925 = vmatpush1.bf16.msra.mxu0 %v6748
        %8926 = vmatprep.subr.bf16.mxu0 0
        %8927 = vmatpush1.bf16.msra.mxu0 %v6755
        %8928 = vmatprep.subr.bf16.mxu0 0
        %8929 = vmatpush1.bf16.msra.mxu0 %v6762
        %8930 = vmatprep.subr.bf16.mxu0 0
        %8931 = vmatpush1.bf16.msra.mxu0 %v6769
        %8932 = vmatprep.subr.bf16.mxu0 0
        %8933 = vmatpush1.bf16.msra.mxu0 %v6776
        %8934 = vmatprep.mubr.bf16.mxu0 %v4535
        %8935 = vmatmul.mubr.bf16.gmra.mrb[0].mxu0 %v4534
        %v8936 = vpop.f32.mrb[0].mxu0
        %v8937 = vadd.f32 %v8840, %v8936
        %v8938 = vpop.f32.mrb[0].mxu0
        %v8939 = vpop.f32.mrb[0].mxu0
        %v8940 = vadd.f32 %v8843, %v8939
        %v8941 = vpop.f32.mrb[0].mxu0
        %8942 = vmatprep.mubr.bf16.mxu0 %v4543
        %8943 = vmatmul.mubr.bf16.gmra.mrb[0].mxu0 %v4542
        %v8944 = vpop.f32.mrb[0].mxu0
        %v8945 = vadd.f32 %v8848, %v8944
        %v8946 = vpop.f32.mrb[0].mxu0
        %v8947 = vpop.f32.mrb[0].mxu0
        %v8948 = vadd.f32 %v8851, %v8947
        %v8949 = vpop.f32.mrb[0].mxu0
        %8950 = vmatprep.mubr.bf16.mxu0 %v4551
        %8951 = vmatmul.mubr.bf16.gmra.mrb[0].mxu0 %v4550
        %v8952 = vpop.f32.mrb[0].mxu0
        %v8953 = vadd.f32 %v8856, %v8952
        %v8954 = vpop.f32.mrb[0].mxu0
        %v8955 = vpop.f32.mrb[0].mxu0
        %v8956 = vadd.f32 %v8859, %v8955
        %v8957 = vpop.f32.mrb[0].mxu0
        %8958 = vmatprep.mubr.bf16.mxu0 %v4559
        %8959 = vmatmul.mubr.bf16.gmra.mrb[0].mxu0 %v4558
        %v8960 = vpop.f32.mrb[0].mxu0
        %v8961 = vadd.f32 %v8864, %v8960
        %v8962 = vpop.f32.mrb[0].mxu0
        %v8963 = vpop.f32.mrb[0].mxu0
        %v8964 = vadd.f32 %v8867, %v8963
        %v8965 = vpop.f32.mrb[0].mxu0
        %8966 = vmatprep.mubr.bf16.mxu0 %v4567
        %8967 = vmatmul.mubr.bf16.gmra.mrb[0].mxu0 %v4566
        %v8968 = vpop.f32.mrb[0].mxu0
        %v8969 = vadd.f32 %v8872, %v8968
        %v8970 = vpop.f32.mrb[0].mxu0
        %v8971 = vpop.f32.mrb[0].mxu0
        %v8972 = vadd.f32 %v8875, %v8971
        %v8973 = vpop.f32.mrb[0].mxu0
        %8974 = vmatprep.mubr.bf16.mxu0 %v4575
        %8975 = vmatmul.mubr.bf16.gmra.mrb[0].mxu0 %v4574
        %v8976 = vpop.f32.mrb[0].mxu0
        %v8977 = vadd.f32 %v8880, %v8976
        %v8978 = vpop.f32.mrb[0].mxu0
        %v8979 = vpop.f32.mrb[0].mxu0
        %v8980 = vadd.f32 %v8883, %v8979
        %v8981 = vpop.f32.mrb[0].mxu0
        %8982 = vmatprep.mubr.bf16.mxu0 %v4583
        %8983 = vmatmul.mubr.bf16.gmra.mrb[0].mxu0 %v4582
        %v8984 = vpop.f32.mrb[0].mxu0
        %v8985 = vadd.f32 %v8888, %v8984
        %v8986 = vpop.f32.mrb[0].mxu0
        %v8987 = vpop.f32.mrb[0].mxu0
        %v8988 = vadd.f32 %v8891, %v8987
        %v8989 = vpop.f32.mrb[0].mxu0
        %8990 = vmatprep.mubr.bf16.mxu0 %v4591
        %8991 = vmatmul.mubr.bf16.gmra.mrb[0].mxu0 %v4590
        %v8992 = vpop.f32.mrb[0].mxu0
        %v8993 = vadd.f32 %v8896, %v8992
        %v8994 = vpop.f32.mrb[0].mxu0
        %v8995 = vpop.f32.mrb[0].mxu0
        %v8996 = vadd.f32 %v8899, %v8995
        %v8997 = vpop.f32.mrb[0].mxu0
        %8998 = vdwg.mxu0
        %8999 = vmatprep.subr.bf16.mxu0 0
        %9000 = vmatpush1.bf16.msra.mxu0 %v6783
        %9001 = vmatprep.subr.bf16.mxu0 0
        %9002 = vmatpush1.bf16.msra.mxu0 %v6790
        %9003 = vmatprep.subr.bf16.mxu0 0
        %9004 = vmatpush1.bf16.msra.mxu0 %v6797
        %9005 = vmatprep.subr.bf16.mxu0 0
        %9006 = vmatpush1.bf16.msra.mxu0 %v6804
        %9007 = vmatprep.subr.bf16.mxu0 0
        %9008 = vmatpush1.bf16.msra.mxu0 %v6811
        %9009 = vmatprep.subr.bf16.mxu0 0
        %9010 = vmatpush1.bf16.msra.mxu0 %v6818
        %9011 = vmatprep.subr.bf16.mxu0 0
        %9012 = vmatpush1.bf16.msra.mxu0 %v6825
        %9013 = vmatprep.subr.bf16.mxu0 0
        %9014 = vmatpush1.bf16.msra.mxu0 %v6832
        %9015 = vmatprep.subr.bf16.mxu0 0
        %9016 = vmatpush1.bf16.msra.mxu0 %v6839
        %9017 = vmatprep.subr.bf16.mxu0 0
        %9018 = vmatpush1.bf16.msra.mxu0 %v6846
        %9019 = vmatprep.subr.bf16.mxu0 0
        %9020 = vmatpush1.bf16.msra.mxu0 %v6853
        %9021 = vmatprep.subr.bf16.mxu0 0
        %9022 = vmatpush1.bf16.msra.mxu0 %v6860
        %9023 = vmatprep.subr.bf16.mxu0 0
        %9024 = vmatpush1.bf16.msra.mxu0 %v6867
        %9025 = vmatprep.subr.bf16.mxu0 0
        %9026 = vmatpush1.bf16.msra.mxu0 %v6874
        %9027 = vmatprep.subr.bf16.mxu0 0
        %9028 = vmatpush1.bf16.msra.mxu0 %v6881
        %9029 = vmatprep.subr.bf16.mxu0 0
        %9030 = vmatpush1.bf16.msra.mxu0 %v6888
        %9031 = vmatprep.mubr.bf16.mxu0 %v4537
        %9032 = vmatmul.mubr.bf16.gmra.mrb[0].mxu0 %v4536
        %v9033 = vpop.f32.mrb[0].mxu0
        %v9034 = vadd.f32 %v8937, %v9033
        %v9035 = vpop.f32.mrb[0].mxu0
        %v9036 = vpop.f32.mrb[0].mxu0
        %v9037 = vadd.f32 %v8940, %v9036
        %v9038 = vpop.f32.mrb[0].mxu0
        %9039 = vmatprep.mubr.bf16.mxu0 %v4545
        %9040 = vmatmul.mubr.bf16.gmra.mrb[0].mxu0 %v4544
        %v9041 = vpop.f32.mrb[0].mxu0
        %v9042 = vadd.f32 %v8945, %v9041
        %v9043 = vpop.f32.mrb[0].mxu0
        %v9044 = vpop.f32.mrb[0].mxu0
        %v9045 = vadd.f32 %v8948, %v9044
        %v9046 = vpop.f32.mrb[0].mxu0
        %9047 = vmatprep.mubr.bf16.mxu0 %v4553
        %9048 = vmatmul.mubr.bf16.gmra.mrb[0].mxu0 %v4552
        %v9049 = vpop.f32.mrb[0].mxu0
        %v9050 = vadd.f32 %v8953, %v9049
        %v9051 = vpop.f32.mrb[0].mxu0
        %v9052 = vpop.f32.mrb[0].mxu0
        %v9053 = vadd.f32 %v8956, %v9052
        %v9054 = vpop.f32.mrb[0].mxu0
        %9055 = vmatprep.mubr.bf16.mxu0 %v4561
        %9056 = vmatmul.mubr.bf16.gmra.mrb[0].mxu0 %v4560
        %v9057 = vpop.f32.mrb[0].mxu0
        %v9058 = vadd.f32 %v8961, %v9057
        %v9059 = vpop.f32.mrb[0].mxu0
        %v9060 = vpop.f32.mrb[0].mxu0
        %v9061 = vadd.f32 %v8964, %v9060
        %v9062 = vpop.f32.mrb[0].mxu0
        %9063 = vmatprep.mubr.bf16.mxu0 %v4569
        %9064 = vmatmul.mubr.bf16.gmra.mrb[0].mxu0 %v4568
        %v9065 = vpop.f32.mrb[0].mxu0
        %v9066 = vadd.f32 %v8969, %v9065
        %v9067 = vpop.f32.mrb[0].mxu0
        %v9068 = vpop.f32.mrb[0].mxu0
        %v9069 = vadd.f32 %v8972, %v9068
        %v9070 = vpop.f32.mrb[0].mxu0
        %9071 = vmatprep.mubr.bf16.mxu0 %v4577
        %9072 = vmatmul.mubr.bf16.gmra.mrb[0].mxu0 %v4576
        %v9073 = vpop.f32.mrb[0].mxu0
        %v9074 = vadd.f32 %v8977, %v9073
        %v9075 = vpop.f32.mrb[0].mxu0
        %v9076 = vpop.f32.mrb[0].mxu0
        %v9077 = vadd.f32 %v8980, %v9076
        %v9078 = vpop.f32.mrb[0].mxu0
        %9079 = vmatprep.mubr.bf16.mxu0 %v4585
        %9080 = vmatmul.mubr.bf16.gmra.mrb[0].mxu0 %v4584
        %v9081 = vpop.f32.mrb[0].mxu0
        %v9082 = vadd.f32 %v8985, %v9081
        %v9083 = vpop.f32.mrb[0].mxu0
        %v9084 = vpop.f32.mrb[0].mxu0
        %v9085 = vadd.f32 %v8988, %v9084
        %v9086 = vpop.f32.mrb[0].mxu0
        %9087 = vmatprep.mubr.bf16.mxu0 %v4593
        %9088 = vmatmul.mubr.bf16.gmra.mrb[0].mxu0 %v4592
        %v9089 = vpop.f32.mrb[0].mxu0
        %v9090 = vadd.f32 %v8993, %v9089
        %v9091 = vpop.f32.mrb[0].mxu0
        %v9092 = vpop.f32.mrb[0].mxu0
        %v9093 = vadd.f32 %v8996, %v9092
        %v9094 = vpop.f32.mrb[0].mxu0
        %9095 = vdwg.mxu0
        %9096 = vmatprep.subr.bf16.mxu0 0
        %9097 = vmatpush1.bf16.msra.mxu0 %v6895
        %9098 = vmatprep.subr.bf16.mxu0 0
        %9099 = vmatpush1.bf16.msra.mxu0 %v6902
        %9100 = vmatprep.subr.bf16.mxu0 0
        %9101 = vmatpush1.bf16.msra.mxu0 %v6909
        %9102 = vmatprep.subr.bf16.mxu0 0
        %9103 = vmatpush1.bf16.msra.mxu0 %v6916
        %9104 = vmatprep.subr.bf16.mxu0 0
        %9105 = vmatpush1.bf16.msra.mxu0 %v6923
        %9106 = vmatprep.subr.bf16.mxu0 0
        %9107 = vmatpush1.bf16.msra.mxu0 %v6930
        %9108 = vmatprep.subr.bf16.mxu0 0
        %9109 = vmatpush1.bf16.msra.mxu0 %v6937
        %9110 = vmatprep.subr.bf16.mxu0 0
        %9111 = vmatpush1.bf16.msra.mxu0 %v6944
        %9112 = vmatprep.subr.bf16.mxu0 0
        %9113 = vmatpush1.bf16.msra.mxu0 %v6951
        %9114 = vmatprep.subr.bf16.mxu0 0
        %9115 = vmatpush1.bf16.msra.mxu0 %v6958
        %9116 = vmatprep.subr.bf16.mxu0 0
        %9117 = vmatpush1.bf16.msra.mxu0 %v6965
        %9118 = vmatprep.subr.bf16.mxu0 0
        %9119 = vmatpush1.bf16.msra.mxu0 %v6972
        %9120 = vmatprep.subr.bf16.mxu0 0
        %9121 = vmatpush1.bf16.msra.mxu0 %v6979
        %9122 = vmatprep.subr.bf16.mxu0 0
        %9123 = vmatpush1.bf16.msra.mxu0 %v6986
        %9124 = vmatprep.subr.bf16.mxu0 0
        %9125 = vmatpush1.bf16.msra.mxu0 %v6993
        %9126 = vmatprep.subr.bf16.mxu0 0
        %9127 = vmatpush1.bf16.msra.mxu0 %v7000
        %9128 = vmatprep.mubr.bf16.mxu0 %v4539
        %9129 = vmatmul.mubr.bf16.gmra.mrb[0].mxu0 %v4538
        %v9130 = vpop.f32.mrb[0].mxu0
        %v9131 = vadd.f32 %v9034, %v9130
        %v9132 = vpop.f32.mrb[0].mxu0
        %v9133 = vpop.f32.mrb[0].mxu0
        %v9134 = vadd.f32 %v9037, %v9133
        %v9135 = vpop.f32.mrb[0].mxu0
        %9136 = vmatprep.mubr.bf16.mxu0 %v4547
        %9137 = vmatmul.mubr.bf16.gmra.mrb[0].mxu0 %v4546
        %v9138 = vpop.f32.mrb[0].mxu0
        %v9139 = vadd.f32 %v9042, %v9138
        %v9140 = vpop.f32.mrb[0].mxu0
        %v9141 = vpop.f32.mrb[0].mxu0
        %v9142 = vadd.f32 %v9045, %v9141
        %v9143 = vpop.f32.mrb[0].mxu0
        %9144 = vmatprep.mubr.bf16.mxu0 %v4555
        %9145 = vmatmul.mubr.bf16.gmra.mrb[0].mxu0 %v4554
        %v9146 = vpop.f32.mrb[0].mxu0
        %v9147 = vadd.f32 %v9050, %v9146
        %v9148 = vpop.f32.mrb[0].mxu0
        %v9149 = vpop.f32.mrb[0].mxu0
        %v9150 = vadd.f32 %v9053, %v9149
        %v9151 = vpop.f32.mrb[0].mxu0
        %9152 = vmatprep.mubr.bf16.mxu0 %v4563
        %9153 = vmatmul.mubr.bf16.gmra.mrb[0].mxu0 %v4562
        %v9154 = vpop.f32.mrb[0].mxu0
        %v9155 = vadd.f32 %v9058, %v9154
        %v9156 = vpop.f32.mrb[0].mxu0
        %v9157 = vpop.f32.mrb[0].mxu0
        %v9158 = vadd.f32 %v9061, %v9157
        %v9159 = vpop.f32.mrb[0].mxu0
        %9160 = vmatprep.mubr.bf16.mxu0 %v4571
        %9161 = vmatmul.mubr.bf16.gmra.mrb[0].mxu0 %v4570
        %v9162 = vpop.f32.mrb[0].mxu0
        %v9163 = vadd.f32 %v9066, %v9162
        %v9164 = vpop.f32.mrb[0].mxu0
        %v9165 = vpop.f32.mrb[0].mxu0
        %v9166 = vadd.f32 %v9069, %v9165
        %v9167 = vpop.f32.mrb[0].mxu0
        %9168 = vmatprep.mubr.bf16.mxu0 %v4579
        %9169 = vmatmul.mubr.bf16.gmra.mrb[0].mxu0 %v4578
        %v9170 = vpop.f32.mrb[0].mxu0
        %v9171 = vadd.f32 %v9074, %v9170
        %v9172 = vpop.f32.mrb[0].mxu0
        %v9173 = vpop.f32.mrb[0].mxu0
        %v9174 = vadd.f32 %v9077, %v9173
        %v9175 = vpop.f32.mrb[0].mxu0
        %9176 = vmatprep.mubr.bf16.mxu0 %v4587
        %9177 = vmatmul.mubr.bf16.gmra.mrb[0].mxu0 %v4586
        %v9178 = vpop.f32.mrb[0].mxu0
        %v9179 = vadd.f32 %v9082, %v9178
        %v9180 = vpop.f32.mrb[0].mxu0
        %v9181 = vpop.f32.mrb[0].mxu0
        %v9182 = vadd.f32 %v9085, %v9181
        %v9183 = vpop.f32.mrb[0].mxu0
        %9184 = vmatprep.mubr.bf16.mxu0 %v4595
        %9185 = vmatmul.mubr.bf16.gmra.mrb[0].mxu0 %v4594
        %v9186 = vpop.f32.mrb[0].mxu0
        %v9187 = vadd.f32 %v9090, %v9186
        %v9188 = vpop.f32.mrb[0].mxu0
        %v9189 = vpop.f32.mrb[0].mxu0
        %v9190 = vadd.f32 %v9093, %v9189
        %v9191 = vpop.f32.mrb[0].mxu0
        %9192 = vdwg.mxu0
        %v9193 = vtanh.pop %v7823
        %v9194 = vtanh.pop %v7825
        %v9195 = vtanh.pop %v8275
        %v9196 = vtanh.pop %v8277
        %v9197 = vtanh.pop %v8727
        %v9198 = vtanh.pop %v8729
        %v9199 = vtanh.pop %v9131
        %v9200 = vtanh.pop %v7827
        %v9201 = vtanh.pop %v7829
        %v9202 = vtanh.pop %v8279
        %v9203 = vtanh.pop %v8281
        %v9204 = vtanh.pop %v8731
        %v9205 = vtanh.pop %v8733
        %v9206 = vtanh.pop %v9134
        %v9207 = vtanh.pop %v7833
        %v9208 = vtanh.pop %v7835
        %v9209 = vtanh.pop %v8285
        %v9210 = vtanh.pop %v8287
        %v9211 = vtanh.pop %v8737
        %v9212 = vtanh.pop %v8739
        %v9213 = vtanh.pop %v9139
        %v9214 = vtanh.pop %v7837
        %v9215 = vtanh.pop %v7839
        %v9216 = vtanh.pop %v8289
        %v9217 = vtanh.pop %v8291
        %v9218 = vtanh.pop %v8741
        %v9219 = vtanh.pop %v8743
        %v9220 = vtanh.pop %v9142
        %v9221 = vtanh.pop %v7843
        %v9222 = vtanh.pop %v7845
        %v9223 = vtanh.pop %v8295
        %v9224 = vtanh.pop %v8297
        %v9225 = vtanh.pop %v8747
        %v9226 = vtanh.pop %v8749
        %v9227 = vtanh.pop %v9147
        %v9228 = vtanh.pop %v7847
        %v9229 = vtanh.pop %v7849
        %v9230 = vtanh.pop %v8299
        %v9231 = vtanh.pop %v8301
        %v9232 = vtanh.pop %v8751
        %v9233 = vtanh.pop %v8753
        %v9234 = vtanh.pop %v9150
        %v9235 = vtanh.pop %v7853
        %v9236 = vtanh.pop %v7855
        %v9237 = vtanh.pop %v8305
        %v9238 = vtanh.pop %v8307
        %v9239 = vtanh.pop %v8757
        %v9240 = vtanh.pop %v8759
        %v9241 = vtanh.pop %v9155
        %v9242 = vtanh.pop %v7857
        %v9243 = vtanh.pop %v7859
        %v9244 = vtanh.pop %v8309
        %v9245 = vtanh.pop %v8311
        %v9246 = vtanh.pop %v8761
        %v9247 = vtanh.pop %v8763
        %v9248 = vtanh.pop %v9158
        %v9249 = vtanh.pop %v7863
        %v9250 = vtanh.pop %v7865
        %v9251 = vtanh.pop %v8315
        %v9252 = vtanh.pop %v8317
        %v9253 = vtanh.pop %v8767
        %v9254 = vtanh.pop %v8769
        %v9255 = vtanh.pop %v9163
        %v9256 = vtanh.pop %v7867
        %v9257 = vtanh.pop %v7869
        %v9258 = vtanh.pop %v8319
        %v9259 = vtanh.pop %v8321
        %v9260 = vtanh.pop %v8771
        %v9261 = vtanh.pop %v8773
        %v9262 = vtanh.pop %v9166
        %v9263 = vtanh.pop %v7873
        %v9264 = vtanh.pop %v7875
        %v9265 = vtanh.pop %v8325
        %v9266 = vtanh.pop %v8327
        %v9267 = vtanh.pop %v8777
        %v9268 = vtanh.pop %v8779
        %v9269 = vtanh.pop %v9171
        %v9270 = vtanh.pop %v7877
        %v9271 = vtanh.pop %v7879
        %v9272 = vtanh.pop %v8329
        %v9273 = vtanh.pop %v8331
        %v9274 = vtanh.pop %v8781
        %v9275 = vtanh.pop %v8783
        %v9276 = vtanh.pop %v9174
        %v9277 = vtanh.pop %v7883
        %v9278 = vtanh.pop %v7885
        %v9279 = vtanh.pop %v8335
        %v9280 = vtanh.pop %v8337
        %v9281 = vtanh.pop %v8787
        %v9282 = vtanh.pop %v8789
        %v9283 = vtanh.pop %v9179
        %v9284 = vtanh.pop %v7887
        %v9285 = vtanh.pop %v7889
        %v9286 = vtanh.pop %v8339
        %v9287 = vtanh.pop %v8341
        %v9288 = vtanh.pop %v8791
        %v9289 = vtanh.pop %v8793
        %v9290 = vtanh.pop %v9182
        %v9291 = vtanh.pop %v7893
        %v9292 = vtanh.pop %v7895
        %v9293 = vtanh.pop %v8345
        %v9294 = vtanh.pop %v8347
        %v9295 = vtanh.pop %v8797
        %v9296 = vtanh.pop %v8799
        %v9297 = vtanh.pop %v9187
        %v9298 = vtanh.pop %v7897
        %v9299 = vtanh.pop %v7899
        %v9300 = vtanh.pop %v8349
        %v9301 = vtanh.pop %v8351
        %v9302 = vtanh.pop %v8801
        %v9303 = vtanh.pop %v8803
        %v9304 = vtanh.pop %v9190
        %9305 = vst [vmem:[%s435] sm:$0xff] %v9193
        %9306 = vst [vmem:[%s435 + $0x8] sm:$0xff] %v9194
        %9307 = vst [vmem:[%s435 + $0x10] sm:$0xff] %v9195
        %9308 = vst [vmem:[%s435 + $0x18] sm:$0xff] %v9196
        %9309 = vst [vmem:[%s435 + $0x20] sm:$0xff] %v9197
        %9310 = vst [vmem:[%s435 + $0x28] sm:$0xff] %v9198
        %9311 = vst [vmem:[%s435 + $0x30] sm:$0xff] %v9199
        %9312 = vst [vmem:[%s435 + $0x38] sm:$0xff] %v9200
        %9313 = vst [vmem:[%s435 + $0x40] sm:$0xff] %v9201
        %9314 = vst [vmem:[%s435 + $0x48] sm:$0xff] %v9202
        %9315 = vst [vmem:[%s435 + $0x50] sm:$0xff] %v9203
        %9316 = vst [vmem:[%s435 + $0x58] sm:$0xff] %v9204
        %9317 = vst [vmem:[%s435 + $0x60] sm:$0xff] %v9205
        %9318 = vst [vmem:[%s435 + $0x68] sm:$0xff] %v9206
        %9319 = vst [vmem:[%s435 + $0x70] sm:$0xff] %v9207
        %9320 = vst [vmem:[%s435 + $0x78] sm:$0xff] %v9208
        %9321 = vst [vmem:[%s435 + $0x80] sm:$0xff] %v9209
        %9322 = vst [vmem:[%s435 + $0x88] sm:$0xff] %v9210
        %9323 = vst [vmem:[%s435 + $0x90] sm:$0xff] %v9211
        %9324 = vst [vmem:[%s435 + $0x98] sm:$0xff] %v9212
        %9325 = vst [vmem:[%s435 + $0xa0] sm:$0xff] %v9213
        %9326 = vst [vmem:[%s435 + $0xa8] sm:$0xff] %v9214
        %9327 = vst [vmem:[%s435 + $0xb0] sm:$0xff] %v9215
        %9328 = vst [vmem:[%s435 + $0xb8] sm:$0xff] %v9216
        %9329 = vst [vmem:[%s435 + $0xc0] sm:$0xff] %v9217
        %9330 = vst [vmem:[%s435 + $0xc8] sm:$0xff] %v9218
        %9331 = vst [vmem:[%s435 + $0xd0] sm:$0xff] %v9219
        %9332 = vst [vmem:[%s435 + $0xd8] sm:$0xff] %v9220
        %9333 = vst [vmem:[%s435 + $0xe0] sm:$0xff] %v9221
        %9334 = vst [vmem:[%s435 + $0xe8] sm:$0xff] %v9222
        %9335 = vst [vmem:[%s435 + $0xf0] sm:$0xff] %v9223
        %9336 = vst [vmem:[%s435 + $0xf8] sm:$0xff] %v9224
        %9337 = vst [vmem:[%s435 + $0x100] sm:$0xff] %v9225
        %9338 = vst [vmem:[%s435 + $0x108] sm:$0xff] %v9226
        %9339 = vst [vmem:[%s435 + $0x110] sm:$0xff] %v9227
        %9340 = vst [vmem:[%s435 + $0x118] sm:$0xff] %v9228
        %9341 = vst [vmem:[%s435 + $0x120] sm:$0xff] %v9229
        %9342 = vst [vmem:[%s435 + $0x128] sm:$0xff] %v9230
        %9343 = vst [vmem:[%s435 + $0x130] sm:$0xff] %v9231
        %9344 = vst [vmem:[%s435 + $0x138] sm:$0xff] %v9232
        %9345 = vst [vmem:[%s435 + $0x140] sm:$0xff] %v9233
        %9346 = vst [vmem:[%s435 + $0x148] sm:$0xff] %v9234
        %9347 = vst [vmem:[%s435 + $0x150] sm:$0xff] %v9235
        %9348 = vst [vmem:[%s435 + $0x158] sm:$0xff] %v9236
        %9349 = vst [vmem:[%s435 + $0x160] sm:$0xff] %v9237
        %9350 = vst [vmem:[%s435 + $0x168] sm:$0xff] %v9238
        %9351 = vst [vmem:[%s435 + $0x170] sm:$0xff] %v9239
        %9352 = vst [vmem:[%s435 + $0x178] sm:$0xff] %v9240
        %9353 = vst [vmem:[%s435 + $0x180] sm:$0xff] %v9241
        %9354 = vst [vmem:[%s435 + $0x188] sm:$0xff] %v9242
        %9355 = vst [vmem:[%s435 + $0x190] sm:$0xff] %v9243
        %9356 = vst [vmem:[%s435 + $0x198] sm:$0xff] %v9244
        %9357 = vst [vmem:[%s435 + $0x1a0] sm:$0xff] %v9245
        %9358 = vst [vmem:[%s435 + $0x1a8] sm:$0xff] %v9246
        %9359 = vst [vmem:[%s435 + $0x1b0] sm:$0xff] %v9247
        %9360 = vst [vmem:[%s435 + $0x1b8] sm:$0xff] %v9248
        %9361 = vst [vmem:[%s435 + $0x1c0] sm:$0xff] %v9249
        %9362 = vst [vmem:[%s435 + $0x1c8] sm:$0xff] %v9250
        %9363 = vst [vmem:[%s435 + $0x1d0] sm:$0xff] %v9251
        %9364 = vst [vmem:[%s435 + $0x1d8] sm:$0xff] %v9252
        %9365 = vst [vmem:[%s435 + $0x1e0] sm:$0xff] %v9253
        %9366 = vst [vmem:[%s435 + $0x1e8] sm:$0xff] %v9254
        %9367 = vst [vmem:[%s435 + $0x1f0] sm:$0xff] %v9255
        %9368 = vst [vmem:[%s435 + $0x1f8] sm:$0xff] %v9256
        %9369 = vst [vmem:[%s435 + $0x200] sm:$0xff] %v9257
        %9370 = vst [vmem:[%s435 + $0x208] sm:$0xff] %v9258
        %9371 = vst [vmem:[%s435 + $0x210] sm:$0xff] %v9259
        %9372 = vst [vmem:[%s435 + $0x218] sm:$0xff] %v9260
        %9373 = vst [vmem:[%s435 + $0x220] sm:$0xff] %v9261
        %9374 = vst [vmem:[%s435 + $0x228] sm:$0xff] %v9262
        %9375 = vst [vmem:[%s435 + $0x230] sm:$0xff] %v9263
        %9376 = vst [vmem:[%s435 + $0x238] sm:$0xff] %v9264
        %9377 = vst [vmem:[%s435 + $0x240] sm:$0xff] %v9265
        %9378 = vst [vmem:[%s435 + $0x248] sm:$0xff] %v9266
        %9379 = vst [vmem:[%s435 + $0x250] sm:$0xff] %v9267
        %9380 = vst [vmem:[%s435 + $0x258] sm:$0xff] %v9268
        %9381 = vst [vmem:[%s435 + $0x260] sm:$0xff] %v9269
        %9382 = vst [vmem:[%s435 + $0x268] sm:$0xff] %v9270
        %9383 = vst [vmem:[%s435 + $0x270] sm:$0xff] %v9271
        %9384 = vst [vmem:[%s435 + $0x278] sm:$0xff] %v9272
        %9385 = vst [vmem:[%s435 + $0x280] sm:$0xff] %v9273
        %9386 = vst [vmem:[%s435 + $0x288] sm:$0xff] %v9274
        %9387 = vst [vmem:[%s435 + $0x290] sm:$0xff] %v9275
        %9388 = vst [vmem:[%s435 + $0x298] sm:$0xff] %v9276
        %9389 = vst [vmem:[%s435 + $0x2a0] sm:$0xff] %v9277
        %9390 = vst [vmem:[%s435 + $0x2a8] sm:$0xff] %v9278
        %9391 = vst [vmem:[%s435 + $0x2b0] sm:$0xff] %v9279
        %9392 = vst [vmem:[%s435 + $0x2b8] sm:$0xff] %v9280
        %9393 = vst [vmem:[%s435 + $0x2c0] sm:$0xff] %v9281
        %9394 = vst [vmem:[%s435 + $0x2c8] sm:$0xff] %v9282
        %9395 = vst [vmem:[%s435 + $0x2d0] sm:$0xff] %v9283
        %9396 = vst [vmem:[%s435 + $0x2d8] sm:$0xff] %v9284
        %9397 = vst [vmem:[%s435 + $0x2e0] sm:$0xff] %v9285
        %9398 = vst [vmem:[%s435 + $0x2e8] sm:$0xff] %v9286
        %9399 = vst [vmem:[%s435 + $0x2f0] sm:$0xff] %v9287
        %9400 = vst [vmem:[%s435 + $0x2f8] sm:$0xff] %v9288
        %9401 = vst [vmem:[%s435 + $0x300] sm:$0xff] %v9289
        %9402 = vst [vmem:[%s435 + $0x308] sm:$0xff] %v9290
        %9403 = vst [vmem:[%s435 + $0x310] sm:$0xff] %v9291
        %9404 = vst [vmem:[%s435 + $0x318] sm:$0xff] %v9292
        %9405 = vst [vmem:[%s435 + $0x320] sm:$0xff] %v9293
        %9406 = vst [vmem:[%s435 + $0x328] sm:$0xff] %v9294
        %9407 = vst [vmem:[%s435 + $0x330] sm:$0xff] %v9295
        %9408 = vst [vmem:[%s435 + $0x338] sm:$0xff] %v9296
        %9409 = vst [vmem:[%s435 + $0x340] sm:$0xff] %v9297
        %9410 = vst [vmem:[%s435 + $0x348] sm:$0xff] %v9298
        %9411 = vst [vmem:[%s435 + $0x350] sm:$0xff] %v9299
        %9412 = vst [vmem:[%s435 + $0x358] sm:$0xff] %v9300
        %9413 = vst [vmem:[%s435 + $0x360] sm:$0xff] %v9301
        %9414 = vst [vmem:[%s435 + $0x368] sm:$0xff] %v9302
        %9415 = vst [vmem:[%s435 + $0x370] sm:$0xff] %v9303
        %9416 = vst [vmem:[%s435 + $0x378] sm:$0xff] %v9304
        %s9417 = sand.u32 %s230, 1
        %s9418 = scalar_lea.sflag [#allocation4], %s9417
        %s9419 = sand.u32 %s230, 1
        %s9420 = smul.addr %s9419, 896
        %s9421 = scalar_lea.vmem [#allocation16], %s9420
        // Predicated region
        $region89: #{tpu_custom_call.1} parent=55 // pred_check
          %p9422 = pneg %p240
        $region90: #{tpu_custom_call.1} parent=55 // pred_check_branch
          %9424 = sbr.rel (%p9422) target = $region92
        $region91: #{tpu_custom_call.1} parent=55 // pred_region
          %s9425 = smul.u32 16, %s28
          %s9427 = ssub.s32 14336, 14336
          %9428 = vsyncadd %s9418, %s9427
          %s9429 = smul.addr %s9425, 7
          %s9430 = smul.addr %s9429, 128
          %s9431 = scalar_lea.hbm %s9, %s9430
          %s9432 = sshll.u32 %s9421, 4
          %s9433 = int_to_ptr.vmem [resolvable:$true] %s9432
          %9438 = dma.vmem_to_hbm [thread:$0]  %s9433, 14336, %s9431, %s9418, 896, 896, 56
        $region92: #{tpu_custom_call.1} parent=55 // pred_fallthru
          _
      $region56: #{tpu_custom_call.1} parent=5 // pred_fallthru
        _
      %p9439 = scmp.le.s32.totalorder 2, %s23
      // Predicated region
      $region93: #{tpu_custom_call.1} parent=5 // pred_check
        %p9440 = pneg %p9439
      $region94: #{tpu_custom_call.1} parent=5 // pred_check_branch
        %9442 = sbr.rel (%p9440) target = $region96
      $region95: #{tpu_custom_call.1} parent=5 // pred_region
        %s9443 = ssub.s32 %s23, 2
        // Predicated region
        $region97: #{tpu_custom_call.1} parent=95 // pred_check
          %p9444 = pneg %p246
        $region98: #{tpu_custom_call.1} parent=95 // pred_check_branch
          %9446 = sbr.rel (%p9444) target = $region100
        $region99: #{tpu_custom_call.1} parent=95 // pred_region
          %s9447 = sand.u32 %s231, 1
          %s9448 = scalar_lea.sflag [#allocation4], %s9447
          %s9449 = sand.u32 %s231, 1
          %s9450 = smul.addr %s9449, 896
          %s9451 = scalar_lea.vmem [#allocation16], %s9450
          %9452 = dma.done %s9448, 14336
        $region100: #{tpu_custom_call.1} parent=95 // pred_fallthru
          _
      $region96: #{tpu_custom_call.1} parent=5 // pred_fallthru
        _
    $region6: #{tpu_custom_call.1} parent=1 // loop_footer
      %s27 = sadd.s32 1, %s23
    $region7: #{tpu_custom_call.1} parent=1 // loop_footer_branch
      %22 = sbr.rel target = $region3
    $region8: #{tpu_custom_call.1} parent=1 // loop_exit
      _
    %9453 = vsyncpa [#allocation3], 1
    %s9454 = scalar_lea.sflag [#allocation3], 1
    %9455 = vsyncpa %s9454, 1
    %9456 = vsyncpa [#allocation6], 1
    %9457 = vsyncpa [#allocation9], 1
    %9458 = vsyncpa [#allocation12], 1
    %9459 = vsyncpa [#allocation15], 1
    %9460 = vsyncpa [#allocation4], 1
    %s9461 = scalar_lea.sflag [#allocation4], 1
    %9462 = vsyncpa %s9461, 1

</llo_original>
